<compile_context>
chip_gen: v7x
topology: tpu7x:2x2x1
jax: 0.10.0
libtpu: 0.0.40
codegen_flags: <defaults>
</compile_context>

<pallas_src>
import functools

import numpy as np
import jax
import jax.numpy as jnp
from jax.experimental import pallas as pl
from jax.experimental.pallas import tpu as pltpu


# ----------------------------------------------------------------------------
# Pallas kernels
# ----------------------------------------------------------------------------
def _round_up(x, m):
    return (x + m - 1) // m * m


def _mm_single_kernel(*refs, relu, has_res):
    """out = act(A @ W + shift [+ residual]) — single K step (no accumulator)."""
    if has_res:
        a_ref, w_ref, b_ref, r_ref, o_ref = refs
    else:
        a_ref, w_ref, b_ref, o_ref = refs
        r_ref = None
    y = jnp.dot(a_ref[...], w_ref[...], preferred_element_type=jnp.float32)
    y = y + b_ref[...]
    if r_ref is not None:
        y = y + r_ref[...].astype(jnp.float32)
    if relu:
        y = jnp.maximum(y, 0.0)
    o_ref[...] = y.astype(o_ref.dtype)


def _mm_multi_kernel(*refs, relu, has_res):
    """Same, with a K grid axis.  First K step writes the accumulator directly."""
    if has_res:
        a_ref, w_ref, b_ref, r_ref, o_ref, acc_ref = refs
    else:
        a_ref, w_ref, b_ref, o_ref, acc_ref = refs
        r_ref = None
    k = pl.program_id(2)
    part = jnp.dot(a_ref[...], w_ref[...], preferred_element_type=jnp.float32)

    @pl.when(k == 0)
    def _():
        acc_ref[...] = part

    @pl.when(k > 0)
    def _():
        acc_ref[...] += part

    @pl.when(k == pl.num_programs(2) - 1)
    def _():
        y = acc_ref[...] + b_ref[...]
        if r_ref is not None:
            y = y + r_ref[...].astype(jnp.float32)
        if relu:
            y = jnp.maximum(y, 0.0)
        o_ref[...] = y.astype(o_ref.dtype)


def matmul_bias_act(a, w, shift, *, residual=None, relu=True):
    """A:(M,K) @ W:(K,N) + shift (+residual), optional ReLU.  bf16 MXU, f32 acc."""
    M, K = a.shape
    Kw, N = w.shape
    assert K == Kw, (K, Kw)

    a = a.astype(jnp.bfloat16)
    w = w.astype(jnp.bfloat16)
    shift = shift.astype(jnp.float32)

    Np = _round_up(N, 128)
    tn = min(256, Np)
    tm = 512 if M >= 512 else _round_up(M, 16)
    Mp = _round_up(M, tm)
    pad_m, pad_n = Mp - M, Np - N

    single_k = K <= 2048
    if single_k:
        tk, Kp = K, K
        grid = (Mp // tm, Np // tn)
    else:
        tk = 512
        Kp = _round_up(K, tk)
        grid = (Mp // tm, Np // tn, Kp // tk)

    a_p = a if (pad_m == 0 and Kp == K) else jnp.pad(a, ((0, pad_m), (0, Kp - K)))
    w_p = w if (pad_n == 0 and Kp == K) else jnp.pad(w, ((0, Kp - K), (0, pad_n)))
    b_p = (shift if pad_n == 0 else jnp.pad(shift, (0, pad_n))).reshape(1, Np)

    has_res = residual is not None
    args = [a_p, w_p, b_p]
    if has_res:
        r = residual.astype(jnp.bfloat16)
        r_p = r if (pad_m == 0 and pad_n == 0) else jnp.pad(
            r, ((0, pad_m), (0, pad_n)))
        args.append(r_p)

    if single_k:
        in_specs = [
            pl.BlockSpec((tm, Kp), lambda i, j: (i, 0)),
            pl.BlockSpec((Kp, tn), lambda i, j: (0, j)),
            pl.BlockSpec((1, tn), lambda i, j: (0, j)),
        ]
        if has_res:
            in_specs.append(pl.BlockSpec((tm, tn), lambda i, j: (i, j)))
        out_spec = pl.BlockSpec((tm, tn), lambda i, j: (i, j))
        kernel = functools.partial(_mm_single_kernel, relu=relu, has_res=has_res)
        scratch = []
        dims = ("parallel", "parallel")
    else:
        in_specs = [
            pl.BlockSpec((tm, tk), lambda i, j, k: (i, k)),
            pl.BlockSpec((tk, tn), lambda i, j, k: (k, j)),
            pl.BlockSpec((1, tn), lambda i, j, k: (0, j)),
        ]
        if has_res:
            in_specs.append(pl.BlockSpec((tm, tn), lambda i, j, k: (i, j)))
        out_spec = pl.BlockSpec((tm, tn), lambda i, j, k: (i, j))
        kernel = functools.partial(_mm_multi_kernel, relu=relu, has_res=has_res)
        scratch = [pltpu.VMEM((tm, tn), jnp.float32)]
        dims = ("parallel", "parallel", "arbitrary")

    out = pl.pallas_call(
        kernel,
        out_shape=jax.ShapeDtypeStruct((Mp, Np), jnp.bfloat16),
        grid_spec=pltpu.PrefetchScalarGridSpec(
            num_scalar_prefetch=0,
            grid=grid,
            in_specs=in_specs,
            out_specs=out_spec,
            scratch_shapes=scratch,
        ),
        compiler_params=pltpu.CompilerParams(dimension_semantics=dims),
    )(*args)
    return out[:M, :N]


def _pool_kernel(m_ref, x_ref, o_ref):
    o_ref[...] = jnp.dot(m_ref[...], x_ref[...],
                         preferred_element_type=jnp.float32).astype(o_ref.dtype)


def _adaptive_matrix(in_size, out_size):
    """Exact PyTorch AdaptiveAvgPool2d bin-averaging matrix (out_size, in_size)."""
    m = np.zeros((out_size, in_size), np.float32)
    for i in range(out_size):
        start = (i * in_size) // out_size
        end = -(-((i + 1) * in_size) // out_size)  # ceil
        m[i, start:end] = 1.0 / float(end - start)
    return m


def adaptive_avg_pool_nhwc(x, out_size):
    """x: (B,H,W,C) -> (B,P,P,C) via ONE matmul: pool_op(P*P,H*W) @ X(H*W,B*C)."""
    B, H, W, C = x.shape
    P = out_size
    pool_op = jnp.asarray(
        np.kron(_adaptive_matrix(H, P), _adaptive_matrix(W, P)), jnp.float32)
    xm = jnp.transpose(x, (1, 2, 0, 3)).reshape(H * W, B * C).astype(jnp.float32)
    out = pl.pallas_call(
        _pool_kernel,
        out_shape=jax.ShapeDtypeStruct((P * P, B * C), jnp.float32),
        grid=(1,),
        in_specs=[
            pl.BlockSpec((P * P, H * W), lambda b: (0, 0)),
            pl.BlockSpec((H * W, B * C), lambda b: (0, 0)),
        ],
        out_specs=pl.BlockSpec((P * P, B * C), lambda b: (0, 0)),
    )(pool_op, xm)
    return jnp.transpose(out.reshape(P, P, B, C), (2, 0, 1, 3))


# ----------------------------------------------------------------------------
# Conv / ResNet plumbing (data-movement glue in plain JAX; matmuls are Pallas)
# ----------------------------------------------------------------------------
def _im2col(x, kh, kw, stride, padding):
    """x: (B,H,W,C) -> patches (B,Ho,Wo,kh*kw*C).  All slice params are static."""
    B, H, W, C = x.shape
    if padding:
        x = jnp.pad(x, ((0, 0), (padding, padding), (padding, padding), (0, 0)))
    Ho = (H + 2 * padding - kh) // stride + 1
    Wo = (W + 2 * padding - kw) // stride + 1
    cols = []
    for i in range(kh):
        for j in range(kw):
            cols.append(x[:, i:i + stride * (Ho - 1) + 1:stride,
                          j:j + stride * (Wo - 1) + 1:stride, :])
    return jnp.concatenate(cols, axis=-1), Ho, Wo


def conv_block(x, p, c, *, relu=True, residual=None):
    """x NHWC bf16; p['w'] pre-packed (kh*kw*Cin, Cout) bf16 with BN scale folded."""
    kh, kw, stride, pad = c['kh'], c['kw'], c['stride'], c['pad']
    B = x.shape[0]
    if kh == 1 and kw == 1 and pad == 0:
        if stride > 1:
            x = x[:, ::stride, ::stride, :]
        _, Ho, Wo, Cin = x.shape
        A = x.reshape(B * Ho * Wo, Cin)
    else:
        patches, Ho, Wo = _im2col(x, kh, kw, stride, pad)
        A = patches.reshape(B * Ho * Wo, kh * kw * x.shape[-1])
    Cout = p['w'].shape[1]
    res = residual.reshape(B * Ho * Wo, Cout) if residual is not None else None
    out = matmul_bias_act(A, p['w'], p['shift'], residual=res, relu=relu)
    return out.reshape(B, Ho, Wo, Cout)


def max_pool_3x3_s2(x):
    # Stem 3x3/stride-2/pad-1 max-pool (tiny, not the hot path) -> plain JAX glue.
    init = jnp.asarray(-jnp.inf, dtype=x.dtype)
    return jax.lax.reduce_window(
        x, init, jax.lax.max,
        (1, 3, 3, 1), (1, 2, 2, 1),
        [(0, 0), (1, 1), (1, 1), (0, 0)])


def bottleneck(x, p, c):
    identity = x
    out = conv_block(x, p['conv1'], c['conv1'], relu=True)
    out = conv_block(out, p['conv2'], c['conv2'], relu=True)
    if 'downsample' in p:
        identity = conv_block(x, p['downsample'], c['downsample'], relu=False)
    # fused: relu(conv3(out)*scale + shift + identity) in the Pallas epilogue
    out = conv_block(out, p['conv3'], c['conv3'], relu=True, residual=identity)
    return out


def encoder_forward(images_nchw, params, *, config, encoded_image_size):
    # images are NCHW (PyTorch); transpose once to NHWC + bf16 for the kernels.
    x = jnp.transpose(images_nchw, (0, 2, 3, 1)).astype(jnp.bfloat16)
    x = conv_block(x, params['stem'], config['stem'], relu=True)
    x = max_pool_3x3_s2(x)
    for p_stage, c_stage in zip(params['layers'], config['layers']):
        for p_blk, c_blk in zip(p_stage, c_stage):
            x = bottleneck(x, p_blk, c_blk)
    # AdaptiveAvgPool2d((P,P)) + permute(0,2,3,1): NHWC output directly.
    return adaptive_avg_pool_nhwc(x, encoded_image_size)


# ----------------------------------------------------------------------------
# Deterministic synthetic parameters.
#  * BN folded into per-channel scale/shift; scale folded into the weight.
#  * weights pre-packed once to (kh*kw*Cin, Cout) bf16 (MXU-native dtype).
#  * static hyper-params (kh/kw/stride/pad) go into a separate Python `config`
#    tree so they never become tracers under jit.
# ----------------------------------------------------------------------------
class _KeyGen:
    def __init__(self, seed):
        self._key = jax.random.PRNGKey(seed)

    def __call__(self):
        self._key, k = jax.random.split(self._key)
        return k


def _make_conv(pg, cout, cin, kh, kw):
    w = 0.05 * jax.random.normal(pg(), (cout, cin, kh, kw), jnp.float32)
    scale = 1.0 + 0.1 * jax.random.normal(pg(), (cout,), jnp.float32)
    shift = 0.05 * jax.random.normal(pg(), (cout,), jnp.float32)
    wm = jnp.transpose(w, (2, 3, 1, 0)).reshape(kh * kw * cin, cout) * scale[None, :]
    return {'w': wm.astype(jnp.bfloat16), 'shift': shift}


def build_encoder(seed=0, base=8, blocks=(1, 1, 1, 1)):
    pg = _KeyGen(seed)
    params = {'stem': _make_conv(pg, base, 3, 7, 7)}
    config = {'stem': dict(kh=7, kw=7, stride=2, pad=3)}
    p_layers, c_layers = [], []
    in_ch = base
    for stage_idx, nblocks in enumerate(blocks):
        planes = base * (2 ** stage_idx)
        stage_stride = 1 if stage_idx == 0 else 2
        p_stage, c_stage = [], []
        for b in range(nblocks):
            s = stage_stride if b == 0 else 1
            p_blk = {
                'conv1': _make_conv(pg, planes, in_ch, 1, 1),
                'conv2': _make_conv(pg, planes, planes, 3, 3),
                'conv3': _make_conv(pg, planes * 4, planes, 1, 1),
            }
            c_blk = {
                'conv1': dict(kh=1, kw=1, stride=1, pad=0),
                'conv2': dict(kh=3, kw=3, stride=s, pad=1),
                'conv3': dict(kh=1, kw=1, stride=1, pad=0),
            }
            if s != 1 or in_ch != planes * 4:
                p_blk['downsample'] = _make_conv(pg, planes * 4, in_ch, 1, 1)
                c_blk['downsample'] = dict(kh=1, kw=1, stride=s, pad=0)
            in_ch = planes * 4
            p_stage.append(p_blk)
            c_stage.append(c_blk)
        p_layers.append(p_stage)
        c_layers.append(c_stage)
    params['layers'] = p_layers
    config['layers'] = c_layers
    return params, config, in_ch  # in_ch = final channel count


# ----------------------------------------------------------------------------
if __name__ == "__main__":
    B, IMG = 2, 64
    ENC_SIZE = 4  # small analogue of encoded_image_size=14

    key = jax.random.PRNGKey(0)
    images = jax.random.normal(key, (B, 3, IMG, IMG), jnp.float32)  # NCHW

    params, config, final_c = build_encoder(seed=0)

    fwd = jax.jit(functools.partial(encoder_forward,
                                    config=config,
                                    encoded_image_size=ENC_SIZE))
    out = fwd(images, params)
    out = jax.block_until_ready(out)

    assert out.shape == (B, ENC_SIZE, ENC_SIZE, final_c), out.shape
    assert out.dtype == jnp.float32
    assert bool(jnp.all(jnp.isfinite(out)))
    print("KERNEL_OK")
</pallas_src>

<mosaic_0001>
module attributes {stable_mosaic.version = 11 : i64} {
  func.func @_mm_single_kernel(%arg0: i32, %arg1: i32, %arg2: memref<512x147xbf16, #tpu.memory_space<vmem>>, %arg3: memref<147x128xbf16, #tpu.memory_space<vmem>>, %arg4: memref<1x128xf32, #tpu.memory_space<vmem>>, %arg5: memref<512x128xbf16, #tpu.memory_space<vmem>>) attributes {dimension_semantics = [#tpu.dimension_semantics<parallel>, #tpu.dimension_semantics<parallel>], iteration_bounds = array<i64: 4, 1>, scalar_prefetch = 0 : i64, scratch_operands = 0 : i64, tpu.core_type = #tpu.core_type<tc>, window_params = [{transform_indices = @transform_0, window_bounds = array<i64: 512, 147>}, {transform_indices = @transform_1, window_bounds = array<i64: 147, 128>}, {transform_indices = @transform_2, window_bounds = array<i64: 1, 128>}, {transform_indices = @transform_3, window_bounds = array<i64: 512, 128>}]} {
    %c0 = arith.constant 0 : index
    %c0_0 = arith.constant 0 : index
    %0 = vector.load %arg2[%c0, %c0_0] : memref<512x147xbf16, #tpu.memory_space<vmem>>, vector<512x147xbf16>
    %c0_1 = arith.constant 0 : index
    %c0_2 = arith.constant 0 : index
    %1 = vector.load %arg3[%c0_1, %c0_2] : memref<147x128xbf16, #tpu.memory_space<vmem>>, vector<147x128xbf16>
    %cst = arith.constant dense<0.000000e+00> : vector<512x128xf32>
    %2 = tpu.matmul %0, %1, %cst {dimension_numbers = #tpu.dot_dimension_numbers<[1], [0], [0], [1], [0, 0, 1, 1], [], []>} : vector<512x147xbf16>, vector<147x128xbf16>, vector<512x128xf32> -> vector<512x128xf32>
    %c0_3 = arith.constant 0 : index
    %c0_4 = arith.constant 0 : index
    %3 = vector.load %arg4[%c0_3, %c0_4] : memref<1x128xf32, #tpu.memory_space<vmem>>, vector<1x128xf32>
    %4 = vector.broadcast %3 : vector<1x128xf32> to vector<512x128xf32>
    %5 = arith.addf %2, %4 : vector<512x128xf32>
    %cst_5 = arith.constant 0.000000e+00 : f32
    %6 = vector.broadcast %cst_5 : f32 to vector<512x128xf32>
    %7 = arith.maximumf %5, %6 : vector<512x128xf32>
    %8 = arith.truncf %7 : vector<512x128xf32> to vector<512x128xbf16>
    %c0_6 = arith.constant 0 : index
    %c0_7 = arith.constant 0 : index
    %9 = vector.load %arg5[%c0_6, %c0_7] : memref<512x128xbf16, #tpu.memory_space<vmem>>, vector<512x128xbf16>
    tpu.vector_store %arg5[%c0_6, %c0_7], %8 {strides = array<i32>} : memref<512x128xbf16, #tpu.memory_space<vmem>>, vector<512x128xbf16>,
    return
  }
  func.func @transform_0(%arg0: i32, %arg1: i32) -> (i32, i32) {
    %c0_i32 = arith.constant 0 : i32
    %c0_i32_0 = arith.constant 0 : i32
    return %arg0, %c0_i32 : i32, i32
  }
  func.func @transform_1(%arg0: i32, %arg1: i32) -> (i32, i32) {
    %c0_i32 = arith.constant 0 : i32
    %c0_i32_0 = arith.constant 0 : i32
    return %c0_i32, %arg1 : i32, i32
  }
  func.func @transform_2(%arg0: i32, %arg1: i32) -> (i32, i32) {
    %c0_i32 = arith.constant 0 : i32
    %c0_i32_0 = arith.constant 0 : i32
    return %c0_i32, %arg1 : i32, i32
  }
  func.func @transform_3(%arg0: i32, %arg1: i32) -> (i32, i32) {
    %c0_i32 = arith.constant 0 : i32
    return %arg0, %arg1 : i32, i32
  }
}

module attributes {stable_mosaic.version = 11 : i64} {
  func.func @_mm_single_kernel(%arg0: i32, %arg1: i32, %arg2: memref<512x8xbf16, #tpu.memory_space<vmem>>, %arg3: memref<8x128xbf16, #tpu.memory_space<vmem>>, %arg4: memref<1x128xf32, #tpu.memory_space<vmem>>, %arg5: memref<512x128xbf16, #tpu.memory_space<vmem>>) attributes {dimension_semantics = [#tpu.dimension_semantics<parallel>, #tpu.dimension_semantics<parallel>], iteration_bounds = array<i64: 1, 1>, scalar_prefetch = 0 : i64, scratch_operands = 0 : i64, tpu.core_type = #tpu.core_type<tc>, window_params = [{transform_indices = @transform_0, window_bounds = array<i64: 512, 8>}, {transform_indices = @transform_1, window_bounds = array<i64: 8, 128>}, {transform_indices = @transform_2, window_bounds = array<i64: 1, 128>}, {transform_indices = @transform_3, window_bounds = array<i64: 512, 128>}]} {
    %c0 = arith.constant 0 : index
    %c0_0 = arith.constant 0 : index
    %0 = vector.load %arg2[%c0, %c0_0] : memref<512x8xbf16, #tpu.memory_space<vmem>>, vector<512x8xbf16>
    %c0_1 = arith.constant 0 : index
    %c0_2 = arith.constant 0 : index
    %1 = vector.load %arg3[%c0_1, %c0_2] : memref<8x128xbf16, #tpu.memory_space<vmem>>, vector<8x128xbf16>
    %cst = arith.constant dense<0.000000e+00> : vector<512x128xf32>
    %2 = tpu.matmul %0, %1, %cst {dimension_numbers = #tpu.dot_dimension_numbers<[1], [0], [0], [1], [0, 0, 1, 1], [], []>} : vector<512x8xbf16>, vector<8x128xbf16>, vector<512x128xf32> -> vector<512x128xf32>
    %c0_3 = arith.constant 0 : index
    %c0_4 = arith.constant 0 : index
    %3 = vector.load %arg4[%c0_3, %c0_4] : memref<1x128xf32, #tpu.memory_space<vmem>>, vector<1x128xf32>
    %4 = vector.broadcast %3 : vector<1x128xf32> to vector<512x128xf32>
    %5 = arith.addf %2, %4 : vector<512x128xf32>
    %cst_5 = arith.constant 0.000000e+00 : f32
    %6 = vector.broadcast %cst_5 : f32 to vector<512x128xf32>
    %7 = arith.maximumf %5, %6 : vector<512x128xf32>
    %8 = arith.truncf %7 : vector<512x128xf32> to vector<512x128xbf16>
    %c0_6 = arith.constant 0 : index
    %c0_7 = arith.constant 0 : index
    %9 = vector.load %arg5[%c0_6, %c0_7] : memref<512x128xbf16, #tpu.memory_space<vmem>>, vector<512x128xbf16>
    tpu.vector_store %arg5[%c0_6, %c0_7], %8 {strides = array<i32>} : memref<512x128xbf16, #tpu.memory_space<vmem>>, vector<512x128xbf16>,
    return
  }
  func.func @transform_0(%arg0: i32, %arg1: i32) -> (i32, i32) {
    %c0_i32 = arith.constant 0 : i32
    %c0_i32_0 = arith.constant 0 : i32
    return %arg0, %c0_i32 : i32, i32
  }
  func.func @transform_1(%arg0: i32, %arg1: i32) -> (i32, i32) {
    %c0_i32 = arith.constant 0 : i32
    %c0_i32_0 = arith.constant 0 : i32
    return %c0_i32, %arg1 : i32, i32
  }
  func.func @transform_2(%arg0: i32, %arg1: i32) -> (i32, i32) {
    %c0_i32 = arith.constant 0 : i32
    %c0_i32_0 = arith.constant 0 : i32
    return %c0_i32, %arg1 : i32, i32
  }
  func.func @transform_3(%arg0: i32, %arg1: i32) -> (i32, i32) {
    %c0_i32 = arith.constant 0 : i32
    return %arg0, %arg1 : i32, i32
  }
}

module attributes {stable_mosaic.version = 11 : i64} {
  func.func @_mm_single_kernel(%arg0: i32, %arg1: i32, %arg2: memref<512x72xbf16, #tpu.memory_space<vmem>>, %arg3: memref<72x128xbf16, #tpu.memory_space<vmem>>, %arg4: memref<1x128xf32, #tpu.memory_space<vmem>>, %arg5: memref<512x128xbf16, #tpu.memory_space<vmem>>) attributes {dimension_semantics = [#tpu.dimension_semantics<parallel>, #tpu.dimension_semantics<parallel>], iteration_bounds = array<i64: 1, 1>, scalar_prefetch = 0 : i64, scratch_operands = 0 : i64, tpu.core_type = #tpu.core_type<tc>, window_params = [{transform_indices = @transform_0, window_bounds = array<i64: 512, 72>}, {transform_indices = @transform_1, window_bounds = array<i64: 72, 128>}, {transform_indices = @transform_2, window_bounds = array<i64: 1, 128>}, {transform_indices = @transform_3, window_bounds = array<i64: 512, 128>}]} {
    %c0 = arith.constant 0 : index
    %c0_0 = arith.constant 0 : index
    %0 = vector.load %arg2[%c0, %c0_0] : memref<512x72xbf16, #tpu.memory_space<vmem>>, vector<512x72xbf16>
    %c0_1 = arith.constant 0 : index
    %c0_2 = arith.constant 0 : index
    %1 = vector.load %arg3[%c0_1, %c0_2] : memref<72x128xbf16, #tpu.memory_space<vmem>>, vector<72x128xbf16>
    %cst = arith.constant dense<0.000000e+00> : vector<512x128xf32>
    %2 = tpu.matmul %0, %1, %cst {dimension_numbers = #tpu.dot_dimension_numbers<[1], [0], [0], [1], [0, 0, 1, 1], [], []>} : vector<512x72xbf16>, vector<72x128xbf16>, vector<512x128xf32> -> vector<512x128xf32>
    %c0_3 = arith.constant 0 : index
    %c0_4 = arith.constant 0 : index
    %3 = vector.load %arg4[%c0_3, %c0_4] : memref<1x128xf32, #tpu.memory_space<vmem>>, vector<1x128xf32>
    %4 = vector.broadcast %3 : vector<1x128xf32> to vector<512x128xf32>
    %5 = arith.addf %2, %4 : vector<512x128xf32>
    %cst_5 = arith.constant 0.000000e+00 : f32
    %6 = vector.broadcast %cst_5 : f32 to vector<512x128xf32>
    %7 = arith.maximumf %5, %6 : vector<512x128xf32>
    %8 = arith.truncf %7 : vector<512x128xf32> to vector<512x128xbf16>
    %c0_6 = arith.constant 0 : index
    %c0_7 = arith.constant 0 : index
    %9 = vector.load %arg5[%c0_6, %c0_7] : memref<512x128xbf16, #tpu.memory_space<vmem>>, vector<512x128xbf16>
    tpu.vector_store %arg5[%c0_6, %c0_7], %8 {strides = array<i32>} : memref<512x128xbf16, #tpu.memory_space<vmem>>, vector<512x128xbf16>,
    return
  }
  func.func @transform_0(%arg0: i32, %arg1: i32) -> (i32, i32) {
    %c0_i32 = arith.constant 0 : i32
    %c0_i32_0 = arith.constant 0 : i32
    return %arg0, %c0_i32 : i32, i32
  }
  func.func @transform_1(%arg0: i32, %arg1: i32) -> (i32, i32) {
    %c0_i32 = arith.constant 0 : i32
    %c0_i32_0 = arith.constant 0 : i32
    return %c0_i32, %arg1 : i32, i32
  }
  func.func @transform_2(%arg0: i32, %arg1: i32) -> (i32, i32) {
    %c0_i32 = arith.constant 0 : i32
    %c0_i32_0 = arith.constant 0 : i32
    return %c0_i32, %arg1 : i32, i32
  }
  func.func @transform_3(%arg0: i32, %arg1: i32) -> (i32, i32) {
    %c0_i32 = arith.constant 0 : i32
    return %arg0, %arg1 : i32, i32
  }
}

module attributes {stable_mosaic.version = 11 : i64} {
  func.func @_mm_single_kernel(%arg0: i32, %arg1: i32, %arg2: memref<512x8xbf16, #tpu.memory_space<vmem>>, %arg3: memref<8x128xbf16, #tpu.memory_space<vmem>>, %arg4: memref<1x128xf32, #tpu.memory_space<vmem>>, %arg5: memref<512x128xbf16, #tpu.memory_space<vmem>>) attributes {dimension_semantics = [#tpu.dimension_semantics<parallel>, #tpu.dimension_semantics<parallel>], iteration_bounds = array<i64: 1, 1>, scalar_prefetch = 0 : i64, scratch_operands = 0 : i64, tpu.core_type = #tpu.core_type<tc>, window_params = [{transform_indices = @transform_0, window_bounds = array<i64: 512, 8>}, {transform_indices = @transform_1, window_bounds = array<i64: 8, 128>}, {transform_indices = @transform_2, window_bounds = array<i64: 1, 128>}, {transform_indices = @transform_3, window_bounds = array<i64: 512, 128>}]} {
    %c0 = arith.constant 0 : index
    %c0_0 = arith.constant 0 : index
    %0 = vector.load %arg2[%c0, %c0_0] : memref<512x8xbf16, #tpu.memory_space<vmem>>, vector<512x8xbf16>
    %c0_1 = arith.constant 0 : index
    %c0_2 = arith.constant 0 : index
    %1 = vector.load %arg3[%c0_1, %c0_2] : memref<8x128xbf16, #tpu.memory_space<vmem>>, vector<8x128xbf16>
    %cst = arith.constant dense<0.000000e+00> : vector<512x128xf32>
    %2 = tpu.matmul %0, %1, %cst {dimension_numbers = #tpu.dot_dimension_numbers<[1], [0], [0], [1], [0, 0, 1, 1], [], []>} : vector<512x8xbf16>, vector<8x128xbf16>, vector<512x128xf32> -> vector<512x128xf32>
    %c0_3 = arith.constant 0 : index
    %c0_4 = arith.constant 0 : index
    %3 = vector.load %arg4[%c0_3, %c0_4] : memref<1x128xf32, #tpu.memory_space<vmem>>, vector<1x128xf32>
    %4 = vector.broadcast %3 : vector<1x128xf32> to vector<512x128xf32>
    %5 = arith.addf %2, %4 : vector<512x128xf32>
    %6 = arith.truncf %5 : vector<512x128xf32> to vector<512x128xbf16>
    %c0_5 = arith.constant 0 : index
    %c0_6 = arith.constant 0 : index
    %7 = vector.load %arg5[%c0_5, %c0_6] : memref<512x128xbf16, #tpu.memory_space<vmem>>, vector<512x128xbf16>
    tpu.vector_store %arg5[%c0_5, %c0_6], %6 {strides = array<i32>} : memref<512x128xbf16, #tpu.memory_space<vmem>>, vector<512x128xbf16>,
    return
  }
  func.func @transform_0(%arg0: i32, %arg1: i32) -> (i32, i32) {
    %c0_i32 = arith.constant 0 : i32
    %c0_i32_0 = arith.constant 0 : i32
    return %arg0, %c0_i32 : i32, i32
  }
  func.func @transform_1(%arg0: i32, %arg1: i32) -> (i32, i32) {
    %c0_i32 = arith.constant 0 : i32
    %c0_i32_0 = arith.constant 0 : i32
    return %c0_i32, %arg1 : i32, i32
  }
  func.func @transform_2(%arg0: i32, %arg1: i32) -> (i32, i32) {
    %c0_i32 = arith.constant 0 : i32
    %c0_i32_0 = arith.constant 0 : i32
    return %c0_i32, %arg1 : i32, i32
  }
  func.func @transform_3(%arg0: i32, %arg1: i32) -> (i32, i32) {
    %c0_i32 = arith.constant 0 : i32
    return %arg0, %arg1 : i32, i32
  }
}

module attributes {stable_mosaic.version = 11 : i64} {
  func.func @_mm_single_kernel(%arg0: i32, %arg1: i32, %arg2: memref<512x8xbf16, #tpu.memory_space<vmem>>, %arg3: memref<8x128xbf16, #tpu.memory_space<vmem>>, %arg4: memref<1x128xf32, #tpu.memory_space<vmem>>, %arg5: memref<512x128xbf16, #tpu.memory_space<vmem>>, %arg6: memref<512x128xbf16, #tpu.memory_space<vmem>>) attributes {dimension_semantics = [#tpu.dimension_semantics<parallel>, #tpu.dimension_semantics<parallel>], iteration_bounds = array<i64: 1, 1>, scalar_prefetch = 0 : i64, scratch_operands = 0 : i64, tpu.core_type = #tpu.core_type<tc>, window_params = [{transform_indices = @transform_0, window_bounds = array<i64: 512, 8>}, {transform_indices = @transform_1, window_bounds = array<i64: 8, 128>}, {transform_indices = @transform_2, window_bounds = array<i64: 1, 128>}, {transform_indices = @transform_3, window_bounds = array<i64: 512, 128>}, {transform_indices = @transform_4, window_bounds = array<i64: 512, 128>}]} {
    %c0 = arith.constant 0 : index
    %c0_0 = arith.constant 0 : index
    %0 = vector.load %arg2[%c0, %c0_0] : memref<512x8xbf16, #tpu.memory_space<vmem>>, vector<512x8xbf16>
    %c0_1 = arith.constant 0 : index
    %c0_2 = arith.constant 0 : index
    %1 = vector.load %arg3[%c0_1, %c0_2] : memref<8x128xbf16, #tpu.memory_space<vmem>>, vector<8x128xbf16>
    %cst = arith.constant dense<0.000000e+00> : vector<512x128xf32>
    %2 = tpu.matmul %0, %1, %cst {dimension_numbers = #tpu.dot_dimension_numbers<[1], [0], [0], [1], [0, 0, 1, 1], [], []>} : vector<512x8xbf16>, vector<8x128xbf16>, vector<512x128xf32> -> vector<512x128xf32>
    %c0_3 = arith.constant 0 : index
    %c0_4 = arith.constant 0 : index
    %3 = vector.load %arg4[%c0_3, %c0_4] : memref<1x128xf32, #tpu.memory_space<vmem>>, vector<1x128xf32>
    %4 = vector.broadcast %3 : vector<1x128xf32> to vector<512x128xf32>
    %5 = arith.addf %2, %4 : vector<512x128xf32>
    %c0_5 = arith.constant 0 : index
    %c0_6 = arith.constant 0 : index
    %6 = vector.load %arg5[%c0_5, %c0_6] : memref<512x128xbf16, #tpu.memory_space<vmem>>, vector<512x128xbf16>
    %7 = arith.extf %6 : vector<512x128xbf16> to vector<512x128xf32>
    %8 = arith.addf %5, %7 : vector<512x128xf32>
    %cst_7 = arith.constant 0.000000e+00 : f32
    %9 = vector.broadcast %cst_7 : f32 to vector<512x128xf32>
    %10 = arith.maximumf %8, %9 : vector<512x128xf32>
    %11 = arith.truncf %10 : vector<512x128xf32> to vector<512x128xbf16>
    %c0_8 = arith.constant 0 : index
    %c0_9 = arith.constant 0 : index
    %12 = vector.load %arg6[%c0_8, %c0_9] : memref<512x128xbf16, #tpu.memory_space<vmem>>, vector<512x128xbf16>
    tpu.vector_store %arg6[%c0_8, %c0_9], %11 {strides = array<i32>} : memref<512x128xbf16, #tpu.memory_space<vmem>>, vector<512x128xbf16>,
    return
  }
  func.func @transform_0(%arg0: i32, %arg1: i32) -> (i32, i32) {
    %c0_i32 = arith.constant 0 : i32
    %c0_i32_0 = arith.constant 0 : i32
    return %arg0, %c0_i32 : i32, i32
  }
  func.func @transform_1(%arg0: i32, %arg1: i32) -> (i32, i32) {
    %c0_i32 = arith.constant 0 : i32
    %c0_i32_0 = arith.constant 0 : i32
    return %c0_i32, %arg1 : i32, i32
  }
  func.func @transform_2(%arg0: i32, %arg1: i32) -> (i32, i32) {
    %c0_i32 = arith.constant 0 : i32
    %c0_i32_0 = arith.constant 0 : i32
    return %c0_i32, %arg1 : i32, i32
  }
  func.func @transform_3(%arg0: i32, %arg1: i32) -> (i32, i32) {
    %c0_i32 = arith.constant 0 : i32
    return %arg0, %arg1 : i32, i32
  }
  func.func @transform_4(%arg0: i32, %arg1: i32) -> (i32, i32) {
    %c0_i32 = arith.constant 0 : i32
    return %arg0, %arg1 : i32, i32
  }
}

module attributes {stable_mosaic.version = 11 : i64} {
  func.func @_mm_single_kernel(%arg0: i32, %arg1: i32, %arg2: memref<512x32xbf16, #tpu.memory_space<vmem>>, %arg3: memref<32x128xbf16, #tpu.memory_space<vmem>>, %arg4: memref<1x128xf32, #tpu.memory_space<vmem>>, %arg5: memref<512x128xbf16, #tpu.memory_space<vmem>>) attributes {dimension_semantics = [#tpu.dimension_semantics<parallel>, #tpu.dimension_semantics<parallel>], iteration_bounds = array<i64: 1, 1>, scalar_prefetch = 0 : i64, scratch_operands = 0 : i64, tpu.core_type = #tpu.core_type<tc>, window_params = [{transform_indices = @transform_0, window_bounds = array<i64: 512, 32>}, {transform_indices = @transform_1, window_bounds = array<i64: 32, 128>}, {transform_indices = @transform_2, window_bounds = array<i64: 1, 128>}, {transform_indices = @transform_3, window_bounds = array<i64: 512, 128>}]} {
    %c0 = arith.constant 0 : index
    %c0_0 = arith.constant 0 : index
    %0 = vector.load %arg2[%c0, %c0_0] : memref<512x32xbf16, #tpu.memory_space<vmem>>, vector<512x32xbf16>
    %c0_1 = arith.constant 0 : index
    %c0_2 = arith.constant 0 : index
    %1 = vector.load %arg3[%c0_1, %c0_2] : memref<32x128xbf16, #tpu.memory_space<vmem>>, vector<32x128xbf16>
    %cst = arith.constant dense<0.000000e+00> : vector<512x128xf32>
    %2 = tpu.matmul %0, %1, %cst {dimension_numbers = #tpu.dot_dimension_numbers<[1], [0], [0], [1], [0, 0, 1, 1], [], []>} : vector<512x32xbf16>, vector<32x128xbf16>, vector<512x128xf32> -> vector<512x128xf32>
    %c0_3 = arith.constant 0 : index
    %c0_4 = arith.constant 0 : index
    %3 = vector.load %arg4[%c0_3, %c0_4] : memref<1x128xf32, #tpu.memory_space<vmem>>, vector<1x128xf32>
    %4 = vector.broadcast %3 : vector<1x128xf32> to vector<512x128xf32>
    %5 = arith.addf %2, %4 : vector<512x128xf32>
    %cst_5 = arith.constant 0.000000e+00 : f32
    %6 = vector.broadcast %cst_5 : f32 to vector<512x128xf32>
    %7 = arith.maximumf %5, %6 : vector<512x128xf32>
    %8 = arith.truncf %7 : vector<512x128xf32> to vector<512x128xbf16>
    %c0_6 = arith.constant 0 : index
    %c0_7 = arith.constant 0 : index
    %9 = vector.load %arg5[%c0_6, %c0_7] : memref<512x128xbf16, #tpu.memory_space<vmem>>, vector<512x128xbf16>
    tpu.vector_store %arg5[%c0_6, %c0_7], %8 {strides = array<i32>} : memref<512x128xbf16, #tpu.memory_space<vmem>>, vector<512x128xbf16>,
    return
  }
  func.func @transform_0(%arg0: i32, %arg1: i32) -> (i32, i32) {
    %c0_i32 = arith.constant 0 : i32
    %c0_i32_0 = arith.constant 0 : i32
    return %arg0, %c0_i32 : i32, i32
  }
  func.func @transform_1(%arg0: i32, %arg1: i32) -> (i32, i32) {
    %c0_i32 = arith.constant 0 : i32
    %c0_i32_0 = arith.constant 0 : i32
    return %c0_i32, %arg1 : i32, i32
  }
  func.func @transform_2(%arg0: i32, %arg1: i32) -> (i32, i32) {
    %c0_i32 = arith.constant 0 : i32
    %c0_i32_0 = arith.constant 0 : i32
    return %c0_i32, %arg1 : i32, i32
  }
  func.func @transform_3(%arg0: i32, %arg1: i32) -> (i32, i32) {
    %c0_i32 = arith.constant 0 : i32
    return %arg0, %arg1 : i32, i32
  }
}

module attributes {stable_mosaic.version = 11 : i64} {
  func.func @_mm_single_kernel(%arg0: i32, %arg1: i32, %arg2: memref<128x32xbf16, #tpu.memory_space<vmem>>, %arg3: memref<32x128xbf16, #tpu.memory_space<vmem>>, %arg4: memref<1x128xf32, #tpu.memory_space<vmem>>, %arg5: memref<128x128xbf16, #tpu.memory_space<vmem>>) attributes {dimension_semantics = [#tpu.dimension_semantics<parallel>, #tpu.dimension_semantics<parallel>], iteration_bounds = array<i64: 1, 1>, scalar_prefetch = 0 : i64, scratch_operands = 0 : i64, tpu.core_type = #tpu.core_type<tc>, window_params = [{transform_indices = @transform_0, window_bounds = array<i64: 128, 32>}, {transform_indices = @transform_1, window_bounds = array<i64: 32, 128>}, {transform_indices = @transform_2, window_bounds = array<i64: 1, 128>}, {transform_indices = @transform_3, window_bounds = array<i64: 128, 128>}]} {
    %c0 = arith.constant 0 : index
    %c0_0 = arith.constant 0 : index
    %0 = vector.load %arg2[%c0, %c0_0] : memref<128x32xbf16, #tpu.memory_space<vmem>>, vector<128x32xbf16>
    %c0_1 = arith.constant 0 : index
    %c0_2 = arith.constant 0 : index
    %1 = vector.load %arg3[%c0_1, %c0_2] : memref<32x128xbf16, #tpu.memory_space<vmem>>, vector<32x128xbf16>
    %cst = arith.constant dense<0.000000e+00> : vector<128x128xf32>
    %2 = tpu.matmul %0, %1, %cst {dimension_numbers = #tpu.dot_dimension_numbers<[1], [0], [0], [1], [0, 0, 1, 1], [], []>} : vector<128x32xbf16>, vector<32x128xbf16>, vector<128x128xf32> -> vector<128x128xf32>
    %c0_3 = arith.constant 0 : index
    %c0_4 = arith.constant 0 : index
    %3 = vector.load %arg4[%c0_3, %c0_4] : memref<1x128xf32, #tpu.memory_space<vmem>>, vector<1x128xf32>
    %4 = vector.broadcast %3 : vector<1x128xf32> to vector<128x128xf32>
    %5 = arith.addf %2, %4 : vector<128x128xf32>
    %6 = arith.truncf %5 : vector<128x128xf32> to vector<128x128xbf16>
    %c0_5 = arith.constant 0 : index
    %c0_6 = arith.constant 0 : index
    %7 = vector.load %arg5[%c0_5, %c0_6] : memref<128x128xbf16, #tpu.memory_space<vmem>>, vector<128x128xbf16>
    tpu.vector_store %arg5[%c0_5, %c0_6], %6 {strides = array<i32>} : memref<128x128xbf16, #tpu.memory_space<vmem>>, vector<128x128xbf16>,
    return
  }
  func.func @transform_0(%arg0: i32, %arg1: i32) -> (i32, i32) {
    %c0_i32 = arith.constant 0 : i32
    %c0_i32_0 = arith.constant 0 : i32
    return %arg0, %c0_i32 : i32, i32
  }
  func.func @transform_1(%arg0: i32, %arg1: i32) -> (i32, i32) {
    %c0_i32 = arith.constant 0 : i32
    %c0_i32_0 = arith.constant 0 : i32
    return %c0_i32, %arg1 : i32, i32
  }
  func.func @transform_2(%arg0: i32, %arg1: i32) -> (i32, i32) {
    %c0_i32 = arith.constant 0 : i32
    %c0_i32_0 = arith.constant 0 : i32
    return %c0_i32, %arg1 : i32, i32
  }
  func.func @transform_3(%arg0: i32, %arg1: i32) -> (i32, i32) {
    %c0_i32 = arith.constant 0 : i32
    return %arg0, %arg1 : i32, i32
  }
}

module attributes {stable_mosaic.version = 11 : i64} {
  func.func @_mm_single_kernel(%arg0: i32, %arg1: i32, %arg2: memref<128x144xbf16, #tpu.memory_space<vmem>>, %arg3: memref<144x128xbf16, #tpu.memory_space<vmem>>, %arg4: memref<1x128xf32, #tpu.memory_space<vmem>>, %arg5: memref<128x128xbf16, #tpu.memory_space<vmem>>) attributes {dimension_semantics = [#tpu.dimension_semantics<parallel>, #tpu.dimension_semantics<parallel>], iteration_bounds = array<i64: 1, 1>, scalar_prefetch = 0 : i64, scratch_operands = 0 : i64, tpu.core_type = #tpu.core_type<tc>, window_params = [{transform_indices = @transform_0, window_bounds = array<i64: 128, 144>}, {transform_indices = @transform_1, window_bounds = array<i64: 144, 128>}, {transform_indices = @transform_2, window_bounds = array<i64: 1, 128>}, {transform_indices = @transform_3, window_bounds = array<i64: 128, 128>}]} {
    %c0 = arith.constant 0 : index
    %c0_0 = arith.constant 0 : index
    %0 = vector.load %arg2[%c0, %c0_0] : memref<128x144xbf16, #tpu.memory_space<vmem>>, vector<128x144xbf16>
    %c0_1 = arith.constant 0 : index
    %c0_2 = arith.constant 0 : index
    %1 = vector.load %arg3[%c0_1, %c0_2] : memref<144x128xbf16, #tpu.memory_space<vmem>>, vector<144x128xbf16>
    %cst = arith.constant dense<0.000000e+00> : vector<128x128xf32>
    %2 = tpu.matmul %0, %1, %cst {dimension_numbers = #tpu.dot_dimension_numbers<[1], [0], [0], [1], [0, 0, 1, 1], [], []>} : vector<128x144xbf16>, vector<144x128xbf16>, vector<128x128xf32> -> vector<128x128xf32>
    %c0_3 = arith.constant 0 : index
    %c0_4 = arith.constant 0 : index
    %3 = vector.load %arg4[%c0_3, %c0_4] : memref<1x128xf32, #tpu.memory_space<vmem>>, vector<1x128xf32>
    %4 = vector.broadcast %3 : vector<1x128xf32> to vector<128x128xf32>
    %5 = arith.addf %2, %4 : vector<128x128xf32>
    %cst_5 = arith.constant 0.000000e+00 : f32
    %6 = vector.broadcast %cst_5 : f32 to vector<128x128xf32>
    %7 = arith.maximumf %5, %6 : vector<128x128xf32>
    %8 = arith.truncf %7 : vector<128x128xf32> to vector<128x128xbf16>
    %c0_6 = arith.constant 0 : index
    %c0_7 = arith.constant 0 : index
    %9 = vector.load %arg5[%c0_6, %c0_7] : memref<128x128xbf16, #tpu.memory_space<vmem>>, vector<128x128xbf16>
    tpu.vector_store %arg5[%c0_6, %c0_7], %8 {strides = array<i32>} : memref<128x128xbf16, #tpu.memory_space<vmem>>, vector<128x128xbf16>,
    return
  }
  func.func @transform_0(%arg0: i32, %arg1: i32) -> (i32, i32) {
    %c0_i32 = arith.constant 0 : i32
    %c0_i32_0 = arith.constant 0 : i32
    return %arg0, %c0_i32 : i32, i32
  }
  func.func @transform_1(%arg0: i32, %arg1: i32) -> (i32, i32) {
    %c0_i32 = arith.constant 0 : i32
    %c0_i32_0 = arith.constant 0 : i32
    return %c0_i32, %arg1 : i32, i32
  }
  func.func @transform_2(%arg0: i32, %arg1: i32) -> (i32, i32) {
    %c0_i32 = arith.constant 0 : i32
    %c0_i32_0 = arith.constant 0 : i32
    return %c0_i32, %arg1 : i32, i32
  }
  func.func @transform_3(%arg0: i32, %arg1: i32) -> (i32, i32) {
    %c0_i32 = arith.constant 0 : i32
    return %arg0, %arg1 : i32, i32
  }
}

module attributes {stable_mosaic.version = 11 : i64} {
  func.func @_mm_single_kernel(%arg0: i32, %arg1: i32, %arg2: memref<128x16xbf16, #tpu.memory_space<vmem>>, %arg3: memref<16x128xbf16, #tpu.memory_space<vmem>>, %arg4: memref<1x128xf32, #tpu.memory_space<vmem>>, %arg5: memref<128x128xbf16, #tpu.memory_space<vmem>>, %arg6: memref<128x128xbf16, #tpu.memory_space<vmem>>) attributes {dimension_semantics = [#tpu.dimension_semantics<parallel>, #tpu.dimension_semantics<parallel>], iteration_bounds = array<i64: 1, 1>, scalar_prefetch = 0 : i64, scratch_operands = 0 : i64, tpu.core_type = #tpu.core_type<tc>, window_params = [{transform_indices = @transform_0, window_bounds = array<i64: 128, 16>}, {transform_indices = @transform_1, window_bounds = array<i64: 16, 128>}, {transform_indices = @transform_2, window_bounds = array<i64: 1, 128>}, {transform_indices = @transform_3, window_bounds = array<i64: 128, 128>}, {transform_indices = @transform_4, window_bounds = array<i64: 128, 128>}]} {
    %c0 = arith.constant 0 : index
    %c0_0 = arith.constant 0 : index
    %0 = vector.load %arg2[%c0, %c0_0] : memref<128x16xbf16, #tpu.memory_space<vmem>>, vector<128x16xbf16>
    %c0_1 = arith.constant 0 : index
    %c0_2 = arith.constant 0 : index
    %1 = vector.load %arg3[%c0_1, %c0_2] : memref<16x128xbf16, #tpu.memory_space<vmem>>, vector<16x128xbf16>
    %cst = arith.constant dense<0.000000e+00> : vector<128x128xf32>
    %2 = tpu.matmul %0, %1, %cst {dimension_numbers = #tpu.dot_dimension_numbers<[1], [0], [0], [1], [0, 0, 1, 1], [], []>} : vector<128x16xbf16>, vector<16x128xbf16>, vector<128x128xf32> -> vector<128x128xf32>
    %c0_3 = arith.constant 0 : index
    %c0_4 = arith.constant 0 : index
    %3 = vector.load %arg4[%c0_3, %c0_4] : memref<1x128xf32, #tpu.memory_space<vmem>>, vector<1x128xf32>
    %4 = vector.broadcast %3 : vector<1x128xf32> to vector<128x128xf32>
    %5 = arith.addf %2, %4 : vector<128x128xf32>
    %c0_5 = arith.constant 0 : index
    %c0_6 = arith.constant 0 : index
    %6 = vector.load %arg5[%c0_5, %c0_6] : memref<128x128xbf16, #tpu.memory_space<vmem>>, vector<128x128xbf16>
    %7 = arith.extf %6 : vector<128x128xbf16> to vector<128x128xf32>
    %8 = arith.addf %5, %7 : vector<128x128xf32>
    %cst_7 = arith.constant 0.000000e+00 : f32
    %9 = vector.broadcast %cst_7 : f32 to vector<128x128xf32>
    %10 = arith.maximumf %8, %9 : vector<128x128xf32>
    %11 = arith.truncf %10 : vector<128x128xf32> to vector<128x128xbf16>
    %c0_8 = arith.constant 0 : index
    %c0_9 = arith.constant 0 : index
    %12 = vector.load %arg6[%c0_8, %c0_9] : memref<128x128xbf16, #tpu.memory_space<vmem>>, vector<128x128xbf16>
    tpu.vector_store %arg6[%c0_8, %c0_9], %11 {strides = array<i32>} : memref<128x128xbf16, #tpu.memory_space<vmem>>, vector<128x128xbf16>,
    return
  }
  func.func @transform_0(%arg0: i32, %arg1: i32) -> (i32, i32) {
    %c0_i32 = arith.constant 0 : i32
    %c0_i32_0 = arith.constant 0 : i32
    return %arg0, %c0_i32 : i32, i32
  }
  func.func @transform_1(%arg0: i32, %arg1: i32) -> (i32, i32) {
    %c0_i32 = arith.constant 0 : i32
    %c0_i32_0 = arith.constant 0 : i32
    return %c0_i32, %arg1 : i32, i32
  }
  func.func @transform_2(%arg0: i32, %arg1: i32) -> (i32, i32) {
    %c0_i32 = arith.constant 0 : i32
    %c0_i32_0 = arith.constant 0 : i32
    return %c0_i32, %arg1 : i32, i32
  }
  func.func @transform_3(%arg0: i32, %arg1: i32) -> (i32, i32) {
    %c0_i32 = arith.constant 0 : i32
    return %arg0, %arg1 : i32, i32
  }
  func.func @transform_4(%arg0: i32, %arg1: i32) -> (i32, i32) {
    %c0_i32 = arith.constant 0 : i32
    return %arg0, %arg1 : i32, i32
  }
}

module attributes {stable_mosaic.version = 11 : i64} {
  func.func @_mm_single_kernel(%arg0: i32, %arg1: i32, %arg2: memref<128x64xbf16, #tpu.memory_space<vmem>>, %arg3: memref<64x128xbf16, #tpu.memory_space<vmem>>, %arg4: memref<1x128xf32, #tpu.memory_space<vmem>>, %arg5: memref<128x128xbf16, #tpu.memory_space<vmem>>) attributes {dimension_semantics = [#tpu.dimension_semantics<parallel>, #tpu.dimension_semantics<parallel>], iteration_bounds = array<i64: 1, 1>, scalar_prefetch = 0 : i64, scratch_operands = 0 : i64, tpu.core_type = #tpu.core_type<tc>, window_params = [{transform_indices = @transform_0, window_bounds = array<i64: 128, 64>}, {transform_indices = @transform_1, window_bounds = array<i64: 64, 128>}, {transform_indices = @transform_2, window_bounds = array<i64: 1, 128>}, {transform_indices = @transform_3, window_bounds = array<i64: 128, 128>}]} {
    %c0 = arith.constant 0 : index
    %c0_0 = arith.constant 0 : index
    %0 = vector.load %arg2[%c0, %c0_0] : memref<128x64xbf16, #tpu.memory_space<vmem>>, vector<128x64xbf16>
    %c0_1 = arith.constant 0 : index
    %c0_2 = arith.constant 0 : index
    %1 = vector.load %arg3[%c0_1, %c0_2] : memref<64x128xbf16, #tpu.memory_space<vmem>>, vector<64x128xbf16>
    %cst = arith.constant dense<0.000000e+00> : vector<128x128xf32>
    %2 = tpu.matmul %0, %1, %cst {dimension_numbers = #tpu.dot_dimension_numbers<[1], [0], [0], [1], [0, 0, 1, 1], [], []>} : vector<128x64xbf16>, vector<64x128xbf16>, vector<128x128xf32> -> vector<128x128xf32>
    %c0_3 = arith.constant 0 : index
    %c0_4 = arith.constant 0 : index
    %3 = vector.load %arg4[%c0_3, %c0_4] : memref<1x128xf32, #tpu.memory_space<vmem>>, vector<1x128xf32>
    %4 = vector.broadcast %3 : vector<1x128xf32> to vector<128x128xf32>
    %5 = arith.addf %2, %4 : vector<128x128xf32>
    %cst_5 = arith.constant 0.000000e+00 : f32
    %6 = vector.broadcast %cst_5 : f32 to vector<128x128xf32>
    %7 = arith.maximumf %5, %6 : vector<128x128xf32>
    %8 = arith.truncf %7 : vector<128x128xf32> to vector<128x128xbf16>
    %c0_6 = arith.constant 0 : index
    %c0_7 = arith.constant 0 : index
    %9 = vector.load %arg5[%c0_6, %c0_7] : memref<128x128xbf16, #tpu.memory_space<vmem>>, vector<128x128xbf16>
    tpu.vector_store %arg5[%c0_6, %c0_7], %8 {strides = array<i32>} : memref<128x128xbf16, #tpu.memory_space<vmem>>, vector<128x128xbf16>,
    return
  }
  func.func @transform_0(%arg0: i32, %arg1: i32) -> (i32, i32) {
    %c0_i32 = arith.constant 0 : i32
    %c0_i32_0 = arith.constant 0 : i32
    return %arg0, %c0_i32 : i32, i32
  }
  func.func @transform_1(%arg0: i32, %arg1: i32) -> (i32, i32) {
    %c0_i32 = arith.constant 0 : i32
    %c0_i32_0 = arith.constant 0 : i32
    return %c0_i32, %arg1 : i32, i32
  }
  func.func @transform_2(%arg0: i32, %arg1: i32) -> (i32, i32) {
    %c0_i32 = arith.constant 0 : i32
    %c0_i32_0 = arith.constant 0 : i32
    return %c0_i32, %arg1 : i32, i32
  }
  func.func @transform_3(%arg0: i32, %arg1: i32) -> (i32, i32) {
    %c0_i32 = arith.constant 0 : i32
    return %arg0, %arg1 : i32, i32
  }
}

module attributes {stable_mosaic.version = 11 : i64} {
  func.func @_mm_single_kernel(%arg0: i32, %arg1: i32, %arg2: memref<32x288xbf16, #tpu.memory_space<vmem>>, %arg3: memref<288x128xbf16, #tpu.memory_space<vmem>>, %arg4: memref<1x128xf32, #tpu.memory_space<vmem>>, %arg5: memref<32x128xbf16, #tpu.memory_space<vmem>>) attributes {dimension_semantics = [#tpu.dimension_semantics<parallel>, #tpu.dimension_semantics<parallel>], iteration_bounds = array<i64: 1, 1>, scalar_prefetch = 0 : i64, scratch_operands = 0 : i64, tpu.core_type = #tpu.core_type<tc>, window_params = [{transform_indices = @transform_0, window_bounds = array<i64: 32, 288>}, {transform_indices = @transform_1, window_bounds = array<i64: 288, 128>}, {transform_indices = @transform_2, window_bounds = array<i64: 1, 128>}, {transform_indices = @transform_3, window_bounds = array<i64: 32, 128>}]} {
    %c0 = arith.constant 0 : index
    %c0_0 = arith.constant 0 : index
    %0 = vector.load %arg2[%c0, %c0_0] : memref<32x288xbf16, #tpu.memory_space<vmem>>, vector<32x288xbf16>
    %c0_1 = arith.constant 0 : index
    %c0_2 = arith.constant 0 : index
    %1 = vector.load %arg3[%c0_1, %c0_2] : memref<288x128xbf16, #tpu.memory_space<vmem>>, vector<288x128xbf16>
    %cst = arith.constant dense<0.000000e+00> : vector<32x128xf32>
    %2 = tpu.matmul %0, %1, %cst {dimension_numbers = #tpu.dot_dimension_numbers<[1], [0], [0], [1], [0, 0, 1, 1], [], []>} : vector<32x288xbf16>, vector<288x128xbf16>, vector<32x128xf32> -> vector<32x128xf32>
    %c0_3 = arith.constant 0 : index
    %c0_4 = arith.constant 0 : index
    %3 = vector.load %arg4[%c0_3, %c0_4] : memref<1x128xf32, #tpu.memory_space<vmem>>, vector<1x128xf32>
    %4 = vector.broadcast %3 : vector<1x128xf32> to vector<32x128xf32>
    %5 = arith.addf %2, %4 : vector<32x128xf32>
    %cst_5 = arith.constant 0.000000e+00 : f32
    %6 = vector.broadcast %cst_5 : f32 to vector<32x128xf32>
    %7 = arith.maximumf %5, %6 : vector<32x128xf32>
    %8 = arith.truncf %7 : vector<32x128xf32> to vector<32x128xbf16>
    %c0_6 = arith.constant 0 : index
    %c0_7 = arith.constant 0 : index
    %9 = vector.load %arg5[%c0_6, %c0_7] : memref<32x128xbf16, #tpu.memory_space<vmem>>, vector<32x128xbf16>
    tpu.vector_store %arg5[%c0_6, %c0_7], %8 {strides = array<i32>} : memref<32x128xbf16, #tpu.memory_space<vmem>>, vector<32x128xbf16>,
    return
  }
  func.func @transform_0(%arg0: i32, %arg1: i32) -> (i32, i32) {
    %c0_i32 = arith.constant 0 : i32
    %c0_i32_0 = arith.constant 0 : i32
    return %arg0, %c0_i32 : i32, i32
  }
  func.func @transform_1(%arg0: i32, %arg1: i32) -> (i32, i32) {
    %c0_i32 = arith.constant 0 : i32
    %c0_i32_0 = arith.constant 0 : i32
    return %c0_i32, %arg1 : i32, i32
  }
  func.func @transform_2(%arg0: i32, %arg1: i32) -> (i32, i32) {
    %c0_i32 = arith.constant 0 : i32
    %c0_i32_0 = arith.constant 0 : i32
    return %c0_i32, %arg1 : i32, i32
  }
  func.func @transform_3(%arg0: i32, %arg1: i32) -> (i32, i32) {
    %c0_i32 = arith.constant 0 : i32
    return %arg0, %arg1 : i32, i32
  }
}

module attributes {stable_mosaic.version = 11 : i64} {
  func.func @_mm_single_kernel(%arg0: i32, %arg1: i32, %arg2: memref<32x32xbf16, #tpu.memory_space<vmem>>, %arg3: memref<32x128xbf16, #tpu.memory_space<vmem>>, %arg4: memref<1x128xf32, #tpu.memory_space<vmem>>, %arg5: memref<32x128xbf16, #tpu.memory_space<vmem>>, %arg6: memref<32x128xbf16, #tpu.memory_space<vmem>>) attributes {dimension_semantics = [#tpu.dimension_semantics<parallel>, #tpu.dimension_semantics<parallel>], iteration_bounds = array<i64: 1, 1>, scalar_prefetch = 0 : i64, scratch_operands = 0 : i64, tpu.core_type = #tpu.core_type<tc>, window_params = [{transform_indices = @transform_0, window_bounds = array<i64: 32, 32>}, {transform_indices = @transform_1, window_bounds = array<i64: 32, 128>}, {transform_indices = @transform_2, window_bounds = array<i64: 1, 128>}, {transform_indices = @transform_3, window_bounds = array<i64: 32, 128>}, {transform_indices = @transform_4, window_bounds = array<i64: 32, 128>}]} {
    %c0 = arith.constant 0 : index
    %c0_0 = arith.constant 0 : index
    %0 = vector.load %arg2[%c0, %c0_0] : memref<32x32xbf16, #tpu.memory_space<vmem>>, vector<32x32xbf16>
    %c0_1 = arith.constant 0 : index
    %c0_2 = arith.constant 0 : index
    %1 = vector.load %arg3[%c0_1, %c0_2] : memref<32x128xbf16, #tpu.memory_space<vmem>>, vector<32x128xbf16>
    %cst = arith.constant dense<0.000000e+00> : vector<32x128xf32>
    %2 = tpu.matmul %0, %1, %cst {dimension_numbers = #tpu.dot_dimension_numbers<[1], [0], [0], [1], [0, 0, 1, 1], [], []>} : vector<32x32xbf16>, vector<32x128xbf16>, vector<32x128xf32> -> vector<32x128xf32>
    %c0_3 = arith.constant 0 : index
    %c0_4 = arith.constant 0 : index
    %3 = vector.load %arg4[%c0_3, %c0_4] : memref<1x128xf32, #tpu.memory_space<vmem>>, vector<1x128xf32>
    %4 = vector.broadcast %3 : vector<1x128xf32> to vector<32x128xf32>
    %5 = arith.addf %2, %4 : vector<32x128xf32>
    %c0_5 = arith.constant 0 : index
    %c0_6 = arith.constant 0 : index
    %6 = vector.load %arg5[%c0_5, %c0_6] : memref<32x128xbf16, #tpu.memory_space<vmem>>, vector<32x128xbf16>
    %7 = arith.extf %6 : vector<32x128xbf16> to vector<32x128xf32>
    %8 = arith.addf %5, %7 : vector<32x128xf32>
    %cst_7 = arith.constant 0.000000e+00 : f32
    %9 = vector.broadcast %cst_7 : f32 to vector<32x128xf32>
    %10 = arith.maximumf %8, %9 : vector<32x128xf32>
    %11 = arith.truncf %10 : vector<32x128xf32> to vector<32x128xbf16>
    %c0_8 = arith.constant 0 : index
    %c0_9 = arith.constant 0 : index
    %12 = vector.load %arg6[%c0_8, %c0_9] : memref<32x128xbf16, #tpu.memory_space<vmem>>, vector<32x128xbf16>
    tpu.vector_store %arg6[%c0_8, %c0_9], %11 {strides = array<i32>} : memref<32x128xbf16, #tpu.memory_space<vmem>>, vector<32x128xbf16>,
    return
  }
  func.func @transform_0(%arg0: i32, %arg1: i32) -> (i32, i32) {
    %c0_i32 = arith.constant 0 : i32
    %c0_i32_0 = arith.constant 0 : i32
    return %arg0, %c0_i32 : i32, i32
  }
  func.func @transform_1(%arg0: i32, %arg1: i32) -> (i32, i32) {
    %c0_i32 = arith.constant 0 : i32
    %c0_i32_0 = arith.constant 0 : i32
    return %c0_i32, %arg1 : i32, i32
  }
  func.func @transform_2(%arg0: i32, %arg1: i32) -> (i32, i32) {
    %c0_i32 = arith.constant 0 : i32
    %c0_i32_0 = arith.constant 0 : i32
    return %c0_i32, %arg1 : i32, i32
  }
  func.func @transform_3(%arg0: i32, %arg1: i32) -> (i32, i32) {
    %c0_i32 = arith.constant 0 : i32
    return %arg0, %arg1 : i32, i32
  }
  func.func @transform_4(%arg0: i32, %arg1: i32) -> (i32, i32) {
    %c0_i32 = arith.constant 0 : i32
    return %arg0, %arg1 : i32, i32
  }
}

module attributes {stable_mosaic.version = 11 : i64} {
  func.func @_mm_single_kernel(%arg0: i32, %arg1: i32, %arg2: memref<32x64xbf16, #tpu.memory_space<vmem>>, %arg3: memref<64x128xbf16, #tpu.memory_space<vmem>>, %arg4: memref<1x128xf32, #tpu.memory_space<vmem>>, %arg5: memref<32x128xbf16, #tpu.memory_space<vmem>>) attributes {dimension_semantics = [#tpu.dimension_semantics<parallel>, #tpu.dimension_semantics<parallel>], iteration_bounds = array<i64: 1, 1>, scalar_prefetch = 0 : i64, scratch_operands = 0 : i64, tpu.core_type = #tpu.core_type<tc>, window_params = [{transform_indices = @transform_0, window_bounds = array<i64: 32, 64>}, {transform_indices = @transform_1, window_bounds = array<i64: 64, 128>}, {transform_indices = @transform_2, window_bounds = array<i64: 1, 128>}, {transform_indices = @transform_3, window_bounds = array<i64: 32, 128>}]} {
    %c0 = arith.constant 0 : index
    %c0_0 = arith.constant 0 : index
    %0 = vector.load %arg2[%c0, %c0_0] : memref<32x64xbf16, #tpu.memory_space<vmem>>, vector<32x64xbf16>
    %c0_1 = arith.constant 0 : index
    %c0_2 = arith.constant 0 : index
    %1 = vector.load %arg3[%c0_1, %c0_2] : memref<64x128xbf16, #tpu.memory_space<vmem>>, vector<64x128xbf16>
    %cst = arith.constant dense<0.000000e+00> : vector<32x128xf32>
    %2 = tpu.matmul %0, %1, %cst {dimension_numbers = #tpu.dot_dimension_numbers<[1], [0], [0], [1], [0, 0, 1, 1], [], []>} : vector<32x64xbf16>, vector<64x128xbf16>, vector<32x128xf32> -> vector<32x128xf32>
    %c0_3 = arith.constant 0 : index
    %c0_4 = arith.constant 0 : index
    %3 = vector.load %arg4[%c0_3, %c0_4] : memref<1x128xf32, #tpu.memory_space<vmem>>, vector<1x128xf32>
    %4 = vector.broadcast %3 : vector<1x128xf32> to vector<32x128xf32>
    %5 = arith.addf %2, %4 : vector<32x128xf32>
    %6 = arith.truncf %5 : vector<32x128xf32> to vector<32x128xbf16>
    %c0_5 = arith.constant 0 : index
    %c0_6 = arith.constant 0 : index
    %7 = vector.load %arg5[%c0_5, %c0_6] : memref<32x128xbf16, #tpu.memory_space<vmem>>, vector<32x128xbf16>
    tpu.vector_store %arg5[%c0_5, %c0_6], %6 {strides = array<i32>} : memref<32x128xbf16, #tpu.memory_space<vmem>>, vector<32x128xbf16>,
    return
  }
  func.func @transform_0(%arg0: i32, %arg1: i32) -> (i32, i32) {
    %c0_i32 = arith.constant 0 : i32
    %c0_i32_0 = arith.constant 0 : i32
    return %arg0, %c0_i32 : i32, i32
  }
  func.func @transform_1(%arg0: i32, %arg1: i32) -> (i32, i32) {
    %c0_i32 = arith.constant 0 : i32
    %c0_i32_0 = arith.constant 0 : i32
    return %c0_i32, %arg1 : i32, i32
  }
  func.func @transform_2(%arg0: i32, %arg1: i32) -> (i32, i32) {
    %c0_i32 = arith.constant 0 : i32
    %c0_i32_0 = arith.constant 0 : i32
    return %c0_i32, %arg1 : i32, i32
  }
  func.func @transform_3(%arg0: i32, %arg1: i32) -> (i32, i32) {
    %c0_i32 = arith.constant 0 : i32
    return %arg0, %arg1 : i32, i32
  }
}

module attributes {stable_mosaic.version = 11 : i64} {
  func.func @_mm_single_kernel(%arg0: i32, %arg1: i32, %arg2: memref<32x128xbf16, #tpu.memory_space<vmem>>, %arg3: memref<128x128xbf16, #tpu.memory_space<vmem>>, %arg4: memref<1x128xf32, #tpu.memory_space<vmem>>, %arg5: memref<32x128xbf16, #tpu.memory_space<vmem>>) attributes {dimension_semantics = [#tpu.dimension_semantics<parallel>, #tpu.dimension_semantics<parallel>], iteration_bounds = array<i64: 1, 1>, scalar_prefetch = 0 : i64, scratch_operands = 0 : i64, tpu.core_type = #tpu.core_type<tc>, window_params = [{transform_indices = @transform_0, window_bounds = array<i64: 32, 128>}, {transform_indices = @transform_1, window_bounds = array<i64: 128, 128>}, {transform_indices = @transform_2, window_bounds = array<i64: 1, 128>}, {transform_indices = @transform_3, window_bounds = array<i64: 32, 128>}]} {
    %c0 = arith.constant 0 : index
    %c0_0 = arith.constant 0 : index
    %0 = vector.load %arg2[%c0, %c0_0] : memref<32x128xbf16, #tpu.memory_space<vmem>>, vector<32x128xbf16>
    %c0_1 = arith.constant 0 : index
    %c0_2 = arith.constant 0 : index
    %1 = vector.load %arg3[%c0_1, %c0_2] : memref<128x128xbf16, #tpu.memory_space<vmem>>, vector<128x128xbf16>
    %cst = arith.constant dense<0.000000e+00> : vector<32x128xf32>
    %2 = tpu.matmul %0, %1, %cst {dimension_numbers = #tpu.dot_dimension_numbers<[1], [0], [0], [1], [0, 0, 1, 1], [], []>} : vector<32x128xbf16>, vector<128x128xbf16>, vector<32x128xf32> -> vector<32x128xf32>
    %c0_3 = arith.constant 0 : index
    %c0_4 = arith.constant 0 : index
    %3 = vector.load %arg4[%c0_3, %c0_4] : memref<1x128xf32, #tpu.memory_space<vmem>>, vector<1x128xf32>
    %4 = vector.broadcast %3 : vector<1x128xf32> to vector<32x128xf32>
    %5 = arith.addf %2, %4 : vector<32x128xf32>
    %cst_5 = arith.constant 0.000000e+00 : f32
    %6 = vector.broadcast %cst_5 : f32 to vector<32x128xf32>
    %7 = arith.maximumf %5, %6 : vector<32x128xf32>
    %8 = arith.truncf %7 : vector<32x128xf32> to vector<32x128xbf16>
    %c0_6 = arith.constant 0 : index
    %c0_7 = arith.constant 0 : index
    %9 = vector.load %arg5[%c0_6, %c0_7] : memref<32x128xbf16, #tpu.memory_space<vmem>>, vector<32x128xbf16>
    tpu.vector_store %arg5[%c0_6, %c0_7], %8 {strides = array<i32>} : memref<32x128xbf16, #tpu.memory_space<vmem>>, vector<32x128xbf16>,
    return
  }
  func.func @transform_0(%arg0: i32, %arg1: i32) -> (i32, i32) {
    %c0_i32 = arith.constant 0 : i32
    %c0_i32_0 = arith.constant 0 : i32
    return %arg0, %c0_i32 : i32, i32
  }
  func.func @transform_1(%arg0: i32, %arg1: i32) -> (i32, i32) {
    %c0_i32 = arith.constant 0 : i32
    %c0_i32_0 = arith.constant 0 : i32
    return %c0_i32, %arg1 : i32, i32
  }
  func.func @transform_2(%arg0: i32, %arg1: i32) -> (i32, i32) {
    %c0_i32 = arith.constant 0 : i32
    %c0_i32_0 = arith.constant 0 : i32
    return %c0_i32, %arg1 : i32, i32
  }
  func.func @transform_3(%arg0: i32, %arg1: i32) -> (i32, i32) {
    %c0_i32 = arith.constant 0 : i32
    return %arg0, %arg1 : i32, i32
  }
}

module attributes {stable_mosaic.version = 11 : i64} {
  func.func @_mm_single_kernel(%arg0: i32, %arg1: i32, %arg2: memref<16x128xbf16, #tpu.memory_space<vmem>>, %arg3: memref<128x256xbf16, #tpu.memory_space<vmem>>, %arg4: memref<1x256xf32, #tpu.memory_space<vmem>>, %arg5: memref<16x256xbf16, #tpu.memory_space<vmem>>) attributes {dimension_semantics = [#tpu.dimension_semantics<parallel>, #tpu.dimension_semantics<parallel>], iteration_bounds = array<i64: 1, 1>, scalar_prefetch = 0 : i64, scratch_operands = 0 : i64, tpu.core_type = #tpu.core_type<tc>, window_params = [{transform_indices = @transform_0, window_bounds = array<i64: 16, 128>}, {transform_indices = @transform_1, window_bounds = array<i64: 128, 256>}, {transform_indices = @transform_2, window_bounds = array<i64: 1, 256>}, {transform_indices = @transform_3, window_bounds = array<i64: 16, 256>}]} {
    %c0 = arith.constant 0 : index
    %c0_0 = arith.constant 0 : index
    %0 = vector.load %arg2[%c0, %c0_0] : memref<16x128xbf16, #tpu.memory_space<vmem>>, vector<16x128xbf16>
    %c0_1 = arith.constant 0 : index
    %c0_2 = arith.constant 0 : index
    %1 = vector.load %arg3[%c0_1, %c0_2] : memref<128x256xbf16, #tpu.memory_space<vmem>>, vector<128x256xbf16>
    %cst = arith.constant dense<0.000000e+00> : vector<16x256xf32>
    %2 = tpu.matmul %0, %1, %cst {dimension_numbers = #tpu.dot_dimension_numbers<[1], [0], [0], [1], [0, 0, 1, 1], [], []>} : vector<16x128xbf16>, vector<128x256xbf16>, vector<16x256xf32> -> vector<16x256xf32>
    %c0_3 = arith.constant 0 : index
    %c0_4 = arith.constant 0 : index
    %3 = vector.load %arg4[%c0_3, %c0_4] : memref<1x256xf32, #tpu.memory_space<vmem>>, vector<1x256xf32>
    %4 = vector.broadcast %3 : vector<1x256xf32> to vector<16x256xf32>
    %5 = arith.addf %2, %4 : vector<16x256xf32>
    %6 = arith.truncf %5 : vector<16x256xf32> to vector<16x256xbf16>
    %c0_5 = arith.constant 0 : index
    %c0_6 = arith.constant 0 : index
    %7 = vector.load %arg5[%c0_5, %c0_6] : memref<16x256xbf16, #tpu.memory_space<vmem>>, vector<16x256xbf16>
    tpu.vector_store %arg5[%c0_5, %c0_6], %6 {strides = array<i32>} : memref<16x256xbf16, #tpu.memory_space<vmem>>, vector<16x256xbf16>,
    return
  }
  func.func @transform_0(%arg0: i32, %arg1: i32) -> (i32, i32) {
    %c0_i32 = arith.constant 0 : i32
    %c0_i32_0 = arith.constant 0 : i32
    return %arg0, %c0_i32 : i32, i32
  }
  func.func @transform_1(%arg0: i32, %arg1: i32) -> (i32, i32) {
    %c0_i32 = arith.constant 0 : i32
    %c0_i32_0 = arith.constant 0 : i32
    return %c0_i32, %arg1 : i32, i32
  }
  func.func @transform_2(%arg0: i32, %arg1: i32) -> (i32, i32) {
    %c0_i32 = arith.constant 0 : i32
    %c0_i32_0 = arith.constant 0 : i32
    return %c0_i32, %arg1 : i32, i32
  }
  func.func @transform_3(%arg0: i32, %arg1: i32) -> (i32, i32) {
    %c0_i32 = arith.constant 0 : i32
    return %arg0, %arg1 : i32, i32
  }
}

module attributes {stable_mosaic.version = 11 : i64} {
  func.func @_mm_single_kernel(%arg0: i32, %arg1: i32, %arg2: memref<16x576xbf16, #tpu.memory_space<vmem>>, %arg3: memref<576x128xbf16, #tpu.memory_space<vmem>>, %arg4: memref<1x128xf32, #tpu.memory_space<vmem>>, %arg5: memref<16x128xbf16, #tpu.memory_space<vmem>>) attributes {dimension_semantics = [#tpu.dimension_semantics<parallel>, #tpu.dimension_semantics<parallel>], iteration_bounds = array<i64: 1, 1>, scalar_prefetch = 0 : i64, scratch_operands = 0 : i64, tpu.core_type = #tpu.core_type<tc>, window_params = [{transform_indices = @transform_0, window_bounds = array<i64: 16, 576>}, {transform_indices = @transform_1, window_bounds = array<i64: 576, 128>}, {transform_indices = @transform_2, window_bounds = array<i64: 1, 128>}, {transform_indices = @transform_3, window_bounds = array<i64: 16, 128>}]} {
    %c0 = arith.constant 0 : index
    %c0_0 = arith.constant 0 : index
    %0 = vector.load %arg2[%c0, %c0_0] : memref<16x576xbf16, #tpu.memory_space<vmem>>, vector<16x576xbf16>
    %c0_1 = arith.constant 0 : index
    %c0_2 = arith.constant 0 : index
    %1 = vector.load %arg3[%c0_1, %c0_2] : memref<576x128xbf16, #tpu.memory_space<vmem>>, vector<576x128xbf16>
    %cst = arith.constant dense<0.000000e+00> : vector<16x128xf32>
    %2 = tpu.matmul %0, %1, %cst {dimension_numbers = #tpu.dot_dimension_numbers<[1], [0], [0], [1], [0, 0, 1, 1], [], []>} : vector<16x576xbf16>, vector<576x128xbf16>, vector<16x128xf32> -> vector<16x128xf32>
    %c0_3 = arith.constant 0 : index
    %c0_4 = arith.constant 0 : index
    %3 = vector.load %arg4[%c0_3, %c0_4] : memref<1x128xf32, #tpu.memory_space<vmem>>, vector<1x128xf32>
    %4 = vector.broadcast %3 : vector<1x128xf32> to vector<16x128xf32>
    %5 = arith.addf %2, %4 : vector<16x128xf32>
    %cst_5 = arith.constant 0.000000e+00 : f32
    %6 = vector.broadcast %cst_5 : f32 to vector<16x128xf32>
    %7 = arith.maximumf %5, %6 : vector<16x128xf32>
    %8 = arith.truncf %7 : vector<16x128xf32> to vector<16x128xbf16>
    %c0_6 = arith.constant 0 : index
    %c0_7 = arith.constant 0 : index
    %9 = vector.load %arg5[%c0_6, %c0_7] : memref<16x128xbf16, #tpu.memory_space<vmem>>, vector<16x128xbf16>
    tpu.vector_store %arg5[%c0_6, %c0_7], %8 {strides = array<i32>} : memref<16x128xbf16, #tpu.memory_space<vmem>>, vector<16x128xbf16>,
    return
  }
  func.func @transform_0(%arg0: i32, %arg1: i32) -> (i32, i32) {
    %c0_i32 = arith.constant 0 : i32
    %c0_i32_0 = arith.constant 0 : i32
    return %arg0, %c0_i32 : i32, i32
  }
  func.func @transform_1(%arg0: i32, %arg1: i32) -> (i32, i32) {
    %c0_i32 = arith.constant 0 : i32
    %c0_i32_0 = arith.constant 0 : i32
    return %c0_i32, %arg1 : i32, i32
  }
  func.func @transform_2(%arg0: i32, %arg1: i32) -> (i32, i32) {
    %c0_i32 = arith.constant 0 : i32
    %c0_i32_0 = arith.constant 0 : i32
    return %c0_i32, %arg1 : i32, i32
  }
  func.func @transform_3(%arg0: i32, %arg1: i32) -> (i32, i32) {
    %c0_i32 = arith.constant 0 : i32
    return %arg0, %arg1 : i32, i32
  }
}

module attributes {stable_mosaic.version = 11 : i64} {
  func.func @_pool_kernel(%arg0: i32, %arg1: memref<16x4xf32, #tpu.memory_space<vmem>>, %arg2: memref<4x512xf32, #tpu.memory_space<vmem>>, %arg3: memref<16x512xf32, #tpu.memory_space<vmem>>) attributes {dimension_semantics = [#tpu.dimension_semantics<arbitrary>], iteration_bounds = array<i64: 1>, scalar_prefetch = 0 : i64, scratch_operands = 0 : i64, tpu.core_type = #tpu.core_type<tc>, window_params = [{pipeline_mode = #tpu.pipeline_mode<synchronous>, transform_indices = @transform_0, window_bounds = array<i64: 16, 4>}, {pipeline_mode = #tpu.pipeline_mode<synchronous>, transform_indices = @transform_1, window_bounds = array<i64: 4, 512>}, {pipeline_mode = #tpu.pipeline_mode<synchronous>, transform_indices = @transform_2, window_bounds = array<i64: 16, 512>}]} {
    %c0 = arith.constant 0 : index
    %c0_0 = arith.constant 0 : index
    %0 = vector.load %arg1[%c0, %c0_0] : memref<16x4xf32, #tpu.memory_space<vmem>>, vector<16x4xf32>
    %c0_1 = arith.constant 0 : index
    %c0_2 = arith.constant 0 : index
    %1 = vector.load %arg2[%c0_1, %c0_2] : memref<4x512xf32, #tpu.memory_space<vmem>>, vector<4x512xf32>
    %cst = arith.constant dense<0.000000e+00> : vector<16x512xf32>
    %2 = tpu.matmul %0, %1, %cst {dimension_numbers = #tpu.dot_dimension_numbers<[1], [0], [0], [1], [0, 0, 1, 1], [], []>} : vector<16x4xf32>, vector<4x512xf32>, vector<16x512xf32> -> vector<16x512xf32>
    %c0_3 = arith.constant 0 : index
    %c0_4 = arith.constant 0 : index
    %3 = vector.load %arg3[%c0_3, %c0_4] : memref<16x512xf32, #tpu.memory_space<vmem>>, vector<16x512xf32>
    tpu.vector_store %arg3[%c0_3, %c0_4], %2 {strides = array<i32>} : memref<16x512xf32, #tpu.memory_space<vmem>>, vector<16x512xf32>,
    return
  }
  func.func @transform_0(%arg0: i32) -> (i32, i32) {
    %c0_i32 = arith.constant 0 : i32
    %c0_i32_0 = arith.constant 0 : i32
    %c0_i32_1 = arith.constant 0 : i32
    return %c0_i32, %c0_i32_0 : i32, i32
  }
  func.func @transform_1(%arg0: i32) -> (i32, i32) {
    %c0_i32 = arith.constant 0 : i32
    %c0_i32_0 = arith.constant 0 : i32
    %c0_i32_1 = arith.constant 0 : i32
    return %c0_i32, %c0_i32_0 : i32, i32
  }
  func.func @transform_2(%arg0: i32) -> (i32, i32) {
    %c0_i32 = arith.constant 0 : i32
    %c0_i32_0 = arith.constant 0 : i32
    %c0_i32_1 = arith.constant 0 : i32
    return %c0_i32, %c0_i32_0 : i32, i32
  }
}

module attributes {stable_mosaic.version = 11 : i64} {
  func.func @_mm_single_kernel(%arg0: i32, %arg1: i32, %arg2: memref<16x64xbf16, #tpu.memory_space<vmem>>, %arg3: memref<64x256xbf16, #tpu.memory_space<vmem>>, %arg4: memref<1x256xf32, #tpu.memory_space<vmem>>, %arg5: memref<16x256xbf16, #tpu.memory_space<vmem>>, %arg6: memref<16x256xbf16, #tpu.memory_space<vmem>>) attributes {dimension_semantics = [#tpu.dimension_semantics<parallel>, #tpu.dimension_semantics<parallel>], iteration_bounds = array<i64: 1, 1>, scalar_prefetch = 0 : i64, scratch_operands = 0 : i64, tpu.core_type = #tpu.core_type<tc>, window_params = [{transform_indices = @transform_0, window_bounds = array<i64: 16, 64>}, {transform_indices = @transform_1, window_bounds = array<i64: 64, 256>}, {transform_indices = @transform_2, window_bounds = array<i64: 1, 256>}, {transform_indices = @transform_3, window_bounds = array<i64: 16, 256>}, {transform_indices = @transform_4, window_bounds = array<i64: 16, 256>}]} {
    %c0 = arith.constant 0 : index
    %c0_0 = arith.constant 0 : index
    %0 = vector.load %arg2[%c0, %c0_0] : memref<16x64xbf16, #tpu.memory_space<vmem>>, vector<16x64xbf16>
    %c0_1 = arith.constant 0 : index
    %c0_2 = arith.constant 0 : index
    %1 = vector.load %arg3[%c0_1, %c0_2] : memref<64x256xbf16, #tpu.memory_space<vmem>>, vector<64x256xbf16>
    %cst = arith.constant dense<0.000000e+00> : vector<16x256xf32>
    %2 = tpu.matmul %0, %1, %cst {dimension_numbers = #tpu.dot_dimension_numbers<[1], [0], [0], [1], [0, 0, 1, 1], [], []>} : vector<16x64xbf16>, vector<64x256xbf16>, vector<16x256xf32> -> vector<16x256xf32>
    %c0_3 = arith.constant 0 : index
    %c0_4 = arith.constant 0 : index
    %3 = vector.load %arg4[%c0_3, %c0_4] : memref<1x256xf32, #tpu.memory_space<vmem>>, vector<1x256xf32>
    %4 = vector.broadcast %3 : vector<1x256xf32> to vector<16x256xf32>
    %5 = arith.addf %2, %4 : vector<16x256xf32>
    %c0_5 = arith.constant 0 : index
    %c0_6 = arith.constant 0 : index
    %6 = vector.load %arg5[%c0_5, %c0_6] : memref<16x256xbf16, #tpu.memory_space<vmem>>, vector<16x256xbf16>
    %7 = arith.extf %6 : vector<16x256xbf16> to vector<16x256xf32>
    %8 = arith.addf %5, %7 : vector<16x256xf32>
    %cst_7 = arith.constant 0.000000e+00 : f32
    %9 = vector.broadcast %cst_7 : f32 to vector<16x256xf32>
    %10 = arith.maximumf %8, %9 : vector<16x256xf32>
    %11 = arith.truncf %10 : vector<16x256xf32> to vector<16x256xbf16>
    %c0_8 = arith.constant 0 : index
    %c0_9 = arith.constant 0 : index
    %12 = vector.load %arg6[%c0_8, %c0_9] : memref<16x256xbf16, #tpu.memory_space<vmem>>, vector<16x256xbf16>
    tpu.vector_store %arg6[%c0_8, %c0_9], %11 {strides = array<i32>} : memref<16x256xbf16, #tpu.memory_space<vmem>>, vector<16x256xbf16>,
    return
  }
  func.func @transform_0(%arg0: i32, %arg1: i32) -> (i32, i32) {
    %c0_i32 = arith.constant 0 : i32
    %c0_i32_0 = arith.constant 0 : i32
    return %arg0, %c0_i32 : i32, i32
  }
  func.func @transform_1(%arg0: i32, %arg1: i32) -> (i32, i32) {
    %c0_i32 = arith.constant 0 : i32
    %c0_i32_0 = arith.constant 0 : i32
    return %c0_i32, %arg1 : i32, i32
  }
  func.func @transform_2(%arg0: i32, %arg1: i32) -> (i32, i32) {
    %c0_i32 = arith.constant 0 : i32
    %c0_i32_0 = arith.constant 0 : i32
    return %c0_i32, %arg1 : i32, i32
  }
  func.func @transform_3(%arg0: i32, %arg1: i32) -> (i32, i32) {
    %c0_i32 = arith.constant 0 : i32
    return %arg0, %arg1 : i32, i32
  }
  func.func @transform_4(%arg0: i32, %arg1: i32) -> (i32, i32) {
    %c0_i32 = arith.constant 0 : i32
    return %arg0, %arg1 : i32, i32
  }
}

</mosaic_0001>

<llo_original>
// kernel: encoder_forward.19
$region0: #{encoder_forward.19}
  #allocation0 [shape = 'u32[]', space=smem, size = 0x4, offset = 0x4, fixed_abs, tag = 'smem constant byte address 0x4 - core index']
  #allocation1 [shape = 'u32[144,128]{1,0:T(1,128)}', space=vmem, size = 0x12000, scoped, tag = 'internal scratch']
  %s0 = inlined_call_operand.vmem [shape: bf16[512,8], index: 0, kind: input, shape index: {}]
  %s1 = inlined_call_operand.vmem [shape: bf16[8,128], index: 1, kind: input, shape index: {}]
  %s2 = inlined_call_operand.vmem [shape: f32[1,128], index: 2, kind: input, shape index: {}]
  %s3 = inlined_call_operand.vmem [shape: bf16[512,128], index: 3, kind: output, shape index: {}]
  %s4 = sld [smem:[#allocation0]]
  $region22: #{encoder_forward.19} parent=0
    _
  %s6 = ssub.s32 1, %s4
  %s7 = scalar_select 0, %s6, %s4
  // Predicated region
  $region2: #{encoder_forward.19} parent=0 // pred_check
    _
  $region3: #{encoder_forward.19} parent=0 // pred_check_branch
    %9 = sbr.rel (0) target = $region5
  $region4: #{encoder_forward.19} parent=0 // pred_region
    _
  $region5: #{encoder_forward.19} parent=0 // pred_fallthru
    _
  // Predicated region
  $region6: #{encoder_forward.19} parent=0 // pred_check
    _
  $region7: #{encoder_forward.19} parent=0 // pred_check_branch
    %11 = sbr.rel (0) target = $region9
  $region8: #{encoder_forward.19} parent=0 // pred_region
    _
  $region9: #{encoder_forward.19} parent=0 // pred_fallthru
    _
  // Predicated region
  $region10: #{encoder_forward.19} parent=0 // pred_check
    _
  $region11: #{encoder_forward.19} parent=0 // pred_check_branch
    %13 = sbr.rel (0) target = $region13
  $region12: #{encoder_forward.19} parent=0 // pred_region
    _
  $region13: #{encoder_forward.19} parent=0 // pred_fallthru
    _
  %v15 = vld [vmem:[%s0] sm:$0xf]
  %v16 = vld [vmem:[%s0 + $0x4] sm:$0xf]
  %v17 = vld [vmem:[%s0 + $0x8] sm:$0xf]
  %v18 = vld [vmem:[%s0 + $0xc] sm:$0xf]
  %v19 = vld [vmem:[%s0 + $0x10] sm:$0xf]
  %v20 = vld [vmem:[%s0 + $0x14] sm:$0xf]
  %v21 = vld [vmem:[%s0 + $0x18] sm:$0xf]
  %v22 = vld [vmem:[%s0 + $0x1c] sm:$0xf]
  %v23 = vld [vmem:[%s0 + $0x20] sm:$0xf]
  %v24 = vld [vmem:[%s0 + $0x24] sm:$0xf]
  %v25 = vld [vmem:[%s0 + $0x28] sm:$0xf]
  %v26 = vld [vmem:[%s0 + $0x2c] sm:$0xf]
  %v27 = vld [vmem:[%s0 + $0x30] sm:$0xf]
  %v28 = vld [vmem:[%s0 + $0x34] sm:$0xf]
  %v29 = vld [vmem:[%s0 + $0x38] sm:$0xf]
  %v30 = vld [vmem:[%s0 + $0x3c] sm:$0xf]
  %v31 = vld [vmem:[%s0 + $0x40] sm:$0xf]
  %v32 = vld [vmem:[%s0 + $0x44] sm:$0xf]
  %v33 = vld [vmem:[%s0 + $0x48] sm:$0xf]
  %v34 = vld [vmem:[%s0 + $0x4c] sm:$0xf]
  %v35 = vld [vmem:[%s0 + $0x50] sm:$0xf]
  %v36 = vld [vmem:[%s0 + $0x54] sm:$0xf]
  %v37 = vld [vmem:[%s0 + $0x58] sm:$0xf]
  %v38 = vld [vmem:[%s0 + $0x5c] sm:$0xf]
  %v39 = vld [vmem:[%s0 + $0x60] sm:$0xf]
  %v40 = vld [vmem:[%s0 + $0x64] sm:$0xf]
  %v41 = vld [vmem:[%s0 + $0x68] sm:$0xf]
  %v42 = vld [vmem:[%s0 + $0x6c] sm:$0xf]
  %v43 = vld [vmem:[%s0 + $0x70] sm:$0xf]
  %v44 = vld [vmem:[%s0 + $0x74] sm:$0xf]
  %v45 = vld [vmem:[%s0 + $0x78] sm:$0xf]
  %v46 = vld [vmem:[%s0 + $0x7c] sm:$0xf]
  %v47 = vld [vmem:[%s0 + $0x80] sm:$0xf]
  %v48 = vld [vmem:[%s0 + $0x84] sm:$0xf]
  %v49 = vld [vmem:[%s0 + $0x88] sm:$0xf]
  %v50 = vld [vmem:[%s0 + $0x8c] sm:$0xf]
  %v51 = vld [vmem:[%s0 + $0x90] sm:$0xf]
  %v52 = vld [vmem:[%s0 + $0x94] sm:$0xf]
  %v53 = vld [vmem:[%s0 + $0x98] sm:$0xf]
  %v54 = vld [vmem:[%s0 + $0x9c] sm:$0xf]
  %v55 = vld [vmem:[%s0 + $0xa0] sm:$0xf]
  %v56 = vld [vmem:[%s0 + $0xa4] sm:$0xf]
  %v57 = vld [vmem:[%s0 + $0xa8] sm:$0xf]
  %v58 = vld [vmem:[%s0 + $0xac] sm:$0xf]
  %v59 = vld [vmem:[%s0 + $0xb0] sm:$0xf]
  %v60 = vld [vmem:[%s0 + $0xb4] sm:$0xf]
  %v61 = vld [vmem:[%s0 + $0xb8] sm:$0xf]
  %v62 = vld [vmem:[%s0 + $0xbc] sm:$0xf]
  %v63 = vld [vmem:[%s0 + $0xc0] sm:$0xf]
  %v64 = vld [vmem:[%s0 + $0xc4] sm:$0xf]
  %v65 = vld [vmem:[%s0 + $0xc8] sm:$0xf]
  %v66 = vld [vmem:[%s0 + $0xcc] sm:$0xf]
  %v67 = vld [vmem:[%s0 + $0xd0] sm:$0xf]
  %v68 = vld [vmem:[%s0 + $0xd4] sm:$0xf]
  %v69 = vld [vmem:[%s0 + $0xd8] sm:$0xf]
  %v70 = vld [vmem:[%s0 + $0xdc] sm:$0xf]
  %v71 = vld [vmem:[%s0 + $0xe0] sm:$0xf]
  %v72 = vld [vmem:[%s0 + $0xe4] sm:$0xf]
  %v73 = vld [vmem:[%s0 + $0xe8] sm:$0xf]
  %v74 = vld [vmem:[%s0 + $0xec] sm:$0xf]
  %v75 = vld [vmem:[%s0 + $0xf0] sm:$0xf]
  %v76 = vld [vmem:[%s0 + $0xf4] sm:$0xf]
  %v77 = vld [vmem:[%s0 + $0xf8] sm:$0xf]
  %v78 = vld [vmem:[%s0 + $0xfc] sm:$0xf]
  %v79 = vld [vmem:[%s1] sm:$0xf]
  %v80 = vld [vmem:[%s2] sm:$0x1]
  %v82 = vlaneseq
  %v83 = vshrl.u32 %v82, 7
  %v84 = vsub.s32 0, %v83
  %v85 = vrot.slane %v80, %v84
  %v151 = vunpack.c.l.b16 %v15
  %v152 = vunpack.c.l.b16 %v16
  %v153 = vunpack.c.l.b16 %v17
  %v154 = vunpack.c.l.b16 %v18
  %v155 = vunpack.c.l.b16 %v19
  %v156 = vunpack.c.l.b16 %v20
  %v157 = vunpack.c.l.b16 %v21
  %v158 = vunpack.c.l.b16 %v22
  %v159 = vunpack.c.l.b16 %v23
  %v160 = vunpack.c.l.b16 %v24
  %v161 = vunpack.c.l.b16 %v25
  %v162 = vunpack.c.l.b16 %v26
  %v163 = vunpack.c.l.b16 %v27
  %v164 = vunpack.c.l.b16 %v28
  %v165 = vunpack.c.l.b16 %v29
  %v166 = vunpack.c.l.b16 %v30
  %v167 = vunpack.c.l.b16 %v31
  %v168 = vunpack.c.l.b16 %v32
  %v169 = vunpack.c.l.b16 %v33
  %v170 = vunpack.c.l.b16 %v34
  %v171 = vunpack.c.l.b16 %v35
  %v172 = vunpack.c.l.b16 %v36
  %v173 = vunpack.c.l.b16 %v37
  %v174 = vunpack.c.l.b16 %v38
  %v175 = vunpack.c.l.b16 %v39
  %v176 = vunpack.c.l.b16 %v40
  %v177 = vunpack.c.l.b16 %v41
  %v178 = vunpack.c.l.b16 %v42
  %v179 = vunpack.c.l.b16 %v43
  %v180 = vunpack.c.l.b16 %v44
  %v181 = vunpack.c.l.b16 %v45
  %v182 = vunpack.c.l.b16 %v46
  %v183 = vunpack.c.l.b16 %v47
  %v184 = vunpack.c.l.b16 %v48
  %v185 = vunpack.c.l.b16 %v49
  %v186 = vunpack.c.l.b16 %v50
  %v187 = vunpack.c.l.b16 %v51
  %v188 = vunpack.c.l.b16 %v52
  %v189 = vunpack.c.l.b16 %v53
  %v190 = vunpack.c.l.b16 %v54
  %v191 = vunpack.c.l.b16 %v55
  %v192 = vunpack.c.l.b16 %v56
  %v193 = vunpack.c.l.b16 %v57
  %v194 = vunpack.c.l.b16 %v58
  %v195 = vunpack.c.l.b16 %v59
  %v196 = vunpack.c.l.b16 %v60
  %v197 = vunpack.c.l.b16 %v61
  %v198 = vunpack.c.l.b16 %v62
  %v199 = vunpack.c.l.b16 %v63
  %v200 = vunpack.c.l.b16 %v64
  %v201 = vunpack.c.l.b16 %v65
  %v202 = vunpack.c.l.b16 %v66
  %v203 = vunpack.c.l.b16 %v67
  %v204 = vunpack.c.l.b16 %v68
  %v205 = vunpack.c.l.b16 %v69
  %v206 = vunpack.c.l.b16 %v70
  %v207 = vunpack.c.l.b16 %v71
  %v208 = vunpack.c.l.b16 %v72
  %v209 = vunpack.c.l.b16 %v73
  %v210 = vunpack.c.l.b16 %v74
  %v211 = vunpack.c.l.b16 %v75
  %v212 = vunpack.c.l.b16 %v76
  %v213 = vunpack.c.l.b16 %v77
  %v214 = vunpack.c.l.b16 %v78
  %v215 = vpack.c.b16 %v152, %v151
  %v216 = vpack.c.b16 %v154, %v153
  %v217 = vpack.c.b16 %v156, %v155
  %v218 = vpack.c.b16 %v158, %v157
  %v219 = vpack.c.b16 %v160, %v159
  %v220 = vpack.c.b16 %v162, %v161
  %v221 = vpack.c.b16 %v164, %v163
  %v222 = vpack.c.b16 %v166, %v165
  %v223 = vpack.c.b16 %v168, %v167
  %v224 = vpack.c.b16 %v170, %v169
  %v225 = vpack.c.b16 %v172, %v171
  %v226 = vpack.c.b16 %v174, %v173
  %v227 = vpack.c.b16 %v176, %v175
  %v228 = vpack.c.b16 %v178, %v177
  %v229 = vpack.c.b16 %v180, %v179
  %v230 = vpack.c.b16 %v182, %v181
  %v231 = vpack.c.b16 %v184, %v183
  %v232 = vpack.c.b16 %v186, %v185
  %v233 = vpack.c.b16 %v188, %v187
  %v234 = vpack.c.b16 %v190, %v189
  %v235 = vpack.c.b16 %v192, %v191
  %v236 = vpack.c.b16 %v194, %v193
  %v237 = vpack.c.b16 %v196, %v195
  %v238 = vpack.c.b16 %v198, %v197
  %v239 = vpack.c.b16 %v200, %v199
  %v240 = vpack.c.b16 %v202, %v201
  %v241 = vpack.c.b16 %v204, %v203
  %v242 = vpack.c.b16 %v206, %v205
  %v243 = vpack.c.b16 %v208, %v207
  %v244 = vpack.c.b16 %v210, %v209
  %v245 = vpack.c.b16 %v212, %v211
  %v246 = vpack.c.b16 %v214, %v213
  %vm247 = vcmask 64512
  %v249 = vsel %vm247, %v215, 0
  %v252 = vsel %vm247, %v216, 0
  %v255 = vsel %vm247, %v217, 0
  %v258 = vsel %vm247, %v218, 0
  %v261 = vsel %vm247, %v219, 0
  %v264 = vsel %vm247, %v220, 0
  %v267 = vsel %vm247, %v221, 0
  %v270 = vsel %vm247, %v222, 0
  %v273 = vsel %vm247, %v223, 0
  %v276 = vsel %vm247, %v224, 0
  %v279 = vsel %vm247, %v225, 0
  %v282 = vsel %vm247, %v226, 0
  %v285 = vsel %vm247, %v227, 0
  %v288 = vsel %vm247, %v228, 0
  %v291 = vsel %vm247, %v229, 0
  %v294 = vsel %vm247, %v230, 0
  %v297 = vsel %vm247, %v231, 0
  %v300 = vsel %vm247, %v232, 0
  %v303 = vsel %vm247, %v233, 0
  %v306 = vsel %vm247, %v234, 0
  %v309 = vsel %vm247, %v235, 0
  %v312 = vsel %vm247, %v236, 0
  %v315 = vsel %vm247, %v237, 0
  %v318 = vsel %vm247, %v238, 0
  %v321 = vsel %vm247, %v239, 0
  %v324 = vsel %vm247, %v240, 0
  %v327 = vsel %vm247, %v241, 0
  %v330 = vsel %vm247, %v242, 0
  %v333 = vsel %vm247, %v243, 0
  %v336 = vsel %vm247, %v244, 0
  %v339 = vsel %vm247, %v245, 0
  %v342 = vsel %vm247, %v246, 0
  %vm344 = vcmask 1043456
  %v346 = vsel %vm344, %v79, 0
  %348 = vmatprep.subr.bf16.mxu0 0
  %349 = vmatpush1.bf16.msra.mxu0 %v346
  %350 = vmatprep.subr.bf16.mxu0 0
  %351 = vmatpush1.bf16.msra.mxu0 0
  %352 = vmatprep.subr.bf16.mxu0 0
  %353 = vmatpush1.bf16.msra.mxu0 0
  %354 = vmatprep.subr.bf16.mxu0 0
  %355 = vmatpush1.bf16.msra.mxu0 0
  %356 = vmatprep.subr.bf16.mxu0 0
  %357 = vmatpush1.bf16.msra.mxu0 0
  %358 = vmatprep.subr.bf16.mxu0 0
  %359 = vmatpush1.bf16.msra.mxu0 0
  %360 = vmatprep.subr.bf16.mxu0 0
  %361 = vmatpush1.bf16.msra.mxu0 0
  %362 = vmatprep.subr.bf16.mxu0 0
  %363 = vmatpush1.bf16.msra.mxu0 0
  %364 = vmatprep.subr.bf16.mxu0 0
  %365 = vmatpush1.bf16.msra.mxu0 0
  %366 = vmatprep.subr.bf16.mxu0 0
  %367 = vmatpush1.bf16.msra.mxu0 0
  %368 = vmatprep.subr.bf16.mxu0 0
  %369 = vmatpush1.bf16.msra.mxu0 0
  %370 = vmatprep.subr.bf16.mxu0 0
  %371 = vmatpush1.bf16.msra.mxu0 0
  %372 = vmatprep.subr.bf16.mxu0 0
  %373 = vmatpush1.bf16.msra.mxu0 0
  %374 = vmatprep.subr.bf16.mxu0 0
  %375 = vmatpush1.bf16.msra.mxu0 0
  %376 = vmatprep.subr.bf16.mxu0 0
  %377 = vmatpush1.bf16.msra.mxu0 0
  %378 = vmatprep.subr.bf16.mxu0 0
  %379 = vmatpush1.bf16.msra.mxu0 0
  %380 = vmatprep.mubr.bf16.mxu0 0
  %381 = vmatmul.mubr.bf16.gmra.mrb[0].mxu0 %v249
  %v382 = vpop.f32.mrb[0].mxu0
  %v383 = vadd.f32 %v85, %v382
  %v384 = vpop.f32.mrb[0].mxu0
  %v385 = vpop.f32.mrb[0].mxu0
  %v386 = vadd.f32 %v85, %v385
  %v387 = vpop.f32.mrb[0].mxu0
  %388 = vmatprep.mubr.bf16.mxu0 0
  %389 = vmatmul.mubr.bf16.gmra.mrb[0].mxu0 %v252
  %v390 = vpop.f32.mrb[0].mxu0
  %v391 = vadd.f32 %v85, %v390
  %v392 = vpop.f32.mrb[0].mxu0
  %v393 = vpop.f32.mrb[0].mxu0
  %v394 = vadd.f32 %v85, %v393
  %v395 = vpop.f32.mrb[0].mxu0
  %396 = vmatprep.mubr.bf16.mxu0 0
  %397 = vmatmul.mubr.bf16.gmra.mrb[0].mxu0 %v255
  %v398 = vpop.f32.mrb[0].mxu0
  %v399 = vadd.f32 %v85, %v398
  %v400 = vpop.f32.mrb[0].mxu0
  %v401 = vpop.f32.mrb[0].mxu0
  %v402 = vadd.f32 %v85, %v401
  %v403 = vpop.f32.mrb[0].mxu0
  %404 = vmatprep.mubr.bf16.mxu0 0
  %405 = vmatmul.mubr.bf16.gmra.mrb[0].mxu0 %v258
  %v406 = vpop.f32.mrb[0].mxu0
  %v407 = vadd.f32 %v85, %v406
  %v408 = vpop.f32.mrb[0].mxu0
  %v409 = vpop.f32.mrb[0].mxu0
  %v410 = vadd.f32 %v85, %v409
  %v411 = vpop.f32.mrb[0].mxu0
  %412 = vmatprep.mubr.bf16.mxu0 0
  %413 = vmatmul.mubr.bf16.gmra.mrb[0].mxu0 %v261
  %v414 = vpop.f32.mrb[0].mxu0
  %v415 = vadd.f32 %v85, %v414
  %v416 = vpop.f32.mrb[0].mxu0
  %v417 = vpop.f32.mrb[0].mxu0
  %v418 = vadd.f32 %v85, %v417
  %v419 = vpop.f32.mrb[0].mxu0
  %420 = vmatprep.mubr.bf16.mxu0 0
  %421 = vmatmul.mubr.bf16.gmra.mrb[0].mxu0 %v264
  %v422 = vpop.f32.mrb[0].mxu0
  %v423 = vadd.f32 %v85, %v422
  %v424 = vpop.f32.mrb[0].mxu0
  %v425 = vpop.f32.mrb[0].mxu0
  %v426 = vadd.f32 %v85, %v425
  %v427 = vpop.f32.mrb[0].mxu0
  %428 = vmatprep.mubr.bf16.mxu0 0
  %429 = vmatmul.mubr.bf16.gmra.mrb[0].mxu0 %v267
  %v430 = vpop.f32.mrb[0].mxu0
  %v431 = vadd.f32 %v85, %v430
  %v432 = vpop.f32.mrb[0].mxu0
  %v433 = vpop.f32.mrb[0].mxu0
  %v434 = vadd.f32 %v85, %v433
  %v435 = vpop.f32.mrb[0].mxu0
  %436 = vmatprep.mubr.bf16.mxu0 0
  %437 = vmatmul.mubr.bf16.gmra.mrb[0].mxu0 %v270
  %v438 = vpop.f32.mrb[0].mxu0
  %v439 = vadd.f32 %v85, %v438
  %v440 = vpop.f32.mrb[0].mxu0
  %v441 = vpop.f32.mrb[0].mxu0
  %v442 = vadd.f32 %v85, %v441
  %v443 = vpop.f32.mrb[0].mxu0
  %444 = vmatprep.mubr.bf16.mxu0 0
  %445 = vmatmul.mubr.bf16.gmra.mrb[0].mxu0 %v273
  %v446 = vpop.f32.mrb[0].mxu0
  %v447 = vadd.f32 %v85, %v446
  %v448 = vpop.f32.mrb[0].mxu0
  %v449 = vpop.f32.mrb[0].mxu0
  %v450 = vadd.f32 %v85, %v449
  %v451 = vpop.f32.mrb[0].mxu0
  %452 = vmatprep.mubr.bf16.mxu0 0
  %453 = vmatmul.mubr.bf16.gmra.mrb[0].mxu0 %v276
  %v454 = vpop.f32.mrb[0].mxu0
  %v455 = vadd.f32 %v85, %v454
  %v456 = vpop.f32.mrb[0].mxu0
  %v457 = vpop.f32.mrb[0].mxu0
  %v458 = vadd.f32 %v85, %v457
  %v459 = vpop.f32.mrb[0].mxu0
  %460 = vmatprep.mubr.bf16.mxu0 0
  %461 = vmatmul.mubr.bf16.gmra.mrb[0].mxu0 %v279
  %v462 = vpop.f32.mrb[0].mxu0
  %v463 = vadd.f32 %v85, %v462
  %v464 = vpop.f32.mrb[0].mxu0
  %v465 = vpop.f32.mrb[0].mxu0
  %v466 = vadd.f32 %v85, %v465
  %v467 = vpop.f32.mrb[0].mxu0
  %468 = vmatprep.mubr.bf16.mxu0 0
  %469 = vmatmul.mubr.bf16.gmra.mrb[0].mxu0 %v282
  %v470 = vpop.f32.mrb[0].mxu0
  %v471 = vadd.f32 %v85, %v470
  %v472 = vpop.f32.mrb[0].mxu0
  %v473 = vpop.f32.mrb[0].mxu0
  %v474 = vadd.f32 %v85, %v473
  %v475 = vpop.f32.mrb[0].mxu0
  %476 = vmatprep.mubr.bf16.mxu0 0
  %477 = vmatmul.mubr.bf16.gmra.mrb[0].mxu0 %v285
  %v478 = vpop.f32.mrb[0].mxu0
  %v479 = vadd.f32 %v85, %v478
  %v480 = vpop.f32.mrb[0].mxu0
  %v481 = vpop.f32.mrb[0].mxu0
  %v482 = vadd.f32 %v85, %v481
  %v483 = vpop.f32.mrb[0].mxu0
  %484 = vmatprep.mubr.bf16.mxu0 0
  %485 = vmatmul.mubr.bf16.gmra.mrb[0].mxu0 %v288
  %v486 = vpop.f32.mrb[0].mxu0
  %v487 = vadd.f32 %v85, %v486
  %v488 = vpop.f32.mrb[0].mxu0
  %v489 = vpop.f32.mrb[0].mxu0
  %v490 = vadd.f32 %v85, %v489
  %v491 = vpop.f32.mrb[0].mxu0
  %492 = vmatprep.mubr.bf16.mxu0 0
  %493 = vmatmul.mubr.bf16.gmra.mrb[0].mxu0 %v291
  %v494 = vpop.f32.mrb[0].mxu0
  %v495 = vadd.f32 %v85, %v494
  %v496 = vpop.f32.mrb[0].mxu0
  %v497 = vpop.f32.mrb[0].mxu0
  %v498 = vadd.f32 %v85, %v497
  %v499 = vpop.f32.mrb[0].mxu0
  %500 = vmatprep.mubr.bf16.mxu0 0
  %501 = vmatmul.mubr.bf16.gmra.mrb[0].mxu0 %v294
  %v502 = vpop.f32.mrb[0].mxu0
  %v503 = vadd.f32 %v85, %v502
  %v504 = vpop.f32.mrb[0].mxu0
  %v505 = vpop.f32.mrb[0].mxu0
  %v506 = vadd.f32 %v85, %v505
  %v507 = vpop.f32.mrb[0].mxu0
  %508 = vmatprep.mubr.bf16.mxu0 0
  %509 = vmatmul.mubr.bf16.gmra.mrb[0].mxu0 %v297
  %v510 = vpop.f32.mrb[0].mxu0
  %v511 = vadd.f32 %v85, %v510
  %v512 = vpop.f32.mrb[0].mxu0
  %v513 = vpop.f32.mrb[0].mxu0
  %v514 = vadd.f32 %v85, %v513
  %v515 = vpop.f32.mrb[0].mxu0
  %516 = vmatprep.mubr.bf16.mxu0 0
  %517 = vmatmul.mubr.bf16.gmra.mrb[0].mxu0 %v300
  %v518 = vpop.f32.mrb[0].mxu0
  %v519 = vadd.f32 %v85, %v518
  %v520 = vpop.f32.mrb[0].mxu0
  %v521 = vpop.f32.mrb[0].mxu0
  %v522 = vadd.f32 %v85, %v521
  %v523 = vpop.f32.mrb[0].mxu0
  %524 = vmatprep.mubr.bf16.mxu0 0
  %525 = vmatmul.mubr.bf16.gmra.mrb[0].mxu0 %v303
  %v526 = vpop.f32.mrb[0].mxu0
  %v527 = vadd.f32 %v85, %v526
  %v528 = vpop.f32.mrb[0].mxu0
  %v529 = vpop.f32.mrb[0].mxu0
  %v530 = vadd.f32 %v85, %v529
  %v531 = vpop.f32.mrb[0].mxu0
  %532 = vmatprep.mubr.bf16.mxu0 0
  %533 = vmatmul.mubr.bf16.gmra.mrb[0].mxu0 %v306
  %v534 = vpop.f32.mrb[0].mxu0
  %v535 = vadd.f32 %v85, %v534
  %v536 = vpop.f32.mrb[0].mxu0
  %v537 = vpop.f32.mrb[0].mxu0
  %v538 = vadd.f32 %v85, %v537
  %v539 = vpop.f32.mrb[0].mxu0
  %540 = vmatprep.mubr.bf16.mxu0 0
  %541 = vmatmul.mubr.bf16.gmra.mrb[0].mxu0 %v309
  %v542 = vpop.f32.mrb[0].mxu0
  %v543 = vadd.f32 %v85, %v542
  %v544 = vpop.f32.mrb[0].mxu0
  %v545 = vpop.f32.mrb[0].mxu0
  %v546 = vadd.f32 %v85, %v545
  %v547 = vpop.f32.mrb[0].mxu0
  %548 = vmatprep.mubr.bf16.mxu0 0
  %549 = vmatmul.mubr.bf16.gmra.mrb[0].mxu0 %v312
  %v550 = vpop.f32.mrb[0].mxu0
  %v551 = vadd.f32 %v85, %v550
  %v552 = vpop.f32.mrb[0].mxu0
  %v553 = vpop.f32.mrb[0].mxu0
  %v554 = vadd.f32 %v85, %v553
  %v555 = vpop.f32.mrb[0].mxu0
  %556 = vmatprep.mubr.bf16.mxu0 0
  %557 = vmatmul.mubr.bf16.gmra.mrb[0].mxu0 %v315
  %v558 = vpop.f32.mrb[0].mxu0
  %v559 = vadd.f32 %v85, %v558
  %v560 = vpop.f32.mrb[0].mxu0
  %v561 = vpop.f32.mrb[0].mxu0
  %v562 = vadd.f32 %v85, %v561
  %v563 = vpop.f32.mrb[0].mxu0
  %564 = vmatprep.mubr.bf16.mxu0 0
  %565 = vmatmul.mubr.bf16.gmra.mrb[0].mxu0 %v318
  %v566 = vpop.f32.mrb[0].mxu0
  %v567 = vadd.f32 %v85, %v566
  %v568 = vpop.f32.mrb[0].mxu0
  %v569 = vpop.f32.mrb[0].mxu0
  %v570 = vadd.f32 %v85, %v569
  %v571 = vpop.f32.mrb[0].mxu0
  %572 = vmatprep.mubr.bf16.mxu0 0
  %573 = vmatmul.mubr.bf16.gmra.mrb[0].mxu0 %v321
  %v574 = vpop.f32.mrb[0].mxu0
  %v575 = vadd.f32 %v85, %v574
  %v576 = vpop.f32.mrb[0].mxu0
  %v577 = vpop.f32.mrb[0].mxu0
  %v578 = vadd.f32 %v85, %v577
  %v579 = vpop.f32.mrb[0].mxu0
  %580 = vmatprep.mubr.bf16.mxu0 0
  %581 = vmatmul.mubr.bf16.gmra.mrb[0].mxu0 %v324
  %v582 = vpop.f32.mrb[0].mxu0
  %v583 = vadd.f32 %v85, %v582
  %v584 = vpop.f32.mrb[0].mxu0
  %v585 = vpop.f32.mrb[0].mxu0
  %v586 = vadd.f32 %v85, %v585
  %v587 = vpop.f32.mrb[0].mxu0
  %588 = vmatprep.mubr.bf16.mxu0 0
  %589 = vmatmul.mubr.bf16.gmra.mrb[0].mxu0 %v327
  %v590 = vpop.f32.mrb[0].mxu0
  %v591 = vadd.f32 %v85, %v590
  %v592 = vpop.f32.mrb[0].mxu0
  %v593 = vpop.f32.mrb[0].mxu0
  %v594 = vadd.f32 %v85, %v593
  %v595 = vpop.f32.mrb[0].mxu0
  %596 = vmatprep.mubr.bf16.mxu0 0
  %597 = vmatmul.mubr.bf16.gmra.mrb[0].mxu0 %v330
  %v598 = vpop.f32.mrb[0].mxu0
  %v599 = vadd.f32 %v85, %v598
  %v600 = vpop.f32.mrb[0].mxu0
  %v601 = vpop.f32.mrb[0].mxu0
  %v602 = vadd.f32 %v85, %v601
  %v603 = vpop.f32.mrb[0].mxu0
  %604 = vmatprep.mubr.bf16.mxu0 0
  %605 = vmatmul.mubr.bf16.gmra.mrb[0].mxu0 %v333
  %v606 = vpop.f32.mrb[0].mxu0
  %v607 = vadd.f32 %v85, %v606
  %v608 = vpop.f32.mrb[0].mxu0
  %v609 = vpop.f32.mrb[0].mxu0
  %v610 = vadd.f32 %v85, %v609
  %v611 = vpop.f32.mrb[0].mxu0
  %612 = vmatprep.mubr.bf16.mxu0 0
  %613 = vmatmul.mubr.bf16.gmra.mrb[0].mxu0 %v336
  %v614 = vpop.f32.mrb[0].mxu0
  %v615 = vadd.f32 %v85, %v614
  %v616 = vpop.f32.mrb[0].mxu0
  %v617 = vpop.f32.mrb[0].mxu0
  %v618 = vadd.f32 %v85, %v617
  %v619 = vpop.f32.mrb[0].mxu0
  %620 = vmatprep.mubr.bf16.mxu0 0
  %621 = vmatmul.mubr.bf16.gmra.mrb[0].mxu0 %v339
  %v622 = vpop.f32.mrb[0].mxu0
  %v623 = vadd.f32 %v85, %v622
  %v624 = vpop.f32.mrb[0].mxu0
  %v625 = vpop.f32.mrb[0].mxu0
  %v626 = vadd.f32 %v85, %v625
  %v627 = vpop.f32.mrb[0].mxu0
  %628 = vmatprep.mubr.bf16.mxu0 0
  %629 = vmatmul.mubr.bf16.gmra.mrb[0].mxu0 %v342
  %v630 = vpop.f32.mrb[0].mxu0
  %v631 = vadd.f32 %v85, %v630
  %v632 = vpop.f32.mrb[0].mxu0
  %v633 = vpop.f32.mrb[0].mxu0
  %v634 = vadd.f32 %v85, %v633
  %v635 = vpop.f32.mrb[0].mxu0
  %636 = vdwg.mxu0
  %v637 = vmax.f32 %v383, 0.0
  %v638 = vmax.f32 %v386, 0.0
  %v639 = vmax.f32 %v391, 0.0
  %v640 = vmax.f32 %v394, 0.0
  %v641 = vmax.f32 %v399, 0.0
  %v642 = vmax.f32 %v402, 0.0
  %v643 = vmax.f32 %v407, 0.0
  %v644 = vmax.f32 %v410, 0.0
  %v645 = vmax.f32 %v415, 0.0
  %v646 = vmax.f32 %v418, 0.0
  %v647 = vmax.f32 %v423, 0.0
  %v648 = vmax.f32 %v426, 0.0
  %v649 = vmax.f32 %v431, 0.0
  %v650 = vmax.f32 %v434, 0.0
  %v651 = vmax.f32 %v439, 0.0
  %v652 = vmax.f32 %v442, 0.0
  %v653 = vmax.f32 %v447, 0.0
  %v654 = vmax.f32 %v450, 0.0
  %v655 = vmax.f32 %v455, 0.0
  %v656 = vmax.f32 %v458, 0.0
  %v657 = vmax.f32 %v463, 0.0
  %v658 = vmax.f32 %v466, 0.0
  %v659 = vmax.f32 %v471, 0.0
  %v660 = vmax.f32 %v474, 0.0
  %v661 = vmax.f32 %v479, 0.0
  %v662 = vmax.f32 %v482, 0.0
  %v663 = vmax.f32 %v487, 0.0
  %v664 = vmax.f32 %v490, 0.0
  %v665 = vmax.f32 %v495, 0.0
  %v666 = vmax.f32 %v498, 0.0
  %v667 = vmax.f32 %v503, 0.0
  %v668 = vmax.f32 %v506, 0.0
  %v669 = vmax.f32 %v511, 0.0
  %v670 = vmax.f32 %v514, 0.0
  %v671 = vmax.f32 %v519, 0.0
  %v672 = vmax.f32 %v522, 0.0
  %v673 = vmax.f32 %v527, 0.0
  %v674 = vmax.f32 %v530, 0.0
  %v675 = vmax.f32 %v535, 0.0
  %v676 = vmax.f32 %v538, 0.0
  %v677 = vmax.f32 %v543, 0.0
  %v678 = vmax.f32 %v546, 0.0
  %v679 = vmax.f32 %v551, 0.0
  %v680 = vmax.f32 %v554, 0.0
  %v681 = vmax.f32 %v559, 0.0
  %v682 = vmax.f32 %v562, 0.0
  %v683 = vmax.f32 %v567, 0.0
  %v684 = vmax.f32 %v570, 0.0
  %v685 = vmax.f32 %v575, 0.0
  %v686 = vmax.f32 %v578, 0.0
  %v687 = vmax.f32 %v583, 0.0
  %v688 = vmax.f32 %v586, 0.0
  %v689 = vmax.f32 %v591, 0.0
  %v690 = vmax.f32 %v594, 0.0
  %v691 = vmax.f32 %v599, 0.0
  %v692 = vmax.f32 %v602, 0.0
  %v693 = vmax.f32 %v607, 0.0
  %v694 = vmax.f32 %v610, 0.0
  %v695 = vmax.f32 %v615, 0.0
  %v696 = vmax.f32 %v618, 0.0
  %v697 = vmax.f32 %v623, 0.0
  %v698 = vmax.f32 %v626, 0.0
  %v699 = vmax.f32 %v631, 0.0
  %v700 = vmax.f32 %v634, 0.0
  %v701 = vpack.c.bf16 %v638, %v637
  %v702 = vpack.c.bf16 %v640, %v639
  %v703 = vpack.c.bf16 %v642, %v641
  %v704 = vpack.c.bf16 %v644, %v643
  %v705 = vpack.c.bf16 %v646, %v645
  %v706 = vpack.c.bf16 %v648, %v647
  %v707 = vpack.c.bf16 %v650, %v649
  %v708 = vpack.c.bf16 %v652, %v651
  %v709 = vpack.c.bf16 %v654, %v653
  %v710 = vpack.c.bf16 %v656, %v655
  %v711 = vpack.c.bf16 %v658, %v657
  %v712 = vpack.c.bf16 %v660, %v659
  %v713 = vpack.c.bf16 %v662, %v661
  %v714 = vpack.c.bf16 %v664, %v663
  %v715 = vpack.c.bf16 %v666, %v665
  %v716 = vpack.c.bf16 %v668, %v667
  %v717 = vpack.c.bf16 %v670, %v669
  %v718 = vpack.c.bf16 %v672, %v671
  %v719 = vpack.c.bf16 %v674, %v673
  %v720 = vpack.c.bf16 %v676, %v675
  %v721 = vpack.c.bf16 %v678, %v677
  %v722 = vpack.c.bf16 %v680, %v679
  %v723 = vpack.c.bf16 %v682, %v681
  %v724 = vpack.c.bf16 %v684, %v683
  %v725 = vpack.c.bf16 %v686, %v685
  %v726 = vpack.c.bf16 %v688, %v687
  %v727 = vpack.c.bf16 %v690, %v689
  %v728 = vpack.c.bf16 %v692, %v691
  %v729 = vpack.c.bf16 %v694, %v693
  %v730 = vpack.c.bf16 %v696, %v695
  %v731 = vpack.c.bf16 %v698, %v697
  %v732 = vpack.c.bf16 %v700, %v699
  %v765 = vunpack.c.l.b16 %v701
  %v766 = vunpack.c.h.b16 %v701
  %v767 = vunpack.c.l.b16 %v702
  %v768 = vunpack.c.h.b16 %v702
  %v769 = vunpack.c.l.b16 %v703
  %v770 = vunpack.c.h.b16 %v703
  %v771 = vunpack.c.l.b16 %v704
  %v772 = vunpack.c.h.b16 %v704
  %v773 = vunpack.c.l.b16 %v705
  %v774 = vunpack.c.h.b16 %v705
  %v775 = vunpack.c.l.b16 %v706
  %v776 = vunpack.c.h.b16 %v706
  %v777 = vunpack.c.l.b16 %v707
  %v778 = vunpack.c.h.b16 %v707
  %v779 = vunpack.c.l.b16 %v708
  %v780 = vunpack.c.h.b16 %v708
  %v781 = vunpack.c.l.b16 %v709
  %v782 = vunpack.c.h.b16 %v709
  %v783 = vunpack.c.l.b16 %v710
  %v784 = vunpack.c.h.b16 %v710
  %v785 = vunpack.c.l.b16 %v711
  %v786 = vunpack.c.h.b16 %v711
  %v787 = vunpack.c.l.b16 %v712
  %v788 = vunpack.c.h.b16 %v712
  %v789 = vunpack.c.l.b16 %v713
  %v790 = vunpack.c.h.b16 %v713
  %v791 = vunpack.c.l.b16 %v714
  %v792 = vunpack.c.h.b16 %v714
  %v793 = vunpack.c.l.b16 %v715
  %v794 = vunpack.c.h.b16 %v715
  %v795 = vunpack.c.l.b16 %v716
  %v796 = vunpack.c.h.b16 %v716
  %v797 = vunpack.c.l.b16 %v717
  %v798 = vunpack.c.h.b16 %v717
  %v799 = vunpack.c.l.b16 %v718
  %v800 = vunpack.c.h.b16 %v718
  %v801 = vunpack.c.l.b16 %v719
  %v802 = vunpack.c.h.b16 %v719
  %v803 = vunpack.c.l.b16 %v720
  %v804 = vunpack.c.h.b16 %v720
  %v805 = vunpack.c.l.b16 %v721
  %v806 = vunpack.c.h.b16 %v721
  %v807 = vunpack.c.l.b16 %v722
  %v808 = vunpack.c.h.b16 %v722
  %v809 = vunpack.c.l.b16 %v723
  %v810 = vunpack.c.h.b16 %v723
  %v811 = vunpack.c.l.b16 %v724
  %v812 = vunpack.c.h.b16 %v724
  %v813 = vunpack.c.l.b16 %v725
  %v814 = vunpack.c.h.b16 %v725
  %v815 = vunpack.c.l.b16 %v726
  %v816 = vunpack.c.h.b16 %v726
  %v817 = vunpack.c.l.b16 %v727
  %v818 = vunpack.c.h.b16 %v727
  %v819 = vunpack.c.l.b16 %v728
  %v820 = vunpack.c.h.b16 %v728
  %v821 = vunpack.c.l.b16 %v729
  %v822 = vunpack.c.h.b16 %v729
  %v823 = vunpack.c.l.b16 %v730
  %v824 = vunpack.c.h.b16 %v730
  %v825 = vunpack.c.l.b16 %v731
  %v826 = vunpack.c.h.b16 %v731
  %v827 = vunpack.c.l.b16 %v732
  %v828 = vunpack.c.h.b16 %v732
  %v829 = vpack.c.b16 %v765, %v765
  %v830 = vpack.c.b16 %v766, %v766
  %v831 = vpack.c.b16 %v767, %v767
  %v832 = vpack.c.b16 %v768, %v768
  %v833 = vpack.c.b16 %v769, %v769
  %v834 = vpack.c.b16 %v770, %v770
  %v835 = vpack.c.b16 %v771, %v771
  %v836 = vpack.c.b16 %v772, %v772
  %v837 = vpack.c.b16 %v773, %v773
  %v838 = vpack.c.b16 %v774, %v774
  %v839 = vpack.c.b16 %v775, %v775
  %v840 = vpack.c.b16 %v776, %v776
  %v841 = vpack.c.b16 %v777, %v777
  %v842 = vpack.c.b16 %v778, %v778
  %v843 = vpack.c.b16 %v779, %v779
  %v844 = vpack.c.b16 %v780, %v780
  %v845 = vpack.c.b16 %v781, %v781
  %v846 = vpack.c.b16 %v782, %v782
  %v847 = vpack.c.b16 %v783, %v783
  %v848 = vpack.c.b16 %v784, %v784
  %v849 = vpack.c.b16 %v785, %v785
  %v850 = vpack.c.b16 %v786, %v786
  %v851 = vpack.c.b16 %v787, %v787
  %v852 = vpack.c.b16 %v788, %v788
  %v853 = vpack.c.b16 %v789, %v789
  %v854 = vpack.c.b16 %v790, %v790
  %v855 = vpack.c.b16 %v791, %v791
  %v856 = vpack.c.b16 %v792, %v792
  %v857 = vpack.c.b16 %v793, %v793
  %v858 = vpack.c.b16 %v794, %v794
  %v859 = vpack.c.b16 %v795, %v795
  %v860 = vpack.c.b16 %v796, %v796
  %v861 = vpack.c.b16 %v797, %v797
  %v862 = vpack.c.b16 %v798, %v798
  %v863 = vpack.c.b16 %v799, %v799
  %v864 = vpack.c.b16 %v800, %v800
  %v865 = vpack.c.b16 %v801, %v801
  %v866 = vpack.c.b16 %v802, %v802
  %v867 = vpack.c.b16 %v803, %v803
  %v868 = vpack.c.b16 %v804, %v804
  %v869 = vpack.c.b16 %v805, %v805
  %v870 = vpack.c.b16 %v806, %v806
  %v871 = vpack.c.b16 %v807, %v807
  %v872 = vpack.c.b16 %v808, %v808
  %v873 = vpack.c.b16 %v809, %v809
  %v874 = vpack.c.b16 %v810, %v810
  %v875 = vpack.c.b16 %v811, %v811
  %v876 = vpack.c.b16 %v812, %v812
  %v877 = vpack.c.b16 %v813, %v813
  %v878 = vpack.c.b16 %v814, %v814
  %v879 = vpack.c.b16 %v815, %v815
  %v880 = vpack.c.b16 %v816, %v816
  %v881 = vpack.c.b16 %v817, %v817
  %v882 = vpack.c.b16 %v818, %v818
  %v883 = vpack.c.b16 %v819, %v819
  %v884 = vpack.c.b16 %v820, %v820
  %v885 = vpack.c.b16 %v821, %v821
  %v886 = vpack.c.b16 %v822, %v822
  %v887 = vpack.c.b16 %v823, %v823
  %v888 = vpack.c.b16 %v824, %v824
  %v889 = vpack.c.b16 %v825, %v825
  %v890 = vpack.c.b16 %v826, %v826
  %v891 = vpack.c.b16 %v827, %v827
  %v892 = vpack.c.b16 %v828, %v828
  %957 = vst [vmem:[%s3] sm:$0xf] %v829
  %958 = vst [vmem:[%s3 + $0x4] sm:$0xf] %v830
  %959 = vst [vmem:[%s3 + $0x8] sm:$0xf] %v831
  %960 = vst [vmem:[%s3 + $0xc] sm:$0xf] %v832
  %961 = vst [vmem:[%s3 + $0x10] sm:$0xf] %v833
  %962 = vst [vmem:[%s3 + $0x14] sm:$0xf] %v834
  %963 = vst [vmem:[%s3 + $0x18] sm:$0xf] %v835
  %964 = vst [vmem:[%s3 + $0x1c] sm:$0xf] %v836
  %965 = vst [vmem:[%s3 + $0x20] sm:$0xf] %v837
  %966 = vst [vmem:[%s3 + $0x24] sm:$0xf] %v838
  %967 = vst [vmem:[%s3 + $0x28] sm:$0xf] %v839
  %968 = vst [vmem:[%s3 + $0x2c] sm:$0xf] %v840
  %969 = vst [vmem:[%s3 + $0x30] sm:$0xf] %v841
  %970 = vst [vmem:[%s3 + $0x34] sm:$0xf] %v842
  %971 = vst [vmem:[%s3 + $0x38] sm:$0xf] %v843
  %972 = vst [vmem:[%s3 + $0x3c] sm:$0xf] %v844
  %973 = vst [vmem:[%s3 + $0x40] sm:$0xf] %v845
  %974 = vst [vmem:[%s3 + $0x44] sm:$0xf] %v846
  %975 = vst [vmem:[%s3 + $0x48] sm:$0xf] %v847
  %976 = vst [vmem:[%s3 + $0x4c] sm:$0xf] %v848
  %977 = vst [vmem:[%s3 + $0x50] sm:$0xf] %v849
  %978 = vst [vmem:[%s3 + $0x54] sm:$0xf] %v850
  %979 = vst [vmem:[%s3 + $0x58] sm:$0xf] %v851
  %980 = vst [vmem:[%s3 + $0x5c] sm:$0xf] %v852
  %981 = vst [vmem:[%s3 + $0x60] sm:$0xf] %v853
  %982 = vst [vmem:[%s3 + $0x64] sm:$0xf] %v854
  %983 = vst [vmem:[%s3 + $0x68] sm:$0xf] %v855
  %984 = vst [vmem:[%s3 + $0x6c] sm:$0xf] %v856
  %985 = vst [vmem:[%s3 + $0x70] sm:$0xf] %v857
  %986 = vst [vmem:[%s3 + $0x74] sm:$0xf] %v858
  %987 = vst [vmem:[%s3 + $0x78] sm:$0xf] %v859
  %988 = vst [vmem:[%s3 + $0x7c] sm:$0xf] %v860
  %989 = vst [vmem:[%s3 + $0x80] sm:$0xf] %v861
  %990 = vst [vmem:[%s3 + $0x84] sm:$0xf] %v862
  %991 = vst [vmem:[%s3 + $0x88] sm:$0xf] %v863
  %992 = vst [vmem:[%s3 + $0x8c] sm:$0xf] %v864
  %993 = vst [vmem:[%s3 + $0x90] sm:$0xf] %v865
  %994 = vst [vmem:[%s3 + $0x94] sm:$0xf] %v866
  %995 = vst [vmem:[%s3 + $0x98] sm:$0xf] %v867
  %996 = vst [vmem:[%s3 + $0x9c] sm:$0xf] %v868
  %997 = vst [vmem:[%s3 + $0xa0] sm:$0xf] %v869
  %998 = vst [vmem:[%s3 + $0xa4] sm:$0xf] %v870
  %999 = vst [vmem:[%s3 + $0xa8] sm:$0xf] %v871
  %1000 = vst [vmem:[%s3 + $0xac] sm:$0xf] %v872
  %1001 = vst [vmem:[%s3 + $0xb0] sm:$0xf] %v873
  %1002 = vst [vmem:[%s3 + $0xb4] sm:$0xf] %v874
  %1003 = vst [vmem:[%s3 + $0xb8] sm:$0xf] %v875
  %1004 = vst [vmem:[%s3 + $0xbc] sm:$0xf] %v876
  %1005 = vst [vmem:[%s3 + $0xc0] sm:$0xf] %v877
  %1006 = vst [vmem:[%s3 + $0xc4] sm:$0xf] %v878
  %1007 = vst [vmem:[%s3 + $0xc8] sm:$0xf] %v879
  %1008 = vst [vmem:[%s3 + $0xcc] sm:$0xf] %v880
  %1009 = vst [vmem:[%s3 + $0xd0] sm:$0xf] %v881
  %1010 = vst [vmem:[%s3 + $0xd4] sm:$0xf] %v882
  %1011 = vst [vmem:[%s3 + $0xd8] sm:$0xf] %v883
  %1012 = vst [vmem:[%s3 + $0xdc] sm:$0xf] %v884
  %1013 = vst [vmem:[%s3 + $0xe0] sm:$0xf] %v885
  %1014 = vst [vmem:[%s3 + $0xe4] sm:$0xf] %v886
  %1015 = vst [vmem:[%s3 + $0xe8] sm:$0xf] %v887
  %1016 = vst [vmem:[%s3 + $0xec] sm:$0xf] %v888
  %1017 = vst [vmem:[%s3 + $0xf0] sm:$0xf] %v889
  %1018 = vst [vmem:[%s3 + $0xf4] sm:$0xf] %v890
  %1019 = vst [vmem:[%s3 + $0xf8] sm:$0xf] %v891
  %1020 = vst [vmem:[%s3 + $0xfc] sm:$0xf] %v892
  // Predicated region
  $region14: #{encoder_forward.19} parent=0 // pred_check
    _
  $region15: #{encoder_forward.19} parent=0 // pred_check_branch
    %1022 = sbr.rel (0) target = $region17
  $region16: #{encoder_forward.19} parent=0 // pred_region
    _
  $region17: #{encoder_forward.19} parent=0 // pred_fallthru
    _
  // Predicated region
  $region18: #{encoder_forward.19} parent=0 // pred_check
    _
  $region19: #{encoder_forward.19} parent=0 // pred_check_branch
    %1024 = sbr.rel (0) target = $region21
  $region20: #{encoder_forward.19} parent=0 // pred_region
    _
  $region21: #{encoder_forward.19} parent=0 // pred_fallthru
    _

// kernel: encoder_forward.18
$region0: #{encoder_forward.18}
  #allocation0 [shape = 'u32[]', space=smem, size = 0x4, offset = 0x4, fixed_abs, tag = 'smem constant byte address 0x4 - core index']
  #allocation1 [shape = 'u32[144,128]{1,0:T(1,128)}', space=vmem, size = 0x12000, scoped, tag = 'internal scratch']
  %s0 = inlined_call_operand.vmem [shape: bf16[2048,147], index: 0, kind: input, shape index: {}]
  %s1 = inlined_call_operand.vmem [shape: bf16[147,128], index: 1, kind: input, shape index: {}]
  %s2 = inlined_call_operand.vmem [shape: f32[1,128], index: 2, kind: input, shape index: {}]
  %s3 = inlined_call_operand.vmem [shape: bf16[2048,128], index: 3, kind: output, shape index: {}]
  %s4 = sld [smem:[#allocation0]]
  $region45: #{encoder_forward.18} parent=0
    _
  %s6 = ssub.s32 1, %s4
  %s7 = scalar_select 0, %s6, %s4
  loop: start=0, step=1, limit=6
  $region2: #{encoder_forward.18} parent=0 // loop_pre_header
    _
  $region3: #{encoder_forward.18} parent=0 // loop_header
    %s9 = sphi 0, %s13
    %p10 = scmp.ge.s32.totalorder %s9, 6
    %s16 = sphi 0, %s28
    %s17 = sphi 0, %s24
    %s18 = sphi 0, %s16
    %s19 = sphi 0, %s17
    %s20 = sphi 0, %s18
    %s21 = sphi 0, %s19
    %s31 = sphi 0, %s33
    %s34 = sphi 0, %s31
    %s35 = sphi 0, %s34
    %s51 = sphi 0, %s35
    %s57 = sphi 0, %s59
    %s60 = sphi 0, %s57
    %s61 = sphi 0, %s60
    %s77 = sphi 0, %s61
    %s83 = sphi 0, %s85
    %s86 = sphi 0, %s83
    %s87 = sphi 0, %s86
    %s103 = sphi 0, %s87
    %s111 = sphi 0, %s113
    %s114 = sphi 0, %s111
    %s115 = sphi 0, %s114
    %s131 = sphi 0, %s115
  $region4: #{encoder_forward.18} parent=0 // loop_header_branch
    %12 = sbr.rel (%p10) target = $region8
  $region5: #{encoder_forward.18} parent=0 // loop_body
    %s14 = ssub.s32 %s9, 1
    %s15 = ssub.s32 %s9, 2
    %s22 = sadd.s32 1, %s17
    %p23 = scmp.ge.s32.totalorder %s22, 1
    %s24 = scalar_select %p23, 0, %s22
    %s25 = sadd.s32 1, %s16
    %s26 = scalar_select %p23, %s25, %s16
    %p27 = scmp.ge.s32.totalorder %s26, 4
    %s28 = scalar_select %p27, 0, %s26
    %s29 = ssub.s32 %s16, %s28
    %p30 = scmp.eq.s32.totalorder %s29, 0
    %s32 = sadd.s32 %s31, 1
    %s33 = scalar_select %p30, %s31, %s32
    %p36 = pneg %p30
    %p37 = scmp.eq.s32.totalorder %s9, 3
    %p38 = por %p36, %p37
    %p39 = scmp.ne.s32.totalorder %s31, %s34
    %p40 = scmp.eq.s32.totalorder %s9, 0
    %p41 = por %p39, %p40
    %p42 = scmp.ne.s32.totalorder %s31, %s34
    %p43 = scmp.eq.s32.totalorder %s14, 3
    %p44 = por %p42, %p43
    %p45 = scmp.ne.s32.totalorder %s34, %s35
    %p46 = scmp.eq.s32.totalorder %s14, 0
    %p47 = por %p45, %p46
    %p48 = scmp.ne.s32.totalorder %s34, %s35
    %p49 = scmp.eq.s32.totalorder %s15, 3
    %p50 = por %p48, %p49
    %p52 = scmp.ne.s32.totalorder %s35, %s51
    %p53 = scmp.eq.s32.totalorder %s15, 0
    %p54 = por %p52, %p53
    %s55 = ssub.s32 %s17, %s24
    %p56 = scmp.eq.s32.totalorder %s55, 0
    %s58 = sadd.s32 %s57, 1
    %s59 = scalar_select %p56, %s57, %s58
    %p62 = pneg %p56
    %p63 = scmp.eq.s32.totalorder %s9, 3
    %p64 = por %p62, %p63
    %p65 = scmp.ne.s32.totalorder %s57, %s60
    %p66 = scmp.eq.s32.totalorder %s9, 0
    %p67 = por %p65, %p66
    %p68 = scmp.ne.s32.totalorder %s57, %s60
    %p69 = scmp.eq.s32.totalorder %s14, 3
    %p70 = por %p68, %p69
    %p71 = scmp.ne.s32.totalorder %s60, %s61
    %p72 = scmp.eq.s32.totalorder %s14, 0
    %p73 = por %p71, %p72
    %p74 = scmp.ne.s32.totalorder %s60, %s61
    %p75 = scmp.eq.s32.totalorder %s15, 3
    %p76 = por %p74, %p75
    %p78 = scmp.ne.s32.totalorder %s61, %s77
    %p79 = scmp.eq.s32.totalorder %s15, 0
    %p80 = por %p78, %p79
    %s81 = ssub.s32 %s17, %s24
    %p82 = scmp.eq.s32.totalorder %s81, 0
    %s84 = sadd.s32 %s83, 1
    %s85 = scalar_select %p82, %s83, %s84
    %p88 = pneg %p82
    %p89 = scmp.eq.s32.totalorder %s9, 3
    %p90 = por %p88, %p89
    %p91 = scmp.ne.s32.totalorder %s83, %s86
    %p92 = scmp.eq.s32.totalorder %s9, 0
    %p93 = por %p91, %p92
    %p94 = scmp.ne.s32.totalorder %s83, %s86
    %p95 = scmp.eq.s32.totalorder %s14, 3
    %p96 = por %p94, %p95
    %p97 = scmp.ne.s32.totalorder %s86, %s87
    %p98 = scmp.eq.s32.totalorder %s14, 0
    %p99 = por %p97, %p98
    %p100 = scmp.ne.s32.totalorder %s86, %s87
    %p101 = scmp.eq.s32.totalorder %s15, 3
    %p102 = por %p100, %p101
    %p104 = scmp.ne.s32.totalorder %s87, %s103
    %p105 = scmp.eq.s32.totalorder %s15, 0
    %p106 = por %p104, %p105
    %s107 = ssub.s32 %s16, %s28
    %s108 = ssub.s32 %s17, %s24
    %s109 = sor.u32 %s107, %s108
    %p110 = scmp.eq.s32.totalorder %s109, 0
    %s112 = sadd.s32 %s111, 1
    %s113 = scalar_select %p110, %s111, %s112
    %p116 = pneg %p110
    %p117 = scmp.eq.s32.totalorder %s9, 3
    %p118 = por %p116, %p117
    %p119 = scmp.ne.s32.totalorder %s111, %s114
    %p120 = scmp.eq.s32.totalorder %s9, 0
    %p121 = por %p119, %p120
    %p122 = scmp.ne.s32.totalorder %s111, %s114
    %p123 = scmp.eq.s32.totalorder %s14, 3
    %p124 = por %p122, %p123
    %p125 = scmp.ne.s32.totalorder %s114, %s115
    %p126 = scmp.eq.s32.totalorder %s14, 0
    %p127 = por %p125, %p126
    %p128 = scmp.ne.s32.totalorder %s114, %s115
    %p129 = scmp.eq.s32.totalorder %s15, 3
    %p130 = por %p128, %p129
    %p132 = scmp.ne.s32.totalorder %s115, %s131
    %p133 = scmp.eq.s32.totalorder %s15, 0
    %p134 = por %p132, %p133
    %p135 = scmp.le.s32.totalorder 1, %s9
    %p136 = scmp.lt.s32.totalorder %s9, 5
    %p137 = pnand %p135, %p136
    %p138 = pneg %p137
    // Predicated region
    $region9: #{encoder_forward.18} parent=5 // pred_check
      _
    $region10: #{encoder_forward.18} parent=5 // pred_check_branch
      %140 = sbr.rel (%p137) target = $region12
    $region11: #{encoder_forward.18} parent=5 // pred_region
      %s141 = ssub.s32 %s9, 1
      // Predicated region
      $region13: #{encoder_forward.18} parent=11 // pred_check
        %p142 = pneg %p73
      $region14: #{encoder_forward.18} parent=11 // pred_check_branch
        %144 = sbr.rel (%p142) target = $region16
      $region15: #{encoder_forward.18} parent=11 // pred_region
        %p145 = scmp.lt.s32.totalorder %s19, 0
        %s146 = scalar_select %p145, %s19, 0
        %s147 = smul.addr %s146, 4
        %s148 = scalar_lea.vmem %s1, %s147
      $region16: #{encoder_forward.18} parent=11 // pred_fallthru
        _
      // Predicated region
      $region17: #{encoder_forward.18} parent=11 // pred_check
        %p149 = pneg %p99
      $region18: #{encoder_forward.18} parent=11 // pred_check_branch
        %151 = sbr.rel (%p149) target = $region20
      $region19: #{encoder_forward.18} parent=11 // pred_region
        %p152 = scmp.lt.s32.totalorder %s19, 0
        %s153 = scalar_select %p152, %s19, 0
        %s154 = scalar_lea.vmem %s2, %s153
      $region20: #{encoder_forward.18} parent=11 // pred_fallthru
        _
    $region12: #{encoder_forward.18} parent=5 // pred_fallthru
      _
    %p155 = scmp.lt.s32.totalorder %s9, 4
    // Predicated region
    $region21: #{encoder_forward.18} parent=5 // pred_check
      %p156 = pneg %p155
    $region22: #{encoder_forward.18} parent=5 // pred_check_branch
      %158 = sbr.rel (%p156) target = $region24
    $region23: #{encoder_forward.18} parent=5 // pred_region
      // Predicated region
      $region25: #{encoder_forward.18} parent=23 // pred_check
        %p159 = pneg %p41
      $region26: #{encoder_forward.18} parent=23 // pred_check_branch
        %161 = sbr.rel (%p159) target = $region28
      $region27: #{encoder_forward.18} parent=23 // pred_region
        %s162 = smul.u32 64, %s16
        %p163 = scmp.lt.s32.totalorder %s162, 255
        %s164 = scalar_select %p163, %s162, 255
        %s165 = smul.addr %s164, 2
        %s166 = smul.addr %s165, 4
        %s167 = scalar_lea.vmem %s0, %s166
        %s168 = smul.u32 64, %s16
      $region28: #{encoder_forward.18} parent=23 // pred_fallthru
        _
    $region24: #{encoder_forward.18} parent=5 // pred_fallthru
      _
    %p169 = scmp.le.s32.totalorder 1, %s9
    %p170 = scmp.lt.s32.totalorder %s9, 5
    %p171 = pnand %p169, %p170
    %p172 = pneg %p171
    // Predicated region
    $region29: #{encoder_forward.18} parent=5 // pred_check
      _
    $region30: #{encoder_forward.18} parent=5 // pred_check_branch
      %174 = sbr.rel (%p171) target = $region32
    $region31: #{encoder_forward.18} parent=5 // pred_region
      %s175 = ssub.s32 %s9, 1
      %s176 = smul.u32 64, %s18
      %p177 = scmp.lt.s32.totalorder %s176, 255
      %s178 = scalar_select %p177, %s176, 255
      %s179 = smul.addr %s178, 2
      %s180 = smul.addr %s179, 4
      %s181 = scalar_lea.vmem %s0, %s180
      %p182 = pneg %p47
      %p183 = pneg %p44
      %p184 = scmp.lt.s32.totalorder %s19, 0
      %s185 = scalar_select %p184, %s19, 0
      %s186 = smul.addr %s185, 4
      %s187 = scalar_lea.vmem %s1, %s186
      %p188 = pneg %p73
      %p189 = pneg %p70
      %p190 = scmp.lt.s32.totalorder %s19, 0
      %s191 = scalar_select %p190, %s19, 0
      %s192 = scalar_lea.vmem %s2, %s191
      %p193 = pneg %p99
      %p194 = pneg %p96
      %p195 = pneg %p127
      %p196 = pneg %p124
      %s197 = smul.u32 64, %s18
      %p198 = scmp.lt.s32.totalorder %s197, 255
      %s199 = scalar_select %p198, %s197, 255
      %p200 = scmp.lt.s32.totalorder %s19, 0
      %s201 = scalar_select %p200, %s19, 0
      %s202 = sadd.s32 %s201, %s199
      %s203 = smul.addr %s202, 4
      %s204 = scalar_lea.vmem %s3, %s203
      %s205 = smul.u32 64, %s18
      %p206 = scmp.lt.s32.totalorder %s205, 255
      %s207 = scalar_select %p206, %s205, 255
      %s208 = smul.addr %s207, 2
      %s209 = smul.addr %s208, 4
      %s210 = scalar_lea.vmem %s0, %s209
      %s211 = smul.u32 64, %s18
      %p212 = scmp.lt.s32.totalorder %s19, 0
      %s213 = scalar_select %p212, %s19, 0
      %s214 = smul.addr %s213, 4
      %s215 = scalar_lea.vmem %s1, %s214
      %p216 = scmp.lt.s32.totalorder %s19, 0
      %s217 = scalar_select %p216, %s19, 0
      %s218 = scalar_lea.vmem %s2, %s217
      %s219 = smul.u32 64, %s18
      %p220 = scmp.lt.s32.totalorder %s219, 255
      %s221 = scalar_select %p220, %s219, 255
      %p222 = scmp.lt.s32.totalorder %s19, 0
      %s223 = scalar_select %p222, %s19, 0
      %s224 = sadd.s32 %s223, %s221
      %s225 = smul.addr %s224, 4
      %s226 = scalar_lea.vmem %s3, %s225
      %s227 = smul.u32 64, %s18
      %v229 = vld [vmem:[%s210] sm:$0xff]
      %v230 = vld [vmem:[%s210 + $0x8] sm:$0xff]
      %v231 = vld [vmem:[%s210 + $0x10] sm:$0xff]
      %v232 = vld [vmem:[%s210 + $0x18] sm:$0xff]
      %v233 = vld [vmem:[%s210 + $0x20] sm:$0xff]
      %v234 = vld [vmem:[%s210 + $0x28] sm:$0xff]
      %v235 = vld [vmem:[%s210 + $0x30] sm:$0xff]
      %v236 = vld [vmem:[%s210 + $0x38] sm:$0xff]
      %v237 = vld [vmem:[%s210 + $0x40] sm:$0xff]
      %v238 = vld [vmem:[%s210 + $0x48] sm:$0xff]
      %v239 = vld [vmem:[%s210 + $0x50] sm:$0xff]
      %v240 = vld [vmem:[%s210 + $0x58] sm:$0xff]
      %v241 = vld [vmem:[%s210 + $0x60] sm:$0xff]
      %v242 = vld [vmem:[%s210 + $0x68] sm:$0xff]
      %v243 = vld [vmem:[%s210 + $0x70] sm:$0xff]
      %v244 = vld [vmem:[%s210 + $0x78] sm:$0xff]
      %v245 = vld [vmem:[%s210 + $0x80] sm:$0xff]
      %v246 = vld [vmem:[%s210 + $0x88] sm:$0xff]
      %v247 = vld [vmem:[%s210 + $0x90] sm:$0xff]
      %v248 = vld [vmem:[%s210 + $0x98] sm:$0xff]
      %v249 = vld [vmem:[%s210 + $0xa0] sm:$0xff]
      %v250 = vld [vmem:[%s210 + $0xa8] sm:$0xff]
      %v251 = vld [vmem:[%s210 + $0xb0] sm:$0xff]
      %v252 = vld [vmem:[%s210 + $0xb8] sm:$0xff]
      %v253 = vld [vmem:[%s210 + $0xc0] sm:$0xff]
      %v254 = vld [vmem:[%s210 + $0xc8] sm:$0xff]
      %v255 = vld [vmem:[%s210 + $0xd0] sm:$0xff]
      %v256 = vld [vmem:[%s210 + $0xd8] sm:$0xff]
      %v257 = vld [vmem:[%s210 + $0xe0] sm:$0xff]
      %v258 = vld [vmem:[%s210 + $0xe8] sm:$0xff]
      %v259 = vld [vmem:[%s210 + $0xf0] sm:$0xff]
      %v260 = vld [vmem:[%s210 + $0xf8] sm:$0xff]
      %v261 = vld [vmem:[%s210 + $0x100] sm:$0xff]
      %v262 = vld [vmem:[%s210 + $0x108] sm:$0xff]
      %v263 = vld [vmem:[%s210 + $0x110] sm:$0xff]
      %v264 = vld [vmem:[%s210 + $0x118] sm:$0xff]
      %v265 = vld [vmem:[%s210 + $0x120] sm:$0xff]
      %v266 = vld [vmem:[%s210 + $0x128] sm:$0xff]
      %v267 = vld [vmem:[%s210 + $0x130] sm:$0xff]
      %v268 = vld [vmem:[%s210 + $0x138] sm:$0xff]
      %v269 = vld [vmem:[%s210 + $0x140] sm:$0xff]
      %v270 = vld [vmem:[%s210 + $0x148] sm:$0xff]
      %v271 = vld [vmem:[%s210 + $0x150] sm:$0xff]
      %v272 = vld [vmem:[%s210 + $0x158] sm:$0xff]
      %v273 = vld [vmem:[%s210 + $0x160] sm:$0xff]
      %v274 = vld [vmem:[%s210 + $0x168] sm:$0xff]
      %v275 = vld [vmem:[%s210 + $0x170] sm:$0xff]
      %v276 = vld [vmem:[%s210 + $0x178] sm:$0xff]
      %v277 = vld [vmem:[%s210 + $0x180] sm:$0xff]
      %v278 = vld [vmem:[%s210 + $0x188] sm:$0xff]
      %v279 = vld [vmem:[%s210 + $0x190] sm:$0xff]
      %v280 = vld [vmem:[%s210 + $0x198] sm:$0xff]
      %v281 = vld [vmem:[%s210 + $0x1a0] sm:$0xff]
      %v282 = vld [vmem:[%s210 + $0x1a8] sm:$0xff]
      %v283 = vld [vmem:[%s210 + $0x1b0] sm:$0xff]
      %v284 = vld [vmem:[%s210 + $0x1b8] sm:$0xff]
      %v285 = vld [vmem:[%s210 + $0x1c0] sm:$0xff]
      %v286 = vld [vmem:[%s210 + $0x1c8] sm:$0xff]
      %v287 = vld [vmem:[%s210 + $0x1d0] sm:$0xff]
      %v288 = vld [vmem:[%s210 + $0x1d8] sm:$0xff]
      %v289 = vld [vmem:[%s210 + $0x1e0] sm:$0xff]
      %v290 = vld [vmem:[%s210 + $0x1e8] sm:$0xff]
      %v291 = vld [vmem:[%s210 + $0x1f0] sm:$0xff]
      %v292 = vld [vmem:[%s210 + $0x1f8] sm:$0xff]
      %v293 = vld [vmem:[%s215] sm:$0xf]
      %v294 = vld [vmem:[%s215 + $0x4] sm:$0xf]
      %v295 = vld [vmem:[%s215 + $0x8] sm:$0xf]
      %v296 = vld [vmem:[%s215 + $0xc] sm:$0xf]
      %v297 = vld [vmem:[%s215 + $0x10] sm:$0xf]
      %v298 = vld [vmem:[%s215 + $0x14] sm:$0xf]
      %v299 = vld [vmem:[%s215 + $0x18] sm:$0xf]
      %v300 = vld [vmem:[%s215 + $0x1c] sm:$0xf]
      %v301 = vld [vmem:[%s215 + $0x20] sm:$0xf]
      %v302 = vld [vmem:[%s215 + $0x24] sm:$0xf]
      %v303 = vld [vmem:[%s215 + $0x28] sm:$0xf]
      %v304 = vld [vmem:[%s215 + $0x2c] sm:$0xf]
      %v305 = vld [vmem:[%s215 + $0x30] sm:$0xf]
      %v306 = vld [vmem:[%s215 + $0x34] sm:$0xf]
      %v307 = vld [vmem:[%s215 + $0x38] sm:$0xf]
      %v308 = vld [vmem:[%s215 + $0x3c] sm:$0xf]
      %v309 = vld [vmem:[%s215 + $0x40] sm:$0xf]
      %v310 = vld [vmem:[%s215 + $0x44] sm:$0xf]
      %v311 = vld [vmem:[%s215 + $0x48] sm:$0x3]
      %v312 = vld [vmem:[%s218] sm:$0x1]
      %v314 = vlaneseq
      %v315 = vshrl.u32 %v314, 7
      %v316 = vsub.s32 0, %v315
      %v317 = vrot.slane %v312, %v316
      %v383 = vunpack.c.l.b16 %v229
      %v384 = vunpack.c.h.b16 %v229
      %v385 = vunpack.c.l.b16 %v230
      %v386 = vunpack.c.h.b16 %v230
      %v387 = vunpack.c.l.b16 %v231
      %v388 = vunpack.c.h.b16 %v231
      %v389 = vunpack.c.l.b16 %v232
      %v390 = vunpack.c.h.b16 %v232
      %v391 = vunpack.c.l.b16 %v233
      %v392 = vunpack.c.h.b16 %v233
      %v393 = vunpack.c.l.b16 %v234
      %v394 = vunpack.c.h.b16 %v234
      %v395 = vunpack.c.l.b16 %v235
      %v396 = vunpack.c.h.b16 %v235
      %v397 = vunpack.c.l.b16 %v236
      %v398 = vunpack.c.h.b16 %v236
      %v399 = vunpack.c.l.b16 %v237
      %v400 = vunpack.c.h.b16 %v237
      %v401 = vunpack.c.l.b16 %v238
      %v402 = vunpack.c.h.b16 %v238
      %v403 = vunpack.c.l.b16 %v239
      %v404 = vunpack.c.h.b16 %v239
      %v405 = vunpack.c.l.b16 %v240
      %v406 = vunpack.c.h.b16 %v240
      %v407 = vunpack.c.l.b16 %v241
      %v408 = vunpack.c.h.b16 %v241
      %v409 = vunpack.c.l.b16 %v242
      %v410 = vunpack.c.h.b16 %v242
      %v411 = vunpack.c.l.b16 %v243
      %v412 = vunpack.c.h.b16 %v243
      %v413 = vunpack.c.l.b16 %v244
      %v414 = vunpack.c.h.b16 %v244
      %v415 = vunpack.c.l.b16 %v245
      %v416 = vunpack.c.h.b16 %v245
      %v417 = vunpack.c.l.b16 %v246
      %v418 = vunpack.c.h.b16 %v246
      %v419 = vunpack.c.l.b16 %v247
      %v420 = vunpack.c.h.b16 %v247
      %v421 = vunpack.c.l.b16 %v248
      %v422 = vunpack.c.h.b16 %v248
      %v423 = vunpack.c.l.b16 %v249
      %v424 = vunpack.c.h.b16 %v249
      %v425 = vunpack.c.l.b16 %v250
      %v426 = vunpack.c.h.b16 %v250
      %v427 = vunpack.c.l.b16 %v251
      %v428 = vunpack.c.h.b16 %v251
      %v429 = vunpack.c.l.b16 %v252
      %v430 = vunpack.c.h.b16 %v252
      %v431 = vunpack.c.l.b16 %v253
      %v432 = vunpack.c.h.b16 %v253
      %v433 = vunpack.c.l.b16 %v254
      %v434 = vunpack.c.h.b16 %v254
      %v435 = vunpack.c.l.b16 %v255
      %v436 = vunpack.c.h.b16 %v255
      %v437 = vunpack.c.l.b16 %v256
      %v438 = vunpack.c.h.b16 %v256
      %v439 = vunpack.c.l.b16 %v257
      %v440 = vunpack.c.h.b16 %v257
      %v441 = vunpack.c.l.b16 %v258
      %v442 = vunpack.c.h.b16 %v258
      %v443 = vunpack.c.l.b16 %v259
      %v444 = vunpack.c.h.b16 %v259
      %v445 = vunpack.c.l.b16 %v260
      %v446 = vunpack.c.h.b16 %v260
      %v447 = vunpack.c.l.b16 %v261
      %v448 = vunpack.c.h.b16 %v261
      %v449 = vunpack.c.l.b16 %v262
      %v450 = vunpack.c.h.b16 %v262
      %v451 = vunpack.c.l.b16 %v263
      %v452 = vunpack.c.h.b16 %v263
      %v453 = vunpack.c.l.b16 %v264
      %v454 = vunpack.c.h.b16 %v264
      %v455 = vunpack.c.l.b16 %v265
      %v456 = vunpack.c.h.b16 %v265
      %v457 = vunpack.c.l.b16 %v266
      %v458 = vunpack.c.h.b16 %v266
      %v459 = vunpack.c.l.b16 %v267
      %v460 = vunpack.c.h.b16 %v267
      %v461 = vunpack.c.l.b16 %v268
      %v462 = vunpack.c.h.b16 %v268
      %v463 = vunpack.c.l.b16 %v269
      %v464 = vunpack.c.h.b16 %v269
      %v465 = vunpack.c.l.b16 %v270
      %v466 = vunpack.c.h.b16 %v270
      %v467 = vunpack.c.l.b16 %v271
      %v468 = vunpack.c.h.b16 %v271
      %v469 = vunpack.c.l.b16 %v272
      %v470 = vunpack.c.h.b16 %v272
      %v471 = vunpack.c.l.b16 %v273
      %v472 = vunpack.c.h.b16 %v273
      %v473 = vunpack.c.l.b16 %v274
      %v474 = vunpack.c.h.b16 %v274
      %v475 = vunpack.c.l.b16 %v275
      %v476 = vunpack.c.h.b16 %v275
      %v477 = vunpack.c.l.b16 %v276
      %v478 = vunpack.c.h.b16 %v276
      %v479 = vunpack.c.l.b16 %v277
      %v480 = vunpack.c.h.b16 %v277
      %v481 = vunpack.c.l.b16 %v278
      %v482 = vunpack.c.h.b16 %v278
      %v483 = vunpack.c.l.b16 %v279
      %v484 = vunpack.c.h.b16 %v279
      %v485 = vunpack.c.l.b16 %v280
      %v486 = vunpack.c.h.b16 %v280
      %v487 = vunpack.c.l.b16 %v281
      %v488 = vunpack.c.h.b16 %v281
      %v489 = vunpack.c.l.b16 %v282
      %v490 = vunpack.c.h.b16 %v282
      %v491 = vunpack.c.l.b16 %v283
      %v492 = vunpack.c.h.b16 %v283
      %v493 = vunpack.c.l.b16 %v284
      %v494 = vunpack.c.h.b16 %v284
      %v495 = vunpack.c.l.b16 %v285
      %v496 = vunpack.c.h.b16 %v285
      %v497 = vunpack.c.l.b16 %v286
      %v498 = vunpack.c.h.b16 %v286
      %v499 = vunpack.c.l.b16 %v287
      %v500 = vunpack.c.h.b16 %v287
      %v501 = vunpack.c.l.b16 %v288
      %v502 = vunpack.c.h.b16 %v288
      %v503 = vunpack.c.l.b16 %v289
      %v504 = vunpack.c.h.b16 %v289
      %v505 = vunpack.c.l.b16 %v290
      %v506 = vunpack.c.h.b16 %v290
      %v507 = vunpack.c.l.b16 %v291
      %v508 = vunpack.c.h.b16 %v291
      %v509 = vunpack.c.l.b16 %v292
      %v510 = vunpack.c.h.b16 %v292
      %v511 = vpack.c.b16 %v385, %v383
      %v512 = vpack.c.b16 %v386, %v384
      %v513 = vpack.c.b16 %v389, %v387
      %v514 = vpack.c.b16 %v390, %v388
      %v515 = vpack.c.b16 %v393, %v391
      %v516 = vpack.c.b16 %v394, %v392
      %v517 = vpack.c.b16 %v397, %v395
      %v518 = vpack.c.b16 %v398, %v396
      %v519 = vpack.c.b16 %v401, %v399
      %v520 = vpack.c.b16 %v402, %v400
      %v521 = vpack.c.b16 %v405, %v403
      %v522 = vpack.c.b16 %v406, %v404
      %v523 = vpack.c.b16 %v409, %v407
      %v524 = vpack.c.b16 %v410, %v408
      %v525 = vpack.c.b16 %v413, %v411
      %v526 = vpack.c.b16 %v414, %v412
      %v527 = vpack.c.b16 %v417, %v415
      %v528 = vpack.c.b16 %v418, %v416
      %v529 = vpack.c.b16 %v421, %v419
      %v530 = vpack.c.b16 %v422, %v420
      %v531 = vpack.c.b16 %v425, %v423
      %v532 = vpack.c.b16 %v426, %v424
      %v533 = vpack.c.b16 %v429, %v427
      %v534 = vpack.c.b16 %v430, %v428
      %v535 = vpack.c.b16 %v433, %v431
      %v536 = vpack.c.b16 %v434, %v432
      %v537 = vpack.c.b16 %v437, %v435
      %v538 = vpack.c.b16 %v438, %v436
      %v539 = vpack.c.b16 %v441, %v439
      %v540 = vpack.c.b16 %v442, %v440
      %v541 = vpack.c.b16 %v445, %v443
      %v542 = vpack.c.b16 %v446, %v444
      %v543 = vpack.c.b16 %v449, %v447
      %v544 = vpack.c.b16 %v450, %v448
      %v545 = vpack.c.b16 %v453, %v451
      %v546 = vpack.c.b16 %v454, %v452
      %v547 = vpack.c.b16 %v457, %v455
      %v548 = vpack.c.b16 %v458, %v456
      %v549 = vpack.c.b16 %v461, %v459
      %v550 = vpack.c.b16 %v462, %v460
      %v551 = vpack.c.b16 %v465, %v463
      %v552 = vpack.c.b16 %v466, %v464
      %v553 = vpack.c.b16 %v469, %v467
      %v554 = vpack.c.b16 %v470, %v468
      %v555 = vpack.c.b16 %v473, %v471
      %v556 = vpack.c.b16 %v474, %v472
      %v557 = vpack.c.b16 %v477, %v475
      %v558 = vpack.c.b16 %v478, %v476
      %v559 = vpack.c.b16 %v481, %v479
      %v560 = vpack.c.b16 %v482, %v480
      %v561 = vpack.c.b16 %v485, %v483
      %v562 = vpack.c.b16 %v486, %v484
      %v563 = vpack.c.b16 %v489, %v487
      %v564 = vpack.c.b16 %v490, %v488
      %v565 = vpack.c.b16 %v493, %v491
      %v566 = vpack.c.b16 %v494, %v492
      %v567 = vpack.c.b16 %v497, %v495
      %v568 = vpack.c.b16 %v498, %v496
      %v569 = vpack.c.b16 %v501, %v499
      %v570 = vpack.c.b16 %v502, %v500
      %v571 = vpack.c.b16 %v505, %v503
      %v572 = vpack.c.b16 %v506, %v504
      %v573 = vpack.c.b16 %v509, %v507
      %v574 = vpack.c.b16 %v510, %v508
      %v626 = vunpack.c.l.b16 %v293
      %v627 = vunpack.c.l.b16 %v294
      %v628 = vunpack.c.l.b16 %v295
      %v629 = vunpack.c.l.b16 %v296
      %v630 = vunpack.c.l.b16 %v297
      %v631 = vunpack.c.l.b16 %v298
      %v632 = vunpack.c.l.b16 %v299
      %v633 = vunpack.c.l.b16 %v300
      %v634 = vunpack.c.l.b16 %v301
      %v635 = vunpack.c.l.b16 %v302
      %v636 = vunpack.c.l.b16 %v303
      %v637 = vunpack.c.l.b16 %v304
      %v638 = vunpack.c.l.b16 %v305
      %v639 = vunpack.c.l.b16 %v306
      %v640 = vunpack.c.l.b16 %v307
      %v641 = vunpack.c.l.b16 %v308
      %v642 = vunpack.c.l.b16 %v309
      %v643 = vunpack.c.l.b16 %v310
      %v644 = vunpack.c.l.b16 %v311
      %v645 = vpack.c.b16 %v627, %v626
      %v646 = vpack.c.b16 %v629, %v628
      %v647 = vpack.c.b16 %v631, %v630
      %v648 = vpack.c.b16 %v633, %v632
      %v649 = vpack.c.b16 %v635, %v634
      %v650 = vpack.c.b16 %v637, %v636
      %v651 = vpack.c.b16 %v639, %v638
      %v652 = vpack.c.b16 %v641, %v640
      %v653 = vpack.c.b16 %v643, %v642
      %v654 = vpack.c.b16 %v644, %v644
      %vm664 = vcmask 154624
      %v666 = vsel %vm664, %v512, 0
      %v669 = vsel %vm664, %v514, 0
      %v672 = vsel %vm664, %v516, 0
      %v675 = vsel %vm664, %v518, 0
      %v678 = vsel %vm664, %v520, 0
      %v681 = vsel %vm664, %v522, 0
      %v684 = vsel %vm664, %v524, 0
      %v687 = vsel %vm664, %v526, 0
      %v690 = vsel %vm664, %v528, 0
      %v693 = vsel %vm664, %v530, 0
      %v696 = vsel %vm664, %v532, 0
      %v699 = vsel %vm664, %v534, 0
      %v702 = vsel %vm664, %v536, 0
      %v705 = vsel %vm664, %v538, 0
      %v708 = vsel %vm664, %v540, 0
      %v711 = vsel %vm664, %v542, 0
      %v714 = vsel %vm664, %v544, 0
      %v717 = vsel %vm664, %v546, 0
      %v720 = vsel %vm664, %v548, 0
      %v723 = vsel %vm664, %v550, 0
      %v726 = vsel %vm664, %v552, 0
      %v729 = vsel %vm664, %v554, 0
      %v732 = vsel %vm664, %v556, 0
      %v735 = vsel %vm664, %v558, 0
      %v738 = vsel %vm664, %v560, 0
      %v741 = vsel %vm664, %v562, 0
      %v744 = vsel %vm664, %v564, 0
      %v747 = vsel %vm664, %v566, 0
      %v750 = vsel %vm664, %v568, 0
      %v753 = vsel %vm664, %v570, 0
      %v756 = vsel %vm664, %v572, 0
      %v759 = vsel %vm664, %v574, 0
      %vm761 = vcmask 1040384
      %vm762 = vcmask 1041408
      %v763 = vsel %vm761, 4294967295, 65535
      %v764 = vsel %vm762, %v763, 0
      %v766 = vand.u32 %v654, %v764
      %768 = vmatprep.subr.bf16.mxu0 0
      %769 = vmatpush1.bf16.msra.mxu0 %v645
      %770 = vmatprep.subr.bf16.mxu0 0
      %771 = vmatpush1.bf16.msra.mxu0 %v646
      %772 = vmatprep.subr.bf16.mxu0 0
      %773 = vmatpush1.bf16.msra.mxu0 %v647
      %774 = vmatprep.subr.bf16.mxu0 0
      %775 = vmatpush1.bf16.msra.mxu0 %v648
      %776 = vmatprep.subr.bf16.mxu0 0
      %777 = vmatpush1.bf16.msra.mxu0 %v649
      %778 = vmatprep.subr.bf16.mxu0 0
      %779 = vmatpush1.bf16.msra.mxu0 %v650
      %780 = vmatprep.subr.bf16.mxu0 0
      %781 = vmatpush1.bf16.msra.mxu0 %v651
      %782 = vmatprep.subr.bf16.mxu0 0
      %783 = vmatpush1.bf16.msra.mxu0 %v652
      %784 = vmatprep.subr.bf16.mxu0 0
      %785 = vmatpush1.bf16.msra.mxu0 %v653
      %786 = vmatprep.subr.bf16.mxu0 0
      %787 = vmatpush1.bf16.msra.mxu0 %v766
      %788 = vmatprep.subr.bf16.mxu0 0
      %789 = vmatpush1.bf16.msra.mxu0 0
      %790 = vmatprep.subr.bf16.mxu0 0
      %791 = vmatpush1.bf16.msra.mxu0 0
      %792 = vmatprep.subr.bf16.mxu0 0
      %793 = vmatpush1.bf16.msra.mxu0 0
      %794 = vmatprep.subr.bf16.mxu0 0
      %795 = vmatpush1.bf16.msra.mxu0 0
      %796 = vmatprep.subr.bf16.mxu0 0
      %797 = vmatpush1.bf16.msra.mxu0 0
      %798 = vmatprep.subr.bf16.mxu0 0
      %799 = vmatpush1.bf16.msra.mxu0 0
      %800 = vmatprep.mubr.bf16.mxu0 %v666
      %801 = vmatmul.mubr.bf16.gmra.mrb[0].mxu0 %v511
      %v802 = vpop.f32.mrb[0].mxu0
      %v803 = vadd.f32 %v317, %v802
      %v804 = vpop.f32.mrb[0].mxu0
      %v805 = vpop.f32.mrb[0].mxu0
      %v806 = vadd.f32 %v317, %v805
      %v807 = vpop.f32.mrb[0].mxu0
      %808 = vmatprep.mubr.bf16.mxu0 %v669
      %809 = vmatmul.mubr.bf16.gmra.mrb[0].mxu0 %v513
      %v810 = vpop.f32.mrb[0].mxu0
      %v811 = vadd.f32 %v317, %v810
      %v812 = vpop.f32.mrb[0].mxu0
      %v813 = vpop.f32.mrb[0].mxu0
      %v814 = vadd.f32 %v317, %v813
      %v815 = vpop.f32.mrb[0].mxu0
      %816 = vmatprep.mubr.bf16.mxu0 %v672
      %817 = vmatmul.mubr.bf16.gmra.mrb[0].mxu0 %v515
      %v818 = vpop.f32.mrb[0].mxu0
      %v819 = vadd.f32 %v317, %v818
      %v820 = vpop.f32.mrb[0].mxu0
      %v821 = vpop.f32.mrb[0].mxu0
      %v822 = vadd.f32 %v317, %v821
      %v823 = vpop.f32.mrb[0].mxu0
      %824 = vmatprep.mubr.bf16.mxu0 %v675
      %825 = vmatmul.mubr.bf16.gmra.mrb[0].mxu0 %v517
      %v826 = vpop.f32.mrb[0].mxu0
      %v827 = vadd.f32 %v317, %v826
      %v828 = vpop.f32.mrb[0].mxu0
      %v829 = vpop.f32.mrb[0].mxu0
      %v830 = vadd.f32 %v317, %v829
      %v831 = vpop.f32.mrb[0].mxu0
      %832 = vmatprep.mubr.bf16.mxu0 %v678
      %833 = vmatmul.mubr.bf16.gmra.mrb[0].mxu0 %v519
      %v834 = vpop.f32.mrb[0].mxu0
      %v835 = vadd.f32 %v317, %v834
      %v836 = vpop.f32.mrb[0].mxu0
      %v837 = vpop.f32.mrb[0].mxu0
      %v838 = vadd.f32 %v317, %v837
      %v839 = vpop.f32.mrb[0].mxu0
      %840 = vmatprep.mubr.bf16.mxu0 %v681
      %841 = vmatmul.mubr.bf16.gmra.mrb[0].mxu0 %v521
      %v842 = vpop.f32.mrb[0].mxu0
      %v843 = vadd.f32 %v317, %v842
      %v844 = vpop.f32.mrb[0].mxu0
      %v845 = vpop.f32.mrb[0].mxu0
      %v846 = vadd.f32 %v317, %v845
      %v847 = vpop.f32.mrb[0].mxu0
      %848 = vmatprep.mubr.bf16.mxu0 %v684
      %849 = vmatmul.mubr.bf16.gmra.mrb[0].mxu0 %v523
      %v850 = vpop.f32.mrb[0].mxu0
      %v851 = vadd.f32 %v317, %v850
      %v852 = vpop.f32.mrb[0].mxu0
      %v853 = vpop.f32.mrb[0].mxu0
      %v854 = vadd.f32 %v317, %v853
      %v855 = vpop.f32.mrb[0].mxu0
      %856 = vmatprep.mubr.bf16.mxu0 %v687
      %857 = vmatmul.mubr.bf16.gmra.mrb[0].mxu0 %v525
      %v858 = vpop.f32.mrb[0].mxu0
      %v859 = vadd.f32 %v317, %v858
      %v860 = vpop.f32.mrb[0].mxu0
      %v861 = vpop.f32.mrb[0].mxu0
      %v862 = vadd.f32 %v317, %v861
      %v863 = vpop.f32.mrb[0].mxu0
      %864 = vmatprep.mubr.bf16.mxu0 %v690
      %865 = vmatmul.mubr.bf16.gmra.mrb[0].mxu0 %v527
      %v866 = vpop.f32.mrb[0].mxu0
      %v867 = vadd.f32 %v317, %v866
      %v868 = vpop.f32.mrb[0].mxu0
      %v869 = vpop.f32.mrb[0].mxu0
      %v870 = vadd.f32 %v317, %v869
      %v871 = vpop.f32.mrb[0].mxu0
      %872 = vmatprep.mubr.bf16.mxu0 %v693
      %873 = vmatmul.mubr.bf16.gmra.mrb[0].mxu0 %v529
      %v874 = vpop.f32.mrb[0].mxu0
      %v875 = vadd.f32 %v317, %v874
      %v876 = vpop.f32.mrb[0].mxu0
      %v877 = vpop.f32.mrb[0].mxu0
      %v878 = vadd.f32 %v317, %v877
      %v879 = vpop.f32.mrb[0].mxu0
      %880 = vmatprep.mubr.bf16.mxu0 %v696
      %881 = vmatmul.mubr.bf16.gmra.mrb[0].mxu0 %v531
      %v882 = vpop.f32.mrb[0].mxu0
      %v883 = vadd.f32 %v317, %v882
      %v884 = vpop.f32.mrb[0].mxu0
      %v885 = vpop.f32.mrb[0].mxu0
      %v886 = vadd.f32 %v317, %v885
      %v887 = vpop.f32.mrb[0].mxu0
      %888 = vmatprep.mubr.bf16.mxu0 %v699
      %889 = vmatmul.mubr.bf16.gmra.mrb[0].mxu0 %v533
      %v890 = vpop.f32.mrb[0].mxu0
      %v891 = vadd.f32 %v317, %v890
      %v892 = vpop.f32.mrb[0].mxu0
      %v893 = vpop.f32.mrb[0].mxu0
      %v894 = vadd.f32 %v317, %v893
      %v895 = vpop.f32.mrb[0].mxu0
      %896 = vmatprep.mubr.bf16.mxu0 %v702
      %897 = vmatmul.mubr.bf16.gmra.mrb[0].mxu0 %v535
      %v898 = vpop.f32.mrb[0].mxu0
      %v899 = vadd.f32 %v317, %v898
      %v900 = vpop.f32.mrb[0].mxu0
      %v901 = vpop.f32.mrb[0].mxu0
      %v902 = vadd.f32 %v317, %v901
      %v903 = vpop.f32.mrb[0].mxu0
      %904 = vmatprep.mubr.bf16.mxu0 %v705
      %905 = vmatmul.mubr.bf16.gmra.mrb[0].mxu0 %v537
      %v906 = vpop.f32.mrb[0].mxu0
      %v907 = vadd.f32 %v317, %v906
      %v908 = vpop.f32.mrb[0].mxu0
      %v909 = vpop.f32.mrb[0].mxu0
      %v910 = vadd.f32 %v317, %v909
      %v911 = vpop.f32.mrb[0].mxu0
      %912 = vmatprep.mubr.bf16.mxu0 %v708
      %913 = vmatmul.mubr.bf16.gmra.mrb[0].mxu0 %v539
      %v914 = vpop.f32.mrb[0].mxu0
      %v915 = vadd.f32 %v317, %v914
      %v916 = vpop.f32.mrb[0].mxu0
      %v917 = vpop.f32.mrb[0].mxu0
      %v918 = vadd.f32 %v317, %v917
      %v919 = vpop.f32.mrb[0].mxu0
      %920 = vmatprep.mubr.bf16.mxu0 %v711
      %921 = vmatmul.mubr.bf16.gmra.mrb[0].mxu0 %v541
      %v922 = vpop.f32.mrb[0].mxu0
      %v923 = vadd.f32 %v317, %v922
      %v924 = vpop.f32.mrb[0].mxu0
      %v925 = vpop.f32.mrb[0].mxu0
      %v926 = vadd.f32 %v317, %v925
      %v927 = vpop.f32.mrb[0].mxu0
      %928 = vmatprep.mubr.bf16.mxu0 %v714
      %929 = vmatmul.mubr.bf16.gmra.mrb[0].mxu0 %v543
      %v930 = vpop.f32.mrb[0].mxu0
      %v931 = vadd.f32 %v317, %v930
      %v932 = vpop.f32.mrb[0].mxu0
      %v933 = vpop.f32.mrb[0].mxu0
      %v934 = vadd.f32 %v317, %v933
      %v935 = vpop.f32.mrb[0].mxu0
      %936 = vmatprep.mubr.bf16.mxu0 %v717
      %937 = vmatmul.mubr.bf16.gmra.mrb[0].mxu0 %v545
      %v938 = vpop.f32.mrb[0].mxu0
      %v939 = vadd.f32 %v317, %v938
      %v940 = vpop.f32.mrb[0].mxu0
      %v941 = vpop.f32.mrb[0].mxu0
      %v942 = vadd.f32 %v317, %v941
      %v943 = vpop.f32.mrb[0].mxu0
      %944 = vmatprep.mubr.bf16.mxu0 %v720
      %945 = vmatmul.mubr.bf16.gmra.mrb[0].mxu0 %v547
      %v946 = vpop.f32.mrb[0].mxu0
      %v947 = vadd.f32 %v317, %v946
      %v948 = vpop.f32.mrb[0].mxu0
      %v949 = vpop.f32.mrb[0].mxu0
      %v950 = vadd.f32 %v317, %v949
      %v951 = vpop.f32.mrb[0].mxu0
      %952 = vmatprep.mubr.bf16.mxu0 %v723
      %953 = vmatmul.mubr.bf16.gmra.mrb[0].mxu0 %v549
      %v954 = vpop.f32.mrb[0].mxu0
      %v955 = vadd.f32 %v317, %v954
      %v956 = vpop.f32.mrb[0].mxu0
      %v957 = vpop.f32.mrb[0].mxu0
      %v958 = vadd.f32 %v317, %v957
      %v959 = vpop.f32.mrb[0].mxu0
      %960 = vmatprep.mubr.bf16.mxu0 %v726
      %961 = vmatmul.mubr.bf16.gmra.mrb[0].mxu0 %v551
      %v962 = vpop.f32.mrb[0].mxu0
      %v963 = vadd.f32 %v317, %v962
      %v964 = vpop.f32.mrb[0].mxu0
      %v965 = vpop.f32.mrb[0].mxu0
      %v966 = vadd.f32 %v317, %v965
      %v967 = vpop.f32.mrb[0].mxu0
      %968 = vmatprep.mubr.bf16.mxu0 %v729
      %969 = vmatmul.mubr.bf16.gmra.mrb[0].mxu0 %v553
      %v970 = vpop.f32.mrb[0].mxu0
      %v971 = vadd.f32 %v317, %v970
      %v972 = vpop.f32.mrb[0].mxu0
      %v973 = vpop.f32.mrb[0].mxu0
      %v974 = vadd.f32 %v317, %v973
      %v975 = vpop.f32.mrb[0].mxu0
      %976 = vmatprep.mubr.bf16.mxu0 %v732
      %977 = vmatmul.mubr.bf16.gmra.mrb[0].mxu0 %v555
      %v978 = vpop.f32.mrb[0].mxu0
      %v979 = vadd.f32 %v317, %v978
      %v980 = vpop.f32.mrb[0].mxu0
      %v981 = vpop.f32.mrb[0].mxu0
      %v982 = vadd.f32 %v317, %v981
      %v983 = vpop.f32.mrb[0].mxu0
      %984 = vmatprep.mubr.bf16.mxu0 %v735
      %985 = vmatmul.mubr.bf16.gmra.mrb[0].mxu0 %v557
      %v986 = vpop.f32.mrb[0].mxu0
      %v987 = vadd.f32 %v317, %v986
      %v988 = vpop.f32.mrb[0].mxu0
      %v989 = vpop.f32.mrb[0].mxu0
      %v990 = vadd.f32 %v317, %v989
      %v991 = vpop.f32.mrb[0].mxu0
      %992 = vmatprep.mubr.bf16.mxu0 %v738
      %993 = vmatmul.mubr.bf16.gmra.mrb[0].mxu0 %v559
      %v994 = vpop.f32.mrb[0].mxu0
      %v995 = vadd.f32 %v317, %v994
      %v996 = vpop.f32.mrb[0].mxu0
      %v997 = vpop.f32.mrb[0].mxu0
      %v998 = vadd.f32 %v317, %v997
      %v999 = vpop.f32.mrb[0].mxu0
      %1000 = vmatprep.mubr.bf16.mxu0 %v741
      %1001 = vmatmul.mubr.bf16.gmra.mrb[0].mxu0 %v561
      %v1002 = vpop.f32.mrb[0].mxu0
      %v1003 = vadd.f32 %v317, %v1002
      %v1004 = vpop.f32.mrb[0].mxu0
      %v1005 = vpop.f32.mrb[0].mxu0
      %v1006 = vadd.f32 %v317, %v1005
      %v1007 = vpop.f32.mrb[0].mxu0
      %1008 = vmatprep.mubr.bf16.mxu0 %v744
      %1009 = vmatmul.mubr.bf16.gmra.mrb[0].mxu0 %v563
      %v1010 = vpop.f32.mrb[0].mxu0
      %v1011 = vadd.f32 %v317, %v1010
      %v1012 = vpop.f32.mrb[0].mxu0
      %v1013 = vpop.f32.mrb[0].mxu0
      %v1014 = vadd.f32 %v317, %v1013
      %v1015 = vpop.f32.mrb[0].mxu0
      %1016 = vmatprep.mubr.bf16.mxu0 %v747
      %1017 = vmatmul.mubr.bf16.gmra.mrb[0].mxu0 %v565
      %v1018 = vpop.f32.mrb[0].mxu0
      %v1019 = vadd.f32 %v317, %v1018
      %v1020 = vpop.f32.mrb[0].mxu0
      %v1021 = vpop.f32.mrb[0].mxu0
      %v1022 = vadd.f32 %v317, %v1021
      %v1023 = vpop.f32.mrb[0].mxu0
      %1024 = vmatprep.mubr.bf16.mxu0 %v750
      %1025 = vmatmul.mubr.bf16.gmra.mrb[0].mxu0 %v567
      %v1026 = vpop.f32.mrb[0].mxu0
      %v1027 = vadd.f32 %v317, %v1026
      %v1028 = vpop.f32.mrb[0].mxu0
      %v1029 = vpop.f32.mrb[0].mxu0
      %v1030 = vadd.f32 %v317, %v1029
      %v1031 = vpop.f32.mrb[0].mxu0
      %1032 = vmatprep.mubr.bf16.mxu0 %v753
      %1033 = vmatmul.mubr.bf16.gmra.mrb[0].mxu0 %v569
      %v1034 = vpop.f32.mrb[0].mxu0
      %v1035 = vadd.f32 %v317, %v1034
      %v1036 = vpop.f32.mrb[0].mxu0
      %v1037 = vpop.f32.mrb[0].mxu0
      %v1038 = vadd.f32 %v317, %v1037
      %v1039 = vpop.f32.mrb[0].mxu0
      %1040 = vmatprep.mubr.bf16.mxu0 %v756
      %1041 = vmatmul.mubr.bf16.gmra.mrb[0].mxu0 %v571
      %v1042 = vpop.f32.mrb[0].mxu0
      %v1043 = vadd.f32 %v317, %v1042
      %v1044 = vpop.f32.mrb[0].mxu0
      %v1045 = vpop.f32.mrb[0].mxu0
      %v1046 = vadd.f32 %v317, %v1045
      %v1047 = vpop.f32.mrb[0].mxu0
      %1048 = vmatprep.mubr.bf16.mxu0 %v759
      %1049 = vmatmul.mubr.bf16.gmra.mrb[0].mxu0 %v573
      %v1050 = vpop.f32.mrb[0].mxu0
      %v1051 = vadd.f32 %v317, %v1050
      %v1052 = vpop.f32.mrb[0].mxu0
      %v1053 = vpop.f32.mrb[0].mxu0
      %v1054 = vadd.f32 %v317, %v1053
      %v1055 = vpop.f32.mrb[0].mxu0
      %1056 = vdwg.mxu0
      %v1057 = vmax.f32 %v803, 0.0
      %v1058 = vmax.f32 %v806, 0.0
      %v1059 = vmax.f32 %v811, 0.0
      %v1060 = vmax.f32 %v814, 0.0
      %v1061 = vmax.f32 %v819, 0.0
      %v1062 = vmax.f32 %v822, 0.0
      %v1063 = vmax.f32 %v827, 0.0
      %v1064 = vmax.f32 %v830, 0.0
      %v1065 = vmax.f32 %v835, 0.0
      %v1066 = vmax.f32 %v838, 0.0
      %v1067 = vmax.f32 %v843, 0.0
      %v1068 = vmax.f32 %v846, 0.0
      %v1069 = vmax.f32 %v851, 0.0
      %v1070 = vmax.f32 %v854, 0.0
      %v1071 = vmax.f32 %v859, 0.0
      %v1072 = vmax.f32 %v862, 0.0
      %v1073 = vmax.f32 %v867, 0.0
      %v1074 = vmax.f32 %v870, 0.0
      %v1075 = vmax.f32 %v875, 0.0
      %v1076 = vmax.f32 %v878, 0.0
      %v1077 = vmax.f32 %v883, 0.0
      %v1078 = vmax.f32 %v886, 0.0
      %v1079 = vmax.f32 %v891, 0.0
      %v1080 = vmax.f32 %v894, 0.0
      %v1081 = vmax.f32 %v899, 0.0
      %v1082 = vmax.f32 %v902, 0.0
      %v1083 = vmax.f32 %v907, 0.0
      %v1084 = vmax.f32 %v910, 0.0
      %v1085 = vmax.f32 %v915, 0.0
      %v1086 = vmax.f32 %v918, 0.0
      %v1087 = vmax.f32 %v923, 0.0
      %v1088 = vmax.f32 %v926, 0.0
      %v1089 = vmax.f32 %v931, 0.0
      %v1090 = vmax.f32 %v934, 0.0
      %v1091 = vmax.f32 %v939, 0.0
      %v1092 = vmax.f32 %v942, 0.0
      %v1093 = vmax.f32 %v947, 0.0
      %v1094 = vmax.f32 %v950, 0.0
      %v1095 = vmax.f32 %v955, 0.0
      %v1096 = vmax.f32 %v958, 0.0
      %v1097 = vmax.f32 %v963, 0.0
      %v1098 = vmax.f32 %v966, 0.0
      %v1099 = vmax.f32 %v971, 0.0
      %v1100 = vmax.f32 %v974, 0.0
      %v1101 = vmax.f32 %v979, 0.0
      %v1102 = vmax.f32 %v982, 0.0
      %v1103 = vmax.f32 %v987, 0.0
      %v1104 = vmax.f32 %v990, 0.0
      %v1105 = vmax.f32 %v995, 0.0
      %v1106 = vmax.f32 %v998, 0.0
      %v1107 = vmax.f32 %v1003, 0.0
      %v1108 = vmax.f32 %v1006, 0.0
      %v1109 = vmax.f32 %v1011, 0.0
      %v1110 = vmax.f32 %v1014, 0.0
      %v1111 = vmax.f32 %v1019, 0.0
      %v1112 = vmax.f32 %v1022, 0.0
      %v1113 = vmax.f32 %v1027, 0.0
      %v1114 = vmax.f32 %v1030, 0.0
      %v1115 = vmax.f32 %v1035, 0.0
      %v1116 = vmax.f32 %v1038, 0.0
      %v1117 = vmax.f32 %v1043, 0.0
      %v1118 = vmax.f32 %v1046, 0.0
      %v1119 = vmax.f32 %v1051, 0.0
      %v1120 = vmax.f32 %v1054, 0.0
      %v1121 = vpack.c.bf16 %v1058, %v1057
      %v1122 = vpack.c.bf16 %v1060, %v1059
      %v1123 = vpack.c.bf16 %v1062, %v1061
      %v1124 = vpack.c.bf16 %v1064, %v1063
      %v1125 = vpack.c.bf16 %v1066, %v1065
      %v1126 = vpack.c.bf16 %v1068, %v1067
      %v1127 = vpack.c.bf16 %v1070, %v1069
      %v1128 = vpack.c.bf16 %v1072, %v1071
      %v1129 = vpack.c.bf16 %v1074, %v1073
      %v1130 = vpack.c.bf16 %v1076, %v1075
      %v1131 = vpack.c.bf16 %v1078, %v1077
      %v1132 = vpack.c.bf16 %v1080, %v1079
      %v1133 = vpack.c.bf16 %v1082, %v1081
      %v1134 = vpack.c.bf16 %v1084, %v1083
      %v1135 = vpack.c.bf16 %v1086, %v1085
      %v1136 = vpack.c.bf16 %v1088, %v1087
      %v1137 = vpack.c.bf16 %v1090, %v1089
      %v1138 = vpack.c.bf16 %v1092, %v1091
      %v1139 = vpack.c.bf16 %v1094, %v1093
      %v1140 = vpack.c.bf16 %v1096, %v1095
      %v1141 = vpack.c.bf16 %v1098, %v1097
      %v1142 = vpack.c.bf16 %v1100, %v1099
      %v1143 = vpack.c.bf16 %v1102, %v1101
      %v1144 = vpack.c.bf16 %v1104, %v1103
      %v1145 = vpack.c.bf16 %v1106, %v1105
      %v1146 = vpack.c.bf16 %v1108, %v1107
      %v1147 = vpack.c.bf16 %v1110, %v1109
      %v1148 = vpack.c.bf16 %v1112, %v1111
      %v1149 = vpack.c.bf16 %v1114, %v1113
      %v1150 = vpack.c.bf16 %v1116, %v1115
      %v1151 = vpack.c.bf16 %v1118, %v1117
      %v1152 = vpack.c.bf16 %v1120, %v1119
      %v1185 = vunpack.c.l.b16 %v1121
      %v1186 = vunpack.c.h.b16 %v1121
      %v1187 = vunpack.c.l.b16 %v1122
      %v1188 = vunpack.c.h.b16 %v1122
      %v1189 = vunpack.c.l.b16 %v1123
      %v1190 = vunpack.c.h.b16 %v1123
      %v1191 = vunpack.c.l.b16 %v1124
      %v1192 = vunpack.c.h.b16 %v1124
      %v1193 = vunpack.c.l.b16 %v1125
      %v1194 = vunpack.c.h.b16 %v1125
      %v1195 = vunpack.c.l.b16 %v1126
      %v1196 = vunpack.c.h.b16 %v1126
      %v1197 = vunpack.c.l.b16 %v1127
      %v1198 = vunpack.c.h.b16 %v1127
      %v1199 = vunpack.c.l.b16 %v1128
      %v1200 = vunpack.c.h.b16 %v1128
      %v1201 = vunpack.c.l.b16 %v1129
      %v1202 = vunpack.c.h.b16 %v1129
      %v1203 = vunpack.c.l.b16 %v1130
      %v1204 = vunpack.c.h.b16 %v1130
      %v1205 = vunpack.c.l.b16 %v1131
      %v1206 = vunpack.c.h.b16 %v1131
      %v1207 = vunpack.c.l.b16 %v1132
      %v1208 = vunpack.c.h.b16 %v1132
      %v1209 = vunpack.c.l.b16 %v1133
      %v1210 = vunpack.c.h.b16 %v1133
      %v1211 = vunpack.c.l.b16 %v1134
      %v1212 = vunpack.c.h.b16 %v1134
      %v1213 = vunpack.c.l.b16 %v1135
      %v1214 = vunpack.c.h.b16 %v1135
      %v1215 = vunpack.c.l.b16 %v1136
      %v1216 = vunpack.c.h.b16 %v1136
      %v1217 = vunpack.c.l.b16 %v1137
      %v1218 = vunpack.c.h.b16 %v1137
      %v1219 = vunpack.c.l.b16 %v1138
      %v1220 = vunpack.c.h.b16 %v1138
      %v1221 = vunpack.c.l.b16 %v1139
      %v1222 = vunpack.c.h.b16 %v1139
      %v1223 = vunpack.c.l.b16 %v1140
      %v1224 = vunpack.c.h.b16 %v1140
      %v1225 = vunpack.c.l.b16 %v1141
      %v1226 = vunpack.c.h.b16 %v1141
      %v1227 = vunpack.c.l.b16 %v1142
      %v1228 = vunpack.c.h.b16 %v1142
      %v1229 = vunpack.c.l.b16 %v1143
      %v1230 = vunpack.c.h.b16 %v1143
      %v1231 = vunpack.c.l.b16 %v1144
      %v1232 = vunpack.c.h.b16 %v1144
      %v1233 = vunpack.c.l.b16 %v1145
      %v1234 = vunpack.c.h.b16 %v1145
      %v1235 = vunpack.c.l.b16 %v1146
      %v1236 = vunpack.c.h.b16 %v1146
      %v1237 = vunpack.c.l.b16 %v1147
      %v1238 = vunpack.c.h.b16 %v1147
      %v1239 = vunpack.c.l.b16 %v1148
      %v1240 = vunpack.c.h.b16 %v1148
      %v1241 = vunpack.c.l.b16 %v1149
      %v1242 = vunpack.c.h.b16 %v1149
      %v1243 = vunpack.c.l.b16 %v1150
      %v1244 = vunpack.c.h.b16 %v1150
      %v1245 = vunpack.c.l.b16 %v1151
      %v1246 = vunpack.c.h.b16 %v1151
      %v1247 = vunpack.c.l.b16 %v1152
      %v1248 = vunpack.c.h.b16 %v1152
      %v1249 = vpack.c.b16 %v1185, %v1185
      %v1250 = vpack.c.b16 %v1186, %v1186
      %v1251 = vpack.c.b16 %v1187, %v1187
      %v1252 = vpack.c.b16 %v1188, %v1188
      %v1253 = vpack.c.b16 %v1189, %v1189
      %v1254 = vpack.c.b16 %v1190, %v1190
      %v1255 = vpack.c.b16 %v1191, %v1191
      %v1256 = vpack.c.b16 %v1192, %v1192
      %v1257 = vpack.c.b16 %v1193, %v1193
      %v1258 = vpack.c.b16 %v1194, %v1194
      %v1259 = vpack.c.b16 %v1195, %v1195
      %v1260 = vpack.c.b16 %v1196, %v1196
      %v1261 = vpack.c.b16 %v1197, %v1197
      %v1262 = vpack.c.b16 %v1198, %v1198
      %v1263 = vpack.c.b16 %v1199, %v1199
      %v1264 = vpack.c.b16 %v1200, %v1200
      %v1265 = vpack.c.b16 %v1201, %v1201
      %v1266 = vpack.c.b16 %v1202, %v1202
      %v1267 = vpack.c.b16 %v1203, %v1203
      %v1268 = vpack.c.b16 %v1204, %v1204
      %v1269 = vpack.c.b16 %v1205, %v1205
      %v1270 = vpack.c.b16 %v1206, %v1206
      %v1271 = vpack.c.b16 %v1207, %v1207
      %v1272 = vpack.c.b16 %v1208, %v1208
      %v1273 = vpack.c.b16 %v1209, %v1209
      %v1274 = vpack.c.b16 %v1210, %v1210
      %v1275 = vpack.c.b16 %v1211, %v1211
      %v1276 = vpack.c.b16 %v1212, %v1212
      %v1277 = vpack.c.b16 %v1213, %v1213
      %v1278 = vpack.c.b16 %v1214, %v1214
      %v1279 = vpack.c.b16 %v1215, %v1215
      %v1280 = vpack.c.b16 %v1216, %v1216
      %v1281 = vpack.c.b16 %v1217, %v1217
      %v1282 = vpack.c.b16 %v1218, %v1218
      %v1283 = vpack.c.b16 %v1219, %v1219
      %v1284 = vpack.c.b16 %v1220, %v1220
      %v1285 = vpack.c.b16 %v1221, %v1221
      %v1286 = vpack.c.b16 %v1222, %v1222
      %v1287 = vpack.c.b16 %v1223, %v1223
      %v1288 = vpack.c.b16 %v1224, %v1224
      %v1289 = vpack.c.b16 %v1225, %v1225
      %v1290 = vpack.c.b16 %v1226, %v1226
      %v1291 = vpack.c.b16 %v1227, %v1227
      %v1292 = vpack.c.b16 %v1228, %v1228
      %v1293 = vpack.c.b16 %v1229, %v1229
      %v1294 = vpack.c.b16 %v1230, %v1230
      %v1295 = vpack.c.b16 %v1231, %v1231
      %v1296 = vpack.c.b16 %v1232, %v1232
      %v1297 = vpack.c.b16 %v1233, %v1233
      %v1298 = vpack.c.b16 %v1234, %v1234
      %v1299 = vpack.c.b16 %v1235, %v1235
      %v1300 = vpack.c.b16 %v1236, %v1236
      %v1301 = vpack.c.b16 %v1237, %v1237
      %v1302 = vpack.c.b16 %v1238, %v1238
      %v1303 = vpack.c.b16 %v1239, %v1239
      %v1304 = vpack.c.b16 %v1240, %v1240
      %v1305 = vpack.c.b16 %v1241, %v1241
      %v1306 = vpack.c.b16 %v1242, %v1242
      %v1307 = vpack.c.b16 %v1243, %v1243
      %v1308 = vpack.c.b16 %v1244, %v1244
      %v1309 = vpack.c.b16 %v1245, %v1245
      %v1310 = vpack.c.b16 %v1246, %v1246
      %v1311 = vpack.c.b16 %v1247, %v1247
      %v1312 = vpack.c.b16 %v1248, %v1248
      %1377 = vst [vmem:[%s226] sm:$0xf] %v1249
      %1378 = vst [vmem:[%s226 + $0x4] sm:$0xf] %v1250
      %1379 = vst [vmem:[%s226 + $0x8] sm:$0xf] %v1251
      %1380 = vst [vmem:[%s226 + $0xc] sm:$0xf] %v1252
      %1381 = vst [vmem:[%s226 + $0x10] sm:$0xf] %v1253
      %1382 = vst [vmem:[%s226 + $0x14] sm:$0xf] %v1254
      %1383 = vst [vmem:[%s226 + $0x18] sm:$0xf] %v1255
      %1384 = vst [vmem:[%s226 + $0x1c] sm:$0xf] %v1256
      %1385 = vst [vmem:[%s226 + $0x20] sm:$0xf] %v1257
      %1386 = vst [vmem:[%s226 + $0x24] sm:$0xf] %v1258
      %1387 = vst [vmem:[%s226 + $0x28] sm:$0xf] %v1259
      %1388 = vst [vmem:[%s226 + $0x2c] sm:$0xf] %v1260
      %1389 = vst [vmem:[%s226 + $0x30] sm:$0xf] %v1261
      %1390 = vst [vmem:[%s226 + $0x34] sm:$0xf] %v1262
      %1391 = vst [vmem:[%s226 + $0x38] sm:$0xf] %v1263
      %1392 = vst [vmem:[%s226 + $0x3c] sm:$0xf] %v1264
      %1393 = vst [vmem:[%s226 + $0x40] sm:$0xf] %v1265
      %1394 = vst [vmem:[%s226 + $0x44] sm:$0xf] %v1266
      %1395 = vst [vmem:[%s226 + $0x48] sm:$0xf] %v1267
      %1396 = vst [vmem:[%s226 + $0x4c] sm:$0xf] %v1268
      %1397 = vst [vmem:[%s226 + $0x50] sm:$0xf] %v1269
      %1398 = vst [vmem:[%s226 + $0x54] sm:$0xf] %v1270
      %1399 = vst [vmem:[%s226 + $0x58] sm:$0xf] %v1271
      %1400 = vst [vmem:[%s226 + $0x5c] sm:$0xf] %v1272
      %1401 = vst [vmem:[%s226 + $0x60] sm:$0xf] %v1273
      %1402 = vst [vmem:[%s226 + $0x64] sm:$0xf] %v1274
      %1403 = vst [vmem:[%s226 + $0x68] sm:$0xf] %v1275
      %1404 = vst [vmem:[%s226 + $0x6c] sm:$0xf] %v1276
      %1405 = vst [vmem:[%s226 + $0x70] sm:$0xf] %v1277
      %1406 = vst [vmem:[%s226 + $0x74] sm:$0xf] %v1278
      %1407 = vst [vmem:[%s226 + $0x78] sm:$0xf] %v1279
      %1408 = vst [vmem:[%s226 + $0x7c] sm:$0xf] %v1280
      %1409 = vst [vmem:[%s226 + $0x80] sm:$0xf] %v1281
      %1410 = vst [vmem:[%s226 + $0x84] sm:$0xf] %v1282
      %1411 = vst [vmem:[%s226 + $0x88] sm:$0xf] %v1283
      %1412 = vst [vmem:[%s226 + $0x8c] sm:$0xf] %v1284
      %1413 = vst [vmem:[%s226 + $0x90] sm:$0xf] %v1285
      %1414 = vst [vmem:[%s226 + $0x94] sm:$0xf] %v1286
      %1415 = vst [vmem:[%s226 + $0x98] sm:$0xf] %v1287
      %1416 = vst [vmem:[%s226 + $0x9c] sm:$0xf] %v1288
      %1417 = vst [vmem:[%s226 + $0xa0] sm:$0xf] %v1289
      %1418 = vst [vmem:[%s226 + $0xa4] sm:$0xf] %v1290
      %1419 = vst [vmem:[%s226 + $0xa8] sm:$0xf] %v1291
      %1420 = vst [vmem:[%s226 + $0xac] sm:$0xf] %v1292
      %1421 = vst [vmem:[%s226 + $0xb0] sm:$0xf] %v1293
      %1422 = vst [vmem:[%s226 + $0xb4] sm:$0xf] %v1294
      %1423 = vst [vmem:[%s226 + $0xb8] sm:$0xf] %v1295
      %1424 = vst [vmem:[%s226 + $0xbc] sm:$0xf] %v1296
      %1425 = vst [vmem:[%s226 + $0xc0] sm:$0xf] %v1297
      %1426 = vst [vmem:[%s226 + $0xc4] sm:$0xf] %v1298
      %1427 = vst [vmem:[%s226 + $0xc8] sm:$0xf] %v1299
      %1428 = vst [vmem:[%s226 + $0xcc] sm:$0xf] %v1300
      %1429 = vst [vmem:[%s226 + $0xd0] sm:$0xf] %v1301
      %1430 = vst [vmem:[%s226 + $0xd4] sm:$0xf] %v1302
      %1431 = vst [vmem:[%s226 + $0xd8] sm:$0xf] %v1303
      %1432 = vst [vmem:[%s226 + $0xdc] sm:$0xf] %v1304
      %1433 = vst [vmem:[%s226 + $0xe0] sm:$0xf] %v1305
      %1434 = vst [vmem:[%s226 + $0xe4] sm:$0xf] %v1306
      %1435 = vst [vmem:[%s226 + $0xe8] sm:$0xf] %v1307
      %1436 = vst [vmem:[%s226 + $0xec] sm:$0xf] %v1308
      %1437 = vst [vmem:[%s226 + $0xf0] sm:$0xf] %v1309
      %1438 = vst [vmem:[%s226 + $0xf4] sm:$0xf] %v1310
      %1439 = vst [vmem:[%s226 + $0xf8] sm:$0xf] %v1311
      %1440 = vst [vmem:[%s226 + $0xfc] sm:$0xf] %v1312
      %s1441 = smul.u32 64, %s18
      %p1442 = scmp.lt.s32.totalorder %s1441, 255
      %s1443 = scalar_select %p1442, %s1441, 255
      %p1444 = scmp.lt.s32.totalorder %s19, 0
      %s1445 = scalar_select %p1444, %s19, 0
      %s1446 = sadd.s32 %s1445, %s1443
      %s1447 = smul.addr %s1446, 4
      %s1448 = scalar_lea.vmem %s3, %s1447
      // Predicated region
      $region33: #{encoder_forward.18} parent=31 // pred_check
        %p1449 = pneg %p124
      $region34: #{encoder_forward.18} parent=31 // pred_check_branch
        %1451 = sbr.rel (%p1449) target = $region36
      $region35: #{encoder_forward.18} parent=31 // pred_region
        %s1452 = smul.u32 64, %s18
      $region36: #{encoder_forward.18} parent=31 // pred_fallthru
        _
    $region32: #{encoder_forward.18} parent=5 // pred_fallthru
      _
    %p1453 = scmp.le.s32.totalorder 2, %s9
    // Predicated region
    $region37: #{encoder_forward.18} parent=5 // pred_check
      %p1454 = pneg %p1453
    $region38: #{encoder_forward.18} parent=5 // pred_check_branch
      %1456 = sbr.rel (%p1454) target = $region40
    $region39: #{encoder_forward.18} parent=5 // pred_region
      %s1457 = ssub.s32 %s9, 2
      // Predicated region
      $region41: #{encoder_forward.18} parent=39 // pred_check
        %p1458 = pneg %p130
      $region42: #{encoder_forward.18} parent=39 // pred_check_branch
        %1460 = sbr.rel (%p1458) target = $region44
      $region43: #{encoder_forward.18} parent=39 // pred_region
        %s1461 = smul.u32 64, %s20
        %p1462 = scmp.lt.s32.totalorder %s1461, 255
        %s1463 = scalar_select %p1462, %s1461, 255
        %p1464 = scmp.lt.s32.totalorder %s21, 0
        %s1465 = scalar_select %p1464, %s21, 0
        %s1466 = sadd.s32 %s1465, %s1463
        %s1467 = smul.addr %s1466, 4
        %s1468 = scalar_lea.vmem %s3, %s1467
      $region44: #{encoder_forward.18} parent=39 // pred_fallthru
        _
    $region40: #{encoder_forward.18} parent=5 // pred_fallthru
      _
  $region6: #{encoder_forward.18} parent=0 // loop_footer
    %s13 = sadd.s32 1, %s9
  $region7: #{encoder_forward.18} parent=0 // loop_footer_branch
    %8 = sbr.rel target = $region3
  $region8: #{encoder_forward.18} parent=0 // loop_exit
    _

// kernel: encoder_forward.20
$region0: #{encoder_forward.20}
  #allocation0 [shape = 'u32[]', space=smem, size = 0x4, offset = 0x4, fixed_abs, tag = 'smem constant byte address 0x4 - core index']
  #allocation1 [shape = 'u32[144,128]{1,0:T(1,128)}', space=vmem, size = 0x12000, scoped, tag = 'internal scratch']
  %s0 = inlined_call_operand.vmem [shape: bf16[512,72], index: 0, kind: input, shape index: {}]
  %s1 = inlined_call_operand.vmem [shape: bf16[72,128], index: 1, kind: input, shape index: {}]
  %s2 = inlined_call_operand.vmem [shape: f32[1,128], index: 2, kind: input, shape index: {}]
  %s3 = inlined_call_operand.vmem [shape: bf16[512,128], index: 3, kind: output, shape index: {}]
  %s4 = sld [smem:[#allocation0]]
  $region22: #{encoder_forward.20} parent=0
    _
  %s6 = ssub.s32 1, %s4
  %s7 = scalar_select 0, %s6, %s4
  // Predicated region
  $region2: #{encoder_forward.20} parent=0 // pred_check
    _
  $region3: #{encoder_forward.20} parent=0 // pred_check_branch
    %9 = sbr.rel (0) target = $region5
  $region4: #{encoder_forward.20} parent=0 // pred_region
    _
  $region5: #{encoder_forward.20} parent=0 // pred_fallthru
    _
  // Predicated region
  $region6: #{encoder_forward.20} parent=0 // pred_check
    _
  $region7: #{encoder_forward.20} parent=0 // pred_check_branch
    %11 = sbr.rel (0) target = $region9
  $region8: #{encoder_forward.20} parent=0 // pred_region
    _
  $region9: #{encoder_forward.20} parent=0 // pred_fallthru
    _
  // Predicated region
  $region10: #{encoder_forward.20} parent=0 // pred_check
    _
  $region11: #{encoder_forward.20} parent=0 // pred_check_branch
    %13 = sbr.rel (0) target = $region13
  $region12: #{encoder_forward.20} parent=0 // pred_region
    _
  $region13: #{encoder_forward.20} parent=0 // pred_fallthru
    _
  %v15 = vld [vmem:[%s0] sm:$0xf]
  %v16 = vld [vmem:[%s0 + $0x4] sm:$0xf]
  %v17 = vld [vmem:[%s0 + $0x8] sm:$0xf]
  %v18 = vld [vmem:[%s0 + $0xc] sm:$0xf]
  %v19 = vld [vmem:[%s0 + $0x10] sm:$0xf]
  %v20 = vld [vmem:[%s0 + $0x14] sm:$0xf]
  %v21 = vld [vmem:[%s0 + $0x18] sm:$0xf]
  %v22 = vld [vmem:[%s0 + $0x1c] sm:$0xf]
  %v23 = vld [vmem:[%s0 + $0x20] sm:$0xf]
  %v24 = vld [vmem:[%s0 + $0x24] sm:$0xf]
  %v25 = vld [vmem:[%s0 + $0x28] sm:$0xf]
  %v26 = vld [vmem:[%s0 + $0x2c] sm:$0xf]
  %v27 = vld [vmem:[%s0 + $0x30] sm:$0xf]
  %v28 = vld [vmem:[%s0 + $0x34] sm:$0xf]
  %v29 = vld [vmem:[%s0 + $0x38] sm:$0xf]
  %v30 = vld [vmem:[%s0 + $0x3c] sm:$0xf]
  %v31 = vld [vmem:[%s0 + $0x40] sm:$0xf]
  %v32 = vld [vmem:[%s0 + $0x44] sm:$0xf]
  %v33 = vld [vmem:[%s0 + $0x48] sm:$0xf]
  %v34 = vld [vmem:[%s0 + $0x4c] sm:$0xf]
  %v35 = vld [vmem:[%s0 + $0x50] sm:$0xf]
  %v36 = vld [vmem:[%s0 + $0x54] sm:$0xf]
  %v37 = vld [vmem:[%s0 + $0x58] sm:$0xf]
  %v38 = vld [vmem:[%s0 + $0x5c] sm:$0xf]
  %v39 = vld [vmem:[%s0 + $0x60] sm:$0xf]
  %v40 = vld [vmem:[%s0 + $0x64] sm:$0xf]
  %v41 = vld [vmem:[%s0 + $0x68] sm:$0xf]
  %v42 = vld [vmem:[%s0 + $0x6c] sm:$0xf]
  %v43 = vld [vmem:[%s0 + $0x70] sm:$0xf]
  %v44 = vld [vmem:[%s0 + $0x74] sm:$0xf]
  %v45 = vld [vmem:[%s0 + $0x78] sm:$0xf]
  %v46 = vld [vmem:[%s0 + $0x7c] sm:$0xf]
  %v47 = vld [vmem:[%s0 + $0x80] sm:$0xf]
  %v48 = vld [vmem:[%s0 + $0x84] sm:$0xf]
  %v49 = vld [vmem:[%s0 + $0x88] sm:$0xf]
  %v50 = vld [vmem:[%s0 + $0x8c] sm:$0xf]
  %v51 = vld [vmem:[%s0 + $0x90] sm:$0xf]
  %v52 = vld [vmem:[%s0 + $0x94] sm:$0xf]
  %v53 = vld [vmem:[%s0 + $0x98] sm:$0xf]
  %v54 = vld [vmem:[%s0 + $0x9c] sm:$0xf]
  %v55 = vld [vmem:[%s0 + $0xa0] sm:$0xf]
  %v56 = vld [vmem:[%s0 + $0xa4] sm:$0xf]
  %v57 = vld [vmem:[%s0 + $0xa8] sm:$0xf]
  %v58 = vld [vmem:[%s0 + $0xac] sm:$0xf]
  %v59 = vld [vmem:[%s0 + $0xb0] sm:$0xf]
  %v60 = vld [vmem:[%s0 + $0xb4] sm:$0xf]
  %v61 = vld [vmem:[%s0 + $0xb8] sm:$0xf]
  %v62 = vld [vmem:[%s0 + $0xbc] sm:$0xf]
  %v63 = vld [vmem:[%s0 + $0xc0] sm:$0xf]
  %v64 = vld [vmem:[%s0 + $0xc4] sm:$0xf]
  %v65 = vld [vmem:[%s0 + $0xc8] sm:$0xf]
  %v66 = vld [vmem:[%s0 + $0xcc] sm:$0xf]
  %v67 = vld [vmem:[%s0 + $0xd0] sm:$0xf]
  %v68 = vld [vmem:[%s0 + $0xd4] sm:$0xf]
  %v69 = vld [vmem:[%s0 + $0xd8] sm:$0xf]
  %v70 = vld [vmem:[%s0 + $0xdc] sm:$0xf]
  %v71 = vld [vmem:[%s0 + $0xe0] sm:$0xf]
  %v72 = vld [vmem:[%s0 + $0xe4] sm:$0xf]
  %v73 = vld [vmem:[%s0 + $0xe8] sm:$0xf]
  %v74 = vld [vmem:[%s0 + $0xec] sm:$0xf]
  %v75 = vld [vmem:[%s0 + $0xf0] sm:$0xf]
  %v76 = vld [vmem:[%s0 + $0xf4] sm:$0xf]
  %v77 = vld [vmem:[%s0 + $0xf8] sm:$0xf]
  %v78 = vld [vmem:[%s0 + $0xfc] sm:$0xf]
  %v79 = vld [vmem:[%s1] sm:$0xf]
  %v80 = vld [vmem:[%s1 + $0x4] sm:$0xf]
  %v81 = vld [vmem:[%s1 + $0x8] sm:$0xf]
  %v82 = vld [vmem:[%s1 + $0xc] sm:$0xf]
  %v83 = vld [vmem:[%s1 + $0x10] sm:$0xf]
  %v84 = vld [vmem:[%s1 + $0x14] sm:$0xf]
  %v85 = vld [vmem:[%s1 + $0x18] sm:$0xf]
  %v86 = vld [vmem:[%s1 + $0x1c] sm:$0xf]
  %v87 = vld [vmem:[%s1 + $0x20] sm:$0xf]
  %v88 = vld [vmem:[%s2] sm:$0x1]
  %v90 = vlaneseq
  %v91 = vshrl.u32 %v90, 7
  %v92 = vsub.s32 0, %v91
  %v93 = vrot.slane %v88, %v92
  %v159 = vunpack.c.l.b16 %v15
  %v160 = vunpack.c.l.b16 %v16
  %v161 = vunpack.c.l.b16 %v17
  %v162 = vunpack.c.l.b16 %v18
  %v163 = vunpack.c.l.b16 %v19
  %v164 = vunpack.c.l.b16 %v20
  %v165 = vunpack.c.l.b16 %v21
  %v166 = vunpack.c.l.b16 %v22
  %v167 = vunpack.c.l.b16 %v23
  %v168 = vunpack.c.l.b16 %v24
  %v169 = vunpack.c.l.b16 %v25
  %v170 = vunpack.c.l.b16 %v26
  %v171 = vunpack.c.l.b16 %v27
  %v172 = vunpack.c.l.b16 %v28
  %v173 = vunpack.c.l.b16 %v29
  %v174 = vunpack.c.l.b16 %v30
  %v175 = vunpack.c.l.b16 %v31
  %v176 = vunpack.c.l.b16 %v32
  %v177 = vunpack.c.l.b16 %v33
  %v178 = vunpack.c.l.b16 %v34
  %v179 = vunpack.c.l.b16 %v35
  %v180 = vunpack.c.l.b16 %v36
  %v181 = vunpack.c.l.b16 %v37
  %v182 = vunpack.c.l.b16 %v38
  %v183 = vunpack.c.l.b16 %v39
  %v184 = vunpack.c.l.b16 %v40
  %v185 = vunpack.c.l.b16 %v41
  %v186 = vunpack.c.l.b16 %v42
  %v187 = vunpack.c.l.b16 %v43
  %v188 = vunpack.c.l.b16 %v44
  %v189 = vunpack.c.l.b16 %v45
  %v190 = vunpack.c.l.b16 %v46
  %v191 = vunpack.c.l.b16 %v47
  %v192 = vunpack.c.l.b16 %v48
  %v193 = vunpack.c.l.b16 %v49
  %v194 = vunpack.c.l.b16 %v50
  %v195 = vunpack.c.l.b16 %v51
  %v196 = vunpack.c.l.b16 %v52
  %v197 = vunpack.c.l.b16 %v53
  %v198 = vunpack.c.l.b16 %v54
  %v199 = vunpack.c.l.b16 %v55
  %v200 = vunpack.c.l.b16 %v56
  %v201 = vunpack.c.l.b16 %v57
  %v202 = vunpack.c.l.b16 %v58
  %v203 = vunpack.c.l.b16 %v59
  %v204 = vunpack.c.l.b16 %v60
  %v205 = vunpack.c.l.b16 %v61
  %v206 = vunpack.c.l.b16 %v62
  %v207 = vunpack.c.l.b16 %v63
  %v208 = vunpack.c.l.b16 %v64
  %v209 = vunpack.c.l.b16 %v65
  %v210 = vunpack.c.l.b16 %v66
  %v211 = vunpack.c.l.b16 %v67
  %v212 = vunpack.c.l.b16 %v68
  %v213 = vunpack.c.l.b16 %v69
  %v214 = vunpack.c.l.b16 %v70
  %v215 = vunpack.c.l.b16 %v71
  %v216 = vunpack.c.l.b16 %v72
  %v217 = vunpack.c.l.b16 %v73
  %v218 = vunpack.c.l.b16 %v74
  %v219 = vunpack.c.l.b16 %v75
  %v220 = vunpack.c.l.b16 %v76
  %v221 = vunpack.c.l.b16 %v77
  %v222 = vunpack.c.l.b16 %v78
  %v223 = vpack.c.b16 %v160, %v159
  %v224 = vpack.c.b16 %v162, %v161
  %v225 = vpack.c.b16 %v164, %v163
  %v226 = vpack.c.b16 %v166, %v165
  %v227 = vpack.c.b16 %v168, %v167
  %v228 = vpack.c.b16 %v170, %v169
  %v229 = vpack.c.b16 %v172, %v171
  %v230 = vpack.c.b16 %v174, %v173
  %v231 = vpack.c.b16 %v176, %v175
  %v232 = vpack.c.b16 %v178, %v177
  %v233 = vpack.c.b16 %v180, %v179
  %v234 = vpack.c.b16 %v182, %v181
  %v235 = vpack.c.b16 %v184, %v183
  %v236 = vpack.c.b16 %v186, %v185
  %v237 = vpack.c.b16 %v188, %v187
  %v238 = vpack.c.b16 %v190, %v189
  %v239 = vpack.c.b16 %v192, %v191
  %v240 = vpack.c.b16 %v194, %v193
  %v241 = vpack.c.b16 %v196, %v195
  %v242 = vpack.c.b16 %v198, %v197
  %v243 = vpack.c.b16 %v200, %v199
  %v244 = vpack.c.b16 %v202, %v201
  %v245 = vpack.c.b16 %v204, %v203
  %v246 = vpack.c.b16 %v206, %v205
  %v247 = vpack.c.b16 %v208, %v207
  %v248 = vpack.c.b16 %v210, %v209
  %v249 = vpack.c.b16 %v212, %v211
  %v250 = vpack.c.b16 %v214, %v213
  %v251 = vpack.c.b16 %v216, %v215
  %v252 = vpack.c.b16 %v218, %v217
  %v253 = vpack.c.b16 %v220, %v219
  %v254 = vpack.c.b16 %v222, %v221
  %v264 = vunpack.c.l.b16 %v79
  %v265 = vunpack.c.l.b16 %v80
  %v266 = vunpack.c.l.b16 %v81
  %v267 = vunpack.c.l.b16 %v82
  %v268 = vunpack.c.l.b16 %v83
  %v269 = vunpack.c.l.b16 %v84
  %v270 = vunpack.c.l.b16 %v85
  %v271 = vunpack.c.l.b16 %v86
  %v272 = vunpack.c.l.b16 %v87
  %v273 = vpack.c.b16 %v265, %v264
  %v274 = vpack.c.b16 %v267, %v266
  %v275 = vpack.c.b16 %v269, %v268
  %v276 = vpack.c.b16 %v271, %v270
  %v277 = vpack.c.b16 %v272, %v272
  %vm282 = vcmask 588800
  %v284 = vsel %vm282, %v223, 0
  %v287 = vsel %vm282, %v224, 0
  %v290 = vsel %vm282, %v225, 0
  %v293 = vsel %vm282, %v226, 0
  %v296 = vsel %vm282, %v227, 0
  %v299 = vsel %vm282, %v228, 0
  %v302 = vsel %vm282, %v229, 0
  %v305 = vsel %vm282, %v230, 0
  %v308 = vsel %vm282, %v231, 0
  %v311 = vsel %vm282, %v232, 0
  %v314 = vsel %vm282, %v233, 0
  %v317 = vsel %vm282, %v234, 0
  %v320 = vsel %vm282, %v235, 0
  %v323 = vsel %vm282, %v236, 0
  %v326 = vsel %vm282, %v237, 0
  %v329 = vsel %vm282, %v238, 0
  %v332 = vsel %vm282, %v239, 0
  %v335 = vsel %vm282, %v240, 0
  %v338 = vsel %vm282, %v241, 0
  %v341 = vsel %vm282, %v242, 0
  %v344 = vsel %vm282, %v243, 0
  %v347 = vsel %vm282, %v244, 0
  %v350 = vsel %vm282, %v245, 0
  %v353 = vsel %vm282, %v246, 0
  %v356 = vsel %vm282, %v247, 0
  %v359 = vsel %vm282, %v248, 0
  %v362 = vsel %vm282, %v249, 0
  %v365 = vsel %vm282, %v250, 0
  %v368 = vsel %vm282, %v251, 0
  %v371 = vsel %vm282, %v252, 0
  %v374 = vsel %vm282, %v253, 0
  %v377 = vsel %vm282, %v254, 0
  %vm379 = vcmask 1043456
  %v381 = vsel %vm379, %v277, 0
  %383 = vmatprep.subr.bf16.mxu0 0
  %384 = vmatpush1.bf16.msra.mxu0 %v273
  %385 = vmatprep.subr.bf16.mxu0 0
  %386 = vmatpush1.bf16.msra.mxu0 %v274
  %387 = vmatprep.subr.bf16.mxu0 0
  %388 = vmatpush1.bf16.msra.mxu0 %v275
  %389 = vmatprep.subr.bf16.mxu0 0
  %390 = vmatpush1.bf16.msra.mxu0 %v276
  %391 = vmatprep.subr.bf16.mxu0 0
  %392 = vmatpush1.bf16.msra.mxu0 %v381
  %393 = vmatprep.subr.bf16.mxu0 0
  %394 = vmatpush1.bf16.msra.mxu0 0
  %395 = vmatprep.subr.bf16.mxu0 0
  %396 = vmatpush1.bf16.msra.mxu0 0
  %397 = vmatprep.subr.bf16.mxu0 0
  %398 = vmatpush1.bf16.msra.mxu0 0
  %399 = vmatprep.subr.bf16.mxu0 0
  %400 = vmatpush1.bf16.msra.mxu0 0
  %401 = vmatprep.subr.bf16.mxu0 0
  %402 = vmatpush1.bf16.msra.mxu0 0
  %403 = vmatprep.subr.bf16.mxu0 0
  %404 = vmatpush1.bf16.msra.mxu0 0
  %405 = vmatprep.subr.bf16.mxu0 0
  %406 = vmatpush1.bf16.msra.mxu0 0
  %407 = vmatprep.subr.bf16.mxu0 0
  %408 = vmatpush1.bf16.msra.mxu0 0
  %409 = vmatprep.subr.bf16.mxu0 0
  %410 = vmatpush1.bf16.msra.mxu0 0
  %411 = vmatprep.subr.bf16.mxu0 0
  %412 = vmatpush1.bf16.msra.mxu0 0
  %413 = vmatprep.subr.bf16.mxu0 0
  %414 = vmatpush1.bf16.msra.mxu0 0
  %415 = vmatprep.mubr.bf16.mxu0 0
  %416 = vmatmul.mubr.bf16.gmra.mrb[0].mxu0 %v284
  %v417 = vpop.f32.mrb[0].mxu0
  %v418 = vadd.f32 %v93, %v417
  %v419 = vpop.f32.mrb[0].mxu0
  %v420 = vpop.f32.mrb[0].mxu0
  %v421 = vadd.f32 %v93, %v420
  %v422 = vpop.f32.mrb[0].mxu0
  %423 = vmatprep.mubr.bf16.mxu0 0
  %424 = vmatmul.mubr.bf16.gmra.mrb[0].mxu0 %v287
  %v425 = vpop.f32.mrb[0].mxu0
  %v426 = vadd.f32 %v93, %v425
  %v427 = vpop.f32.mrb[0].mxu0
  %v428 = vpop.f32.mrb[0].mxu0
  %v429 = vadd.f32 %v93, %v428
  %v430 = vpop.f32.mrb[0].mxu0
  %431 = vmatprep.mubr.bf16.mxu0 0
  %432 = vmatmul.mubr.bf16.gmra.mrb[0].mxu0 %v290
  %v433 = vpop.f32.mrb[0].mxu0
  %v434 = vadd.f32 %v93, %v433
  %v435 = vpop.f32.mrb[0].mxu0
  %v436 = vpop.f32.mrb[0].mxu0
  %v437 = vadd.f32 %v93, %v436
  %v438 = vpop.f32.mrb[0].mxu0
  %439 = vmatprep.mubr.bf16.mxu0 0
  %440 = vmatmul.mubr.bf16.gmra.mrb[0].mxu0 %v293
  %v441 = vpop.f32.mrb[0].mxu0
  %v442 = vadd.f32 %v93, %v441
  %v443 = vpop.f32.mrb[0].mxu0
  %v444 = vpop.f32.mrb[0].mxu0
  %v445 = vadd.f32 %v93, %v444
  %v446 = vpop.f32.mrb[0].mxu0
  %447 = vmatprep.mubr.bf16.mxu0 0
  %448 = vmatmul.mubr.bf16.gmra.mrb[0].mxu0 %v296
  %v449 = vpop.f32.mrb[0].mxu0
  %v450 = vadd.f32 %v93, %v449
  %v451 = vpop.f32.mrb[0].mxu0
  %v452 = vpop.f32.mrb[0].mxu0
  %v453 = vadd.f32 %v93, %v452
  %v454 = vpop.f32.mrb[0].mxu0
  %455 = vmatprep.mubr.bf16.mxu0 0
  %456 = vmatmul.mubr.bf16.gmra.mrb[0].mxu0 %v299
  %v457 = vpop.f32.mrb[0].mxu0
  %v458 = vadd.f32 %v93, %v457
  %v459 = vpop.f32.mrb[0].mxu0
  %v460 = vpop.f32.mrb[0].mxu0
  %v461 = vadd.f32 %v93, %v460
  %v462 = vpop.f32.mrb[0].mxu0
  %463 = vmatprep.mubr.bf16.mxu0 0
  %464 = vmatmul.mubr.bf16.gmra.mrb[0].mxu0 %v302
  %v465 = vpop.f32.mrb[0].mxu0
  %v466 = vadd.f32 %v93, %v465
  %v467 = vpop.f32.mrb[0].mxu0
  %v468 = vpop.f32.mrb[0].mxu0
  %v469 = vadd.f32 %v93, %v468
  %v470 = vpop.f32.mrb[0].mxu0
  %471 = vmatprep.mubr.bf16.mxu0 0
  %472 = vmatmul.mubr.bf16.gmra.mrb[0].mxu0 %v305
  %v473 = vpop.f32.mrb[0].mxu0
  %v474 = vadd.f32 %v93, %v473
  %v475 = vpop.f32.mrb[0].mxu0
  %v476 = vpop.f32.mrb[0].mxu0
  %v477 = vadd.f32 %v93, %v476
  %v478 = vpop.f32.mrb[0].mxu0
  %479 = vmatprep.mubr.bf16.mxu0 0
  %480 = vmatmul.mubr.bf16.gmra.mrb[0].mxu0 %v308
  %v481 = vpop.f32.mrb[0].mxu0
  %v482 = vadd.f32 %v93, %v481
  %v483 = vpop.f32.mrb[0].mxu0
  %v484 = vpop.f32.mrb[0].mxu0
  %v485 = vadd.f32 %v93, %v484
  %v486 = vpop.f32.mrb[0].mxu0
  %487 = vmatprep.mubr.bf16.mxu0 0
  %488 = vmatmul.mubr.bf16.gmra.mrb[0].mxu0 %v311
  %v489 = vpop.f32.mrb[0].mxu0
  %v490 = vadd.f32 %v93, %v489
  %v491 = vpop.f32.mrb[0].mxu0
  %v492 = vpop.f32.mrb[0].mxu0
  %v493 = vadd.f32 %v93, %v492
  %v494 = vpop.f32.mrb[0].mxu0
  %495 = vmatprep.mubr.bf16.mxu0 0
  %496 = vmatmul.mubr.bf16.gmra.mrb[0].mxu0 %v314
  %v497 = vpop.f32.mrb[0].mxu0
  %v498 = vadd.f32 %v93, %v497
  %v499 = vpop.f32.mrb[0].mxu0
  %v500 = vpop.f32.mrb[0].mxu0
  %v501 = vadd.f32 %v93, %v500
  %v502 = vpop.f32.mrb[0].mxu0
  %503 = vmatprep.mubr.bf16.mxu0 0
  %504 = vmatmul.mubr.bf16.gmra.mrb[0].mxu0 %v317
  %v505 = vpop.f32.mrb[0].mxu0
  %v506 = vadd.f32 %v93, %v505
  %v507 = vpop.f32.mrb[0].mxu0
  %v508 = vpop.f32.mrb[0].mxu0
  %v509 = vadd.f32 %v93, %v508
  %v510 = vpop.f32.mrb[0].mxu0
  %511 = vmatprep.mubr.bf16.mxu0 0
  %512 = vmatmul.mubr.bf16.gmra.mrb[0].mxu0 %v320
  %v513 = vpop.f32.mrb[0].mxu0
  %v514 = vadd.f32 %v93, %v513
  %v515 = vpop.f32.mrb[0].mxu0
  %v516 = vpop.f32.mrb[0].mxu0
  %v517 = vadd.f32 %v93, %v516
  %v518 = vpop.f32.mrb[0].mxu0
  %519 = vmatprep.mubr.bf16.mxu0 0
  %520 = vmatmul.mubr.bf16.gmra.mrb[0].mxu0 %v323
  %v521 = vpop.f32.mrb[0].mxu0
  %v522 = vadd.f32 %v93, %v521
  %v523 = vpop.f32.mrb[0].mxu0
  %v524 = vpop.f32.mrb[0].mxu0
  %v525 = vadd.f32 %v93, %v524
  %v526 = vpop.f32.mrb[0].mxu0
  %527 = vmatprep.mubr.bf16.mxu0 0
  %528 = vmatmul.mubr.bf16.gmra.mrb[0].mxu0 %v326
  %v529 = vpop.f32.mrb[0].mxu0
  %v530 = vadd.f32 %v93, %v529
  %v531 = vpop.f32.mrb[0].mxu0
  %v532 = vpop.f32.mrb[0].mxu0
  %v533 = vadd.f32 %v93, %v532
  %v534 = vpop.f32.mrb[0].mxu0
  %535 = vmatprep.mubr.bf16.mxu0 0
  %536 = vmatmul.mubr.bf16.gmra.mrb[0].mxu0 %v329
  %v537 = vpop.f32.mrb[0].mxu0
  %v538 = vadd.f32 %v93, %v537
  %v539 = vpop.f32.mrb[0].mxu0
  %v540 = vpop.f32.mrb[0].mxu0
  %v541 = vadd.f32 %v93, %v540
  %v542 = vpop.f32.mrb[0].mxu0
  %543 = vmatprep.mubr.bf16.mxu0 0
  %544 = vmatmul.mubr.bf16.gmra.mrb[0].mxu0 %v332
  %v545 = vpop.f32.mrb[0].mxu0
  %v546 = vadd.f32 %v93, %v545
  %v547 = vpop.f32.mrb[0].mxu0
  %v548 = vpop.f32.mrb[0].mxu0
  %v549 = vadd.f32 %v93, %v548
  %v550 = vpop.f32.mrb[0].mxu0
  %551 = vmatprep.mubr.bf16.mxu0 0
  %552 = vmatmul.mubr.bf16.gmra.mrb[0].mxu0 %v335
  %v553 = vpop.f32.mrb[0].mxu0
  %v554 = vadd.f32 %v93, %v553
  %v555 = vpop.f32.mrb[0].mxu0
  %v556 = vpop.f32.mrb[0].mxu0
  %v557 = vadd.f32 %v93, %v556
  %v558 = vpop.f32.mrb[0].mxu0
  %559 = vmatprep.mubr.bf16.mxu0 0
  %560 = vmatmul.mubr.bf16.gmra.mrb[0].mxu0 %v338
  %v561 = vpop.f32.mrb[0].mxu0
  %v562 = vadd.f32 %v93, %v561
  %v563 = vpop.f32.mrb[0].mxu0
  %v564 = vpop.f32.mrb[0].mxu0
  %v565 = vadd.f32 %v93, %v564
  %v566 = vpop.f32.mrb[0].mxu0
  %567 = vmatprep.mubr.bf16.mxu0 0
  %568 = vmatmul.mubr.bf16.gmra.mrb[0].mxu0 %v341
  %v569 = vpop.f32.mrb[0].mxu0
  %v570 = vadd.f32 %v93, %v569
  %v571 = vpop.f32.mrb[0].mxu0
  %v572 = vpop.f32.mrb[0].mxu0
  %v573 = vadd.f32 %v93, %v572
  %v574 = vpop.f32.mrb[0].mxu0
  %575 = vmatprep.mubr.bf16.mxu0 0
  %576 = vmatmul.mubr.bf16.gmra.mrb[0].mxu0 %v344
  %v577 = vpop.f32.mrb[0].mxu0
  %v578 = vadd.f32 %v93, %v577
  %v579 = vpop.f32.mrb[0].mxu0
  %v580 = vpop.f32.mrb[0].mxu0
  %v581 = vadd.f32 %v93, %v580
  %v582 = vpop.f32.mrb[0].mxu0
  %583 = vmatprep.mubr.bf16.mxu0 0
  %584 = vmatmul.mubr.bf16.gmra.mrb[0].mxu0 %v347
  %v585 = vpop.f32.mrb[0].mxu0
  %v586 = vadd.f32 %v93, %v585
  %v587 = vpop.f32.mrb[0].mxu0
  %v588 = vpop.f32.mrb[0].mxu0
  %v589 = vadd.f32 %v93, %v588
  %v590 = vpop.f32.mrb[0].mxu0
  %591 = vmatprep.mubr.bf16.mxu0 0
  %592 = vmatmul.mubr.bf16.gmra.mrb[0].mxu0 %v350
  %v593 = vpop.f32.mrb[0].mxu0
  %v594 = vadd.f32 %v93, %v593
  %v595 = vpop.f32.mrb[0].mxu0
  %v596 = vpop.f32.mrb[0].mxu0
  %v597 = vadd.f32 %v93, %v596
  %v598 = vpop.f32.mrb[0].mxu0
  %599 = vmatprep.mubr.bf16.mxu0 0
  %600 = vmatmul.mubr.bf16.gmra.mrb[0].mxu0 %v353
  %v601 = vpop.f32.mrb[0].mxu0
  %v602 = vadd.f32 %v93, %v601
  %v603 = vpop.f32.mrb[0].mxu0
  %v604 = vpop.f32.mrb[0].mxu0
  %v605 = vadd.f32 %v93, %v604
  %v606 = vpop.f32.mrb[0].mxu0
  %607 = vmatprep.mubr.bf16.mxu0 0
  %608 = vmatmul.mubr.bf16.gmra.mrb[0].mxu0 %v356
  %v609 = vpop.f32.mrb[0].mxu0
  %v610 = vadd.f32 %v93, %v609
  %v611 = vpop.f32.mrb[0].mxu0
  %v612 = vpop.f32.mrb[0].mxu0
  %v613 = vadd.f32 %v93, %v612
  %v614 = vpop.f32.mrb[0].mxu0
  %615 = vmatprep.mubr.bf16.mxu0 0
  %616 = vmatmul.mubr.bf16.gmra.mrb[0].mxu0 %v359
  %v617 = vpop.f32.mrb[0].mxu0
  %v618 = vadd.f32 %v93, %v617
  %v619 = vpop.f32.mrb[0].mxu0
  %v620 = vpop.f32.mrb[0].mxu0
  %v621 = vadd.f32 %v93, %v620
  %v622 = vpop.f32.mrb[0].mxu0
  %623 = vmatprep.mubr.bf16.mxu0 0
  %624 = vmatmul.mubr.bf16.gmra.mrb[0].mxu0 %v362
  %v625 = vpop.f32.mrb[0].mxu0
  %v626 = vadd.f32 %v93, %v625
  %v627 = vpop.f32.mrb[0].mxu0
  %v628 = vpop.f32.mrb[0].mxu0
  %v629 = vadd.f32 %v93, %v628
  %v630 = vpop.f32.mrb[0].mxu0
  %631 = vmatprep.mubr.bf16.mxu0 0
  %632 = vmatmul.mubr.bf16.gmra.mrb[0].mxu0 %v365
  %v633 = vpop.f32.mrb[0].mxu0
  %v634 = vadd.f32 %v93, %v633
  %v635 = vpop.f32.mrb[0].mxu0
  %v636 = vpop.f32.mrb[0].mxu0
  %v637 = vadd.f32 %v93, %v636
  %v638 = vpop.f32.mrb[0].mxu0
  %639 = vmatprep.mubr.bf16.mxu0 0
  %640 = vmatmul.mubr.bf16.gmra.mrb[0].mxu0 %v368
  %v641 = vpop.f32.mrb[0].mxu0
  %v642 = vadd.f32 %v93, %v641
  %v643 = vpop.f32.mrb[0].mxu0
  %v644 = vpop.f32.mrb[0].mxu0
  %v645 = vadd.f32 %v93, %v644
  %v646 = vpop.f32.mrb[0].mxu0
  %647 = vmatprep.mubr.bf16.mxu0 0
  %648 = vmatmul.mubr.bf16.gmra.mrb[0].mxu0 %v371
  %v649 = vpop.f32.mrb[0].mxu0
  %v650 = vadd.f32 %v93, %v649
  %v651 = vpop.f32.mrb[0].mxu0
  %v652 = vpop.f32.mrb[0].mxu0
  %v653 = vadd.f32 %v93, %v652
  %v654 = vpop.f32.mrb[0].mxu0
  %655 = vmatprep.mubr.bf16.mxu0 0
  %656 = vmatmul.mubr.bf16.gmra.mrb[0].mxu0 %v374
  %v657 = vpop.f32.mrb[0].mxu0
  %v658 = vadd.f32 %v93, %v657
  %v659 = vpop.f32.mrb[0].mxu0
  %v660 = vpop.f32.mrb[0].mxu0
  %v661 = vadd.f32 %v93, %v660
  %v662 = vpop.f32.mrb[0].mxu0
  %663 = vmatprep.mubr.bf16.mxu0 0
  %664 = vmatmul.mubr.bf16.gmra.mrb[0].mxu0 %v377
  %v665 = vpop.f32.mrb[0].mxu0
  %v666 = vadd.f32 %v93, %v665
  %v667 = vpop.f32.mrb[0].mxu0
  %v668 = vpop.f32.mrb[0].mxu0
  %v669 = vadd.f32 %v93, %v668
  %v670 = vpop.f32.mrb[0].mxu0
  %671 = vdwg.mxu0
  %v672 = vmax.f32 %v418, 0.0
  %v673 = vmax.f32 %v421, 0.0
  %v674 = vmax.f32 %v426, 0.0
  %v675 = vmax.f32 %v429, 0.0
  %v676 = vmax.f32 %v434, 0.0
  %v677 = vmax.f32 %v437, 0.0
  %v678 = vmax.f32 %v442, 0.0
  %v679 = vmax.f32 %v445, 0.0
  %v680 = vmax.f32 %v450, 0.0
  %v681 = vmax.f32 %v453, 0.0
  %v682 = vmax.f32 %v458, 0.0
  %v683 = vmax.f32 %v461, 0.0
  %v684 = vmax.f32 %v466, 0.0
  %v685 = vmax.f32 %v469, 0.0
  %v686 = vmax.f32 %v474, 0.0
  %v687 = vmax.f32 %v477, 0.0
  %v688 = vmax.f32 %v482, 0.0
  %v689 = vmax.f32 %v485, 0.0
  %v690 = vmax.f32 %v490, 0.0
  %v691 = vmax.f32 %v493, 0.0
  %v692 = vmax.f32 %v498, 0.0
  %v693 = vmax.f32 %v501, 0.0
  %v694 = vmax.f32 %v506, 0.0
  %v695 = vmax.f32 %v509, 0.0
  %v696 = vmax.f32 %v514, 0.0
  %v697 = vmax.f32 %v517, 0.0
  %v698 = vmax.f32 %v522, 0.0
  %v699 = vmax.f32 %v525, 0.0
  %v700 = vmax.f32 %v530, 0.0
  %v701 = vmax.f32 %v533, 0.0
  %v702 = vmax.f32 %v538, 0.0
  %v703 = vmax.f32 %v541, 0.0
  %v704 = vmax.f32 %v546, 0.0
  %v705 = vmax.f32 %v549, 0.0
  %v706 = vmax.f32 %v554, 0.0
  %v707 = vmax.f32 %v557, 0.0
  %v708 = vmax.f32 %v562, 0.0
  %v709 = vmax.f32 %v565, 0.0
  %v710 = vmax.f32 %v570, 0.0
  %v711 = vmax.f32 %v573, 0.0
  %v712 = vmax.f32 %v578, 0.0
  %v713 = vmax.f32 %v581, 0.0
  %v714 = vmax.f32 %v586, 0.0
  %v715 = vmax.f32 %v589, 0.0
  %v716 = vmax.f32 %v594, 0.0
  %v717 = vmax.f32 %v597, 0.0
  %v718 = vmax.f32 %v602, 0.0
  %v719 = vmax.f32 %v605, 0.0
  %v720 = vmax.f32 %v610, 0.0
  %v721 = vmax.f32 %v613, 0.0
  %v722 = vmax.f32 %v618, 0.0
  %v723 = vmax.f32 %v621, 0.0
  %v724 = vmax.f32 %v626, 0.0
  %v725 = vmax.f32 %v629, 0.0
  %v726 = vmax.f32 %v634, 0.0
  %v727 = vmax.f32 %v637, 0.0
  %v728 = vmax.f32 %v642, 0.0
  %v729 = vmax.f32 %v645, 0.0
  %v730 = vmax.f32 %v650, 0.0
  %v731 = vmax.f32 %v653, 0.0
  %v732 = vmax.f32 %v658, 0.0
  %v733 = vmax.f32 %v661, 0.0
  %v734 = vmax.f32 %v666, 0.0
  %v735 = vmax.f32 %v669, 0.0
  %v736 = vpack.c.bf16 %v673, %v672
  %v737 = vpack.c.bf16 %v675, %v674
  %v738 = vpack.c.bf16 %v677, %v676
  %v739 = vpack.c.bf16 %v679, %v678
  %v740 = vpack.c.bf16 %v681, %v680
  %v741 = vpack.c.bf16 %v683, %v682
  %v742 = vpack.c.bf16 %v685, %v684
  %v743 = vpack.c.bf16 %v687, %v686
  %v744 = vpack.c.bf16 %v689, %v688
  %v745 = vpack.c.bf16 %v691, %v690
  %v746 = vpack.c.bf16 %v693, %v692
  %v747 = vpack.c.bf16 %v695, %v694
  %v748 = vpack.c.bf16 %v697, %v696
  %v749 = vpack.c.bf16 %v699, %v698
  %v750 = vpack.c.bf16 %v701, %v700
  %v751 = vpack.c.bf16 %v703, %v702
  %v752 = vpack.c.bf16 %v705, %v704
  %v753 = vpack.c.bf16 %v707, %v706
  %v754 = vpack.c.bf16 %v709, %v708
  %v755 = vpack.c.bf16 %v711, %v710
  %v756 = vpack.c.bf16 %v713, %v712
  %v757 = vpack.c.bf16 %v715, %v714
  %v758 = vpack.c.bf16 %v717, %v716
  %v759 = vpack.c.bf16 %v719, %v718
  %v760 = vpack.c.bf16 %v721, %v720
  %v761 = vpack.c.bf16 %v723, %v722
  %v762 = vpack.c.bf16 %v725, %v724
  %v763 = vpack.c.bf16 %v727, %v726
  %v764 = vpack.c.bf16 %v729, %v728
  %v765 = vpack.c.bf16 %v731, %v730
  %v766 = vpack.c.bf16 %v733, %v732
  %v767 = vpack.c.bf16 %v735, %v734
  %v800 = vunpack.c.l.b16 %v736
  %v801 = vunpack.c.h.b16 %v736
  %v802 = vunpack.c.l.b16 %v737
  %v803 = vunpack.c.h.b16 %v737
  %v804 = vunpack.c.l.b16 %v738
  %v805 = vunpack.c.h.b16 %v738
  %v806 = vunpack.c.l.b16 %v739
  %v807 = vunpack.c.h.b16 %v739
  %v808 = vunpack.c.l.b16 %v740
  %v809 = vunpack.c.h.b16 %v740
  %v810 = vunpack.c.l.b16 %v741
  %v811 = vunpack.c.h.b16 %v741
  %v812 = vunpack.c.l.b16 %v742
  %v813 = vunpack.c.h.b16 %v742
  %v814 = vunpack.c.l.b16 %v743
  %v815 = vunpack.c.h.b16 %v743
  %v816 = vunpack.c.l.b16 %v744
  %v817 = vunpack.c.h.b16 %v744
  %v818 = vunpack.c.l.b16 %v745
  %v819 = vunpack.c.h.b16 %v745
  %v820 = vunpack.c.l.b16 %v746
  %v821 = vunpack.c.h.b16 %v746
  %v822 = vunpack.c.l.b16 %v747
  %v823 = vunpack.c.h.b16 %v747
  %v824 = vunpack.c.l.b16 %v748
  %v825 = vunpack.c.h.b16 %v748
  %v826 = vunpack.c.l.b16 %v749
  %v827 = vunpack.c.h.b16 %v749
  %v828 = vunpack.c.l.b16 %v750
  %v829 = vunpack.c.h.b16 %v750
  %v830 = vunpack.c.l.b16 %v751
  %v831 = vunpack.c.h.b16 %v751
  %v832 = vunpack.c.l.b16 %v752
  %v833 = vunpack.c.h.b16 %v752
  %v834 = vunpack.c.l.b16 %v753
  %v835 = vunpack.c.h.b16 %v753
  %v836 = vunpack.c.l.b16 %v754
  %v837 = vunpack.c.h.b16 %v754
  %v838 = vunpack.c.l.b16 %v755
  %v839 = vunpack.c.h.b16 %v755
  %v840 = vunpack.c.l.b16 %v756
  %v841 = vunpack.c.h.b16 %v756
  %v842 = vunpack.c.l.b16 %v757
  %v843 = vunpack.c.h.b16 %v757
  %v844 = vunpack.c.l.b16 %v758
  %v845 = vunpack.c.h.b16 %v758
  %v846 = vunpack.c.l.b16 %v759
  %v847 = vunpack.c.h.b16 %v759
  %v848 = vunpack.c.l.b16 %v760
  %v849 = vunpack.c.h.b16 %v760
  %v850 = vunpack.c.l.b16 %v761
  %v851 = vunpack.c.h.b16 %v761
  %v852 = vunpack.c.l.b16 %v762
  %v853 = vunpack.c.h.b16 %v762
  %v854 = vunpack.c.l.b16 %v763
  %v855 = vunpack.c.h.b16 %v763
  %v856 = vunpack.c.l.b16 %v764
  %v857 = vunpack.c.h.b16 %v764
  %v858 = vunpack.c.l.b16 %v765
  %v859 = vunpack.c.h.b16 %v765
  %v860 = vunpack.c.l.b16 %v766
  %v861 = vunpack.c.h.b16 %v766
  %v862 = vunpack.c.l.b16 %v767
  %v863 = vunpack.c.h.b16 %v767
  %v864 = vpack.c.b16 %v800, %v800
  %v865 = vpack.c.b16 %v801, %v801
  %v866 = vpack.c.b16 %v802, %v802
  %v867 = vpack.c.b16 %v803, %v803
  %v868 = vpack.c.b16 %v804, %v804
  %v869 = vpack.c.b16 %v805, %v805
  %v870 = vpack.c.b16 %v806, %v806
  %v871 = vpack.c.b16 %v807, %v807
  %v872 = vpack.c.b16 %v808, %v808
  %v873 = vpack.c.b16 %v809, %v809
  %v874 = vpack.c.b16 %v810, %v810
  %v875 = vpack.c.b16 %v811, %v811
  %v876 = vpack.c.b16 %v812, %v812
  %v877 = vpack.c.b16 %v813, %v813
  %v878 = vpack.c.b16 %v814, %v814
  %v879 = vpack.c.b16 %v815, %v815
  %v880 = vpack.c.b16 %v816, %v816
  %v881 = vpack.c.b16 %v817, %v817
  %v882 = vpack.c.b16 %v818, %v818
  %v883 = vpack.c.b16 %v819, %v819
  %v884 = vpack.c.b16 %v820, %v820
  %v885 = vpack.c.b16 %v821, %v821
  %v886 = vpack.c.b16 %v822, %v822
  %v887 = vpack.c.b16 %v823, %v823
  %v888 = vpack.c.b16 %v824, %v824
  %v889 = vpack.c.b16 %v825, %v825
  %v890 = vpack.c.b16 %v826, %v826
  %v891 = vpack.c.b16 %v827, %v827
  %v892 = vpack.c.b16 %v828, %v828
  %v893 = vpack.c.b16 %v829, %v829
  %v894 = vpack.c.b16 %v830, %v830
  %v895 = vpack.c.b16 %v831, %v831
  %v896 = vpack.c.b16 %v832, %v832
  %v897 = vpack.c.b16 %v833, %v833
  %v898 = vpack.c.b16 %v834, %v834
  %v899 = vpack.c.b16 %v835, %v835
  %v900 = vpack.c.b16 %v836, %v836
  %v901 = vpack.c.b16 %v837, %v837
  %v902 = vpack.c.b16 %v838, %v838
  %v903 = vpack.c.b16 %v839, %v839
  %v904 = vpack.c.b16 %v840, %v840
  %v905 = vpack.c.b16 %v841, %v841
  %v906 = vpack.c.b16 %v842, %v842
  %v907 = vpack.c.b16 %v843, %v843
  %v908 = vpack.c.b16 %v844, %v844
  %v909 = vpack.c.b16 %v845, %v845
  %v910 = vpack.c.b16 %v846, %v846
  %v911 = vpack.c.b16 %v847, %v847
  %v912 = vpack.c.b16 %v848, %v848
  %v913 = vpack.c.b16 %v849, %v849
  %v914 = vpack.c.b16 %v850, %v850
  %v915 = vpack.c.b16 %v851, %v851
  %v916 = vpack.c.b16 %v852, %v852
  %v917 = vpack.c.b16 %v853, %v853
  %v918 = vpack.c.b16 %v854, %v854
  %v919 = vpack.c.b16 %v855, %v855
  %v920 = vpack.c.b16 %v856, %v856
  %v921 = vpack.c.b16 %v857, %v857
  %v922 = vpack.c.b16 %v858, %v858
  %v923 = vpack.c.b16 %v859, %v859
  %v924 = vpack.c.b16 %v860, %v860
  %v925 = vpack.c.b16 %v861, %v861
  %v926 = vpack.c.b16 %v862, %v862
  %v927 = vpack.c.b16 %v863, %v863
  %992 = vst [vmem:[%s3] sm:$0xf] %v864
  %993 = vst [vmem:[%s3 + $0x4] sm:$0xf] %v865
  %994 = vst [vmem:[%s3 + $0x8] sm:$0xf] %v866
  %995 = vst [vmem:[%s3 + $0xc] sm:$0xf] %v867
  %996 = vst [vmem:[%s3 + $0x10] sm:$0xf] %v868
  %997 = vst [vmem:[%s3 + $0x14] sm:$0xf] %v869
  %998 = vst [vmem:[%s3 + $0x18] sm:$0xf] %v870
  %999 = vst [vmem:[%s3 + $0x1c] sm:$0xf] %v871
  %1000 = vst [vmem:[%s3 + $0x20] sm:$0xf] %v872
  %1001 = vst [vmem:[%s3 + $0x24] sm:$0xf] %v873
  %1002 = vst [vmem:[%s3 + $0x28] sm:$0xf] %v874
  %1003 = vst [vmem:[%s3 + $0x2c] sm:$0xf] %v875
  %1004 = vst [vmem:[%s3 + $0x30] sm:$0xf] %v876
  %1005 = vst [vmem:[%s3 + $0x34] sm:$0xf] %v877
  %1006 = vst [vmem:[%s3 + $0x38] sm:$0xf] %v878
  %1007 = vst [vmem:[%s3 + $0x3c] sm:$0xf] %v879
  %1008 = vst [vmem:[%s3 + $0x40] sm:$0xf] %v880
  %1009 = vst [vmem:[%s3 + $0x44] sm:$0xf] %v881
  %1010 = vst [vmem:[%s3 + $0x48] sm:$0xf] %v882
  %1011 = vst [vmem:[%s3 + $0x4c] sm:$0xf] %v883
  %1012 = vst [vmem:[%s3 + $0x50] sm:$0xf] %v884
  %1013 = vst [vmem:[%s3 + $0x54] sm:$0xf] %v885
  %1014 = vst [vmem:[%s3 + $0x58] sm:$0xf] %v886
  %1015 = vst [vmem:[%s3 + $0x5c] sm:$0xf] %v887
  %1016 = vst [vmem:[%s3 + $0x60] sm:$0xf] %v888
  %1017 = vst [vmem:[%s3 + $0x64] sm:$0xf] %v889
  %1018 = vst [vmem:[%s3 + $0x68] sm:$0xf] %v890
  %1019 = vst [vmem:[%s3 + $0x6c] sm:$0xf] %v891
  %1020 = vst [vmem:[%s3 + $0x70] sm:$0xf] %v892
  %1021 = vst [vmem:[%s3 + $0x74] sm:$0xf] %v893
  %1022 = vst [vmem:[%s3 + $0x78] sm:$0xf] %v894
  %1023 = vst [vmem:[%s3 + $0x7c] sm:$0xf] %v895
  %1024 = vst [vmem:[%s3 + $0x80] sm:$0xf] %v896
  %1025 = vst [vmem:[%s3 + $0x84] sm:$0xf] %v897
  %1026 = vst [vmem:[%s3 + $0x88] sm:$0xf] %v898
  %1027 = vst [vmem:[%s3 + $0x8c] sm:$0xf] %v899
  %1028 = vst [vmem:[%s3 + $0x90] sm:$0xf] %v900
  %1029 = vst [vmem:[%s3 + $0x94] sm:$0xf] %v901
  %1030 = vst [vmem:[%s3 + $0x98] sm:$0xf] %v902
  %1031 = vst [vmem:[%s3 + $0x9c] sm:$0xf] %v903
  %1032 = vst [vmem:[%s3 + $0xa0] sm:$0xf] %v904
  %1033 = vst [vmem:[%s3 + $0xa4] sm:$0xf] %v905
  %1034 = vst [vmem:[%s3 + $0xa8] sm:$0xf] %v906
  %1035 = vst [vmem:[%s3 + $0xac] sm:$0xf] %v907
  %1036 = vst [vmem:[%s3 + $0xb0] sm:$0xf] %v908
  %1037 = vst [vmem:[%s3 + $0xb4] sm:$0xf] %v909
  %1038 = vst [vmem:[%s3 + $0xb8] sm:$0xf] %v910
  %1039 = vst [vmem:[%s3 + $0xbc] sm:$0xf] %v911
  %1040 = vst [vmem:[%s3 + $0xc0] sm:$0xf] %v912
  %1041 = vst [vmem:[%s3 + $0xc4] sm:$0xf] %v913
  %1042 = vst [vmem:[%s3 + $0xc8] sm:$0xf] %v914
  %1043 = vst [vmem:[%s3 + $0xcc] sm:$0xf] %v915
  %1044 = vst [vmem:[%s3 + $0xd0] sm:$0xf] %v916
  %1045 = vst [vmem:[%s3 + $0xd4] sm:$0xf] %v917
  %1046 = vst [vmem:[%s3 + $0xd8] sm:$0xf] %v918
  %1047 = vst [vmem:[%s3 + $0xdc] sm:$0xf] %v919
  %1048 = vst [vmem:[%s3 + $0xe0] sm:$0xf] %v920
  %1049 = vst [vmem:[%s3 + $0xe4] sm:$0xf] %v921
  %1050 = vst [vmem:[%s3 + $0xe8] sm:$0xf] %v922
  %1051 = vst [vmem:[%s3 + $0xec] sm:$0xf] %v923
  %1052 = vst [vmem:[%s3 + $0xf0] sm:$0xf] %v924
  %1053 = vst [vmem:[%s3 + $0xf4] sm:$0xf] %v925
  %1054 = vst [vmem:[%s3 + $0xf8] sm:$0xf] %v926
  %1055 = vst [vmem:[%s3 + $0xfc] sm:$0xf] %v927
  // Predicated region
  $region14: #{encoder_forward.20} parent=0 // pred_check
    _
  $region15: #{encoder_forward.20} parent=0 // pred_check_branch
    %1057 = sbr.rel (0) target = $region17
  $region16: #{encoder_forward.20} parent=0 // pred_region
    _
  $region17: #{encoder_forward.20} parent=0 // pred_fallthru
    _
  // Predicated region
  $region18: #{encoder_forward.20} parent=0 // pred_check
    _
  $region19: #{encoder_forward.20} parent=0 // pred_check_branch
    %1059 = sbr.rel (0) target = $region21
  $region20: #{encoder_forward.20} parent=0 // pred_region
    _
  $region21: #{encoder_forward.20} parent=0 // pred_fallthru
    _

// kernel: encoder_forward.21
$region0: #{encoder_forward.21}
  #allocation0 [shape = 'u32[]', space=smem, size = 0x4, offset = 0x4, fixed_abs, tag = 'smem constant byte address 0x4 - core index']
  #allocation1 [shape = 'u32[144,128]{1,0:T(1,128)}', space=vmem, size = 0x12000, scoped, tag = 'internal scratch']
  %s0 = inlined_call_operand.vmem [shape: bf16[512,8], index: 0, kind: input, shape index: {}]
  %s1 = inlined_call_operand.vmem [shape: bf16[8,128], index: 1, kind: input, shape index: {}]
  %s2 = inlined_call_operand.vmem [shape: f32[1,128], index: 2, kind: input, shape index: {}]
  %s3 = inlined_call_operand.vmem [shape: bf16[512,128], index: 3, kind: output, shape index: {}]
  %s4 = sld [smem:[#allocation0]]
  $region22: #{encoder_forward.21} parent=0
    _
  %s6 = ssub.s32 1, %s4
  %s7 = scalar_select 0, %s6, %s4
  // Predicated region
  $region2: #{encoder_forward.21} parent=0 // pred_check
    _
  $region3: #{encoder_forward.21} parent=0 // pred_check_branch
    %9 = sbr.rel (0) target = $region5
  $region4: #{encoder_forward.21} parent=0 // pred_region
    _
  $region5: #{encoder_forward.21} parent=0 // pred_fallthru
    _
  // Predicated region
  $region6: #{encoder_forward.21} parent=0 // pred_check
    _
  $region7: #{encoder_forward.21} parent=0 // pred_check_branch
    %11 = sbr.rel (0) target = $region9
  $region8: #{encoder_forward.21} parent=0 // pred_region
    _
  $region9: #{encoder_forward.21} parent=0 // pred_fallthru
    _
  // Predicated region
  $region10: #{encoder_forward.21} parent=0 // pred_check
    _
  $region11: #{encoder_forward.21} parent=0 // pred_check_branch
    %13 = sbr.rel (0) target = $region13
  $region12: #{encoder_forward.21} parent=0 // pred_region
    _
  $region13: #{encoder_forward.21} parent=0 // pred_fallthru
    _
  %v15 = vld [vmem:[%s0] sm:$0xf]
  %v16 = vld [vmem:[%s0 + $0x4] sm:$0xf]
  %v17 = vld [vmem:[%s0 + $0x8] sm:$0xf]
  %v18 = vld [vmem:[%s0 + $0xc] sm:$0xf]
  %v19 = vld [vmem:[%s0 + $0x10] sm:$0xf]
  %v20 = vld [vmem:[%s0 + $0x14] sm:$0xf]
  %v21 = vld [vmem:[%s0 + $0x18] sm:$0xf]
  %v22 = vld [vmem:[%s0 + $0x1c] sm:$0xf]
  %v23 = vld [vmem:[%s0 + $0x20] sm:$0xf]
  %v24 = vld [vmem:[%s0 + $0x24] sm:$0xf]
  %v25 = vld [vmem:[%s0 + $0x28] sm:$0xf]
  %v26 = vld [vmem:[%s0 + $0x2c] sm:$0xf]
  %v27 = vld [vmem:[%s0 + $0x30] sm:$0xf]
  %v28 = vld [vmem:[%s0 + $0x34] sm:$0xf]
  %v29 = vld [vmem:[%s0 + $0x38] sm:$0xf]
  %v30 = vld [vmem:[%s0 + $0x3c] sm:$0xf]
  %v31 = vld [vmem:[%s0 + $0x40] sm:$0xf]
  %v32 = vld [vmem:[%s0 + $0x44] sm:$0xf]
  %v33 = vld [vmem:[%s0 + $0x48] sm:$0xf]
  %v34 = vld [vmem:[%s0 + $0x4c] sm:$0xf]
  %v35 = vld [vmem:[%s0 + $0x50] sm:$0xf]
  %v36 = vld [vmem:[%s0 + $0x54] sm:$0xf]
  %v37 = vld [vmem:[%s0 + $0x58] sm:$0xf]
  %v38 = vld [vmem:[%s0 + $0x5c] sm:$0xf]
  %v39 = vld [vmem:[%s0 + $0x60] sm:$0xf]
  %v40 = vld [vmem:[%s0 + $0x64] sm:$0xf]
  %v41 = vld [vmem:[%s0 + $0x68] sm:$0xf]
  %v42 = vld [vmem:[%s0 + $0x6c] sm:$0xf]
  %v43 = vld [vmem:[%s0 + $0x70] sm:$0xf]
  %v44 = vld [vmem:[%s0 + $0x74] sm:$0xf]
  %v45 = vld [vmem:[%s0 + $0x78] sm:$0xf]
  %v46 = vld [vmem:[%s0 + $0x7c] sm:$0xf]
  %v47 = vld [vmem:[%s0 + $0x80] sm:$0xf]
  %v48 = vld [vmem:[%s0 + $0x84] sm:$0xf]
  %v49 = vld [vmem:[%s0 + $0x88] sm:$0xf]
  %v50 = vld [vmem:[%s0 + $0x8c] sm:$0xf]
  %v51 = vld [vmem:[%s0 + $0x90] sm:$0xf]
  %v52 = vld [vmem:[%s0 + $0x94] sm:$0xf]
  %v53 = vld [vmem:[%s0 + $0x98] sm:$0xf]
  %v54 = vld [vmem:[%s0 + $0x9c] sm:$0xf]
  %v55 = vld [vmem:[%s0 + $0xa0] sm:$0xf]
  %v56 = vld [vmem:[%s0 + $0xa4] sm:$0xf]
  %v57 = vld [vmem:[%s0 + $0xa8] sm:$0xf]
  %v58 = vld [vmem:[%s0 + $0xac] sm:$0xf]
  %v59 = vld [vmem:[%s0 + $0xb0] sm:$0xf]
  %v60 = vld [vmem:[%s0 + $0xb4] sm:$0xf]
  %v61 = vld [vmem:[%s0 + $0xb8] sm:$0xf]
  %v62 = vld [vmem:[%s0 + $0xbc] sm:$0xf]
  %v63 = vld [vmem:[%s0 + $0xc0] sm:$0xf]
  %v64 = vld [vmem:[%s0 + $0xc4] sm:$0xf]
  %v65 = vld [vmem:[%s0 + $0xc8] sm:$0xf]
  %v66 = vld [vmem:[%s0 + $0xcc] sm:$0xf]
  %v67 = vld [vmem:[%s0 + $0xd0] sm:$0xf]
  %v68 = vld [vmem:[%s0 + $0xd4] sm:$0xf]
  %v69 = vld [vmem:[%s0 + $0xd8] sm:$0xf]
  %v70 = vld [vmem:[%s0 + $0xdc] sm:$0xf]
  %v71 = vld [vmem:[%s0 + $0xe0] sm:$0xf]
  %v72 = vld [vmem:[%s0 + $0xe4] sm:$0xf]
  %v73 = vld [vmem:[%s0 + $0xe8] sm:$0xf]
  %v74 = vld [vmem:[%s0 + $0xec] sm:$0xf]
  %v75 = vld [vmem:[%s0 + $0xf0] sm:$0xf]
  %v76 = vld [vmem:[%s0 + $0xf4] sm:$0xf]
  %v77 = vld [vmem:[%s0 + $0xf8] sm:$0xf]
  %v78 = vld [vmem:[%s0 + $0xfc] sm:$0xf]
  %v79 = vld [vmem:[%s1] sm:$0xf]
  %v80 = vld [vmem:[%s2] sm:$0x1]
  %v82 = vlaneseq
  %v83 = vshrl.u32 %v82, 7
  %v84 = vsub.s32 0, %v83
  %v85 = vrot.slane %v80, %v84
  %v151 = vunpack.c.l.b16 %v15
  %v152 = vunpack.c.l.b16 %v16
  %v153 = vunpack.c.l.b16 %v17
  %v154 = vunpack.c.l.b16 %v18
  %v155 = vunpack.c.l.b16 %v19
  %v156 = vunpack.c.l.b16 %v20
  %v157 = vunpack.c.l.b16 %v21
  %v158 = vunpack.c.l.b16 %v22
  %v159 = vunpack.c.l.b16 %v23
  %v160 = vunpack.c.l.b16 %v24
  %v161 = vunpack.c.l.b16 %v25
  %v162 = vunpack.c.l.b16 %v26
  %v163 = vunpack.c.l.b16 %v27
  %v164 = vunpack.c.l.b16 %v28
  %v165 = vunpack.c.l.b16 %v29
  %v166 = vunpack.c.l.b16 %v30
  %v167 = vunpack.c.l.b16 %v31
  %v168 = vunpack.c.l.b16 %v32
  %v169 = vunpack.c.l.b16 %v33
  %v170 = vunpack.c.l.b16 %v34
  %v171 = vunpack.c.l.b16 %v35
  %v172 = vunpack.c.l.b16 %v36
  %v173 = vunpack.c.l.b16 %v37
  %v174 = vunpack.c.l.b16 %v38
  %v175 = vunpack.c.l.b16 %v39
  %v176 = vunpack.c.l.b16 %v40
  %v177 = vunpack.c.l.b16 %v41
  %v178 = vunpack.c.l.b16 %v42
  %v179 = vunpack.c.l.b16 %v43
  %v180 = vunpack.c.l.b16 %v44
  %v181 = vunpack.c.l.b16 %v45
  %v182 = vunpack.c.l.b16 %v46
  %v183 = vunpack.c.l.b16 %v47
  %v184 = vunpack.c.l.b16 %v48
  %v185 = vunpack.c.l.b16 %v49
  %v186 = vunpack.c.l.b16 %v50
  %v187 = vunpack.c.l.b16 %v51
  %v188 = vunpack.c.l.b16 %v52
  %v189 = vunpack.c.l.b16 %v53
  %v190 = vunpack.c.l.b16 %v54
  %v191 = vunpack.c.l.b16 %v55
  %v192 = vunpack.c.l.b16 %v56
  %v193 = vunpack.c.l.b16 %v57
  %v194 = vunpack.c.l.b16 %v58
  %v195 = vunpack.c.l.b16 %v59
  %v196 = vunpack.c.l.b16 %v60
  %v197 = vunpack.c.l.b16 %v61
  %v198 = vunpack.c.l.b16 %v62
  %v199 = vunpack.c.l.b16 %v63
  %v200 = vunpack.c.l.b16 %v64
  %v201 = vunpack.c.l.b16 %v65
  %v202 = vunpack.c.l.b16 %v66
  %v203 = vunpack.c.l.b16 %v67
  %v204 = vunpack.c.l.b16 %v68
  %v205 = vunpack.c.l.b16 %v69
  %v206 = vunpack.c.l.b16 %v70
  %v207 = vunpack.c.l.b16 %v71
  %v208 = vunpack.c.l.b16 %v72
  %v209 = vunpack.c.l.b16 %v73
  %v210 = vunpack.c.l.b16 %v74
  %v211 = vunpack.c.l.b16 %v75
  %v212 = vunpack.c.l.b16 %v76
  %v213 = vunpack.c.l.b16 %v77
  %v214 = vunpack.c.l.b16 %v78
  %v215 = vpack.c.b16 %v152, %v151
  %v216 = vpack.c.b16 %v154, %v153
  %v217 = vpack.c.b16 %v156, %v155
  %v218 = vpack.c.b16 %v158, %v157
  %v219 = vpack.c.b16 %v160, %v159
  %v220 = vpack.c.b16 %v162, %v161
  %v221 = vpack.c.b16 %v164, %v163
  %v222 = vpack.c.b16 %v166, %v165
  %v223 = vpack.c.b16 %v168, %v167
  %v224 = vpack.c.b16 %v170, %v169
  %v225 = vpack.c.b16 %v172, %v171
  %v226 = vpack.c.b16 %v174, %v173
  %v227 = vpack.c.b16 %v176, %v175
  %v228 = vpack.c.b16 %v178, %v177
  %v229 = vpack.c.b16 %v180, %v179
  %v230 = vpack.c.b16 %v182, %v181
  %v231 = vpack.c.b16 %v184, %v183
  %v232 = vpack.c.b16 %v186, %v185
  %v233 = vpack.c.b16 %v188, %v187
  %v234 = vpack.c.b16 %v190, %v189
  %v235 = vpack.c.b16 %v192, %v191
  %v236 = vpack.c.b16 %v194, %v193
  %v237 = vpack.c.b16 %v196, %v195
  %v238 = vpack.c.b16 %v198, %v197
  %v239 = vpack.c.b16 %v200, %v199
  %v240 = vpack.c.b16 %v202, %v201
  %v241 = vpack.c.b16 %v204, %v203
  %v242 = vpack.c.b16 %v206, %v205
  %v243 = vpack.c.b16 %v208, %v207
  %v244 = vpack.c.b16 %v210, %v209
  %v245 = vpack.c.b16 %v212, %v211
  %v246 = vpack.c.b16 %v214, %v213
  %vm247 = vcmask 64512
  %v249 = vsel %vm247, %v215, 0
  %v252 = vsel %vm247, %v216, 0
  %v255 = vsel %vm247, %v217, 0
  %v258 = vsel %vm247, %v218, 0
  %v261 = vsel %vm247, %v219, 0
  %v264 = vsel %vm247, %v220, 0
  %v267 = vsel %vm247, %v221, 0
  %v270 = vsel %vm247, %v222, 0
  %v273 = vsel %vm247, %v223, 0
  %v276 = vsel %vm247, %v224, 0
  %v279 = vsel %vm247, %v225, 0
  %v282 = vsel %vm247, %v226, 0
  %v285 = vsel %vm247, %v227, 0
  %v288 = vsel %vm247, %v228, 0
  %v291 = vsel %vm247, %v229, 0
  %v294 = vsel %vm247, %v230, 0
  %v297 = vsel %vm247, %v231, 0
  %v300 = vsel %vm247, %v232, 0
  %v303 = vsel %vm247, %v233, 0
  %v306 = vsel %vm247, %v234, 0
  %v309 = vsel %vm247, %v235, 0
  %v312 = vsel %vm247, %v236, 0
  %v315 = vsel %vm247, %v237, 0
  %v318 = vsel %vm247, %v238, 0
  %v321 = vsel %vm247, %v239, 0
  %v324 = vsel %vm247, %v240, 0
  %v327 = vsel %vm247, %v241, 0
  %v330 = vsel %vm247, %v242, 0
  %v333 = vsel %vm247, %v243, 0
  %v336 = vsel %vm247, %v244, 0
  %v339 = vsel %vm247, %v245, 0
  %v342 = vsel %vm247, %v246, 0
  %vm344 = vcmask 1043456
  %v346 = vsel %vm344, %v79, 0
  %348 = vmatprep.subr.bf16.mxu0 0
  %349 = vmatpush1.bf16.msra.mxu0 %v346
  %350 = vmatprep.subr.bf16.mxu0 0
  %351 = vmatpush1.bf16.msra.mxu0 0
  %352 = vmatprep.subr.bf16.mxu0 0
  %353 = vmatpush1.bf16.msra.mxu0 0
  %354 = vmatprep.subr.bf16.mxu0 0
  %355 = vmatpush1.bf16.msra.mxu0 0
  %356 = vmatprep.subr.bf16.mxu0 0
  %357 = vmatpush1.bf16.msra.mxu0 0
  %358 = vmatprep.subr.bf16.mxu0 0
  %359 = vmatpush1.bf16.msra.mxu0 0
  %360 = vmatprep.subr.bf16.mxu0 0
  %361 = vmatpush1.bf16.msra.mxu0 0
  %362 = vmatprep.subr.bf16.mxu0 0
  %363 = vmatpush1.bf16.msra.mxu0 0
  %364 = vmatprep.subr.bf16.mxu0 0
  %365 = vmatpush1.bf16.msra.mxu0 0
  %366 = vmatprep.subr.bf16.mxu0 0
  %367 = vmatpush1.bf16.msra.mxu0 0
  %368 = vmatprep.subr.bf16.mxu0 0
  %369 = vmatpush1.bf16.msra.mxu0 0
  %370 = vmatprep.subr.bf16.mxu0 0
  %371 = vmatpush1.bf16.msra.mxu0 0
  %372 = vmatprep.subr.bf16.mxu0 0
  %373 = vmatpush1.bf16.msra.mxu0 0
  %374 = vmatprep.subr.bf16.mxu0 0
  %375 = vmatpush1.bf16.msra.mxu0 0
  %376 = vmatprep.subr.bf16.mxu0 0
  %377 = vmatpush1.bf16.msra.mxu0 0
  %378 = vmatprep.subr.bf16.mxu0 0
  %379 = vmatpush1.bf16.msra.mxu0 0
  %380 = vmatprep.mubr.bf16.mxu0 0
  %381 = vmatmul.mubr.bf16.gmra.mrb[0].mxu0 %v249
  %v382 = vpop.f32.mrb[0].mxu0
  %v383 = vadd.f32 %v85, %v382
  %v384 = vpop.f32.mrb[0].mxu0
  %v385 = vpop.f32.mrb[0].mxu0
  %v386 = vadd.f32 %v85, %v385
  %v387 = vpop.f32.mrb[0].mxu0
  %388 = vmatprep.mubr.bf16.mxu0 0
  %389 = vmatmul.mubr.bf16.gmra.mrb[0].mxu0 %v252
  %v390 = vpop.f32.mrb[0].mxu0
  %v391 = vadd.f32 %v85, %v390
  %v392 = vpop.f32.mrb[0].mxu0
  %v393 = vpop.f32.mrb[0].mxu0
  %v394 = vadd.f32 %v85, %v393
  %v395 = vpop.f32.mrb[0].mxu0
  %396 = vmatprep.mubr.bf16.mxu0 0
  %397 = vmatmul.mubr.bf16.gmra.mrb[0].mxu0 %v255
  %v398 = vpop.f32.mrb[0].mxu0
  %v399 = vadd.f32 %v85, %v398
  %v400 = vpop.f32.mrb[0].mxu0
  %v401 = vpop.f32.mrb[0].mxu0
  %v402 = vadd.f32 %v85, %v401
  %v403 = vpop.f32.mrb[0].mxu0
  %404 = vmatprep.mubr.bf16.mxu0 0
  %405 = vmatmul.mubr.bf16.gmra.mrb[0].mxu0 %v258
  %v406 = vpop.f32.mrb[0].mxu0
  %v407 = vadd.f32 %v85, %v406
  %v408 = vpop.f32.mrb[0].mxu0
  %v409 = vpop.f32.mrb[0].mxu0
  %v410 = vadd.f32 %v85, %v409
  %v411 = vpop.f32.mrb[0].mxu0
  %412 = vmatprep.mubr.bf16.mxu0 0
  %413 = vmatmul.mubr.bf16.gmra.mrb[0].mxu0 %v261
  %v414 = vpop.f32.mrb[0].mxu0
  %v415 = vadd.f32 %v85, %v414
  %v416 = vpop.f32.mrb[0].mxu0
  %v417 = vpop.f32.mrb[0].mxu0
  %v418 = vadd.f32 %v85, %v417
  %v419 = vpop.f32.mrb[0].mxu0
  %420 = vmatprep.mubr.bf16.mxu0 0
  %421 = vmatmul.mubr.bf16.gmra.mrb[0].mxu0 %v264
  %v422 = vpop.f32.mrb[0].mxu0
  %v423 = vadd.f32 %v85, %v422
  %v424 = vpop.f32.mrb[0].mxu0
  %v425 = vpop.f32.mrb[0].mxu0
  %v426 = vadd.f32 %v85, %v425
  %v427 = vpop.f32.mrb[0].mxu0
  %428 = vmatprep.mubr.bf16.mxu0 0
  %429 = vmatmul.mubr.bf16.gmra.mrb[0].mxu0 %v267
  %v430 = vpop.f32.mrb[0].mxu0
  %v431 = vadd.f32 %v85, %v430
  %v432 = vpop.f32.mrb[0].mxu0
  %v433 = vpop.f32.mrb[0].mxu0
  %v434 = vadd.f32 %v85, %v433
  %v435 = vpop.f32.mrb[0].mxu0
  %436 = vmatprep.mubr.bf16.mxu0 0
  %437 = vmatmul.mubr.bf16.gmra.mrb[0].mxu0 %v270
  %v438 = vpop.f32.mrb[0].mxu0
  %v439 = vadd.f32 %v85, %v438
  %v440 = vpop.f32.mrb[0].mxu0
  %v441 = vpop.f32.mrb[0].mxu0
  %v442 = vadd.f32 %v85, %v441
  %v443 = vpop.f32.mrb[0].mxu0
  %444 = vmatprep.mubr.bf16.mxu0 0
  %445 = vmatmul.mubr.bf16.gmra.mrb[0].mxu0 %v273
  %v446 = vpop.f32.mrb[0].mxu0
  %v447 = vadd.f32 %v85, %v446
  %v448 = vpop.f32.mrb[0].mxu0
  %v449 = vpop.f32.mrb[0].mxu0
  %v450 = vadd.f32 %v85, %v449
  %v451 = vpop.f32.mrb[0].mxu0
  %452 = vmatprep.mubr.bf16.mxu0 0
  %453 = vmatmul.mubr.bf16.gmra.mrb[0].mxu0 %v276
  %v454 = vpop.f32.mrb[0].mxu0
  %v455 = vadd.f32 %v85, %v454
  %v456 = vpop.f32.mrb[0].mxu0
  %v457 = vpop.f32.mrb[0].mxu0
  %v458 = vadd.f32 %v85, %v457
  %v459 = vpop.f32.mrb[0].mxu0
  %460 = vmatprep.mubr.bf16.mxu0 0
  %461 = vmatmul.mubr.bf16.gmra.mrb[0].mxu0 %v279
  %v462 = vpop.f32.mrb[0].mxu0
  %v463 = vadd.f32 %v85, %v462
  %v464 = vpop.f32.mrb[0].mxu0
  %v465 = vpop.f32.mrb[0].mxu0
  %v466 = vadd.f32 %v85, %v465
  %v467 = vpop.f32.mrb[0].mxu0
  %468 = vmatprep.mubr.bf16.mxu0 0
  %469 = vmatmul.mubr.bf16.gmra.mrb[0].mxu0 %v282
  %v470 = vpop.f32.mrb[0].mxu0
  %v471 = vadd.f32 %v85, %v470
  %v472 = vpop.f32.mrb[0].mxu0
  %v473 = vpop.f32.mrb[0].mxu0
  %v474 = vadd.f32 %v85, %v473
  %v475 = vpop.f32.mrb[0].mxu0
  %476 = vmatprep.mubr.bf16.mxu0 0
  %477 = vmatmul.mubr.bf16.gmra.mrb[0].mxu0 %v285
  %v478 = vpop.f32.mrb[0].mxu0
  %v479 = vadd.f32 %v85, %v478
  %v480 = vpop.f32.mrb[0].mxu0
  %v481 = vpop.f32.mrb[0].mxu0
  %v482 = vadd.f32 %v85, %v481
  %v483 = vpop.f32.mrb[0].mxu0
  %484 = vmatprep.mubr.bf16.mxu0 0
  %485 = vmatmul.mubr.bf16.gmra.mrb[0].mxu0 %v288
  %v486 = vpop.f32.mrb[0].mxu0
  %v487 = vadd.f32 %v85, %v486
  %v488 = vpop.f32.mrb[0].mxu0
  %v489 = vpop.f32.mrb[0].mxu0
  %v490 = vadd.f32 %v85, %v489
  %v491 = vpop.f32.mrb[0].mxu0
  %492 = vmatprep.mubr.bf16.mxu0 0
  %493 = vmatmul.mubr.bf16.gmra.mrb[0].mxu0 %v291
  %v494 = vpop.f32.mrb[0].mxu0
  %v495 = vadd.f32 %v85, %v494
  %v496 = vpop.f32.mrb[0].mxu0
  %v497 = vpop.f32.mrb[0].mxu0
  %v498 = vadd.f32 %v85, %v497
  %v499 = vpop.f32.mrb[0].mxu0
  %500 = vmatprep.mubr.bf16.mxu0 0
  %501 = vmatmul.mubr.bf16.gmra.mrb[0].mxu0 %v294
  %v502 = vpop.f32.mrb[0].mxu0
  %v503 = vadd.f32 %v85, %v502
  %v504 = vpop.f32.mrb[0].mxu0
  %v505 = vpop.f32.mrb[0].mxu0
  %v506 = vadd.f32 %v85, %v505
  %v507 = vpop.f32.mrb[0].mxu0
  %508 = vmatprep.mubr.bf16.mxu0 0
  %509 = vmatmul.mubr.bf16.gmra.mrb[0].mxu0 %v297
  %v510 = vpop.f32.mrb[0].mxu0
  %v511 = vadd.f32 %v85, %v510
  %v512 = vpop.f32.mrb[0].mxu0
  %v513 = vpop.f32.mrb[0].mxu0
  %v514 = vadd.f32 %v85, %v513
  %v515 = vpop.f32.mrb[0].mxu0
  %516 = vmatprep.mubr.bf16.mxu0 0
  %517 = vmatmul.mubr.bf16.gmra.mrb[0].mxu0 %v300
  %v518 = vpop.f32.mrb[0].mxu0
  %v519 = vadd.f32 %v85, %v518
  %v520 = vpop.f32.mrb[0].mxu0
  %v521 = vpop.f32.mrb[0].mxu0
  %v522 = vadd.f32 %v85, %v521
  %v523 = vpop.f32.mrb[0].mxu0
  %524 = vmatprep.mubr.bf16.mxu0 0
  %525 = vmatmul.mubr.bf16.gmra.mrb[0].mxu0 %v303
  %v526 = vpop.f32.mrb[0].mxu0
  %v527 = vadd.f32 %v85, %v526
  %v528 = vpop.f32.mrb[0].mxu0
  %v529 = vpop.f32.mrb[0].mxu0
  %v530 = vadd.f32 %v85, %v529
  %v531 = vpop.f32.mrb[0].mxu0
  %532 = vmatprep.mubr.bf16.mxu0 0
  %533 = vmatmul.mubr.bf16.gmra.mrb[0].mxu0 %v306
  %v534 = vpop.f32.mrb[0].mxu0
  %v535 = vadd.f32 %v85, %v534
  %v536 = vpop.f32.mrb[0].mxu0
  %v537 = vpop.f32.mrb[0].mxu0
  %v538 = vadd.f32 %v85, %v537
  %v539 = vpop.f32.mrb[0].mxu0
  %540 = vmatprep.mubr.bf16.mxu0 0
  %541 = vmatmul.mubr.bf16.gmra.mrb[0].mxu0 %v309
  %v542 = vpop.f32.mrb[0].mxu0
  %v543 = vadd.f32 %v85, %v542
  %v544 = vpop.f32.mrb[0].mxu0
  %v545 = vpop.f32.mrb[0].mxu0
  %v546 = vadd.f32 %v85, %v545
  %v547 = vpop.f32.mrb[0].mxu0
  %548 = vmatprep.mubr.bf16.mxu0 0
  %549 = vmatmul.mubr.bf16.gmra.mrb[0].mxu0 %v312
  %v550 = vpop.f32.mrb[0].mxu0
  %v551 = vadd.f32 %v85, %v550
  %v552 = vpop.f32.mrb[0].mxu0
  %v553 = vpop.f32.mrb[0].mxu0
  %v554 = vadd.f32 %v85, %v553
  %v555 = vpop.f32.mrb[0].mxu0
  %556 = vmatprep.mubr.bf16.mxu0 0
  %557 = vmatmul.mubr.bf16.gmra.mrb[0].mxu0 %v315
  %v558 = vpop.f32.mrb[0].mxu0
  %v559 = vadd.f32 %v85, %v558
  %v560 = vpop.f32.mrb[0].mxu0
  %v561 = vpop.f32.mrb[0].mxu0
  %v562 = vadd.f32 %v85, %v561
  %v563 = vpop.f32.mrb[0].mxu0
  %564 = vmatprep.mubr.bf16.mxu0 0
  %565 = vmatmul.mubr.bf16.gmra.mrb[0].mxu0 %v318
  %v566 = vpop.f32.mrb[0].mxu0
  %v567 = vadd.f32 %v85, %v566
  %v568 = vpop.f32.mrb[0].mxu0
  %v569 = vpop.f32.mrb[0].mxu0
  %v570 = vadd.f32 %v85, %v569
  %v571 = vpop.f32.mrb[0].mxu0
  %572 = vmatprep.mubr.bf16.mxu0 0
  %573 = vmatmul.mubr.bf16.gmra.mrb[0].mxu0 %v321
  %v574 = vpop.f32.mrb[0].mxu0
  %v575 = vadd.f32 %v85, %v574
  %v576 = vpop.f32.mrb[0].mxu0
  %v577 = vpop.f32.mrb[0].mxu0
  %v578 = vadd.f32 %v85, %v577
  %v579 = vpop.f32.mrb[0].mxu0
  %580 = vmatprep.mubr.bf16.mxu0 0
  %581 = vmatmul.mubr.bf16.gmra.mrb[0].mxu0 %v324
  %v582 = vpop.f32.mrb[0].mxu0
  %v583 = vadd.f32 %v85, %v582
  %v584 = vpop.f32.mrb[0].mxu0
  %v585 = vpop.f32.mrb[0].mxu0
  %v586 = vadd.f32 %v85, %v585
  %v587 = vpop.f32.mrb[0].mxu0
  %588 = vmatprep.mubr.bf16.mxu0 0
  %589 = vmatmul.mubr.bf16.gmra.mrb[0].mxu0 %v327
  %v590 = vpop.f32.mrb[0].mxu0
  %v591 = vadd.f32 %v85, %v590
  %v592 = vpop.f32.mrb[0].mxu0
  %v593 = vpop.f32.mrb[0].mxu0
  %v594 = vadd.f32 %v85, %v593
  %v595 = vpop.f32.mrb[0].mxu0
  %596 = vmatprep.mubr.bf16.mxu0 0
  %597 = vmatmul.mubr.bf16.gmra.mrb[0].mxu0 %v330
  %v598 = vpop.f32.mrb[0].mxu0
  %v599 = vadd.f32 %v85, %v598
  %v600 = vpop.f32.mrb[0].mxu0
  %v601 = vpop.f32.mrb[0].mxu0
  %v602 = vadd.f32 %v85, %v601
  %v603 = vpop.f32.mrb[0].mxu0
  %604 = vmatprep.mubr.bf16.mxu0 0
  %605 = vmatmul.mubr.bf16.gmra.mrb[0].mxu0 %v333
  %v606 = vpop.f32.mrb[0].mxu0
  %v607 = vadd.f32 %v85, %v606
  %v608 = vpop.f32.mrb[0].mxu0
  %v609 = vpop.f32.mrb[0].mxu0
  %v610 = vadd.f32 %v85, %v609
  %v611 = vpop.f32.mrb[0].mxu0
  %612 = vmatprep.mubr.bf16.mxu0 0
  %613 = vmatmul.mubr.bf16.gmra.mrb[0].mxu0 %v336
  %v614 = vpop.f32.mrb[0].mxu0
  %v615 = vadd.f32 %v85, %v614
  %v616 = vpop.f32.mrb[0].mxu0
  %v617 = vpop.f32.mrb[0].mxu0
  %v618 = vadd.f32 %v85, %v617
  %v619 = vpop.f32.mrb[0].mxu0
  %620 = vmatprep.mubr.bf16.mxu0 0
  %621 = vmatmul.mubr.bf16.gmra.mrb[0].mxu0 %v339
  %v622 = vpop.f32.mrb[0].mxu0
  %v623 = vadd.f32 %v85, %v622
  %v624 = vpop.f32.mrb[0].mxu0
  %v625 = vpop.f32.mrb[0].mxu0
  %v626 = vadd.f32 %v85, %v625
  %v627 = vpop.f32.mrb[0].mxu0
  %628 = vmatprep.mubr.bf16.mxu0 0
  %629 = vmatmul.mubr.bf16.gmra.mrb[0].mxu0 %v342
  %v630 = vpop.f32.mrb[0].mxu0
  %v631 = vadd.f32 %v85, %v630
  %v632 = vpop.f32.mrb[0].mxu0
  %v633 = vpop.f32.mrb[0].mxu0
  %v634 = vadd.f32 %v85, %v633
  %v635 = vpop.f32.mrb[0].mxu0
  %636 = vdwg.mxu0
  %v637 = vpack.c.bf16 %v386, %v383
  %v638 = vpack.c.bf16 %v394, %v391
  %v639 = vpack.c.bf16 %v402, %v399
  %v640 = vpack.c.bf16 %v410, %v407
  %v641 = vpack.c.bf16 %v418, %v415
  %v642 = vpack.c.bf16 %v426, %v423
  %v643 = vpack.c.bf16 %v434, %v431
  %v644 = vpack.c.bf16 %v442, %v439
  %v645 = vpack.c.bf16 %v450, %v447
  %v646 = vpack.c.bf16 %v458, %v455
  %v647 = vpack.c.bf16 %v466, %v463
  %v648 = vpack.c.bf16 %v474, %v471
  %v649 = vpack.c.bf16 %v482, %v479
  %v650 = vpack.c.bf16 %v490, %v487
  %v651 = vpack.c.bf16 %v498, %v495
  %v652 = vpack.c.bf16 %v506, %v503
  %v653 = vpack.c.bf16 %v514, %v511
  %v654 = vpack.c.bf16 %v522, %v519
  %v655 = vpack.c.bf16 %v530, %v527
  %v656 = vpack.c.bf16 %v538, %v535
  %v657 = vpack.c.bf16 %v546, %v543
  %v658 = vpack.c.bf16 %v554, %v551
  %v659 = vpack.c.bf16 %v562, %v559
  %v660 = vpack.c.bf16 %v570, %v567
  %v661 = vpack.c.bf16 %v578, %v575
  %v662 = vpack.c.bf16 %v586, %v583
  %v663 = vpack.c.bf16 %v594, %v591
  %v664 = vpack.c.bf16 %v602, %v599
  %v665 = vpack.c.bf16 %v610, %v607
  %v666 = vpack.c.bf16 %v618, %v615
  %v667 = vpack.c.bf16 %v626, %v623
  %v668 = vpack.c.bf16 %v634, %v631
  %v701 = vunpack.c.l.b16 %v637
  %v702 = vunpack.c.h.b16 %v637
  %v703 = vunpack.c.l.b16 %v638
  %v704 = vunpack.c.h.b16 %v638
  %v705 = vunpack.c.l.b16 %v639
  %v706 = vunpack.c.h.b16 %v639
  %v707 = vunpack.c.l.b16 %v640
  %v708 = vunpack.c.h.b16 %v640
  %v709 = vunpack.c.l.b16 %v641
  %v710 = vunpack.c.h.b16 %v641
  %v711 = vunpack.c.l.b16 %v642
  %v712 = vunpack.c.h.b16 %v642
  %v713 = vunpack.c.l.b16 %v643
  %v714 = vunpack.c.h.b16 %v643
  %v715 = vunpack.c.l.b16 %v644
  %v716 = vunpack.c.h.b16 %v644
  %v717 = vunpack.c.l.b16 %v645
  %v718 = vunpack.c.h.b16 %v645
  %v719 = vunpack.c.l.b16 %v646
  %v720 = vunpack.c.h.b16 %v646
  %v721 = vunpack.c.l.b16 %v647
  %v722 = vunpack.c.h.b16 %v647
  %v723 = vunpack.c.l.b16 %v648
  %v724 = vunpack.c.h.b16 %v648
  %v725 = vunpack.c.l.b16 %v649
  %v726 = vunpack.c.h.b16 %v649
  %v727 = vunpack.c.l.b16 %v650
  %v728 = vunpack.c.h.b16 %v650
  %v729 = vunpack.c.l.b16 %v651
  %v730 = vunpack.c.h.b16 %v651
  %v731 = vunpack.c.l.b16 %v652
  %v732 = vunpack.c.h.b16 %v652
  %v733 = vunpack.c.l.b16 %v653
  %v734 = vunpack.c.h.b16 %v653
  %v735 = vunpack.c.l.b16 %v654
  %v736 = vunpack.c.h.b16 %v654
  %v737 = vunpack.c.l.b16 %v655
  %v738 = vunpack.c.h.b16 %v655
  %v739 = vunpack.c.l.b16 %v656
  %v740 = vunpack.c.h.b16 %v656
  %v741 = vunpack.c.l.b16 %v657
  %v742 = vunpack.c.h.b16 %v657
  %v743 = vunpack.c.l.b16 %v658
  %v744 = vunpack.c.h.b16 %v658
  %v745 = vunpack.c.l.b16 %v659
  %v746 = vunpack.c.h.b16 %v659
  %v747 = vunpack.c.l.b16 %v660
  %v748 = vunpack.c.h.b16 %v660
  %v749 = vunpack.c.l.b16 %v661
  %v750 = vunpack.c.h.b16 %v661
  %v751 = vunpack.c.l.b16 %v662
  %v752 = vunpack.c.h.b16 %v662
  %v753 = vunpack.c.l.b16 %v663
  %v754 = vunpack.c.h.b16 %v663
  %v755 = vunpack.c.l.b16 %v664
  %v756 = vunpack.c.h.b16 %v664
  %v757 = vunpack.c.l.b16 %v665
  %v758 = vunpack.c.h.b16 %v665
  %v759 = vunpack.c.l.b16 %v666
  %v760 = vunpack.c.h.b16 %v666
  %v761 = vunpack.c.l.b16 %v667
  %v762 = vunpack.c.h.b16 %v667
  %v763 = vunpack.c.l.b16 %v668
  %v764 = vunpack.c.h.b16 %v668
  %v765 = vpack.c.b16 %v701, %v701
  %v766 = vpack.c.b16 %v702, %v702
  %v767 = vpack.c.b16 %v703, %v703
  %v768 = vpack.c.b16 %v704, %v704
  %v769 = vpack.c.b16 %v705, %v705
  %v770 = vpack.c.b16 %v706, %v706
  %v771 = vpack.c.b16 %v707, %v707
  %v772 = vpack.c.b16 %v708, %v708
  %v773 = vpack.c.b16 %v709, %v709
  %v774 = vpack.c.b16 %v710, %v710
  %v775 = vpack.c.b16 %v711, %v711
  %v776 = vpack.c.b16 %v712, %v712
  %v777 = vpack.c.b16 %v713, %v713
  %v778 = vpack.c.b16 %v714, %v714
  %v779 = vpack.c.b16 %v715, %v715
  %v780 = vpack.c.b16 %v716, %v716
  %v781 = vpack.c.b16 %v717, %v717
  %v782 = vpack.c.b16 %v718, %v718
  %v783 = vpack.c.b16 %v719, %v719
  %v784 = vpack.c.b16 %v720, %v720
  %v785 = vpack.c.b16 %v721, %v721
  %v786 = vpack.c.b16 %v722, %v722
  %v787 = vpack.c.b16 %v723, %v723
  %v788 = vpack.c.b16 %v724, %v724
  %v789 = vpack.c.b16 %v725, %v725
  %v790 = vpack.c.b16 %v726, %v726
  %v791 = vpack.c.b16 %v727, %v727
  %v792 = vpack.c.b16 %v728, %v728
  %v793 = vpack.c.b16 %v729, %v729
  %v794 = vpack.c.b16 %v730, %v730
  %v795 = vpack.c.b16 %v731, %v731
  %v796 = vpack.c.b16 %v732, %v732
  %v797 = vpack.c.b16 %v733, %v733
  %v798 = vpack.c.b16 %v734, %v734
  %v799 = vpack.c.b16 %v735, %v735
  %v800 = vpack.c.b16 %v736, %v736
  %v801 = vpack.c.b16 %v737, %v737
  %v802 = vpack.c.b16 %v738, %v738
  %v803 = vpack.c.b16 %v739, %v739
  %v804 = vpack.c.b16 %v740, %v740
  %v805 = vpack.c.b16 %v741, %v741
  %v806 = vpack.c.b16 %v742, %v742
  %v807 = vpack.c.b16 %v743, %v743
  %v808 = vpack.c.b16 %v744, %v744
  %v809 = vpack.c.b16 %v745, %v745
  %v810 = vpack.c.b16 %v746, %v746
  %v811 = vpack.c.b16 %v747, %v747
  %v812 = vpack.c.b16 %v748, %v748
  %v813 = vpack.c.b16 %v749, %v749
  %v814 = vpack.c.b16 %v750, %v750
  %v815 = vpack.c.b16 %v751, %v751
  %v816 = vpack.c.b16 %v752, %v752
  %v817 = vpack.c.b16 %v753, %v753
  %v818 = vpack.c.b16 %v754, %v754
  %v819 = vpack.c.b16 %v755, %v755
  %v820 = vpack.c.b16 %v756, %v756
  %v821 = vpack.c.b16 %v757, %v757
  %v822 = vpack.c.b16 %v758, %v758
  %v823 = vpack.c.b16 %v759, %v759
  %v824 = vpack.c.b16 %v760, %v760
  %v825 = vpack.c.b16 %v761, %v761
  %v826 = vpack.c.b16 %v762, %v762
  %v827 = vpack.c.b16 %v763, %v763
  %v828 = vpack.c.b16 %v764, %v764
  %893 = vst [vmem:[%s3] sm:$0xf] %v765
  %894 = vst [vmem:[%s3 + $0x4] sm:$0xf] %v766
  %895 = vst [vmem:[%s3 + $0x8] sm:$0xf] %v767
  %896 = vst [vmem:[%s3 + $0xc] sm:$0xf] %v768
  %897 = vst [vmem:[%s3 + $0x10] sm:$0xf] %v769
  %898 = vst [vmem:[%s3 + $0x14] sm:$0xf] %v770
  %899 = vst [vmem:[%s3 + $0x18] sm:$0xf] %v771
  %900 = vst [vmem:[%s3 + $0x1c] sm:$0xf] %v772
  %901 = vst [vmem:[%s3 + $0x20] sm:$0xf] %v773
  %902 = vst [vmem:[%s3 + $0x24] sm:$0xf] %v774
  %903 = vst [vmem:[%s3 + $0x28] sm:$0xf] %v775
  %904 = vst [vmem:[%s3 + $0x2c] sm:$0xf] %v776
  %905 = vst [vmem:[%s3 + $0x30] sm:$0xf] %v777
  %906 = vst [vmem:[%s3 + $0x34] sm:$0xf] %v778
  %907 = vst [vmem:[%s3 + $0x38] sm:$0xf] %v779
  %908 = vst [vmem:[%s3 + $0x3c] sm:$0xf] %v780
  %909 = vst [vmem:[%s3 + $0x40] sm:$0xf] %v781
  %910 = vst [vmem:[%s3 + $0x44] sm:$0xf] %v782
  %911 = vst [vmem:[%s3 + $0x48] sm:$0xf] %v783
  %912 = vst [vmem:[%s3 + $0x4c] sm:$0xf] %v784
  %913 = vst [vmem:[%s3 + $0x50] sm:$0xf] %v785
  %914 = vst [vmem:[%s3 + $0x54] sm:$0xf] %v786
  %915 = vst [vmem:[%s3 + $0x58] sm:$0xf] %v787
  %916 = vst [vmem:[%s3 + $0x5c] sm:$0xf] %v788
  %917 = vst [vmem:[%s3 + $0x60] sm:$0xf] %v789
  %918 = vst [vmem:[%s3 + $0x64] sm:$0xf] %v790
  %919 = vst [vmem:[%s3 + $0x68] sm:$0xf] %v791
  %920 = vst [vmem:[%s3 + $0x6c] sm:$0xf] %v792
  %921 = vst [vmem:[%s3 + $0x70] sm:$0xf] %v793
  %922 = vst [vmem:[%s3 + $0x74] sm:$0xf] %v794
  %923 = vst [vmem:[%s3 + $0x78] sm:$0xf] %v795
  %924 = vst [vmem:[%s3 + $0x7c] sm:$0xf] %v796
  %925 = vst [vmem:[%s3 + $0x80] sm:$0xf] %v797
  %926 = vst [vmem:[%s3 + $0x84] sm:$0xf] %v798
  %927 = vst [vmem:[%s3 + $0x88] sm:$0xf] %v799
  %928 = vst [vmem:[%s3 + $0x8c] sm:$0xf] %v800
  %929 = vst [vmem:[%s3 + $0x90] sm:$0xf] %v801
  %930 = vst [vmem:[%s3 + $0x94] sm:$0xf] %v802
  %931 = vst [vmem:[%s3 + $0x98] sm:$0xf] %v803
  %932 = vst [vmem:[%s3 + $0x9c] sm:$0xf] %v804
  %933 = vst [vmem:[%s3 + $0xa0] sm:$0xf] %v805
  %934 = vst [vmem:[%s3 + $0xa4] sm:$0xf] %v806
  %935 = vst [vmem:[%s3 + $0xa8] sm:$0xf] %v807
  %936 = vst [vmem:[%s3 + $0xac] sm:$0xf] %v808
  %937 = vst [vmem:[%s3 + $0xb0] sm:$0xf] %v809
  %938 = vst [vmem:[%s3 + $0xb4] sm:$0xf] %v810
  %939 = vst [vmem:[%s3 + $0xb8] sm:$0xf] %v811
  %940 = vst [vmem:[%s3 + $0xbc] sm:$0xf] %v812
  %941 = vst [vmem:[%s3 + $0xc0] sm:$0xf] %v813
  %942 = vst [vmem:[%s3 + $0xc4] sm:$0xf] %v814
  %943 = vst [vmem:[%s3 + $0xc8] sm:$0xf] %v815
  %944 = vst [vmem:[%s3 + $0xcc] sm:$0xf] %v816
  %945 = vst [vmem:[%s3 + $0xd0] sm:$0xf] %v817
  %946 = vst [vmem:[%s3 + $0xd4] sm:$0xf] %v818
  %947 = vst [vmem:[%s3 + $0xd8] sm:$0xf] %v819
  %948 = vst [vmem:[%s3 + $0xdc] sm:$0xf] %v820
  %949 = vst [vmem:[%s3 + $0xe0] sm:$0xf] %v821
  %950 = vst [vmem:[%s3 + $0xe4] sm:$0xf] %v822
  %951 = vst [vmem:[%s3 + $0xe8] sm:$0xf] %v823
  %952 = vst [vmem:[%s3 + $0xec] sm:$0xf] %v824
  %953 = vst [vmem:[%s3 + $0xf0] sm:$0xf] %v825
  %954 = vst [vmem:[%s3 + $0xf4] sm:$0xf] %v826
  %955 = vst [vmem:[%s3 + $0xf8] sm:$0xf] %v827
  %956 = vst [vmem:[%s3 + $0xfc] sm:$0xf] %v828
  // Predicated region
  $region14: #{encoder_forward.21} parent=0 // pred_check
    _
  $region15: #{encoder_forward.21} parent=0 // pred_check_branch
    %958 = sbr.rel (0) target = $region17
  $region16: #{encoder_forward.21} parent=0 // pred_region
    _
  $region17: #{encoder_forward.21} parent=0 // pred_fallthru
    _
  // Predicated region
  $region18: #{encoder_forward.21} parent=0 // pred_check
    _
  $region19: #{encoder_forward.21} parent=0 // pred_check_branch
    %960 = sbr.rel (0) target = $region21
  $region20: #{encoder_forward.21} parent=0 // pred_region
    _
  $region21: #{encoder_forward.21} parent=0 // pred_fallthru
    _

// kernel: encoder_forward.23
$region0: #{encoder_forward.23}
  #allocation0 [shape = 'u32[]', space=smem, size = 0x4, offset = 0x4, fixed_abs, tag = 'smem constant byte address 0x4 - core index']
  #allocation1 [shape = 'u32[144,128]{1,0:T(1,128)}', space=vmem, size = 0x12000, scoped, tag = 'internal scratch']
  %s0 = inlined_call_operand.vmem [shape: bf16[512,32], index: 0, kind: input, shape index: {}]
  %s1 = inlined_call_operand.vmem [shape: bf16[32,128], index: 1, kind: input, shape index: {}]
  %s2 = inlined_call_operand.vmem [shape: f32[1,128], index: 2, kind: input, shape index: {}]
  %s3 = inlined_call_operand.vmem [shape: bf16[512,128], index: 3, kind: output, shape index: {}]
  %s4 = sld [smem:[#allocation0]]
  $region22: #{encoder_forward.23} parent=0
    _
  %s6 = ssub.s32 1, %s4
  %s7 = scalar_select 0, %s6, %s4
  // Predicated region
  $region2: #{encoder_forward.23} parent=0 // pred_check
    _
  $region3: #{encoder_forward.23} parent=0 // pred_check_branch
    %9 = sbr.rel (0) target = $region5
  $region4: #{encoder_forward.23} parent=0 // pred_region
    _
  $region5: #{encoder_forward.23} parent=0 // pred_fallthru
    _
  // Predicated region
  $region6: #{encoder_forward.23} parent=0 // pred_check
    _
  $region7: #{encoder_forward.23} parent=0 // pred_check_branch
    %11 = sbr.rel (0) target = $region9
  $region8: #{encoder_forward.23} parent=0 // pred_region
    _
  $region9: #{encoder_forward.23} parent=0 // pred_fallthru
    _
  // Predicated region
  $region10: #{encoder_forward.23} parent=0 // pred_check
    _
  $region11: #{encoder_forward.23} parent=0 // pred_check_branch
    %13 = sbr.rel (0) target = $region13
  $region12: #{encoder_forward.23} parent=0 // pred_region
    _
  $region13: #{encoder_forward.23} parent=0 // pred_fallthru
    _
  %v15 = vld [vmem:[%s0] sm:$0xf]
  %v16 = vld [vmem:[%s0 + $0x4] sm:$0xf]
  %v17 = vld [vmem:[%s0 + $0x8] sm:$0xf]
  %v18 = vld [vmem:[%s0 + $0xc] sm:$0xf]
  %v19 = vld [vmem:[%s0 + $0x10] sm:$0xf]
  %v20 = vld [vmem:[%s0 + $0x14] sm:$0xf]
  %v21 = vld [vmem:[%s0 + $0x18] sm:$0xf]
  %v22 = vld [vmem:[%s0 + $0x1c] sm:$0xf]
  %v23 = vld [vmem:[%s0 + $0x20] sm:$0xf]
  %v24 = vld [vmem:[%s0 + $0x24] sm:$0xf]
  %v25 = vld [vmem:[%s0 + $0x28] sm:$0xf]
  %v26 = vld [vmem:[%s0 + $0x2c] sm:$0xf]
  %v27 = vld [vmem:[%s0 + $0x30] sm:$0xf]
  %v28 = vld [vmem:[%s0 + $0x34] sm:$0xf]
  %v29 = vld [vmem:[%s0 + $0x38] sm:$0xf]
  %v30 = vld [vmem:[%s0 + $0x3c] sm:$0xf]
  %v31 = vld [vmem:[%s0 + $0x40] sm:$0xf]
  %v32 = vld [vmem:[%s0 + $0x44] sm:$0xf]
  %v33 = vld [vmem:[%s0 + $0x48] sm:$0xf]
  %v34 = vld [vmem:[%s0 + $0x4c] sm:$0xf]
  %v35 = vld [vmem:[%s0 + $0x50] sm:$0xf]
  %v36 = vld [vmem:[%s0 + $0x54] sm:$0xf]
  %v37 = vld [vmem:[%s0 + $0x58] sm:$0xf]
  %v38 = vld [vmem:[%s0 + $0x5c] sm:$0xf]
  %v39 = vld [vmem:[%s0 + $0x60] sm:$0xf]
  %v40 = vld [vmem:[%s0 + $0x64] sm:$0xf]
  %v41 = vld [vmem:[%s0 + $0x68] sm:$0xf]
  %v42 = vld [vmem:[%s0 + $0x6c] sm:$0xf]
  %v43 = vld [vmem:[%s0 + $0x70] sm:$0xf]
  %v44 = vld [vmem:[%s0 + $0x74] sm:$0xf]
  %v45 = vld [vmem:[%s0 + $0x78] sm:$0xf]
  %v46 = vld [vmem:[%s0 + $0x7c] sm:$0xf]
  %v47 = vld [vmem:[%s0 + $0x80] sm:$0xf]
  %v48 = vld [vmem:[%s0 + $0x84] sm:$0xf]
  %v49 = vld [vmem:[%s0 + $0x88] sm:$0xf]
  %v50 = vld [vmem:[%s0 + $0x8c] sm:$0xf]
  %v51 = vld [vmem:[%s0 + $0x90] sm:$0xf]
  %v52 = vld [vmem:[%s0 + $0x94] sm:$0xf]
  %v53 = vld [vmem:[%s0 + $0x98] sm:$0xf]
  %v54 = vld [vmem:[%s0 + $0x9c] sm:$0xf]
  %v55 = vld [vmem:[%s0 + $0xa0] sm:$0xf]
  %v56 = vld [vmem:[%s0 + $0xa4] sm:$0xf]
  %v57 = vld [vmem:[%s0 + $0xa8] sm:$0xf]
  %v58 = vld [vmem:[%s0 + $0xac] sm:$0xf]
  %v59 = vld [vmem:[%s0 + $0xb0] sm:$0xf]
  %v60 = vld [vmem:[%s0 + $0xb4] sm:$0xf]
  %v61 = vld [vmem:[%s0 + $0xb8] sm:$0xf]
  %v62 = vld [vmem:[%s0 + $0xbc] sm:$0xf]
  %v63 = vld [vmem:[%s0 + $0xc0] sm:$0xf]
  %v64 = vld [vmem:[%s0 + $0xc4] sm:$0xf]
  %v65 = vld [vmem:[%s0 + $0xc8] sm:$0xf]
  %v66 = vld [vmem:[%s0 + $0xcc] sm:$0xf]
  %v67 = vld [vmem:[%s0 + $0xd0] sm:$0xf]
  %v68 = vld [vmem:[%s0 + $0xd4] sm:$0xf]
  %v69 = vld [vmem:[%s0 + $0xd8] sm:$0xf]
  %v70 = vld [vmem:[%s0 + $0xdc] sm:$0xf]
  %v71 = vld [vmem:[%s0 + $0xe0] sm:$0xf]
  %v72 = vld [vmem:[%s0 + $0xe4] sm:$0xf]
  %v73 = vld [vmem:[%s0 + $0xe8] sm:$0xf]
  %v74 = vld [vmem:[%s0 + $0xec] sm:$0xf]
  %v75 = vld [vmem:[%s0 + $0xf0] sm:$0xf]
  %v76 = vld [vmem:[%s0 + $0xf4] sm:$0xf]
  %v77 = vld [vmem:[%s0 + $0xf8] sm:$0xf]
  %v78 = vld [vmem:[%s0 + $0xfc] sm:$0xf]
  %v79 = vld [vmem:[%s1] sm:$0xf]
  %v80 = vld [vmem:[%s1 + $0x4] sm:$0xf]
  %v81 = vld [vmem:[%s1 + $0x8] sm:$0xf]
  %v82 = vld [vmem:[%s1 + $0xc] sm:$0xf]
  %v83 = vld [vmem:[%s2] sm:$0x1]
  %v85 = vlaneseq
  %v86 = vshrl.u32 %v85, 7
  %v87 = vsub.s32 0, %v86
  %v88 = vrot.slane %v83, %v87
  %v154 = vunpack.c.l.b16 %v15
  %v155 = vunpack.c.l.b16 %v16
  %v156 = vunpack.c.l.b16 %v17
  %v157 = vunpack.c.l.b16 %v18
  %v158 = vunpack.c.l.b16 %v19
  %v159 = vunpack.c.l.b16 %v20
  %v160 = vunpack.c.l.b16 %v21
  %v161 = vunpack.c.l.b16 %v22
  %v162 = vunpack.c.l.b16 %v23
  %v163 = vunpack.c.l.b16 %v24
  %v164 = vunpack.c.l.b16 %v25
  %v165 = vunpack.c.l.b16 %v26
  %v166 = vunpack.c.l.b16 %v27
  %v167 = vunpack.c.l.b16 %v28
  %v168 = vunpack.c.l.b16 %v29
  %v169 = vunpack.c.l.b16 %v30
  %v170 = vunpack.c.l.b16 %v31
  %v171 = vunpack.c.l.b16 %v32
  %v172 = vunpack.c.l.b16 %v33
  %v173 = vunpack.c.l.b16 %v34
  %v174 = vunpack.c.l.b16 %v35
  %v175 = vunpack.c.l.b16 %v36
  %v176 = vunpack.c.l.b16 %v37
  %v177 = vunpack.c.l.b16 %v38
  %v178 = vunpack.c.l.b16 %v39
  %v179 = vunpack.c.l.b16 %v40
  %v180 = vunpack.c.l.b16 %v41
  %v181 = vunpack.c.l.b16 %v42
  %v182 = vunpack.c.l.b16 %v43
  %v183 = vunpack.c.l.b16 %v44
  %v184 = vunpack.c.l.b16 %v45
  %v185 = vunpack.c.l.b16 %v46
  %v186 = vunpack.c.l.b16 %v47
  %v187 = vunpack.c.l.b16 %v48
  %v188 = vunpack.c.l.b16 %v49
  %v189 = vunpack.c.l.b16 %v50
  %v190 = vunpack.c.l.b16 %v51
  %v191 = vunpack.c.l.b16 %v52
  %v192 = vunpack.c.l.b16 %v53
  %v193 = vunpack.c.l.b16 %v54
  %v194 = vunpack.c.l.b16 %v55
  %v195 = vunpack.c.l.b16 %v56
  %v196 = vunpack.c.l.b16 %v57
  %v197 = vunpack.c.l.b16 %v58
  %v198 = vunpack.c.l.b16 %v59
  %v199 = vunpack.c.l.b16 %v60
  %v200 = vunpack.c.l.b16 %v61
  %v201 = vunpack.c.l.b16 %v62
  %v202 = vunpack.c.l.b16 %v63
  %v203 = vunpack.c.l.b16 %v64
  %v204 = vunpack.c.l.b16 %v65
  %v205 = vunpack.c.l.b16 %v66
  %v206 = vunpack.c.l.b16 %v67
  %v207 = vunpack.c.l.b16 %v68
  %v208 = vunpack.c.l.b16 %v69
  %v209 = vunpack.c.l.b16 %v70
  %v210 = vunpack.c.l.b16 %v71
  %v211 = vunpack.c.l.b16 %v72
  %v212 = vunpack.c.l.b16 %v73
  %v213 = vunpack.c.l.b16 %v74
  %v214 = vunpack.c.l.b16 %v75
  %v215 = vunpack.c.l.b16 %v76
  %v216 = vunpack.c.l.b16 %v77
  %v217 = vunpack.c.l.b16 %v78
  %v218 = vpack.c.b16 %v155, %v154
  %v219 = vpack.c.b16 %v157, %v156
  %v220 = vpack.c.b16 %v159, %v158
  %v221 = vpack.c.b16 %v161, %v160
  %v222 = vpack.c.b16 %v163, %v162
  %v223 = vpack.c.b16 %v165, %v164
  %v224 = vpack.c.b16 %v167, %v166
  %v225 = vpack.c.b16 %v169, %v168
  %v226 = vpack.c.b16 %v171, %v170
  %v227 = vpack.c.b16 %v173, %v172
  %v228 = vpack.c.b16 %v175, %v174
  %v229 = vpack.c.b16 %v177, %v176
  %v230 = vpack.c.b16 %v179, %v178
  %v231 = vpack.c.b16 %v181, %v180
  %v232 = vpack.c.b16 %v183, %v182
  %v233 = vpack.c.b16 %v185, %v184
  %v234 = vpack.c.b16 %v187, %v186
  %v235 = vpack.c.b16 %v189, %v188
  %v236 = vpack.c.b16 %v191, %v190
  %v237 = vpack.c.b16 %v193, %v192
  %v238 = vpack.c.b16 %v195, %v194
  %v239 = vpack.c.b16 %v197, %v196
  %v240 = vpack.c.b16 %v199, %v198
  %v241 = vpack.c.b16 %v201, %v200
  %v242 = vpack.c.b16 %v203, %v202
  %v243 = vpack.c.b16 %v205, %v204
  %v244 = vpack.c.b16 %v207, %v206
  %v245 = vpack.c.b16 %v209, %v208
  %v246 = vpack.c.b16 %v211, %v210
  %v247 = vpack.c.b16 %v213, %v212
  %v248 = vpack.c.b16 %v215, %v214
  %v249 = vpack.c.b16 %v217, %v216
  %v254 = vunpack.c.l.b16 %v79
  %v255 = vunpack.c.l.b16 %v80
  %v256 = vunpack.c.l.b16 %v81
  %v257 = vunpack.c.l.b16 %v82
  %v258 = vpack.c.b16 %v255, %v254
  %v259 = vpack.c.b16 %v257, %v256
  %vm262 = vcmask 261120
  %v264 = vsel %vm262, %v218, 0
  %v267 = vsel %vm262, %v219, 0
  %v270 = vsel %vm262, %v220, 0
  %v273 = vsel %vm262, %v221, 0
  %v276 = vsel %vm262, %v222, 0
  %v279 = vsel %vm262, %v223, 0
  %v282 = vsel %vm262, %v224, 0
  %v285 = vsel %vm262, %v225, 0
  %v288 = vsel %vm262, %v226, 0
  %v291 = vsel %vm262, %v227, 0
  %v294 = vsel %vm262, %v228, 0
  %v297 = vsel %vm262, %v229, 0
  %v300 = vsel %vm262, %v230, 0
  %v303 = vsel %vm262, %v231, 0
  %v306 = vsel %vm262, %v232, 0
  %v309 = vsel %vm262, %v233, 0
  %v312 = vsel %vm262, %v234, 0
  %v315 = vsel %vm262, %v235, 0
  %v318 = vsel %vm262, %v236, 0
  %v321 = vsel %vm262, %v237, 0
  %v324 = vsel %vm262, %v238, 0
  %v327 = vsel %vm262, %v239, 0
  %v330 = vsel %vm262, %v240, 0
  %v333 = vsel %vm262, %v241, 0
  %v336 = vsel %vm262, %v242, 0
  %v339 = vsel %vm262, %v243, 0
  %v342 = vsel %vm262, %v244, 0
  %v345 = vsel %vm262, %v245, 0
  %v348 = vsel %vm262, %v246, 0
  %v351 = vsel %vm262, %v247, 0
  %v354 = vsel %vm262, %v248, 0
  %v357 = vsel %vm262, %v249, 0
  %359 = vmatprep.subr.bf16.mxu0 0
  %360 = vmatpush1.bf16.msra.mxu0 %v258
  %361 = vmatprep.subr.bf16.mxu0 0
  %362 = vmatpush1.bf16.msra.mxu0 %v259
  %363 = vmatprep.subr.bf16.mxu0 0
  %364 = vmatpush1.bf16.msra.mxu0 0
  %365 = vmatprep.subr.bf16.mxu0 0
  %366 = vmatpush1.bf16.msra.mxu0 0
  %367 = vmatprep.subr.bf16.mxu0 0
  %368 = vmatpush1.bf16.msra.mxu0 0
  %369 = vmatprep.subr.bf16.mxu0 0
  %370 = vmatpush1.bf16.msra.mxu0 0
  %371 = vmatprep.subr.bf16.mxu0 0
  %372 = vmatpush1.bf16.msra.mxu0 0
  %373 = vmatprep.subr.bf16.mxu0 0
  %374 = vmatpush1.bf16.msra.mxu0 0
  %375 = vmatprep.subr.bf16.mxu0 0
  %376 = vmatpush1.bf16.msra.mxu0 0
  %377 = vmatprep.subr.bf16.mxu0 0
  %378 = vmatpush1.bf16.msra.mxu0 0
  %379 = vmatprep.subr.bf16.mxu0 0
  %380 = vmatpush1.bf16.msra.mxu0 0
  %381 = vmatprep.subr.bf16.mxu0 0
  %382 = vmatpush1.bf16.msra.mxu0 0
  %383 = vmatprep.subr.bf16.mxu0 0
  %384 = vmatpush1.bf16.msra.mxu0 0
  %385 = vmatprep.subr.bf16.mxu0 0
  %386 = vmatpush1.bf16.msra.mxu0 0
  %387 = vmatprep.subr.bf16.mxu0 0
  %388 = vmatpush1.bf16.msra.mxu0 0
  %389 = vmatprep.subr.bf16.mxu0 0
  %390 = vmatpush1.bf16.msra.mxu0 0
  %391 = vmatprep.mubr.bf16.mxu0 0
  %392 = vmatmul.mubr.bf16.gmra.mrb[0].mxu0 %v264
  %v393 = vpop.f32.mrb[0].mxu0
  %v394 = vadd.f32 %v88, %v393
  %v395 = vpop.f32.mrb[0].mxu0
  %v396 = vpop.f32.mrb[0].mxu0
  %v397 = vadd.f32 %v88, %v396
  %v398 = vpop.f32.mrb[0].mxu0
  %399 = vmatprep.mubr.bf16.mxu0 0
  %400 = vmatmul.mubr.bf16.gmra.mrb[0].mxu0 %v267
  %v401 = vpop.f32.mrb[0].mxu0
  %v402 = vadd.f32 %v88, %v401
  %v403 = vpop.f32.mrb[0].mxu0
  %v404 = vpop.f32.mrb[0].mxu0
  %v405 = vadd.f32 %v88, %v404
  %v406 = vpop.f32.mrb[0].mxu0
  %407 = vmatprep.mubr.bf16.mxu0 0
  %408 = vmatmul.mubr.bf16.gmra.mrb[0].mxu0 %v270
  %v409 = vpop.f32.mrb[0].mxu0
  %v410 = vadd.f32 %v88, %v409
  %v411 = vpop.f32.mrb[0].mxu0
  %v412 = vpop.f32.mrb[0].mxu0
  %v413 = vadd.f32 %v88, %v412
  %v414 = vpop.f32.mrb[0].mxu0
  %415 = vmatprep.mubr.bf16.mxu0 0
  %416 = vmatmul.mubr.bf16.gmra.mrb[0].mxu0 %v273
  %v417 = vpop.f32.mrb[0].mxu0
  %v418 = vadd.f32 %v88, %v417
  %v419 = vpop.f32.mrb[0].mxu0
  %v420 = vpop.f32.mrb[0].mxu0
  %v421 = vadd.f32 %v88, %v420
  %v422 = vpop.f32.mrb[0].mxu0
  %423 = vmatprep.mubr.bf16.mxu0 0
  %424 = vmatmul.mubr.bf16.gmra.mrb[0].mxu0 %v276
  %v425 = vpop.f32.mrb[0].mxu0
  %v426 = vadd.f32 %v88, %v425
  %v427 = vpop.f32.mrb[0].mxu0
  %v428 = vpop.f32.mrb[0].mxu0
  %v429 = vadd.f32 %v88, %v428
  %v430 = vpop.f32.mrb[0].mxu0
  %431 = vmatprep.mubr.bf16.mxu0 0
  %432 = vmatmul.mubr.bf16.gmra.mrb[0].mxu0 %v279
  %v433 = vpop.f32.mrb[0].mxu0
  %v434 = vadd.f32 %v88, %v433
  %v435 = vpop.f32.mrb[0].mxu0
  %v436 = vpop.f32.mrb[0].mxu0
  %v437 = vadd.f32 %v88, %v436
  %v438 = vpop.f32.mrb[0].mxu0
  %439 = vmatprep.mubr.bf16.mxu0 0
  %440 = vmatmul.mubr.bf16.gmra.mrb[0].mxu0 %v282
  %v441 = vpop.f32.mrb[0].mxu0
  %v442 = vadd.f32 %v88, %v441
  %v443 = vpop.f32.mrb[0].mxu0
  %v444 = vpop.f32.mrb[0].mxu0
  %v445 = vadd.f32 %v88, %v444
  %v446 = vpop.f32.mrb[0].mxu0
  %447 = vmatprep.mubr.bf16.mxu0 0
  %448 = vmatmul.mubr.bf16.gmra.mrb[0].mxu0 %v285
  %v449 = vpop.f32.mrb[0].mxu0
  %v450 = vadd.f32 %v88, %v449
  %v451 = vpop.f32.mrb[0].mxu0
  %v452 = vpop.f32.mrb[0].mxu0
  %v453 = vadd.f32 %v88, %v452
  %v454 = vpop.f32.mrb[0].mxu0
  %455 = vmatprep.mubr.bf16.mxu0 0
  %456 = vmatmul.mubr.bf16.gmra.mrb[0].mxu0 %v288
  %v457 = vpop.f32.mrb[0].mxu0
  %v458 = vadd.f32 %v88, %v457
  %v459 = vpop.f32.mrb[0].mxu0
  %v460 = vpop.f32.mrb[0].mxu0
  %v461 = vadd.f32 %v88, %v460
  %v462 = vpop.f32.mrb[0].mxu0
  %463 = vmatprep.mubr.bf16.mxu0 0
  %464 = vmatmul.mubr.bf16.gmra.mrb[0].mxu0 %v291
  %v465 = vpop.f32.mrb[0].mxu0
  %v466 = vadd.f32 %v88, %v465
  %v467 = vpop.f32.mrb[0].mxu0
  %v468 = vpop.f32.mrb[0].mxu0
  %v469 = vadd.f32 %v88, %v468
  %v470 = vpop.f32.mrb[0].mxu0
  %471 = vmatprep.mubr.bf16.mxu0 0
  %472 = vmatmul.mubr.bf16.gmra.mrb[0].mxu0 %v294
  %v473 = vpop.f32.mrb[0].mxu0
  %v474 = vadd.f32 %v88, %v473
  %v475 = vpop.f32.mrb[0].mxu0
  %v476 = vpop.f32.mrb[0].mxu0
  %v477 = vadd.f32 %v88, %v476
  %v478 = vpop.f32.mrb[0].mxu0
  %479 = vmatprep.mubr.bf16.mxu0 0
  %480 = vmatmul.mubr.bf16.gmra.mrb[0].mxu0 %v297
  %v481 = vpop.f32.mrb[0].mxu0
  %v482 = vadd.f32 %v88, %v481
  %v483 = vpop.f32.mrb[0].mxu0
  %v484 = vpop.f32.mrb[0].mxu0
  %v485 = vadd.f32 %v88, %v484
  %v486 = vpop.f32.mrb[0].mxu0
  %487 = vmatprep.mubr.bf16.mxu0 0
  %488 = vmatmul.mubr.bf16.gmra.mrb[0].mxu0 %v300
  %v489 = vpop.f32.mrb[0].mxu0
  %v490 = vadd.f32 %v88, %v489
  %v491 = vpop.f32.mrb[0].mxu0
  %v492 = vpop.f32.mrb[0].mxu0
  %v493 = vadd.f32 %v88, %v492
  %v494 = vpop.f32.mrb[0].mxu0
  %495 = vmatprep.mubr.bf16.mxu0 0
  %496 = vmatmul.mubr.bf16.gmra.mrb[0].mxu0 %v303
  %v497 = vpop.f32.mrb[0].mxu0
  %v498 = vadd.f32 %v88, %v497
  %v499 = vpop.f32.mrb[0].mxu0
  %v500 = vpop.f32.mrb[0].mxu0
  %v501 = vadd.f32 %v88, %v500
  %v502 = vpop.f32.mrb[0].mxu0
  %503 = vmatprep.mubr.bf16.mxu0 0
  %504 = vmatmul.mubr.bf16.gmra.mrb[0].mxu0 %v306
  %v505 = vpop.f32.mrb[0].mxu0
  %v506 = vadd.f32 %v88, %v505
  %v507 = vpop.f32.mrb[0].mxu0
  %v508 = vpop.f32.mrb[0].mxu0
  %v509 = vadd.f32 %v88, %v508
  %v510 = vpop.f32.mrb[0].mxu0
  %511 = vmatprep.mubr.bf16.mxu0 0
  %512 = vmatmul.mubr.bf16.gmra.mrb[0].mxu0 %v309
  %v513 = vpop.f32.mrb[0].mxu0
  %v514 = vadd.f32 %v88, %v513
  %v515 = vpop.f32.mrb[0].mxu0
  %v516 = vpop.f32.mrb[0].mxu0
  %v517 = vadd.f32 %v88, %v516
  %v518 = vpop.f32.mrb[0].mxu0
  %519 = vmatprep.mubr.bf16.mxu0 0
  %520 = vmatmul.mubr.bf16.gmra.mrb[0].mxu0 %v312
  %v521 = vpop.f32.mrb[0].mxu0
  %v522 = vadd.f32 %v88, %v521
  %v523 = vpop.f32.mrb[0].mxu0
  %v524 = vpop.f32.mrb[0].mxu0
  %v525 = vadd.f32 %v88, %v524
  %v526 = vpop.f32.mrb[0].mxu0
  %527 = vmatprep.mubr.bf16.mxu0 0
  %528 = vmatmul.mubr.bf16.gmra.mrb[0].mxu0 %v315
  %v529 = vpop.f32.mrb[0].mxu0
  %v530 = vadd.f32 %v88, %v529
  %v531 = vpop.f32.mrb[0].mxu0
  %v532 = vpop.f32.mrb[0].mxu0
  %v533 = vadd.f32 %v88, %v532
  %v534 = vpop.f32.mrb[0].mxu0
  %535 = vmatprep.mubr.bf16.mxu0 0
  %536 = vmatmul.mubr.bf16.gmra.mrb[0].mxu0 %v318
  %v537 = vpop.f32.mrb[0].mxu0
  %v538 = vadd.f32 %v88, %v537
  %v539 = vpop.f32.mrb[0].mxu0
  %v540 = vpop.f32.mrb[0].mxu0
  %v541 = vadd.f32 %v88, %v540
  %v542 = vpop.f32.mrb[0].mxu0
  %543 = vmatprep.mubr.bf16.mxu0 0
  %544 = vmatmul.mubr.bf16.gmra.mrb[0].mxu0 %v321
  %v545 = vpop.f32.mrb[0].mxu0
  %v546 = vadd.f32 %v88, %v545
  %v547 = vpop.f32.mrb[0].mxu0
  %v548 = vpop.f32.mrb[0].mxu0
  %v549 = vadd.f32 %v88, %v548
  %v550 = vpop.f32.mrb[0].mxu0
  %551 = vmatprep.mubr.bf16.mxu0 0
  %552 = vmatmul.mubr.bf16.gmra.mrb[0].mxu0 %v324
  %v553 = vpop.f32.mrb[0].mxu0
  %v554 = vadd.f32 %v88, %v553
  %v555 = vpop.f32.mrb[0].mxu0
  %v556 = vpop.f32.mrb[0].mxu0
  %v557 = vadd.f32 %v88, %v556
  %v558 = vpop.f32.mrb[0].mxu0
  %559 = vmatprep.mubr.bf16.mxu0 0
  %560 = vmatmul.mubr.bf16.gmra.mrb[0].mxu0 %v327
  %v561 = vpop.f32.mrb[0].mxu0
  %v562 = vadd.f32 %v88, %v561
  %v563 = vpop.f32.mrb[0].mxu0
  %v564 = vpop.f32.mrb[0].mxu0
  %v565 = vadd.f32 %v88, %v564
  %v566 = vpop.f32.mrb[0].mxu0
  %567 = vmatprep.mubr.bf16.mxu0 0
  %568 = vmatmul.mubr.bf16.gmra.mrb[0].mxu0 %v330
  %v569 = vpop.f32.mrb[0].mxu0
  %v570 = vadd.f32 %v88, %v569
  %v571 = vpop.f32.mrb[0].mxu0
  %v572 = vpop.f32.mrb[0].mxu0
  %v573 = vadd.f32 %v88, %v572
  %v574 = vpop.f32.mrb[0].mxu0
  %575 = vmatprep.mubr.bf16.mxu0 0
  %576 = vmatmul.mubr.bf16.gmra.mrb[0].mxu0 %v333
  %v577 = vpop.f32.mrb[0].mxu0
  %v578 = vadd.f32 %v88, %v577
  %v579 = vpop.f32.mrb[0].mxu0
  %v580 = vpop.f32.mrb[0].mxu0
  %v581 = vadd.f32 %v88, %v580
  %v582 = vpop.f32.mrb[0].mxu0
  %583 = vmatprep.mubr.bf16.mxu0 0
  %584 = vmatmul.mubr.bf16.gmra.mrb[0].mxu0 %v336
  %v585 = vpop.f32.mrb[0].mxu0
  %v586 = vadd.f32 %v88, %v585
  %v587 = vpop.f32.mrb[0].mxu0
  %v588 = vpop.f32.mrb[0].mxu0
  %v589 = vadd.f32 %v88, %v588
  %v590 = vpop.f32.mrb[0].mxu0
  %591 = vmatprep.mubr.bf16.mxu0 0
  %592 = vmatmul.mubr.bf16.gmra.mrb[0].mxu0 %v339
  %v593 = vpop.f32.mrb[0].mxu0
  %v594 = vadd.f32 %v88, %v593
  %v595 = vpop.f32.mrb[0].mxu0
  %v596 = vpop.f32.mrb[0].mxu0
  %v597 = vadd.f32 %v88, %v596
  %v598 = vpop.f32.mrb[0].mxu0
  %599 = vmatprep.mubr.bf16.mxu0 0
  %600 = vmatmul.mubr.bf16.gmra.mrb[0].mxu0 %v342
  %v601 = vpop.f32.mrb[0].mxu0
  %v602 = vadd.f32 %v88, %v601
  %v603 = vpop.f32.mrb[0].mxu0
  %v604 = vpop.f32.mrb[0].mxu0
  %v605 = vadd.f32 %v88, %v604
  %v606 = vpop.f32.mrb[0].mxu0
  %607 = vmatprep.mubr.bf16.mxu0 0
  %608 = vmatmul.mubr.bf16.gmra.mrb[0].mxu0 %v345
  %v609 = vpop.f32.mrb[0].mxu0
  %v610 = vadd.f32 %v88, %v609
  %v611 = vpop.f32.mrb[0].mxu0
  %v612 = vpop.f32.mrb[0].mxu0
  %v613 = vadd.f32 %v88, %v612
  %v614 = vpop.f32.mrb[0].mxu0
  %615 = vmatprep.mubr.bf16.mxu0 0
  %616 = vmatmul.mubr.bf16.gmra.mrb[0].mxu0 %v348
  %v617 = vpop.f32.mrb[0].mxu0
  %v618 = vadd.f32 %v88, %v617
  %v619 = vpop.f32.mrb[0].mxu0
  %v620 = vpop.f32.mrb[0].mxu0
  %v621 = vadd.f32 %v88, %v620
  %v622 = vpop.f32.mrb[0].mxu0
  %623 = vmatprep.mubr.bf16.mxu0 0
  %624 = vmatmul.mubr.bf16.gmra.mrb[0].mxu0 %v351
  %v625 = vpop.f32.mrb[0].mxu0
  %v626 = vadd.f32 %v88, %v625
  %v627 = vpop.f32.mrb[0].mxu0
  %v628 = vpop.f32.mrb[0].mxu0
  %v629 = vadd.f32 %v88, %v628
  %v630 = vpop.f32.mrb[0].mxu0
  %631 = vmatprep.mubr.bf16.mxu0 0
  %632 = vmatmul.mubr.bf16.gmra.mrb[0].mxu0 %v354
  %v633 = vpop.f32.mrb[0].mxu0
  %v634 = vadd.f32 %v88, %v633
  %v635 = vpop.f32.mrb[0].mxu0
  %v636 = vpop.f32.mrb[0].mxu0
  %v637 = vadd.f32 %v88, %v636
  %v638 = vpop.f32.mrb[0].mxu0
  %639 = vmatprep.mubr.bf16.mxu0 0
  %640 = vmatmul.mubr.bf16.gmra.mrb[0].mxu0 %v357
  %v641 = vpop.f32.mrb[0].mxu0
  %v642 = vadd.f32 %v88, %v641
  %v643 = vpop.f32.mrb[0].mxu0
  %v644 = vpop.f32.mrb[0].mxu0
  %v645 = vadd.f32 %v88, %v644
  %v646 = vpop.f32.mrb[0].mxu0
  %647 = vdwg.mxu0
  %v648 = vmax.f32 %v394, 0.0
  %v649 = vmax.f32 %v397, 0.0
  %v650 = vmax.f32 %v402, 0.0
  %v651 = vmax.f32 %v405, 0.0
  %v652 = vmax.f32 %v410, 0.0
  %v653 = vmax.f32 %v413, 0.0
  %v654 = vmax.f32 %v418, 0.0
  %v655 = vmax.f32 %v421, 0.0
  %v656 = vmax.f32 %v426, 0.0
  %v657 = vmax.f32 %v429, 0.0
  %v658 = vmax.f32 %v434, 0.0
  %v659 = vmax.f32 %v437, 0.0
  %v660 = vmax.f32 %v442, 0.0
  %v661 = vmax.f32 %v445, 0.0
  %v662 = vmax.f32 %v450, 0.0
  %v663 = vmax.f32 %v453, 0.0
  %v664 = vmax.f32 %v458, 0.0
  %v665 = vmax.f32 %v461, 0.0
  %v666 = vmax.f32 %v466, 0.0
  %v667 = vmax.f32 %v469, 0.0
  %v668 = vmax.f32 %v474, 0.0
  %v669 = vmax.f32 %v477, 0.0
  %v670 = vmax.f32 %v482, 0.0
  %v671 = vmax.f32 %v485, 0.0
  %v672 = vmax.f32 %v490, 0.0
  %v673 = vmax.f32 %v493, 0.0
  %v674 = vmax.f32 %v498, 0.0
  %v675 = vmax.f32 %v501, 0.0
  %v676 = vmax.f32 %v506, 0.0
  %v677 = vmax.f32 %v509, 0.0
  %v678 = vmax.f32 %v514, 0.0
  %v679 = vmax.f32 %v517, 0.0
  %v680 = vmax.f32 %v522, 0.0
  %v681 = vmax.f32 %v525, 0.0
  %v682 = vmax.f32 %v530, 0.0
  %v683 = vmax.f32 %v533, 0.0
  %v684 = vmax.f32 %v538, 0.0
  %v685 = vmax.f32 %v541, 0.0
  %v686 = vmax.f32 %v546, 0.0
  %v687 = vmax.f32 %v549, 0.0
  %v688 = vmax.f32 %v554, 0.0
  %v689 = vmax.f32 %v557, 0.0
  %v690 = vmax.f32 %v562, 0.0
  %v691 = vmax.f32 %v565, 0.0
  %v692 = vmax.f32 %v570, 0.0
  %v693 = vmax.f32 %v573, 0.0
  %v694 = vmax.f32 %v578, 0.0
  %v695 = vmax.f32 %v581, 0.0
  %v696 = vmax.f32 %v586, 0.0
  %v697 = vmax.f32 %v589, 0.0
  %v698 = vmax.f32 %v594, 0.0
  %v699 = vmax.f32 %v597, 0.0
  %v700 = vmax.f32 %v602, 0.0
  %v701 = vmax.f32 %v605, 0.0
  %v702 = vmax.f32 %v610, 0.0
  %v703 = vmax.f32 %v613, 0.0
  %v704 = vmax.f32 %v618, 0.0
  %v705 = vmax.f32 %v621, 0.0
  %v706 = vmax.f32 %v626, 0.0
  %v707 = vmax.f32 %v629, 0.0
  %v708 = vmax.f32 %v634, 0.0
  %v709 = vmax.f32 %v637, 0.0
  %v710 = vmax.f32 %v642, 0.0
  %v711 = vmax.f32 %v645, 0.0
  %v712 = vpack.c.bf16 %v649, %v648
  %v713 = vpack.c.bf16 %v651, %v650
  %v714 = vpack.c.bf16 %v653, %v652
  %v715 = vpack.c.bf16 %v655, %v654
  %v716 = vpack.c.bf16 %v657, %v656
  %v717 = vpack.c.bf16 %v659, %v658
  %v718 = vpack.c.bf16 %v661, %v660
  %v719 = vpack.c.bf16 %v663, %v662
  %v720 = vpack.c.bf16 %v665, %v664
  %v721 = vpack.c.bf16 %v667, %v666
  %v722 = vpack.c.bf16 %v669, %v668
  %v723 = vpack.c.bf16 %v671, %v670
  %v724 = vpack.c.bf16 %v673, %v672
  %v725 = vpack.c.bf16 %v675, %v674
  %v726 = vpack.c.bf16 %v677, %v676
  %v727 = vpack.c.bf16 %v679, %v678
  %v728 = vpack.c.bf16 %v681, %v680
  %v729 = vpack.c.bf16 %v683, %v682
  %v730 = vpack.c.bf16 %v685, %v684
  %v731 = vpack.c.bf16 %v687, %v686
  %v732 = vpack.c.bf16 %v689, %v688
  %v733 = vpack.c.bf16 %v691, %v690
  %v734 = vpack.c.bf16 %v693, %v692
  %v735 = vpack.c.bf16 %v695, %v694
  %v736 = vpack.c.bf16 %v697, %v696
  %v737 = vpack.c.bf16 %v699, %v698
  %v738 = vpack.c.bf16 %v701, %v700
  %v739 = vpack.c.bf16 %v703, %v702
  %v740 = vpack.c.bf16 %v705, %v704
  %v741 = vpack.c.bf16 %v707, %v706
  %v742 = vpack.c.bf16 %v709, %v708
  %v743 = vpack.c.bf16 %v711, %v710
  %v776 = vunpack.c.l.b16 %v712
  %v777 = vunpack.c.h.b16 %v712
  %v778 = vunpack.c.l.b16 %v713
  %v779 = vunpack.c.h.b16 %v713
  %v780 = vunpack.c.l.b16 %v714
  %v781 = vunpack.c.h.b16 %v714
  %v782 = vunpack.c.l.b16 %v715
  %v783 = vunpack.c.h.b16 %v715
  %v784 = vunpack.c.l.b16 %v716
  %v785 = vunpack.c.h.b16 %v716
  %v786 = vunpack.c.l.b16 %v717
  %v787 = vunpack.c.h.b16 %v717
  %v788 = vunpack.c.l.b16 %v718
  %v789 = vunpack.c.h.b16 %v718
  %v790 = vunpack.c.l.b16 %v719
  %v791 = vunpack.c.h.b16 %v719
  %v792 = vunpack.c.l.b16 %v720
  %v793 = vunpack.c.h.b16 %v720
  %v794 = vunpack.c.l.b16 %v721
  %v795 = vunpack.c.h.b16 %v721
  %v796 = vunpack.c.l.b16 %v722
  %v797 = vunpack.c.h.b16 %v722
  %v798 = vunpack.c.l.b16 %v723
  %v799 = vunpack.c.h.b16 %v723
  %v800 = vunpack.c.l.b16 %v724
  %v801 = vunpack.c.h.b16 %v724
  %v802 = vunpack.c.l.b16 %v725
  %v803 = vunpack.c.h.b16 %v725
  %v804 = vunpack.c.l.b16 %v726
  %v805 = vunpack.c.h.b16 %v726
  %v806 = vunpack.c.l.b16 %v727
  %v807 = vunpack.c.h.b16 %v727
  %v808 = vunpack.c.l.b16 %v728
  %v809 = vunpack.c.h.b16 %v728
  %v810 = vunpack.c.l.b16 %v729
  %v811 = vunpack.c.h.b16 %v729
  %v812 = vunpack.c.l.b16 %v730
  %v813 = vunpack.c.h.b16 %v730
  %v814 = vunpack.c.l.b16 %v731
  %v815 = vunpack.c.h.b16 %v731
  %v816 = vunpack.c.l.b16 %v732
  %v817 = vunpack.c.h.b16 %v732
  %v818 = vunpack.c.l.b16 %v733
  %v819 = vunpack.c.h.b16 %v733
  %v820 = vunpack.c.l.b16 %v734
  %v821 = vunpack.c.h.b16 %v734
  %v822 = vunpack.c.l.b16 %v735
  %v823 = vunpack.c.h.b16 %v735
  %v824 = vunpack.c.l.b16 %v736
  %v825 = vunpack.c.h.b16 %v736
  %v826 = vunpack.c.l.b16 %v737
  %v827 = vunpack.c.h.b16 %v737
  %v828 = vunpack.c.l.b16 %v738
  %v829 = vunpack.c.h.b16 %v738
  %v830 = vunpack.c.l.b16 %v739
  %v831 = vunpack.c.h.b16 %v739
  %v832 = vunpack.c.l.b16 %v740
  %v833 = vunpack.c.h.b16 %v740
  %v834 = vunpack.c.l.b16 %v741
  %v835 = vunpack.c.h.b16 %v741
  %v836 = vunpack.c.l.b16 %v742
  %v837 = vunpack.c.h.b16 %v742
  %v838 = vunpack.c.l.b16 %v743
  %v839 = vunpack.c.h.b16 %v743
  %v840 = vpack.c.b16 %v776, %v776
  %v841 = vpack.c.b16 %v777, %v777
  %v842 = vpack.c.b16 %v778, %v778
  %v843 = vpack.c.b16 %v779, %v779
  %v844 = vpack.c.b16 %v780, %v780
  %v845 = vpack.c.b16 %v781, %v781
  %v846 = vpack.c.b16 %v782, %v782
  %v847 = vpack.c.b16 %v783, %v783
  %v848 = vpack.c.b16 %v784, %v784
  %v849 = vpack.c.b16 %v785, %v785
  %v850 = vpack.c.b16 %v786, %v786
  %v851 = vpack.c.b16 %v787, %v787
  %v852 = vpack.c.b16 %v788, %v788
  %v853 = vpack.c.b16 %v789, %v789
  %v854 = vpack.c.b16 %v790, %v790
  %v855 = vpack.c.b16 %v791, %v791
  %v856 = vpack.c.b16 %v792, %v792
  %v857 = vpack.c.b16 %v793, %v793
  %v858 = vpack.c.b16 %v794, %v794
  %v859 = vpack.c.b16 %v795, %v795
  %v860 = vpack.c.b16 %v796, %v796
  %v861 = vpack.c.b16 %v797, %v797
  %v862 = vpack.c.b16 %v798, %v798
  %v863 = vpack.c.b16 %v799, %v799
  %v864 = vpack.c.b16 %v800, %v800
  %v865 = vpack.c.b16 %v801, %v801
  %v866 = vpack.c.b16 %v802, %v802
  %v867 = vpack.c.b16 %v803, %v803
  %v868 = vpack.c.b16 %v804, %v804
  %v869 = vpack.c.b16 %v805, %v805
  %v870 = vpack.c.b16 %v806, %v806
  %v871 = vpack.c.b16 %v807, %v807
  %v872 = vpack.c.b16 %v808, %v808
  %v873 = vpack.c.b16 %v809, %v809
  %v874 = vpack.c.b16 %v810, %v810
  %v875 = vpack.c.b16 %v811, %v811
  %v876 = vpack.c.b16 %v812, %v812
  %v877 = vpack.c.b16 %v813, %v813
  %v878 = vpack.c.b16 %v814, %v814
  %v879 = vpack.c.b16 %v815, %v815
  %v880 = vpack.c.b16 %v816, %v816
  %v881 = vpack.c.b16 %v817, %v817
  %v882 = vpack.c.b16 %v818, %v818
  %v883 = vpack.c.b16 %v819, %v819
  %v884 = vpack.c.b16 %v820, %v820
  %v885 = vpack.c.b16 %v821, %v821
  %v886 = vpack.c.b16 %v822, %v822
  %v887 = vpack.c.b16 %v823, %v823
  %v888 = vpack.c.b16 %v824, %v824
  %v889 = vpack.c.b16 %v825, %v825
  %v890 = vpack.c.b16 %v826, %v826
  %v891 = vpack.c.b16 %v827, %v827
  %v892 = vpack.c.b16 %v828, %v828
  %v893 = vpack.c.b16 %v829, %v829
  %v894 = vpack.c.b16 %v830, %v830
  %v895 = vpack.c.b16 %v831, %v831
  %v896 = vpack.c.b16 %v832, %v832
  %v897 = vpack.c.b16 %v833, %v833
  %v898 = vpack.c.b16 %v834, %v834
  %v899 = vpack.c.b16 %v835, %v835
  %v900 = vpack.c.b16 %v836, %v836
  %v901 = vpack.c.b16 %v837, %v837
  %v902 = vpack.c.b16 %v838, %v838
  %v903 = vpack.c.b16 %v839, %v839
  %968 = vst [vmem:[%s3] sm:$0xf] %v840
  %969 = vst [vmem:[%s3 + $0x4] sm:$0xf] %v841
  %970 = vst [vmem:[%s3 + $0x8] sm:$0xf] %v842
  %971 = vst [vmem:[%s3 + $0xc] sm:$0xf] %v843
  %972 = vst [vmem:[%s3 + $0x10] sm:$0xf] %v844
  %973 = vst [vmem:[%s3 + $0x14] sm:$0xf] %v845
  %974 = vst [vmem:[%s3 + $0x18] sm:$0xf] %v846
  %975 = vst [vmem:[%s3 + $0x1c] sm:$0xf] %v847
  %976 = vst [vmem:[%s3 + $0x20] sm:$0xf] %v848
  %977 = vst [vmem:[%s3 + $0x24] sm:$0xf] %v849
  %978 = vst [vmem:[%s3 + $0x28] sm:$0xf] %v850
  %979 = vst [vmem:[%s3 + $0x2c] sm:$0xf] %v851
  %980 = vst [vmem:[%s3 + $0x30] sm:$0xf] %v852
  %981 = vst [vmem:[%s3 + $0x34] sm:$0xf] %v853
  %982 = vst [vmem:[%s3 + $0x38] sm:$0xf] %v854
  %983 = vst [vmem:[%s3 + $0x3c] sm:$0xf] %v855
  %984 = vst [vmem:[%s3 + $0x40] sm:$0xf] %v856
  %985 = vst [vmem:[%s3 + $0x44] sm:$0xf] %v857
  %986 = vst [vmem:[%s3 + $0x48] sm:$0xf] %v858
  %987 = vst [vmem:[%s3 + $0x4c] sm:$0xf] %v859
  %988 = vst [vmem:[%s3 + $0x50] sm:$0xf] %v860
  %989 = vst [vmem:[%s3 + $0x54] sm:$0xf] %v861
  %990 = vst [vmem:[%s3 + $0x58] sm:$0xf] %v862
  %991 = vst [vmem:[%s3 + $0x5c] sm:$0xf] %v863
  %992 = vst [vmem:[%s3 + $0x60] sm:$0xf] %v864
  %993 = vst [vmem:[%s3 + $0x64] sm:$0xf] %v865
  %994 = vst [vmem:[%s3 + $0x68] sm:$0xf] %v866
  %995 = vst [vmem:[%s3 + $0x6c] sm:$0xf] %v867
  %996 = vst [vmem:[%s3 + $0x70] sm:$0xf] %v868
  %997 = vst [vmem:[%s3 + $0x74] sm:$0xf] %v869
  %998 = vst [vmem:[%s3 + $0x78] sm:$0xf] %v870
  %999 = vst [vmem:[%s3 + $0x7c] sm:$0xf] %v871
  %1000 = vst [vmem:[%s3 + $0x80] sm:$0xf] %v872
  %1001 = vst [vmem:[%s3 + $0x84] sm:$0xf] %v873
  %1002 = vst [vmem:[%s3 + $0x88] sm:$0xf] %v874
  %1003 = vst [vmem:[%s3 + $0x8c] sm:$0xf] %v875
  %1004 = vst [vmem:[%s3 + $0x90] sm:$0xf] %v876
  %1005 = vst [vmem:[%s3 + $0x94] sm:$0xf] %v877
  %1006 = vst [vmem:[%s3 + $0x98] sm:$0xf] %v878
  %1007 = vst [vmem:[%s3 + $0x9c] sm:$0xf] %v879
  %1008 = vst [vmem:[%s3 + $0xa0] sm:$0xf] %v880
  %1009 = vst [vmem:[%s3 + $0xa4] sm:$0xf] %v881
  %1010 = vst [vmem:[%s3 + $0xa8] sm:$0xf] %v882
  %1011 = vst [vmem:[%s3 + $0xac] sm:$0xf] %v883
  %1012 = vst [vmem:[%s3 + $0xb0] sm:$0xf] %v884
  %1013 = vst [vmem:[%s3 + $0xb4] sm:$0xf] %v885
  %1014 = vst [vmem:[%s3 + $0xb8] sm:$0xf] %v886
  %1015 = vst [vmem:[%s3 + $0xbc] sm:$0xf] %v887
  %1016 = vst [vmem:[%s3 + $0xc0] sm:$0xf] %v888
  %1017 = vst [vmem:[%s3 + $0xc4] sm:$0xf] %v889
  %1018 = vst [vmem:[%s3 + $0xc8] sm:$0xf] %v890
  %1019 = vst [vmem:[%s3 + $0xcc] sm:$0xf] %v891
  %1020 = vst [vmem:[%s3 + $0xd0] sm:$0xf] %v892
  %1021 = vst [vmem:[%s3 + $0xd4] sm:$0xf] %v893
  %1022 = vst [vmem:[%s3 + $0xd8] sm:$0xf] %v894
  %1023 = vst [vmem:[%s3 + $0xdc] sm:$0xf] %v895
  %1024 = vst [vmem:[%s3 + $0xe0] sm:$0xf] %v896
  %1025 = vst [vmem:[%s3 + $0xe4] sm:$0xf] %v897
  %1026 = vst [vmem:[%s3 + $0xe8] sm:$0xf] %v898
  %1027 = vst [vmem:[%s3 + $0xec] sm:$0xf] %v899
  %1028 = vst [vmem:[%s3 + $0xf0] sm:$0xf] %v900
  %1029 = vst [vmem:[%s3 + $0xf4] sm:$0xf] %v901
  %1030 = vst [vmem:[%s3 + $0xf8] sm:$0xf] %v902
  %1031 = vst [vmem:[%s3 + $0xfc] sm:$0xf] %v903
  // Predicated region
  $region14: #{encoder_forward.23} parent=0 // pred_check
    _
  $region15: #{encoder_forward.23} parent=0 // pred_check_branch
    %1033 = sbr.rel (0) target = $region17
  $region16: #{encoder_forward.23} parent=0 // pred_region
    _
  $region17: #{encoder_forward.23} parent=0 // pred_fallthru
    _
  // Predicated region
  $region18: #{encoder_forward.23} parent=0 // pred_check
    _
  $region19: #{encoder_forward.23} parent=0 // pred_check_branch
    %1035 = sbr.rel (0) target = $region21
  $region20: #{encoder_forward.23} parent=0 // pred_region
    _
  $region21: #{encoder_forward.23} parent=0 // pred_fallthru
    _

// kernel: encoder_forward.22
$region0: #{encoder_forward.22}
  #allocation0 [shape = 'u32[]', space=smem, size = 0x4, offset = 0x4, fixed_abs, tag = 'smem constant byte address 0x4 - core index']
  #allocation1 [shape = 'u32[144,128]{1,0:T(1,128)}', space=vmem, size = 0x12000, scoped, tag = 'internal scratch']
  %s0 = inlined_call_operand.vmem [shape: bf16[512,8], index: 0, kind: input, shape index: {}]
  %s1 = inlined_call_operand.vmem [shape: bf16[8,128], index: 1, kind: input, shape index: {}]
  %s2 = inlined_call_operand.vmem [shape: f32[1,128], index: 2, kind: input, shape index: {}]
  %s3 = inlined_call_operand.vmem [shape: bf16[512,128], index: 3, kind: input, shape index: {}]
  %s4 = inlined_call_operand.vmem [shape: bf16[512,128], index: 4, kind: output, shape index: {}]
  %s5 = sld [smem:[#allocation0]]
  $region26: #{encoder_forward.22} parent=0
    _
  %s7 = ssub.s32 1, %s5
  %s8 = scalar_select 0, %s7, %s5
  // Predicated region
  $region2: #{encoder_forward.22} parent=0 // pred_check
    _
  $region3: #{encoder_forward.22} parent=0 // pred_check_branch
    %10 = sbr.rel (0) target = $region5
  $region4: #{encoder_forward.22} parent=0 // pred_region
    _
  $region5: #{encoder_forward.22} parent=0 // pred_fallthru
    _
  // Predicated region
  $region6: #{encoder_forward.22} parent=0 // pred_check
    _
  $region7: #{encoder_forward.22} parent=0 // pred_check_branch
    %12 = sbr.rel (0) target = $region9
  $region8: #{encoder_forward.22} parent=0 // pred_region
    _
  $region9: #{encoder_forward.22} parent=0 // pred_fallthru
    _
  // Predicated region
  $region10: #{encoder_forward.22} parent=0 // pred_check
    _
  $region11: #{encoder_forward.22} parent=0 // pred_check_branch
    %14 = sbr.rel (0) target = $region13
  $region12: #{encoder_forward.22} parent=0 // pred_region
    _
  $region13: #{encoder_forward.22} parent=0 // pred_fallthru
    _
  // Predicated region
  $region14: #{encoder_forward.22} parent=0 // pred_check
    _
  $region15: #{encoder_forward.22} parent=0 // pred_check_branch
    %16 = sbr.rel (0) target = $region17
  $region16: #{encoder_forward.22} parent=0 // pred_region
    _
  $region17: #{encoder_forward.22} parent=0 // pred_fallthru
    _
  %v18 = vld [vmem:[%s0] sm:$0xf]
  %v19 = vld [vmem:[%s0 + $0x4] sm:$0xf]
  %v20 = vld [vmem:[%s0 + $0x8] sm:$0xf]
  %v21 = vld [vmem:[%s0 + $0xc] sm:$0xf]
  %v22 = vld [vmem:[%s0 + $0x10] sm:$0xf]
  %v23 = vld [vmem:[%s0 + $0x14] sm:$0xf]
  %v24 = vld [vmem:[%s0 + $0x18] sm:$0xf]
  %v25 = vld [vmem:[%s0 + $0x1c] sm:$0xf]
  %v26 = vld [vmem:[%s0 + $0x20] sm:$0xf]
  %v27 = vld [vmem:[%s0 + $0x24] sm:$0xf]
  %v28 = vld [vmem:[%s0 + $0x28] sm:$0xf]
  %v29 = vld [vmem:[%s0 + $0x2c] sm:$0xf]
  %v30 = vld [vmem:[%s0 + $0x30] sm:$0xf]
  %v31 = vld [vmem:[%s0 + $0x34] sm:$0xf]
  %v32 = vld [vmem:[%s0 + $0x38] sm:$0xf]
  %v33 = vld [vmem:[%s0 + $0x3c] sm:$0xf]
  %v34 = vld [vmem:[%s0 + $0x40] sm:$0xf]
  %v35 = vld [vmem:[%s0 + $0x44] sm:$0xf]
  %v36 = vld [vmem:[%s0 + $0x48] sm:$0xf]
  %v37 = vld [vmem:[%s0 + $0x4c] sm:$0xf]
  %v38 = vld [vmem:[%s0 + $0x50] sm:$0xf]
  %v39 = vld [vmem:[%s0 + $0x54] sm:$0xf]
  %v40 = vld [vmem:[%s0 + $0x58] sm:$0xf]
  %v41 = vld [vmem:[%s0 + $0x5c] sm:$0xf]
  %v42 = vld [vmem:[%s0 + $0x60] sm:$0xf]
  %v43 = vld [vmem:[%s0 + $0x64] sm:$0xf]
  %v44 = vld [vmem:[%s0 + $0x68] sm:$0xf]
  %v45 = vld [vmem:[%s0 + $0x6c] sm:$0xf]
  %v46 = vld [vmem:[%s0 + $0x70] sm:$0xf]
  %v47 = vld [vmem:[%s0 + $0x74] sm:$0xf]
  %v48 = vld [vmem:[%s0 + $0x78] sm:$0xf]
  %v49 = vld [vmem:[%s0 + $0x7c] sm:$0xf]
  %v50 = vld [vmem:[%s0 + $0x80] sm:$0xf]
  %v51 = vld [vmem:[%s0 + $0x84] sm:$0xf]
  %v52 = vld [vmem:[%s0 + $0x88] sm:$0xf]
  %v53 = vld [vmem:[%s0 + $0x8c] sm:$0xf]
  %v54 = vld [vmem:[%s0 + $0x90] sm:$0xf]
  %v55 = vld [vmem:[%s0 + $0x94] sm:$0xf]
  %v56 = vld [vmem:[%s0 + $0x98] sm:$0xf]
  %v57 = vld [vmem:[%s0 + $0x9c] sm:$0xf]
  %v58 = vld [vmem:[%s0 + $0xa0] sm:$0xf]
  %v59 = vld [vmem:[%s0 + $0xa4] sm:$0xf]
  %v60 = vld [vmem:[%s0 + $0xa8] sm:$0xf]
  %v61 = vld [vmem:[%s0 + $0xac] sm:$0xf]
  %v62 = vld [vmem:[%s0 + $0xb0] sm:$0xf]
  %v63 = vld [vmem:[%s0 + $0xb4] sm:$0xf]
  %v64 = vld [vmem:[%s0 + $0xb8] sm:$0xf]
  %v65 = vld [vmem:[%s0 + $0xbc] sm:$0xf]
  %v66 = vld [vmem:[%s0 + $0xc0] sm:$0xf]
  %v67 = vld [vmem:[%s0 + $0xc4] sm:$0xf]
  %v68 = vld [vmem:[%s0 + $0xc8] sm:$0xf]
  %v69 = vld [vmem:[%s0 + $0xcc] sm:$0xf]
  %v70 = vld [vmem:[%s0 + $0xd0] sm:$0xf]
  %v71 = vld [vmem:[%s0 + $0xd4] sm:$0xf]
  %v72 = vld [vmem:[%s0 + $0xd8] sm:$0xf]
  %v73 = vld [vmem:[%s0 + $0xdc] sm:$0xf]
  %v74 = vld [vmem:[%s0 + $0xe0] sm:$0xf]
  %v75 = vld [vmem:[%s0 + $0xe4] sm:$0xf]
  %v76 = vld [vmem:[%s0 + $0xe8] sm:$0xf]
  %v77 = vld [vmem:[%s0 + $0xec] sm:$0xf]
  %v78 = vld [vmem:[%s0 + $0xf0] sm:$0xf]
  %v79 = vld [vmem:[%s0 + $0xf4] sm:$0xf]
  %v80 = vld [vmem:[%s0 + $0xf8] sm:$0xf]
  %v81 = vld [vmem:[%s0 + $0xfc] sm:$0xf]
  %v82 = vld [vmem:[%s1] sm:$0xf]
  %v83 = vld [vmem:[%s2] sm:$0x1]
  %v85 = vlaneseq
  %v86 = vshrl.u32 %v85, 7
  %v87 = vsub.s32 0, %v86
  %v88 = vrot.slane %v83, %v87
  %v154 = vunpack.c.l.b16 %v18
  %v155 = vunpack.c.l.b16 %v19
  %v156 = vunpack.c.l.b16 %v20
  %v157 = vunpack.c.l.b16 %v21
  %v158 = vunpack.c.l.b16 %v22
  %v159 = vunpack.c.l.b16 %v23
  %v160 = vunpack.c.l.b16 %v24
  %v161 = vunpack.c.l.b16 %v25
  %v162 = vunpack.c.l.b16 %v26
  %v163 = vunpack.c.l.b16 %v27
  %v164 = vunpack.c.l.b16 %v28
  %v165 = vunpack.c.l.b16 %v29
  %v166 = vunpack.c.l.b16 %v30
  %v167 = vunpack.c.l.b16 %v31
  %v168 = vunpack.c.l.b16 %v32
  %v169 = vunpack.c.l.b16 %v33
  %v170 = vunpack.c.l.b16 %v34
  %v171 = vunpack.c.l.b16 %v35
  %v172 = vunpack.c.l.b16 %v36
  %v173 = vunpack.c.l.b16 %v37
  %v174 = vunpack.c.l.b16 %v38
  %v175 = vunpack.c.l.b16 %v39
  %v176 = vunpack.c.l.b16 %v40
  %v177 = vunpack.c.l.b16 %v41
  %v178 = vunpack.c.l.b16 %v42
  %v179 = vunpack.c.l.b16 %v43
  %v180 = vunpack.c.l.b16 %v44
  %v181 = vunpack.c.l.b16 %v45
  %v182 = vunpack.c.l.b16 %v46
  %v183 = vunpack.c.l.b16 %v47
  %v184 = vunpack.c.l.b16 %v48
  %v185 = vunpack.c.l.b16 %v49
  %v186 = vunpack.c.l.b16 %v50
  %v187 = vunpack.c.l.b16 %v51
  %v188 = vunpack.c.l.b16 %v52
  %v189 = vunpack.c.l.b16 %v53
  %v190 = vunpack.c.l.b16 %v54
  %v191 = vunpack.c.l.b16 %v55
  %v192 = vunpack.c.l.b16 %v56
  %v193 = vunpack.c.l.b16 %v57
  %v194 = vunpack.c.l.b16 %v58
  %v195 = vunpack.c.l.b16 %v59
  %v196 = vunpack.c.l.b16 %v60
  %v197 = vunpack.c.l.b16 %v61
  %v198 = vunpack.c.l.b16 %v62
  %v199 = vunpack.c.l.b16 %v63
  %v200 = vunpack.c.l.b16 %v64
  %v201 = vunpack.c.l.b16 %v65
  %v202 = vunpack.c.l.b16 %v66
  %v203 = vunpack.c.l.b16 %v67
  %v204 = vunpack.c.l.b16 %v68
  %v205 = vunpack.c.l.b16 %v69
  %v206 = vunpack.c.l.b16 %v70
  %v207 = vunpack.c.l.b16 %v71
  %v208 = vunpack.c.l.b16 %v72
  %v209 = vunpack.c.l.b16 %v73
  %v210 = vunpack.c.l.b16 %v74
  %v211 = vunpack.c.l.b16 %v75
  %v212 = vunpack.c.l.b16 %v76
  %v213 = vunpack.c.l.b16 %v77
  %v214 = vunpack.c.l.b16 %v78
  %v215 = vunpack.c.l.b16 %v79
  %v216 = vunpack.c.l.b16 %v80
  %v217 = vunpack.c.l.b16 %v81
  %v218 = vpack.c.b16 %v155, %v154
  %v219 = vpack.c.b16 %v157, %v156
  %v220 = vpack.c.b16 %v159, %v158
  %v221 = vpack.c.b16 %v161, %v160
  %v222 = vpack.c.b16 %v163, %v162
  %v223 = vpack.c.b16 %v165, %v164
  %v224 = vpack.c.b16 %v167, %v166
  %v225 = vpack.c.b16 %v169, %v168
  %v226 = vpack.c.b16 %v171, %v170
  %v227 = vpack.c.b16 %v173, %v172
  %v228 = vpack.c.b16 %v175, %v174
  %v229 = vpack.c.b16 %v177, %v176
  %v230 = vpack.c.b16 %v179, %v178
  %v231 = vpack.c.b16 %v181, %v180
  %v232 = vpack.c.b16 %v183, %v182
  %v233 = vpack.c.b16 %v185, %v184
  %v234 = vpack.c.b16 %v187, %v186
  %v235 = vpack.c.b16 %v189, %v188
  %v236 = vpack.c.b16 %v191, %v190
  %v237 = vpack.c.b16 %v193, %v192
  %v238 = vpack.c.b16 %v195, %v194
  %v239 = vpack.c.b16 %v197, %v196
  %v240 = vpack.c.b16 %v199, %v198
  %v241 = vpack.c.b16 %v201, %v200
  %v242 = vpack.c.b16 %v203, %v202
  %v243 = vpack.c.b16 %v205, %v204
  %v244 = vpack.c.b16 %v207, %v206
  %v245 = vpack.c.b16 %v209, %v208
  %v246 = vpack.c.b16 %v211, %v210
  %v247 = vpack.c.b16 %v213, %v212
  %v248 = vpack.c.b16 %v215, %v214
  %v249 = vpack.c.b16 %v217, %v216
  %vm250 = vcmask 64512
  %v252 = vsel %vm250, %v218, 0
  %v255 = vsel %vm250, %v219, 0
  %v258 = vsel %vm250, %v220, 0
  %v261 = vsel %vm250, %v221, 0
  %v264 = vsel %vm250, %v222, 0
  %v267 = vsel %vm250, %v223, 0
  %v270 = vsel %vm250, %v224, 0
  %v273 = vsel %vm250, %v225, 0
  %v276 = vsel %vm250, %v226, 0
  %v279 = vsel %vm250, %v227, 0
  %v282 = vsel %vm250, %v228, 0
  %v285 = vsel %vm250, %v229, 0
  %v288 = vsel %vm250, %v230, 0
  %v291 = vsel %vm250, %v231, 0
  %v294 = vsel %vm250, %v232, 0
  %v297 = vsel %vm250, %v233, 0
  %v300 = vsel %vm250, %v234, 0
  %v303 = vsel %vm250, %v235, 0
  %v306 = vsel %vm250, %v236, 0
  %v309 = vsel %vm250, %v237, 0
  %v312 = vsel %vm250, %v238, 0
  %v315 = vsel %vm250, %v239, 0
  %v318 = vsel %vm250, %v240, 0
  %v321 = vsel %vm250, %v241, 0
  %v324 = vsel %vm250, %v242, 0
  %v327 = vsel %vm250, %v243, 0
  %v330 = vsel %vm250, %v244, 0
  %v333 = vsel %vm250, %v245, 0
  %v336 = vsel %vm250, %v246, 0
  %v339 = vsel %vm250, %v247, 0
  %v342 = vsel %vm250, %v248, 0
  %v345 = vsel %vm250, %v249, 0
  %vm347 = vcmask 1043456
  %v349 = vsel %vm347, %v82, 0
  %351 = vmatprep.subr.bf16.mxu0 0
  %352 = vmatpush1.bf16.msra.mxu0 %v349
  %353 = vmatprep.subr.bf16.mxu0 0
  %354 = vmatpush1.bf16.msra.mxu0 0
  %355 = vmatprep.subr.bf16.mxu0 0
  %356 = vmatpush1.bf16.msra.mxu0 0
  %357 = vmatprep.subr.bf16.mxu0 0
  %358 = vmatpush1.bf16.msra.mxu0 0
  %359 = vmatprep.subr.bf16.mxu0 0
  %360 = vmatpush1.bf16.msra.mxu0 0
  %361 = vmatprep.subr.bf16.mxu0 0
  %362 = vmatpush1.bf16.msra.mxu0 0
  %363 = vmatprep.subr.bf16.mxu0 0
  %364 = vmatpush1.bf16.msra.mxu0 0
  %365 = vmatprep.subr.bf16.mxu0 0
  %366 = vmatpush1.bf16.msra.mxu0 0
  %367 = vmatprep.subr.bf16.mxu0 0
  %368 = vmatpush1.bf16.msra.mxu0 0
  %369 = vmatprep.subr.bf16.mxu0 0
  %370 = vmatpush1.bf16.msra.mxu0 0
  %371 = vmatprep.subr.bf16.mxu0 0
  %372 = vmatpush1.bf16.msra.mxu0 0
  %373 = vmatprep.subr.bf16.mxu0 0
  %374 = vmatpush1.bf16.msra.mxu0 0
  %375 = vmatprep.subr.bf16.mxu0 0
  %376 = vmatpush1.bf16.msra.mxu0 0
  %377 = vmatprep.subr.bf16.mxu0 0
  %378 = vmatpush1.bf16.msra.mxu0 0
  %379 = vmatprep.subr.bf16.mxu0 0
  %380 = vmatpush1.bf16.msra.mxu0 0
  %381 = vmatprep.subr.bf16.mxu0 0
  %382 = vmatpush1.bf16.msra.mxu0 0
  %383 = vmatprep.mubr.bf16.mxu0 0
  %384 = vmatmul.mubr.bf16.gmra.mrb[0].mxu0 %v252
  %v385 = vpop.f32.mrb[0].mxu0
  %v386 = vadd.f32 %v88, %v385
  %v387 = vpop.f32.mrb[0].mxu0
  %v388 = vpop.f32.mrb[0].mxu0
  %v389 = vadd.f32 %v88, %v388
  %v390 = vpop.f32.mrb[0].mxu0
  %391 = vmatprep.mubr.bf16.mxu0 0
  %392 = vmatmul.mubr.bf16.gmra.mrb[0].mxu0 %v255
  %v393 = vpop.f32.mrb[0].mxu0
  %v394 = vadd.f32 %v88, %v393
  %v395 = vpop.f32.mrb[0].mxu0
  %v396 = vpop.f32.mrb[0].mxu0
  %v397 = vadd.f32 %v88, %v396
  %v398 = vpop.f32.mrb[0].mxu0
  %399 = vmatprep.mubr.bf16.mxu0 0
  %400 = vmatmul.mubr.bf16.gmra.mrb[0].mxu0 %v258
  %v401 = vpop.f32.mrb[0].mxu0
  %v402 = vadd.f32 %v88, %v401
  %v403 = vpop.f32.mrb[0].mxu0
  %v404 = vpop.f32.mrb[0].mxu0
  %v405 = vadd.f32 %v88, %v404
  %v406 = vpop.f32.mrb[0].mxu0
  %407 = vmatprep.mubr.bf16.mxu0 0
  %408 = vmatmul.mubr.bf16.gmra.mrb[0].mxu0 %v261
  %v409 = vpop.f32.mrb[0].mxu0
  %v410 = vadd.f32 %v88, %v409
  %v411 = vpop.f32.mrb[0].mxu0
  %v412 = vpop.f32.mrb[0].mxu0
  %v413 = vadd.f32 %v88, %v412
  %v414 = vpop.f32.mrb[0].mxu0
  %415 = vmatprep.mubr.bf16.mxu0 0
  %416 = vmatmul.mubr.bf16.gmra.mrb[0].mxu0 %v264
  %v417 = vpop.f32.mrb[0].mxu0
  %v418 = vadd.f32 %v88, %v417
  %v419 = vpop.f32.mrb[0].mxu0
  %v420 = vpop.f32.mrb[0].mxu0
  %v421 = vadd.f32 %v88, %v420
  %v422 = vpop.f32.mrb[0].mxu0
  %423 = vmatprep.mubr.bf16.mxu0 0
  %424 = vmatmul.mubr.bf16.gmra.mrb[0].mxu0 %v267
  %v425 = vpop.f32.mrb[0].mxu0
  %v426 = vadd.f32 %v88, %v425
  %v427 = vpop.f32.mrb[0].mxu0
  %v428 = vpop.f32.mrb[0].mxu0
  %v429 = vadd.f32 %v88, %v428
  %v430 = vpop.f32.mrb[0].mxu0
  %431 = vmatprep.mubr.bf16.mxu0 0
  %432 = vmatmul.mubr.bf16.gmra.mrb[0].mxu0 %v270
  %v433 = vpop.f32.mrb[0].mxu0
  %v434 = vadd.f32 %v88, %v433
  %v435 = vpop.f32.mrb[0].mxu0
  %v436 = vpop.f32.mrb[0].mxu0
  %v437 = vadd.f32 %v88, %v436
  %v438 = vpop.f32.mrb[0].mxu0
  %439 = vmatprep.mubr.bf16.mxu0 0
  %440 = vmatmul.mubr.bf16.gmra.mrb[0].mxu0 %v273
  %v441 = vpop.f32.mrb[0].mxu0
  %v442 = vadd.f32 %v88, %v441
  %v443 = vpop.f32.mrb[0].mxu0
  %v444 = vpop.f32.mrb[0].mxu0
  %v445 = vadd.f32 %v88, %v444
  %v446 = vpop.f32.mrb[0].mxu0
  %447 = vmatprep.mubr.bf16.mxu0 0
  %448 = vmatmul.mubr.bf16.gmra.mrb[0].mxu0 %v276
  %v449 = vpop.f32.mrb[0].mxu0
  %v450 = vadd.f32 %v88, %v449
  %v451 = vpop.f32.mrb[0].mxu0
  %v452 = vpop.f32.mrb[0].mxu0
  %v453 = vadd.f32 %v88, %v452
  %v454 = vpop.f32.mrb[0].mxu0
  %455 = vmatprep.mubr.bf16.mxu0 0
  %456 = vmatmul.mubr.bf16.gmra.mrb[0].mxu0 %v279
  %v457 = vpop.f32.mrb[0].mxu0
  %v458 = vadd.f32 %v88, %v457
  %v459 = vpop.f32.mrb[0].mxu0
  %v460 = vpop.f32.mrb[0].mxu0
  %v461 = vadd.f32 %v88, %v460
  %v462 = vpop.f32.mrb[0].mxu0
  %463 = vmatprep.mubr.bf16.mxu0 0
  %464 = vmatmul.mubr.bf16.gmra.mrb[0].mxu0 %v282
  %v465 = vpop.f32.mrb[0].mxu0
  %v466 = vadd.f32 %v88, %v465
  %v467 = vpop.f32.mrb[0].mxu0
  %v468 = vpop.f32.mrb[0].mxu0
  %v469 = vadd.f32 %v88, %v468
  %v470 = vpop.f32.mrb[0].mxu0
  %471 = vmatprep.mubr.bf16.mxu0 0
  %472 = vmatmul.mubr.bf16.gmra.mrb[0].mxu0 %v285
  %v473 = vpop.f32.mrb[0].mxu0
  %v474 = vadd.f32 %v88, %v473
  %v475 = vpop.f32.mrb[0].mxu0
  %v476 = vpop.f32.mrb[0].mxu0
  %v477 = vadd.f32 %v88, %v476
  %v478 = vpop.f32.mrb[0].mxu0
  %479 = vmatprep.mubr.bf16.mxu0 0
  %480 = vmatmul.mubr.bf16.gmra.mrb[0].mxu0 %v288
  %v481 = vpop.f32.mrb[0].mxu0
  %v482 = vadd.f32 %v88, %v481
  %v483 = vpop.f32.mrb[0].mxu0
  %v484 = vpop.f32.mrb[0].mxu0
  %v485 = vadd.f32 %v88, %v484
  %v486 = vpop.f32.mrb[0].mxu0
  %487 = vmatprep.mubr.bf16.mxu0 0
  %488 = vmatmul.mubr.bf16.gmra.mrb[0].mxu0 %v291
  %v489 = vpop.f32.mrb[0].mxu0
  %v490 = vadd.f32 %v88, %v489
  %v491 = vpop.f32.mrb[0].mxu0
  %v492 = vpop.f32.mrb[0].mxu0
  %v493 = vadd.f32 %v88, %v492
  %v494 = vpop.f32.mrb[0].mxu0
  %495 = vmatprep.mubr.bf16.mxu0 0
  %496 = vmatmul.mubr.bf16.gmra.mrb[0].mxu0 %v294
  %v497 = vpop.f32.mrb[0].mxu0
  %v498 = vadd.f32 %v88, %v497
  %v499 = vpop.f32.mrb[0].mxu0
  %v500 = vpop.f32.mrb[0].mxu0
  %v501 = vadd.f32 %v88, %v500
  %v502 = vpop.f32.mrb[0].mxu0
  %503 = vmatprep.mubr.bf16.mxu0 0
  %504 = vmatmul.mubr.bf16.gmra.mrb[0].mxu0 %v297
  %v505 = vpop.f32.mrb[0].mxu0
  %v506 = vadd.f32 %v88, %v505
  %v507 = vpop.f32.mrb[0].mxu0
  %v508 = vpop.f32.mrb[0].mxu0
  %v509 = vadd.f32 %v88, %v508
  %v510 = vpop.f32.mrb[0].mxu0
  %511 = vmatprep.mubr.bf16.mxu0 0
  %512 = vmatmul.mubr.bf16.gmra.mrb[0].mxu0 %v300
  %v513 = vpop.f32.mrb[0].mxu0
  %v514 = vadd.f32 %v88, %v513
  %v515 = vpop.f32.mrb[0].mxu0
  %v516 = vpop.f32.mrb[0].mxu0
  %v517 = vadd.f32 %v88, %v516
  %v518 = vpop.f32.mrb[0].mxu0
  %519 = vmatprep.mubr.bf16.mxu0 0
  %520 = vmatmul.mubr.bf16.gmra.mrb[0].mxu0 %v303
  %v521 = vpop.f32.mrb[0].mxu0
  %v522 = vadd.f32 %v88, %v521
  %v523 = vpop.f32.mrb[0].mxu0
  %v524 = vpop.f32.mrb[0].mxu0
  %v525 = vadd.f32 %v88, %v524
  %v526 = vpop.f32.mrb[0].mxu0
  %527 = vmatprep.mubr.bf16.mxu0 0
  %528 = vmatmul.mubr.bf16.gmra.mrb[0].mxu0 %v306
  %v529 = vpop.f32.mrb[0].mxu0
  %v530 = vadd.f32 %v88, %v529
  %v531 = vpop.f32.mrb[0].mxu0
  %v532 = vpop.f32.mrb[0].mxu0
  %v533 = vadd.f32 %v88, %v532
  %v534 = vpop.f32.mrb[0].mxu0
  %535 = vmatprep.mubr.bf16.mxu0 0
  %536 = vmatmul.mubr.bf16.gmra.mrb[0].mxu0 %v309
  %v537 = vpop.f32.mrb[0].mxu0
  %v538 = vadd.f32 %v88, %v537
  %v539 = vpop.f32.mrb[0].mxu0
  %v540 = vpop.f32.mrb[0].mxu0
  %v541 = vadd.f32 %v88, %v540
  %v542 = vpop.f32.mrb[0].mxu0
  %543 = vmatprep.mubr.bf16.mxu0 0
  %544 = vmatmul.mubr.bf16.gmra.mrb[0].mxu0 %v312
  %v545 = vpop.f32.mrb[0].mxu0
  %v546 = vadd.f32 %v88, %v545
  %v547 = vpop.f32.mrb[0].mxu0
  %v548 = vpop.f32.mrb[0].mxu0
  %v549 = vadd.f32 %v88, %v548
  %v550 = vpop.f32.mrb[0].mxu0
  %551 = vmatprep.mubr.bf16.mxu0 0
  %552 = vmatmul.mubr.bf16.gmra.mrb[0].mxu0 %v315
  %v553 = vpop.f32.mrb[0].mxu0
  %v554 = vadd.f32 %v88, %v553
  %v555 = vpop.f32.mrb[0].mxu0
  %v556 = vpop.f32.mrb[0].mxu0
  %v557 = vadd.f32 %v88, %v556
  %v558 = vpop.f32.mrb[0].mxu0
  %559 = vmatprep.mubr.bf16.mxu0 0
  %560 = vmatmul.mubr.bf16.gmra.mrb[0].mxu0 %v318
  %v561 = vpop.f32.mrb[0].mxu0
  %v562 = vadd.f32 %v88, %v561
  %v563 = vpop.f32.mrb[0].mxu0
  %v564 = vpop.f32.mrb[0].mxu0
  %v565 = vadd.f32 %v88, %v564
  %v566 = vpop.f32.mrb[0].mxu0
  %567 = vmatprep.mubr.bf16.mxu0 0
  %568 = vmatmul.mubr.bf16.gmra.mrb[0].mxu0 %v321
  %v569 = vpop.f32.mrb[0].mxu0
  %v570 = vadd.f32 %v88, %v569
  %v571 = vpop.f32.mrb[0].mxu0
  %v572 = vpop.f32.mrb[0].mxu0
  %v573 = vadd.f32 %v88, %v572
  %v574 = vpop.f32.mrb[0].mxu0
  %575 = vmatprep.mubr.bf16.mxu0 0
  %576 = vmatmul.mubr.bf16.gmra.mrb[0].mxu0 %v324
  %v577 = vpop.f32.mrb[0].mxu0
  %v578 = vadd.f32 %v88, %v577
  %v579 = vpop.f32.mrb[0].mxu0
  %v580 = vpop.f32.mrb[0].mxu0
  %v581 = vadd.f32 %v88, %v580
  %v582 = vpop.f32.mrb[0].mxu0
  %583 = vmatprep.mubr.bf16.mxu0 0
  %584 = vmatmul.mubr.bf16.gmra.mrb[0].mxu0 %v327
  %v585 = vpop.f32.mrb[0].mxu0
  %v586 = vadd.f32 %v88, %v585
  %v587 = vpop.f32.mrb[0].mxu0
  %v588 = vpop.f32.mrb[0].mxu0
  %v589 = vadd.f32 %v88, %v588
  %v590 = vpop.f32.mrb[0].mxu0
  %591 = vmatprep.mubr.bf16.mxu0 0
  %592 = vmatmul.mubr.bf16.gmra.mrb[0].mxu0 %v330
  %v593 = vpop.f32.mrb[0].mxu0
  %v594 = vadd.f32 %v88, %v593
  %v595 = vpop.f32.mrb[0].mxu0
  %v596 = vpop.f32.mrb[0].mxu0
  %v597 = vadd.f32 %v88, %v596
  %v598 = vpop.f32.mrb[0].mxu0
  %599 = vmatprep.mubr.bf16.mxu0 0
  %600 = vmatmul.mubr.bf16.gmra.mrb[0].mxu0 %v333
  %v601 = vpop.f32.mrb[0].mxu0
  %v602 = vadd.f32 %v88, %v601
  %v603 = vpop.f32.mrb[0].mxu0
  %v604 = vpop.f32.mrb[0].mxu0
  %v605 = vadd.f32 %v88, %v604
  %v606 = vpop.f32.mrb[0].mxu0
  %607 = vmatprep.mubr.bf16.mxu0 0
  %608 = vmatmul.mubr.bf16.gmra.mrb[0].mxu0 %v336
  %v609 = vpop.f32.mrb[0].mxu0
  %v610 = vadd.f32 %v88, %v609
  %v611 = vpop.f32.mrb[0].mxu0
  %v612 = vpop.f32.mrb[0].mxu0
  %v613 = vadd.f32 %v88, %v612
  %v614 = vpop.f32.mrb[0].mxu0
  %615 = vmatprep.mubr.bf16.mxu0 0
  %616 = vmatmul.mubr.bf16.gmra.mrb[0].mxu0 %v339
  %v617 = vpop.f32.mrb[0].mxu0
  %v618 = vadd.f32 %v88, %v617
  %v619 = vpop.f32.mrb[0].mxu0
  %v620 = vpop.f32.mrb[0].mxu0
  %v621 = vadd.f32 %v88, %v620
  %v622 = vpop.f32.mrb[0].mxu0
  %623 = vmatprep.mubr.bf16.mxu0 0
  %624 = vmatmul.mubr.bf16.gmra.mrb[0].mxu0 %v342
  %v625 = vpop.f32.mrb[0].mxu0
  %v626 = vadd.f32 %v88, %v625
  %v627 = vpop.f32.mrb[0].mxu0
  %v628 = vpop.f32.mrb[0].mxu0
  %v629 = vadd.f32 %v88, %v628
  %v630 = vpop.f32.mrb[0].mxu0
  %631 = vmatprep.mubr.bf16.mxu0 0
  %632 = vmatmul.mubr.bf16.gmra.mrb[0].mxu0 %v345
  %v633 = vpop.f32.mrb[0].mxu0
  %v634 = vadd.f32 %v88, %v633
  %v635 = vpop.f32.mrb[0].mxu0
  %v636 = vpop.f32.mrb[0].mxu0
  %v637 = vadd.f32 %v88, %v636
  %v638 = vpop.f32.mrb[0].mxu0
  %639 = vdwg.mxu0
  %v640 = vld [vmem:[%s3] sm:$0xf]
  %v641 = vld [vmem:[%s3 + $0x4] sm:$0xf]
  %v642 = vld [vmem:[%s3 + $0x8] sm:$0xf]
  %v643 = vld [vmem:[%s3 + $0xc] sm:$0xf]
  %v644 = vld [vmem:[%s3 + $0x10] sm:$0xf]
  %v645 = vld [vmem:[%s3 + $0x14] sm:$0xf]
  %v646 = vld [vmem:[%s3 + $0x18] sm:$0xf]
  %v647 = vld [vmem:[%s3 + $0x1c] sm:$0xf]
  %v648 = vld [vmem:[%s3 + $0x20] sm:$0xf]
  %v649 = vld [vmem:[%s3 + $0x24] sm:$0xf]
  %v650 = vld [vmem:[%s3 + $0x28] sm:$0xf]
  %v651 = vld [vmem:[%s3 + $0x2c] sm:$0xf]
  %v652 = vld [vmem:[%s3 + $0x30] sm:$0xf]
  %v653 = vld [vmem:[%s3 + $0x34] sm:$0xf]
  %v654 = vld [vmem:[%s3 + $0x38] sm:$0xf]
  %v655 = vld [vmem:[%s3 + $0x3c] sm:$0xf]
  %v656 = vld [vmem:[%s3 + $0x40] sm:$0xf]
  %v657 = vld [vmem:[%s3 + $0x44] sm:$0xf]
  %v658 = vld [vmem:[%s3 + $0x48] sm:$0xf]
  %v659 = vld [vmem:[%s3 + $0x4c] sm:$0xf]
  %v660 = vld [vmem:[%s3 + $0x50] sm:$0xf]
  %v661 = vld [vmem:[%s3 + $0x54] sm:$0xf]
  %v662 = vld [vmem:[%s3 + $0x58] sm:$0xf]
  %v663 = vld [vmem:[%s3 + $0x5c] sm:$0xf]
  %v664 = vld [vmem:[%s3 + $0x60] sm:$0xf]
  %v665 = vld [vmem:[%s3 + $0x64] sm:$0xf]
  %v666 = vld [vmem:[%s3 + $0x68] sm:$0xf]
  %v667 = vld [vmem:[%s3 + $0x6c] sm:$0xf]
  %v668 = vld [vmem:[%s3 + $0x70] sm:$0xf]
  %v669 = vld [vmem:[%s3 + $0x74] sm:$0xf]
  %v670 = vld [vmem:[%s3 + $0x78] sm:$0xf]
  %v671 = vld [vmem:[%s3 + $0x7c] sm:$0xf]
  %v672 = vld [vmem:[%s3 + $0x80] sm:$0xf]
  %v673 = vld [vmem:[%s3 + $0x84] sm:$0xf]
  %v674 = vld [vmem:[%s3 + $0x88] sm:$0xf]
  %v675 = vld [vmem:[%s3 + $0x8c] sm:$0xf]
  %v676 = vld [vmem:[%s3 + $0x90] sm:$0xf]
  %v677 = vld [vmem:[%s3 + $0x94] sm:$0xf]
  %v678 = vld [vmem:[%s3 + $0x98] sm:$0xf]
  %v679 = vld [vmem:[%s3 + $0x9c] sm:$0xf]
  %v680 = vld [vmem:[%s3 + $0xa0] sm:$0xf]
  %v681 = vld [vmem:[%s3 + $0xa4] sm:$0xf]
  %v682 = vld [vmem:[%s3 + $0xa8] sm:$0xf]
  %v683 = vld [vmem:[%s3 + $0xac] sm:$0xf]
  %v684 = vld [vmem:[%s3 + $0xb0] sm:$0xf]
  %v685 = vld [vmem:[%s3 + $0xb4] sm:$0xf]
  %v686 = vld [vmem:[%s3 + $0xb8] sm:$0xf]
  %v687 = vld [vmem:[%s3 + $0xbc] sm:$0xf]
  %v688 = vld [vmem:[%s3 + $0xc0] sm:$0xf]
  %v689 = vld [vmem:[%s3 + $0xc4] sm:$0xf]
  %v690 = vld [vmem:[%s3 + $0xc8] sm:$0xf]
  %v691 = vld [vmem:[%s3 + $0xcc] sm:$0xf]
  %v692 = vld [vmem:[%s3 + $0xd0] sm:$0xf]
  %v693 = vld [vmem:[%s3 + $0xd4] sm:$0xf]
  %v694 = vld [vmem:[%s3 + $0xd8] sm:$0xf]
  %v695 = vld [vmem:[%s3 + $0xdc] sm:$0xf]
  %v696 = vld [vmem:[%s3 + $0xe0] sm:$0xf]
  %v697 = vld [vmem:[%s3 + $0xe4] sm:$0xf]
  %v698 = vld [vmem:[%s3 + $0xe8] sm:$0xf]
  %v699 = vld [vmem:[%s3 + $0xec] sm:$0xf]
  %v700 = vld [vmem:[%s3 + $0xf0] sm:$0xf]
  %v701 = vld [vmem:[%s3 + $0xf4] sm:$0xf]
  %v702 = vld [vmem:[%s3 + $0xf8] sm:$0xf]
  %v703 = vld [vmem:[%s3 + $0xfc] sm:$0xf]
  %v704 = vunpack.c.l.bf16 %v640
  %v705 = vunpack.c.l.bf16 %v641
  %v706 = vunpack.c.l.bf16 %v642
  %v707 = vunpack.c.l.bf16 %v643
  %v708 = vunpack.c.l.bf16 %v644
  %v709 = vunpack.c.l.bf16 %v645
  %v710 = vunpack.c.l.bf16 %v646
  %v711 = vunpack.c.l.bf16 %v647
  %v712 = vunpack.c.l.bf16 %v648
  %v713 = vunpack.c.l.bf16 %v649
  %v714 = vunpack.c.l.bf16 %v650
  %v715 = vunpack.c.l.bf16 %v651
  %v716 = vunpack.c.l.bf16 %v652
  %v717 = vunpack.c.l.bf16 %v653
  %v718 = vunpack.c.l.bf16 %v654
  %v719 = vunpack.c.l.bf16 %v655
  %v720 = vunpack.c.l.bf16 %v656
  %v721 = vunpack.c.l.bf16 %v657
  %v722 = vunpack.c.l.bf16 %v658
  %v723 = vunpack.c.l.bf16 %v659
  %v724 = vunpack.c.l.bf16 %v660
  %v725 = vunpack.c.l.bf16 %v661
  %v726 = vunpack.c.l.bf16 %v662
  %v727 = vunpack.c.l.bf16 %v663
  %v728 = vunpack.c.l.bf16 %v664
  %v729 = vunpack.c.l.bf16 %v665
  %v730 = vunpack.c.l.bf16 %v666
  %v731 = vunpack.c.l.bf16 %v667
  %v732 = vunpack.c.l.bf16 %v668
  %v733 = vunpack.c.l.bf16 %v669
  %v734 = vunpack.c.l.bf16 %v670
  %v735 = vunpack.c.l.bf16 %v671
  %v736 = vunpack.c.l.bf16 %v672
  %v737 = vunpack.c.l.bf16 %v673
  %v738 = vunpack.c.l.bf16 %v674
  %v739 = vunpack.c.l.bf16 %v675
  %v740 = vunpack.c.l.bf16 %v676
  %v741 = vunpack.c.l.bf16 %v677
  %v742 = vunpack.c.l.bf16 %v678
  %v743 = vunpack.c.l.bf16 %v679
  %v744 = vunpack.c.l.bf16 %v680
  %v745 = vunpack.c.l.bf16 %v681
  %v746 = vunpack.c.l.bf16 %v682
  %v747 = vunpack.c.l.bf16 %v683
  %v748 = vunpack.c.l.bf16 %v684
  %v749 = vunpack.c.l.bf16 %v685
  %v750 = vunpack.c.l.bf16 %v686
  %v751 = vunpack.c.l.bf16 %v687
  %v752 = vunpack.c.l.bf16 %v688
  %v753 = vunpack.c.l.bf16 %v689
  %v754 = vunpack.c.l.bf16 %v690
  %v755 = vunpack.c.l.bf16 %v691
  %v756 = vunpack.c.l.bf16 %v692
  %v757 = vunpack.c.l.bf16 %v693
  %v758 = vunpack.c.l.bf16 %v694
  %v759 = vunpack.c.l.bf16 %v695
  %v760 = vunpack.c.l.bf16 %v696
  %v761 = vunpack.c.l.bf16 %v697
  %v762 = vunpack.c.l.bf16 %v698
  %v763 = vunpack.c.l.bf16 %v699
  %v764 = vunpack.c.l.bf16 %v700
  %v765 = vunpack.c.l.bf16 %v701
  %v766 = vunpack.c.l.bf16 %v702
  %v767 = vunpack.c.l.bf16 %v703
  %v768 = vadd.f32 %v386, %v704
  %v769 = vadd.f32 %v389, %v705
  %v770 = vadd.f32 %v394, %v706
  %v771 = vadd.f32 %v397, %v707
  %v772 = vadd.f32 %v402, %v708
  %v773 = vadd.f32 %v405, %v709
  %v774 = vadd.f32 %v410, %v710
  %v775 = vadd.f32 %v413, %v711
  %v776 = vadd.f32 %v418, %v712
  %v777 = vadd.f32 %v421, %v713
  %v778 = vadd.f32 %v426, %v714
  %v779 = vadd.f32 %v429, %v715
  %v780 = vadd.f32 %v434, %v716
  %v781 = vadd.f32 %v437, %v717
  %v782 = vadd.f32 %v442, %v718
  %v783 = vadd.f32 %v445, %v719
  %v784 = vadd.f32 %v450, %v720
  %v785 = vadd.f32 %v453, %v721
  %v786 = vadd.f32 %v458, %v722
  %v787 = vadd.f32 %v461, %v723
  %v788 = vadd.f32 %v466, %v724
  %v789 = vadd.f32 %v469, %v725
  %v790 = vadd.f32 %v474, %v726
  %v791 = vadd.f32 %v477, %v727
  %v792 = vadd.f32 %v482, %v728
  %v793 = vadd.f32 %v485, %v729
  %v794 = vadd.f32 %v490, %v730
  %v795 = vadd.f32 %v493, %v731
  %v796 = vadd.f32 %v498, %v732
  %v797 = vadd.f32 %v501, %v733
  %v798 = vadd.f32 %v506, %v734
  %v799 = vadd.f32 %v509, %v735
  %v800 = vadd.f32 %v514, %v736
  %v801 = vadd.f32 %v517, %v737
  %v802 = vadd.f32 %v522, %v738
  %v803 = vadd.f32 %v525, %v739
  %v804 = vadd.f32 %v530, %v740
  %v805 = vadd.f32 %v533, %v741
  %v806 = vadd.f32 %v538, %v742
  %v807 = vadd.f32 %v541, %v743
  %v808 = vadd.f32 %v546, %v744
  %v809 = vadd.f32 %v549, %v745
  %v810 = vadd.f32 %v554, %v746
  %v811 = vadd.f32 %v557, %v747
  %v812 = vadd.f32 %v562, %v748
  %v813 = vadd.f32 %v565, %v749
  %v814 = vadd.f32 %v570, %v750
  %v815 = vadd.f32 %v573, %v751
  %v816 = vadd.f32 %v578, %v752
  %v817 = vadd.f32 %v581, %v753
  %v818 = vadd.f32 %v586, %v754
  %v819 = vadd.f32 %v589, %v755
  %v820 = vadd.f32 %v594, %v756
  %v821 = vadd.f32 %v597, %v757
  %v822 = vadd.f32 %v602, %v758
  %v823 = vadd.f32 %v605, %v759
  %v824 = vadd.f32 %v610, %v760
  %v825 = vadd.f32 %v613, %v761
  %v826 = vadd.f32 %v618, %v762
  %v827 = vadd.f32 %v621, %v763
  %v828 = vadd.f32 %v626, %v764
  %v829 = vadd.f32 %v629, %v765
  %v830 = vadd.f32 %v634, %v766
  %v831 = vadd.f32 %v637, %v767
  %v832 = vmax.f32 %v768, 0.0
  %v833 = vmax.f32 %v769, 0.0
  %v834 = vmax.f32 %v770, 0.0
  %v835 = vmax.f32 %v771, 0.0
  %v836 = vmax.f32 %v772, 0.0
  %v837 = vmax.f32 %v773, 0.0
  %v838 = vmax.f32 %v774, 0.0
  %v839 = vmax.f32 %v775, 0.0
  %v840 = vmax.f32 %v776, 0.0
  %v841 = vmax.f32 %v777, 0.0
  %v842 = vmax.f32 %v778, 0.0
  %v843 = vmax.f32 %v779, 0.0
  %v844 = vmax.f32 %v780, 0.0
  %v845 = vmax.f32 %v781, 0.0
  %v846 = vmax.f32 %v782, 0.0
  %v847 = vmax.f32 %v783, 0.0
  %v848 = vmax.f32 %v784, 0.0
  %v849 = vmax.f32 %v785, 0.0
  %v850 = vmax.f32 %v786, 0.0
  %v851 = vmax.f32 %v787, 0.0
  %v852 = vmax.f32 %v788, 0.0
  %v853 = vmax.f32 %v789, 0.0
  %v854 = vmax.f32 %v790, 0.0
  %v855 = vmax.f32 %v791, 0.0
  %v856 = vmax.f32 %v792, 0.0
  %v857 = vmax.f32 %v793, 0.0
  %v858 = vmax.f32 %v794, 0.0
  %v859 = vmax.f32 %v795, 0.0
  %v860 = vmax.f32 %v796, 0.0
  %v861 = vmax.f32 %v797, 0.0
  %v862 = vmax.f32 %v798, 0.0
  %v863 = vmax.f32 %v799, 0.0
  %v864 = vmax.f32 %v800, 0.0
  %v865 = vmax.f32 %v801, 0.0
  %v866 = vmax.f32 %v802, 0.0
  %v867 = vmax.f32 %v803, 0.0
  %v868 = vmax.f32 %v804, 0.0
  %v869 = vmax.f32 %v805, 0.0
  %v870 = vmax.f32 %v806, 0.0
  %v871 = vmax.f32 %v807, 0.0
  %v872 = vmax.f32 %v808, 0.0
  %v873 = vmax.f32 %v809, 0.0
  %v874 = vmax.f32 %v810, 0.0
  %v875 = vmax.f32 %v811, 0.0
  %v876 = vmax.f32 %v812, 0.0
  %v877 = vmax.f32 %v813, 0.0
  %v878 = vmax.f32 %v814, 0.0
  %v879 = vmax.f32 %v815, 0.0
  %v880 = vmax.f32 %v816, 0.0
  %v881 = vmax.f32 %v817, 0.0
  %v882 = vmax.f32 %v818, 0.0
  %v883 = vmax.f32 %v819, 0.0
  %v884 = vmax.f32 %v820, 0.0
  %v885 = vmax.f32 %v821, 0.0
  %v886 = vmax.f32 %v822, 0.0
  %v887 = vmax.f32 %v823, 0.0
  %v888 = vmax.f32 %v824, 0.0
  %v889 = vmax.f32 %v825, 0.0
  %v890 = vmax.f32 %v826, 0.0
  %v891 = vmax.f32 %v827, 0.0
  %v892 = vmax.f32 %v828, 0.0
  %v893 = vmax.f32 %v829, 0.0
  %v894 = vmax.f32 %v830, 0.0
  %v895 = vmax.f32 %v831, 0.0
  %v896 = vpack.c.bf16 %v833, %v832
  %v897 = vpack.c.bf16 %v835, %v834
  %v898 = vpack.c.bf16 %v837, %v836
  %v899 = vpack.c.bf16 %v839, %v838
  %v900 = vpack.c.bf16 %v841, %v840
  %v901 = vpack.c.bf16 %v843, %v842
  %v902 = vpack.c.bf16 %v845, %v844
  %v903 = vpack.c.bf16 %v847, %v846
  %v904 = vpack.c.bf16 %v849, %v848
  %v905 = vpack.c.bf16 %v851, %v850
  %v906 = vpack.c.bf16 %v853, %v852
  %v907 = vpack.c.bf16 %v855, %v854
  %v908 = vpack.c.bf16 %v857, %v856
  %v909 = vpack.c.bf16 %v859, %v858
  %v910 = vpack.c.bf16 %v861, %v860
  %v911 = vpack.c.bf16 %v863, %v862
  %v912 = vpack.c.bf16 %v865, %v864
  %v913 = vpack.c.bf16 %v867, %v866
  %v914 = vpack.c.bf16 %v869, %v868
  %v915 = vpack.c.bf16 %v871, %v870
  %v916 = vpack.c.bf16 %v873, %v872
  %v917 = vpack.c.bf16 %v875, %v874
  %v918 = vpack.c.bf16 %v877, %v876
  %v919 = vpack.c.bf16 %v879, %v878
  %v920 = vpack.c.bf16 %v881, %v880
  %v921 = vpack.c.bf16 %v883, %v882
  %v922 = vpack.c.bf16 %v885, %v884
  %v923 = vpack.c.bf16 %v887, %v886
  %v924 = vpack.c.bf16 %v889, %v888
  %v925 = vpack.c.bf16 %v891, %v890
  %v926 = vpack.c.bf16 %v893, %v892
  %v927 = vpack.c.bf16 %v895, %v894
  %v960 = vunpack.c.l.b16 %v896
  %v961 = vunpack.c.h.b16 %v896
  %v962 = vunpack.c.l.b16 %v897
  %v963 = vunpack.c.h.b16 %v897
  %v964 = vunpack.c.l.b16 %v898
  %v965 = vunpack.c.h.b16 %v898
  %v966 = vunpack.c.l.b16 %v899
  %v967 = vunpack.c.h.b16 %v899
  %v968 = vunpack.c.l.b16 %v900
  %v969 = vunpack.c.h.b16 %v900
  %v970 = vunpack.c.l.b16 %v901
  %v971 = vunpack.c.h.b16 %v901
  %v972 = vunpack.c.l.b16 %v902
  %v973 = vunpack.c.h.b16 %v902
  %v974 = vunpack.c.l.b16 %v903
  %v975 = vunpack.c.h.b16 %v903
  %v976 = vunpack.c.l.b16 %v904
  %v977 = vunpack.c.h.b16 %v904
  %v978 = vunpack.c.l.b16 %v905
  %v979 = vunpack.c.h.b16 %v905
  %v980 = vunpack.c.l.b16 %v906
  %v981 = vunpack.c.h.b16 %v906
  %v982 = vunpack.c.l.b16 %v907
  %v983 = vunpack.c.h.b16 %v907
  %v984 = vunpack.c.l.b16 %v908
  %v985 = vunpack.c.h.b16 %v908
  %v986 = vunpack.c.l.b16 %v909
  %v987 = vunpack.c.h.b16 %v909
  %v988 = vunpack.c.l.b16 %v910
  %v989 = vunpack.c.h.b16 %v910
  %v990 = vunpack.c.l.b16 %v911
  %v991 = vunpack.c.h.b16 %v911
  %v992 = vunpack.c.l.b16 %v912
  %v993 = vunpack.c.h.b16 %v912
  %v994 = vunpack.c.l.b16 %v913
  %v995 = vunpack.c.h.b16 %v913
  %v996 = vunpack.c.l.b16 %v914
  %v997 = vunpack.c.h.b16 %v914
  %v998 = vunpack.c.l.b16 %v915
  %v999 = vunpack.c.h.b16 %v915
  %v1000 = vunpack.c.l.b16 %v916
  %v1001 = vunpack.c.h.b16 %v916
  %v1002 = vunpack.c.l.b16 %v917
  %v1003 = vunpack.c.h.b16 %v917
  %v1004 = vunpack.c.l.b16 %v918
  %v1005 = vunpack.c.h.b16 %v918
  %v1006 = vunpack.c.l.b16 %v919
  %v1007 = vunpack.c.h.b16 %v919
  %v1008 = vunpack.c.l.b16 %v920
  %v1009 = vunpack.c.h.b16 %v920
  %v1010 = vunpack.c.l.b16 %v921
  %v1011 = vunpack.c.h.b16 %v921
  %v1012 = vunpack.c.l.b16 %v922
  %v1013 = vunpack.c.h.b16 %v922
  %v1014 = vunpack.c.l.b16 %v923
  %v1015 = vunpack.c.h.b16 %v923
  %v1016 = vunpack.c.l.b16 %v924
  %v1017 = vunpack.c.h.b16 %v924
  %v1018 = vunpack.c.l.b16 %v925
  %v1019 = vunpack.c.h.b16 %v925
  %v1020 = vunpack.c.l.b16 %v926
  %v1021 = vunpack.c.h.b16 %v926
  %v1022 = vunpack.c.l.b16 %v927
  %v1023 = vunpack.c.h.b16 %v927
  %v1024 = vpack.c.b16 %v960, %v960
  %v1025 = vpack.c.b16 %v961, %v961
  %v1026 = vpack.c.b16 %v962, %v962
  %v1027 = vpack.c.b16 %v963, %v963
  %v1028 = vpack.c.b16 %v964, %v964
  %v1029 = vpack.c.b16 %v965, %v965
  %v1030 = vpack.c.b16 %v966, %v966
  %v1031 = vpack.c.b16 %v967, %v967
  %v1032 = vpack.c.b16 %v968, %v968
  %v1033 = vpack.c.b16 %v969, %v969
  %v1034 = vpack.c.b16 %v970, %v970
  %v1035 = vpack.c.b16 %v971, %v971
  %v1036 = vpack.c.b16 %v972, %v972
  %v1037 = vpack.c.b16 %v973, %v973
  %v1038 = vpack.c.b16 %v974, %v974
  %v1039 = vpack.c.b16 %v975, %v975
  %v1040 = vpack.c.b16 %v976, %v976
  %v1041 = vpack.c.b16 %v977, %v977
  %v1042 = vpack.c.b16 %v978, %v978
  %v1043 = vpack.c.b16 %v979, %v979
  %v1044 = vpack.c.b16 %v980, %v980
  %v1045 = vpack.c.b16 %v981, %v981
  %v1046 = vpack.c.b16 %v982, %v982
  %v1047 = vpack.c.b16 %v983, %v983
  %v1048 = vpack.c.b16 %v984, %v984
  %v1049 = vpack.c.b16 %v985, %v985
  %v1050 = vpack.c.b16 %v986, %v986
  %v1051 = vpack.c.b16 %v987, %v987
  %v1052 = vpack.c.b16 %v988, %v988
  %v1053 = vpack.c.b16 %v989, %v989
  %v1054 = vpack.c.b16 %v990, %v990
  %v1055 = vpack.c.b16 %v991, %v991
  %v1056 = vpack.c.b16 %v992, %v992
  %v1057 = vpack.c.b16 %v993, %v993
  %v1058 = vpack.c.b16 %v994, %v994
  %v1059 = vpack.c.b16 %v995, %v995
  %v1060 = vpack.c.b16 %v996, %v996
  %v1061 = vpack.c.b16 %v997, %v997
  %v1062 = vpack.c.b16 %v998, %v998
  %v1063 = vpack.c.b16 %v999, %v999
  %v1064 = vpack.c.b16 %v1000, %v1000
  %v1065 = vpack.c.b16 %v1001, %v1001
  %v1066 = vpack.c.b16 %v1002, %v1002
  %v1067 = vpack.c.b16 %v1003, %v1003
  %v1068 = vpack.c.b16 %v1004, %v1004
  %v1069 = vpack.c.b16 %v1005, %v1005
  %v1070 = vpack.c.b16 %v1006, %v1006
  %v1071 = vpack.c.b16 %v1007, %v1007
  %v1072 = vpack.c.b16 %v1008, %v1008
  %v1073 = vpack.c.b16 %v1009, %v1009
  %v1074 = vpack.c.b16 %v1010, %v1010
  %v1075 = vpack.c.b16 %v1011, %v1011
  %v1076 = vpack.c.b16 %v1012, %v1012
  %v1077 = vpack.c.b16 %v1013, %v1013
  %v1078 = vpack.c.b16 %v1014, %v1014
  %v1079 = vpack.c.b16 %v1015, %v1015
  %v1080 = vpack.c.b16 %v1016, %v1016
  %v1081 = vpack.c.b16 %v1017, %v1017
  %v1082 = vpack.c.b16 %v1018, %v1018
  %v1083 = vpack.c.b16 %v1019, %v1019
  %v1084 = vpack.c.b16 %v1020, %v1020
  %v1085 = vpack.c.b16 %v1021, %v1021
  %v1086 = vpack.c.b16 %v1022, %v1022
  %v1087 = vpack.c.b16 %v1023, %v1023
  %1152 = vst [vmem:[%s4] sm:$0xf] %v1024
  %1153 = vst [vmem:[%s4 + $0x4] sm:$0xf] %v1025
  %1154 = vst [vmem:[%s4 + $0x8] sm:$0xf] %v1026
  %1155 = vst [vmem:[%s4 + $0xc] sm:$0xf] %v1027
  %1156 = vst [vmem:[%s4 + $0x10] sm:$0xf] %v1028
  %1157 = vst [vmem:[%s4 + $0x14] sm:$0xf] %v1029
  %1158 = vst [vmem:[%s4 + $0x18] sm:$0xf] %v1030
  %1159 = vst [vmem:[%s4 + $0x1c] sm:$0xf] %v1031
  %1160 = vst [vmem:[%s4 + $0x20] sm:$0xf] %v1032
  %1161 = vst [vmem:[%s4 + $0x24] sm:$0xf] %v1033
  %1162 = vst [vmem:[%s4 + $0x28] sm:$0xf] %v1034
  %1163 = vst [vmem:[%s4 + $0x2c] sm:$0xf] %v1035
  %1164 = vst [vmem:[%s4 + $0x30] sm:$0xf] %v1036
  %1165 = vst [vmem:[%s4 + $0x34] sm:$0xf] %v1037
  %1166 = vst [vmem:[%s4 + $0x38] sm:$0xf] %v1038
  %1167 = vst [vmem:[%s4 + $0x3c] sm:$0xf] %v1039
  %1168 = vst [vmem:[%s4 + $0x40] sm:$0xf] %v1040
  %1169 = vst [vmem:[%s4 + $0x44] sm:$0xf] %v1041
  %1170 = vst [vmem:[%s4 + $0x48] sm:$0xf] %v1042
  %1171 = vst [vmem:[%s4 + $0x4c] sm:$0xf] %v1043
  %1172 = vst [vmem:[%s4 + $0x50] sm:$0xf] %v1044
  %1173 = vst [vmem:[%s4 + $0x54] sm:$0xf] %v1045
  %1174 = vst [vmem:[%s4 + $0x58] sm:$0xf] %v1046
  %1175 = vst [vmem:[%s4 + $0x5c] sm:$0xf] %v1047
  %1176 = vst [vmem:[%s4 + $0x60] sm:$0xf] %v1048
  %1177 = vst [vmem:[%s4 + $0x64] sm:$0xf] %v1049
  %1178 = vst [vmem:[%s4 + $0x68] sm:$0xf] %v1050
  %1179 = vst [vmem:[%s4 + $0x6c] sm:$0xf] %v1051
  %1180 = vst [vmem:[%s4 + $0x70] sm:$0xf] %v1052
  %1181 = vst [vmem:[%s4 + $0x74] sm:$0xf] %v1053
  %1182 = vst [vmem:[%s4 + $0x78] sm:$0xf] %v1054
  %1183 = vst [vmem:[%s4 + $0x7c] sm:$0xf] %v1055
  %1184 = vst [vmem:[%s4 + $0x80] sm:$0xf] %v1056
  %1185 = vst [vmem:[%s4 + $0x84] sm:$0xf] %v1057
  %1186 = vst [vmem:[%s4 + $0x88] sm:$0xf] %v1058
  %1187 = vst [vmem:[%s4 + $0x8c] sm:$0xf] %v1059
  %1188 = vst [vmem:[%s4 + $0x90] sm:$0xf] %v1060
  %1189 = vst [vmem:[%s4 + $0x94] sm:$0xf] %v1061
  %1190 = vst [vmem:[%s4 + $0x98] sm:$0xf] %v1062
  %1191 = vst [vmem:[%s4 + $0x9c] sm:$0xf] %v1063
  %1192 = vst [vmem:[%s4 + $0xa0] sm:$0xf] %v1064
  %1193 = vst [vmem:[%s4 + $0xa4] sm:$0xf] %v1065
  %1194 = vst [vmem:[%s4 + $0xa8] sm:$0xf] %v1066
  %1195 = vst [vmem:[%s4 + $0xac] sm:$0xf] %v1067
  %1196 = vst [vmem:[%s4 + $0xb0] sm:$0xf] %v1068
  %1197 = vst [vmem:[%s4 + $0xb4] sm:$0xf] %v1069
  %1198 = vst [vmem:[%s4 + $0xb8] sm:$0xf] %v1070
  %1199 = vst [vmem:[%s4 + $0xbc] sm:$0xf] %v1071
  %1200 = vst [vmem:[%s4 + $0xc0] sm:$0xf] %v1072
  %1201 = vst [vmem:[%s4 + $0xc4] sm:$0xf] %v1073
  %1202 = vst [vmem:[%s4 + $0xc8] sm:$0xf] %v1074
  %1203 = vst [vmem:[%s4 + $0xcc] sm:$0xf] %v1075
  %1204 = vst [vmem:[%s4 + $0xd0] sm:$0xf] %v1076
  %1205 = vst [vmem:[%s4 + $0xd4] sm:$0xf] %v1077
  %1206 = vst [vmem:[%s4 + $0xd8] sm:$0xf] %v1078
  %1207 = vst [vmem:[%s4 + $0xdc] sm:$0xf] %v1079
  %1208 = vst [vmem:[%s4 + $0xe0] sm:$0xf] %v1080
  %1209 = vst [vmem:[%s4 + $0xe4] sm:$0xf] %v1081
  %1210 = vst [vmem:[%s4 + $0xe8] sm:$0xf] %v1082
  %1211 = vst [vmem:[%s4 + $0xec] sm:$0xf] %v1083
  %1212 = vst [vmem:[%s4 + $0xf0] sm:$0xf] %v1084
  %1213 = vst [vmem:[%s4 + $0xf4] sm:$0xf] %v1085
  %1214 = vst [vmem:[%s4 + $0xf8] sm:$0xf] %v1086
  %1215 = vst [vmem:[%s4 + $0xfc] sm:$0xf] %v1087
  // Predicated region
  $region18: #{encoder_forward.22} parent=0 // pred_check
    _
  $region19: #{encoder_forward.22} parent=0 // pred_check_branch
    %1217 = sbr.rel (0) target = $region21
  $region20: #{encoder_forward.22} parent=0 // pred_region
    _
  $region21: #{encoder_forward.22} parent=0 // pred_fallthru
    _
  // Predicated region
  $region22: #{encoder_forward.22} parent=0 // pred_check
    _
  $region23: #{encoder_forward.22} parent=0 // pred_check_branch
    %1219 = sbr.rel (0) target = $region25
  $region24: #{encoder_forward.22} parent=0 // pred_region
    _
  $region25: #{encoder_forward.22} parent=0 // pred_fallthru
    _

// kernel: encoder_forward.25
$region0: #{encoder_forward.25}
  #allocation0 [shape = 'u32[]', space=smem, size = 0x4, offset = 0x4, fixed_abs, tag = 'smem constant byte address 0x4 - core index']
  #allocation1 [shape = 'u32[144,128]{1,0:T(1,128)}', space=vmem, size = 0x12000, scoped, tag = 'internal scratch']
  %s0 = inlined_call_operand.vmem [shape: bf16[128,32], index: 0, kind: input, shape index: {}]
  %s1 = inlined_call_operand.vmem [shape: bf16[32,128], index: 1, kind: input, shape index: {}]
  %s2 = inlined_call_operand.vmem [shape: f32[1,128], index: 2, kind: input, shape index: {}]
  %s3 = inlined_call_operand.vmem [shape: bf16[128,128], index: 3, kind: output, shape index: {}]
  %s4 = sld [smem:[#allocation0]]
  $region22: #{encoder_forward.25} parent=0
    _
  %s6 = ssub.s32 1, %s4
  %s7 = scalar_select 0, %s6, %s4
  // Predicated region
  $region2: #{encoder_forward.25} parent=0 // pred_check
    _
  $region3: #{encoder_forward.25} parent=0 // pred_check_branch
    %9 = sbr.rel (0) target = $region5
  $region4: #{encoder_forward.25} parent=0 // pred_region
    _
  $region5: #{encoder_forward.25} parent=0 // pred_fallthru
    _
  // Predicated region
  $region6: #{encoder_forward.25} parent=0 // pred_check
    _
  $region7: #{encoder_forward.25} parent=0 // pred_check_branch
    %11 = sbr.rel (0) target = $region9
  $region8: #{encoder_forward.25} parent=0 // pred_region
    _
  $region9: #{encoder_forward.25} parent=0 // pred_fallthru
    _
  // Predicated region
  $region10: #{encoder_forward.25} parent=0 // pred_check
    _
  $region11: #{encoder_forward.25} parent=0 // pred_check_branch
    %13 = sbr.rel (0) target = $region13
  $region12: #{encoder_forward.25} parent=0 // pred_region
    _
  $region13: #{encoder_forward.25} parent=0 // pred_fallthru
    _
  %v15 = vld [vmem:[%s0] sm:$0xf]
  %v16 = vld [vmem:[%s0 + $0x4] sm:$0xf]
  %v17 = vld [vmem:[%s0 + $0x8] sm:$0xf]
  %v18 = vld [vmem:[%s0 + $0xc] sm:$0xf]
  %v19 = vld [vmem:[%s0 + $0x10] sm:$0xf]
  %v20 = vld [vmem:[%s0 + $0x14] sm:$0xf]
  %v21 = vld [vmem:[%s0 + $0x18] sm:$0xf]
  %v22 = vld [vmem:[%s0 + $0x1c] sm:$0xf]
  %v23 = vld [vmem:[%s0 + $0x20] sm:$0xf]
  %v24 = vld [vmem:[%s0 + $0x24] sm:$0xf]
  %v25 = vld [vmem:[%s0 + $0x28] sm:$0xf]
  %v26 = vld [vmem:[%s0 + $0x2c] sm:$0xf]
  %v27 = vld [vmem:[%s0 + $0x30] sm:$0xf]
  %v28 = vld [vmem:[%s0 + $0x34] sm:$0xf]
  %v29 = vld [vmem:[%s0 + $0x38] sm:$0xf]
  %v30 = vld [vmem:[%s0 + $0x3c] sm:$0xf]
  %v31 = vld [vmem:[%s1] sm:$0xf]
  %v32 = vld [vmem:[%s1 + $0x4] sm:$0xf]
  %v33 = vld [vmem:[%s1 + $0x8] sm:$0xf]
  %v34 = vld [vmem:[%s1 + $0xc] sm:$0xf]
  %v35 = vld [vmem:[%s2] sm:$0x1]
  %v37 = vlaneseq
  %v38 = vshrl.u32 %v37, 7
  %v39 = vsub.s32 0, %v38
  %v40 = vrot.slane %v35, %v39
  %v58 = vunpack.c.l.b16 %v15
  %v59 = vunpack.c.l.b16 %v16
  %v60 = vunpack.c.l.b16 %v17
  %v61 = vunpack.c.l.b16 %v18
  %v62 = vunpack.c.l.b16 %v19
  %v63 = vunpack.c.l.b16 %v20
  %v64 = vunpack.c.l.b16 %v21
  %v65 = vunpack.c.l.b16 %v22
  %v66 = vunpack.c.l.b16 %v23
  %v67 = vunpack.c.l.b16 %v24
  %v68 = vunpack.c.l.b16 %v25
  %v69 = vunpack.c.l.b16 %v26
  %v70 = vunpack.c.l.b16 %v27
  %v71 = vunpack.c.l.b16 %v28
  %v72 = vunpack.c.l.b16 %v29
  %v73 = vunpack.c.l.b16 %v30
  %v74 = vpack.c.b16 %v59, %v58
  %v75 = vpack.c.b16 %v61, %v60
  %v76 = vpack.c.b16 %v63, %v62
  %v77 = vpack.c.b16 %v65, %v64
  %v78 = vpack.c.b16 %v67, %v66
  %v79 = vpack.c.b16 %v69, %v68
  %v80 = vpack.c.b16 %v71, %v70
  %v81 = vpack.c.b16 %v73, %v72
  %v86 = vunpack.c.l.b16 %v31
  %v87 = vunpack.c.l.b16 %v32
  %v88 = vunpack.c.l.b16 %v33
  %v89 = vunpack.c.l.b16 %v34
  %v90 = vpack.c.b16 %v87, %v86
  %v91 = vpack.c.b16 %v89, %v88
  %vm94 = vcmask 261120
  %v96 = vsel %vm94, %v74, 0
  %v99 = vsel %vm94, %v75, 0
  %v102 = vsel %vm94, %v76, 0
  %v105 = vsel %vm94, %v77, 0
  %v108 = vsel %vm94, %v78, 0
  %v111 = vsel %vm94, %v79, 0
  %v114 = vsel %vm94, %v80, 0
  %v117 = vsel %vm94, %v81, 0
  %119 = vmatprep.subr.bf16.mxu0 0
  %120 = vmatpush1.bf16.msra.mxu0 %v90
  %121 = vmatprep.subr.bf16.mxu0 0
  %122 = vmatpush1.bf16.msra.mxu0 %v91
  %123 = vmatprep.subr.bf16.mxu0 0
  %124 = vmatpush1.bf16.msra.mxu0 0
  %125 = vmatprep.subr.bf16.mxu0 0
  %126 = vmatpush1.bf16.msra.mxu0 0
  %127 = vmatprep.subr.bf16.mxu0 0
  %128 = vmatpush1.bf16.msra.mxu0 0
  %129 = vmatprep.subr.bf16.mxu0 0
  %130 = vmatpush1.bf16.msra.mxu0 0
  %131 = vmatprep.subr.bf16.mxu0 0
  %132 = vmatpush1.bf16.msra.mxu0 0
  %133 = vmatprep.subr.bf16.mxu0 0
  %134 = vmatpush1.bf16.msra.mxu0 0
  %135 = vmatprep.subr.bf16.mxu0 0
  %136 = vmatpush1.bf16.msra.mxu0 0
  %137 = vmatprep.subr.bf16.mxu0 0
  %138 = vmatpush1.bf16.msra.mxu0 0
  %139 = vmatprep.subr.bf16.mxu0 0
  %140 = vmatpush1.bf16.msra.mxu0 0
  %141 = vmatprep.subr.bf16.mxu0 0
  %142 = vmatpush1.bf16.msra.mxu0 0
  %143 = vmatprep.subr.bf16.mxu0 0
  %144 = vmatpush1.bf16.msra.mxu0 0
  %145 = vmatprep.subr.bf16.mxu0 0
  %146 = vmatpush1.bf16.msra.mxu0 0
  %147 = vmatprep.subr.bf16.mxu0 0
  %148 = vmatpush1.bf16.msra.mxu0 0
  %149 = vmatprep.subr.bf16.mxu0 0
  %150 = vmatpush1.bf16.msra.mxu0 0
  %151 = vmatprep.mubr.bf16.mxu0 0
  %152 = vmatmul.mubr.bf16.gmra.mrb[0].mxu0 %v96
  %v153 = vpop.f32.mrb[0].mxu0
  %v154 = vadd.f32 %v40, %v153
  %v155 = vpop.f32.mrb[0].mxu0
  %v156 = vpop.f32.mrb[0].mxu0
  %v157 = vadd.f32 %v40, %v156
  %v158 = vpop.f32.mrb[0].mxu0
  %159 = vmatprep.mubr.bf16.mxu0 0
  %160 = vmatmul.mubr.bf16.gmra.mrb[0].mxu0 %v99
  %v161 = vpop.f32.mrb[0].mxu0
  %v162 = vadd.f32 %v40, %v161
  %v163 = vpop.f32.mrb[0].mxu0
  %v164 = vpop.f32.mrb[0].mxu0
  %v165 = vadd.f32 %v40, %v164
  %v166 = vpop.f32.mrb[0].mxu0
  %167 = vmatprep.mubr.bf16.mxu0 0
  %168 = vmatmul.mubr.bf16.gmra.mrb[0].mxu0 %v102
  %v169 = vpop.f32.mrb[0].mxu0
  %v170 = vadd.f32 %v40, %v169
  %v171 = vpop.f32.mrb[0].mxu0
  %v172 = vpop.f32.mrb[0].mxu0
  %v173 = vadd.f32 %v40, %v172
  %v174 = vpop.f32.mrb[0].mxu0
  %175 = vmatprep.mubr.bf16.mxu0 0
  %176 = vmatmul.mubr.bf16.gmra.mrb[0].mxu0 %v105
  %v177 = vpop.f32.mrb[0].mxu0
  %v178 = vadd.f32 %v40, %v177
  %v179 = vpop.f32.mrb[0].mxu0
  %v180 = vpop.f32.mrb[0].mxu0
  %v181 = vadd.f32 %v40, %v180
  %v182 = vpop.f32.mrb[0].mxu0
  %183 = vmatprep.mubr.bf16.mxu0 0
  %184 = vmatmul.mubr.bf16.gmra.mrb[0].mxu0 %v108
  %v185 = vpop.f32.mrb[0].mxu0
  %v186 = vadd.f32 %v40, %v185
  %v187 = vpop.f32.mrb[0].mxu0
  %v188 = vpop.f32.mrb[0].mxu0
  %v189 = vadd.f32 %v40, %v188
  %v190 = vpop.f32.mrb[0].mxu0
  %191 = vmatprep.mubr.bf16.mxu0 0
  %192 = vmatmul.mubr.bf16.gmra.mrb[0].mxu0 %v111
  %v193 = vpop.f32.mrb[0].mxu0
  %v194 = vadd.f32 %v40, %v193
  %v195 = vpop.f32.mrb[0].mxu0
  %v196 = vpop.f32.mrb[0].mxu0
  %v197 = vadd.f32 %v40, %v196
  %v198 = vpop.f32.mrb[0].mxu0
  %199 = vmatprep.mubr.bf16.mxu0 0
  %200 = vmatmul.mubr.bf16.gmra.mrb[0].mxu0 %v114
  %v201 = vpop.f32.mrb[0].mxu0
  %v202 = vadd.f32 %v40, %v201
  %v203 = vpop.f32.mrb[0].mxu0
  %v204 = vpop.f32.mrb[0].mxu0
  %v205 = vadd.f32 %v40, %v204
  %v206 = vpop.f32.mrb[0].mxu0
  %207 = vmatprep.mubr.bf16.mxu0 0
  %208 = vmatmul.mubr.bf16.gmra.mrb[0].mxu0 %v117
  %v209 = vpop.f32.mrb[0].mxu0
  %v210 = vadd.f32 %v40, %v209
  %v211 = vpop.f32.mrb[0].mxu0
  %v212 = vpop.f32.mrb[0].mxu0
  %v213 = vadd.f32 %v40, %v212
  %v214 = vpop.f32.mrb[0].mxu0
  %215 = vdwg.mxu0
  %v216 = vpack.c.bf16 %v157, %v154
  %v217 = vpack.c.bf16 %v165, %v162
  %v218 = vpack.c.bf16 %v173, %v170
  %v219 = vpack.c.bf16 %v181, %v178
  %v220 = vpack.c.bf16 %v189, %v186
  %v221 = vpack.c.bf16 %v197, %v194
  %v222 = vpack.c.bf16 %v205, %v202
  %v223 = vpack.c.bf16 %v213, %v210
  %v232 = vunpack.c.l.b16 %v216
  %v233 = vunpack.c.h.b16 %v216
  %v234 = vunpack.c.l.b16 %v217
  %v235 = vunpack.c.h.b16 %v217
  %v236 = vunpack.c.l.b16 %v218
  %v237 = vunpack.c.h.b16 %v218
  %v238 = vunpack.c.l.b16 %v219
  %v239 = vunpack.c.h.b16 %v219
  %v240 = vunpack.c.l.b16 %v220
  %v241 = vunpack.c.h.b16 %v220
  %v242 = vunpack.c.l.b16 %v221
  %v243 = vunpack.c.h.b16 %v221
  %v244 = vunpack.c.l.b16 %v222
  %v245 = vunpack.c.h.b16 %v222
  %v246 = vunpack.c.l.b16 %v223
  %v247 = vunpack.c.h.b16 %v223
  %v248 = vpack.c.b16 %v232, %v232
  %v249 = vpack.c.b16 %v233, %v233
  %v250 = vpack.c.b16 %v234, %v234
  %v251 = vpack.c.b16 %v235, %v235
  %v252 = vpack.c.b16 %v236, %v236
  %v253 = vpack.c.b16 %v237, %v237
  %v254 = vpack.c.b16 %v238, %v238
  %v255 = vpack.c.b16 %v239, %v239
  %v256 = vpack.c.b16 %v240, %v240
  %v257 = vpack.c.b16 %v241, %v241
  %v258 = vpack.c.b16 %v242, %v242
  %v259 = vpack.c.b16 %v243, %v243
  %v260 = vpack.c.b16 %v244, %v244
  %v261 = vpack.c.b16 %v245, %v245
  %v262 = vpack.c.b16 %v246, %v246
  %v263 = vpack.c.b16 %v247, %v247
  %280 = vst [vmem:[%s3] sm:$0xf] %v248
  %281 = vst [vmem:[%s3 + $0x4] sm:$0xf] %v249
  %282 = vst [vmem:[%s3 + $0x8] sm:$0xf] %v250
  %283 = vst [vmem:[%s3 + $0xc] sm:$0xf] %v251
  %284 = vst [vmem:[%s3 + $0x10] sm:$0xf] %v252
  %285 = vst [vmem:[%s3 + $0x14] sm:$0xf] %v253
  %286 = vst [vmem:[%s3 + $0x18] sm:$0xf] %v254
  %287 = vst [vmem:[%s3 + $0x1c] sm:$0xf] %v255
  %288 = vst [vmem:[%s3 + $0x20] sm:$0xf] %v256
  %289 = vst [vmem:[%s3 + $0x24] sm:$0xf] %v257
  %290 = vst [vmem:[%s3 + $0x28] sm:$0xf] %v258
  %291 = vst [vmem:[%s3 + $0x2c] sm:$0xf] %v259
  %292 = vst [vmem:[%s3 + $0x30] sm:$0xf] %v260
  %293 = vst [vmem:[%s3 + $0x34] sm:$0xf] %v261
  %294 = vst [vmem:[%s3 + $0x38] sm:$0xf] %v262
  %295 = vst [vmem:[%s3 + $0x3c] sm:$0xf] %v263
  // Predicated region
  $region14: #{encoder_forward.25} parent=0 // pred_check
    _
  $region15: #{encoder_forward.25} parent=0 // pred_check_branch
    %297 = sbr.rel (0) target = $region17
  $region16: #{encoder_forward.25} parent=0 // pred_region
    _
  $region17: #{encoder_forward.25} parent=0 // pred_fallthru
    _
  // Predicated region
  $region18: #{encoder_forward.25} parent=0 // pred_check
    _
  $region19: #{encoder_forward.25} parent=0 // pred_check_branch
    %299 = sbr.rel (0) target = $region21
  $region20: #{encoder_forward.25} parent=0 // pred_region
    _
  $region21: #{encoder_forward.25} parent=0 // pred_fallthru
    _

// kernel: encoder_forward.24
$region0: #{encoder_forward.24}
  #allocation0 [shape = 'u32[]', space=smem, size = 0x4, offset = 0x4, fixed_abs, tag = 'smem constant byte address 0x4 - core index']
  #allocation1 [shape = 'u32[144,128]{1,0:T(1,128)}', space=vmem, size = 0x12000, scoped, tag = 'internal scratch']
  %s0 = inlined_call_operand.vmem [shape: bf16[128,144], index: 0, kind: input, shape index: {}]
  %s1 = inlined_call_operand.vmem [shape: bf16[144,128], index: 1, kind: input, shape index: {}]
  %s2 = inlined_call_operand.vmem [shape: f32[1,128], index: 2, kind: input, shape index: {}]
  %s3 = inlined_call_operand.vmem [shape: bf16[128,128], index: 3, kind: output, shape index: {}]
  %s4 = sld [smem:[#allocation0]]
  $region22: #{encoder_forward.24} parent=0
    _
  %s6 = ssub.s32 1, %s4
  %s7 = scalar_select 0, %s6, %s4
  // Predicated region
  $region2: #{encoder_forward.24} parent=0 // pred_check
    _
  $region3: #{encoder_forward.24} parent=0 // pred_check_branch
    %9 = sbr.rel (0) target = $region5
  $region4: #{encoder_forward.24} parent=0 // pred_region
    _
  $region5: #{encoder_forward.24} parent=0 // pred_fallthru
    _
  // Predicated region
  $region6: #{encoder_forward.24} parent=0 // pred_check
    _
  $region7: #{encoder_forward.24} parent=0 // pred_check_branch
    %11 = sbr.rel (0) target = $region9
  $region8: #{encoder_forward.24} parent=0 // pred_region
    _
  $region9: #{encoder_forward.24} parent=0 // pred_fallthru
    _
  // Predicated region
  $region10: #{encoder_forward.24} parent=0 // pred_check
    _
  $region11: #{encoder_forward.24} parent=0 // pred_check_branch
    %13 = sbr.rel (0) target = $region13
  $region12: #{encoder_forward.24} parent=0 // pred_region
    _
  $region13: #{encoder_forward.24} parent=0 // pred_fallthru
    _
  %v15 = vld [vmem:[%s0] sm:$0xff]
  %v16 = vld [vmem:[%s0 + $0x8] sm:$0xff]
  %v17 = vld [vmem:[%s0 + $0x10] sm:$0xff]
  %v18 = vld [vmem:[%s0 + $0x18] sm:$0xff]
  %v19 = vld [vmem:[%s0 + $0x20] sm:$0xff]
  %v20 = vld [vmem:[%s0 + $0x28] sm:$0xff]
  %v21 = vld [vmem:[%s0 + $0x30] sm:$0xff]
  %v22 = vld [vmem:[%s0 + $0x38] sm:$0xff]
  %v23 = vld [vmem:[%s0 + $0x40] sm:$0xff]
  %v24 = vld [vmem:[%s0 + $0x48] sm:$0xff]
  %v25 = vld [vmem:[%s0 + $0x50] sm:$0xff]
  %v26 = vld [vmem:[%s0 + $0x58] sm:$0xff]
  %v27 = vld [vmem:[%s0 + $0x60] sm:$0xff]
  %v28 = vld [vmem:[%s0 + $0x68] sm:$0xff]
  %v29 = vld [vmem:[%s0 + $0x70] sm:$0xff]
  %v30 = vld [vmem:[%s0 + $0x78] sm:$0xff]
  %v31 = vld [vmem:[%s1] sm:$0xf]
  %v32 = vld [vmem:[%s1 + $0x4] sm:$0xf]
  %v33 = vld [vmem:[%s1 + $0x8] sm:$0xf]
  %v34 = vld [vmem:[%s1 + $0xc] sm:$0xf]
  %v35 = vld [vmem:[%s1 + $0x10] sm:$0xf]
  %v36 = vld [vmem:[%s1 + $0x14] sm:$0xf]
  %v37 = vld [vmem:[%s1 + $0x18] sm:$0xf]
  %v38 = vld [vmem:[%s1 + $0x1c] sm:$0xf]
  %v39 = vld [vmem:[%s1 + $0x20] sm:$0xf]
  %v40 = vld [vmem:[%s1 + $0x24] sm:$0xf]
  %v41 = vld [vmem:[%s1 + $0x28] sm:$0xf]
  %v42 = vld [vmem:[%s1 + $0x2c] sm:$0xf]
  %v43 = vld [vmem:[%s1 + $0x30] sm:$0xf]
  %v44 = vld [vmem:[%s1 + $0x34] sm:$0xf]
  %v45 = vld [vmem:[%s1 + $0x38] sm:$0xf]
  %v46 = vld [vmem:[%s1 + $0x3c] sm:$0xf]
  %v47 = vld [vmem:[%s1 + $0x40] sm:$0xf]
  %v48 = vld [vmem:[%s1 + $0x44] sm:$0xf]
  %v49 = vld [vmem:[%s2] sm:$0x1]
  %v51 = vlaneseq
  %v52 = vshrl.u32 %v51, 7
  %v53 = vsub.s32 0, %v52
  %v54 = vrot.slane %v49, %v53
  %v72 = vunpack.c.l.b16 %v15
  %v73 = vunpack.c.h.b16 %v15
  %v74 = vunpack.c.l.b16 %v16
  %v75 = vunpack.c.h.b16 %v16
  %v76 = vunpack.c.l.b16 %v17
  %v77 = vunpack.c.h.b16 %v17
  %v78 = vunpack.c.l.b16 %v18
  %v79 = vunpack.c.h.b16 %v18
  %v80 = vunpack.c.l.b16 %v19
  %v81 = vunpack.c.h.b16 %v19
  %v82 = vunpack.c.l.b16 %v20
  %v83 = vunpack.c.h.b16 %v20
  %v84 = vunpack.c.l.b16 %v21
  %v85 = vunpack.c.h.b16 %v21
  %v86 = vunpack.c.l.b16 %v22
  %v87 = vunpack.c.h.b16 %v22
  %v88 = vunpack.c.l.b16 %v23
  %v89 = vunpack.c.h.b16 %v23
  %v90 = vunpack.c.l.b16 %v24
  %v91 = vunpack.c.h.b16 %v24
  %v92 = vunpack.c.l.b16 %v25
  %v93 = vunpack.c.h.b16 %v25
  %v94 = vunpack.c.l.b16 %v26
  %v95 = vunpack.c.h.b16 %v26
  %v96 = vunpack.c.l.b16 %v27
  %v97 = vunpack.c.h.b16 %v27
  %v98 = vunpack.c.l.b16 %v28
  %v99 = vunpack.c.h.b16 %v28
  %v100 = vunpack.c.l.b16 %v29
  %v101 = vunpack.c.h.b16 %v29
  %v102 = vunpack.c.l.b16 %v30
  %v103 = vunpack.c.h.b16 %v30
  %v104 = vpack.c.b16 %v74, %v72
  %v105 = vpack.c.b16 %v75, %v73
  %v106 = vpack.c.b16 %v78, %v76
  %v107 = vpack.c.b16 %v79, %v77
  %v108 = vpack.c.b16 %v82, %v80
  %v109 = vpack.c.b16 %v83, %v81
  %v110 = vpack.c.b16 %v86, %v84
  %v111 = vpack.c.b16 %v87, %v85
  %v112 = vpack.c.b16 %v90, %v88
  %v113 = vpack.c.b16 %v91, %v89
  %v114 = vpack.c.b16 %v94, %v92
  %v115 = vpack.c.b16 %v95, %v93
  %v116 = vpack.c.b16 %v98, %v96
  %v117 = vpack.c.b16 %v99, %v97
  %v118 = vpack.c.b16 %v102, %v100
  %v119 = vpack.c.b16 %v103, %v101
  %v146 = vunpack.c.l.b16 %v31
  %v147 = vunpack.c.l.b16 %v32
  %v148 = vunpack.c.l.b16 %v33
  %v149 = vunpack.c.l.b16 %v34
  %v150 = vunpack.c.l.b16 %v35
  %v151 = vunpack.c.l.b16 %v36
  %v152 = vunpack.c.l.b16 %v37
  %v153 = vunpack.c.l.b16 %v38
  %v154 = vunpack.c.l.b16 %v39
  %v155 = vunpack.c.l.b16 %v40
  %v156 = vunpack.c.l.b16 %v41
  %v157 = vunpack.c.l.b16 %v42
  %v158 = vunpack.c.l.b16 %v43
  %v159 = vunpack.c.l.b16 %v44
  %v160 = vunpack.c.l.b16 %v45
  %v161 = vunpack.c.l.b16 %v46
  %v162 = vunpack.c.l.b16 %v47
  %v163 = vunpack.c.l.b16 %v48
  %v164 = vpack.c.b16 %v147, %v146
  %v165 = vpack.c.b16 %v149, %v148
  %v166 = vpack.c.b16 %v151, %v150
  %v167 = vpack.c.b16 %v153, %v152
  %v168 = vpack.c.b16 %v155, %v154
  %v169 = vpack.c.b16 %v157, %v156
  %v170 = vpack.c.b16 %v159, %v158
  %v171 = vpack.c.b16 %v161, %v160
  %v172 = vpack.c.b16 %v163, %v162
  %vm182 = vcmask 130048
  %v184 = vsel %vm182, %v105, 0
  %v187 = vsel %vm182, %v107, 0
  %v190 = vsel %vm182, %v109, 0
  %v193 = vsel %vm182, %v111, 0
  %v196 = vsel %vm182, %v113, 0
  %v199 = vsel %vm182, %v115, 0
  %v202 = vsel %vm182, %v117, 0
  %v205 = vsel %vm182, %v119, 0
  %207 = vmatprep.subr.bf16.mxu0 0
  %208 = vmatpush1.bf16.msra.mxu0 %v164
  %209 = vmatprep.subr.bf16.mxu0 0
  %210 = vmatpush1.bf16.msra.mxu0 %v165
  %211 = vmatprep.subr.bf16.mxu0 0
  %212 = vmatpush1.bf16.msra.mxu0 %v166
  %213 = vmatprep.subr.bf16.mxu0 0
  %214 = vmatpush1.bf16.msra.mxu0 %v167
  %215 = vmatprep.subr.bf16.mxu0 0
  %216 = vmatpush1.bf16.msra.mxu0 %v168
  %217 = vmatprep.subr.bf16.mxu0 0
  %218 = vmatpush1.bf16.msra.mxu0 %v169
  %219 = vmatprep.subr.bf16.mxu0 0
  %220 = vmatpush1.bf16.msra.mxu0 %v170
  %221 = vmatprep.subr.bf16.mxu0 0
  %222 = vmatpush1.bf16.msra.mxu0 %v171
  %223 = vmatprep.subr.bf16.mxu0 0
  %224 = vmatpush1.bf16.msra.mxu0 %v172
  %225 = vmatprep.subr.bf16.mxu0 0
  %226 = vmatpush1.bf16.msra.mxu0 0
  %227 = vmatprep.subr.bf16.mxu0 0
  %228 = vmatpush1.bf16.msra.mxu0 0
  %229 = vmatprep.subr.bf16.mxu0 0
  %230 = vmatpush1.bf16.msra.mxu0 0
  %231 = vmatprep.subr.bf16.mxu0 0
  %232 = vmatpush1.bf16.msra.mxu0 0
  %233 = vmatprep.subr.bf16.mxu0 0
  %234 = vmatpush1.bf16.msra.mxu0 0
  %235 = vmatprep.subr.bf16.mxu0 0
  %236 = vmatpush1.bf16.msra.mxu0 0
  %237 = vmatprep.subr.bf16.mxu0 0
  %238 = vmatpush1.bf16.msra.mxu0 0
  %239 = vmatprep.mubr.bf16.mxu0 %v184
  %240 = vmatmul.mubr.bf16.gmra.mrb[0].mxu0 %v104
  %v241 = vpop.f32.mrb[0].mxu0
  %v242 = vadd.f32 %v54, %v241
  %v243 = vpop.f32.mrb[0].mxu0
  %v244 = vpop.f32.mrb[0].mxu0
  %v245 = vadd.f32 %v54, %v244
  %v246 = vpop.f32.mrb[0].mxu0
  %247 = vmatprep.mubr.bf16.mxu0 %v187
  %248 = vmatmul.mubr.bf16.gmra.mrb[0].mxu0 %v106
  %v249 = vpop.f32.mrb[0].mxu0
  %v250 = vadd.f32 %v54, %v249
  %v251 = vpop.f32.mrb[0].mxu0
  %v252 = vpop.f32.mrb[0].mxu0
  %v253 = vadd.f32 %v54, %v252
  %v254 = vpop.f32.mrb[0].mxu0
  %255 = vmatprep.mubr.bf16.mxu0 %v190
  %256 = vmatmul.mubr.bf16.gmra.mrb[0].mxu0 %v108
  %v257 = vpop.f32.mrb[0].mxu0
  %v258 = vadd.f32 %v54, %v257
  %v259 = vpop.f32.mrb[0].mxu0
  %v260 = vpop.f32.mrb[0].mxu0
  %v261 = vadd.f32 %v54, %v260
  %v262 = vpop.f32.mrb[0].mxu0
  %263 = vmatprep.mubr.bf16.mxu0 %v193
  %264 = vmatmul.mubr.bf16.gmra.mrb[0].mxu0 %v110
  %v265 = vpop.f32.mrb[0].mxu0
  %v266 = vadd.f32 %v54, %v265
  %v267 = vpop.f32.mrb[0].mxu0
  %v268 = vpop.f32.mrb[0].mxu0
  %v269 = vadd.f32 %v54, %v268
  %v270 = vpop.f32.mrb[0].mxu0
  %271 = vmatprep.mubr.bf16.mxu0 %v196
  %272 = vmatmul.mubr.bf16.gmra.mrb[0].mxu0 %v112
  %v273 = vpop.f32.mrb[0].mxu0
  %v274 = vadd.f32 %v54, %v273
  %v275 = vpop.f32.mrb[0].mxu0
  %v276 = vpop.f32.mrb[0].mxu0
  %v277 = vadd.f32 %v54, %v276
  %v278 = vpop.f32.mrb[0].mxu0
  %279 = vmatprep.mubr.bf16.mxu0 %v199
  %280 = vmatmul.mubr.bf16.gmra.mrb[0].mxu0 %v114
  %v281 = vpop.f32.mrb[0].mxu0
  %v282 = vadd.f32 %v54, %v281
  %v283 = vpop.f32.mrb[0].mxu0
  %v284 = vpop.f32.mrb[0].mxu0
  %v285 = vadd.f32 %v54, %v284
  %v286 = vpop.f32.mrb[0].mxu0
  %287 = vmatprep.mubr.bf16.mxu0 %v202
  %288 = vmatmul.mubr.bf16.gmra.mrb[0].mxu0 %v116
  %v289 = vpop.f32.mrb[0].mxu0
  %v290 = vadd.f32 %v54, %v289
  %v291 = vpop.f32.mrb[0].mxu0
  %v292 = vpop.f32.mrb[0].mxu0
  %v293 = vadd.f32 %v54, %v292
  %v294 = vpop.f32.mrb[0].mxu0
  %295 = vmatprep.mubr.bf16.mxu0 %v205
  %296 = vmatmul.mubr.bf16.gmra.mrb[0].mxu0 %v118
  %v297 = vpop.f32.mrb[0].mxu0
  %v298 = vadd.f32 %v54, %v297
  %v299 = vpop.f32.mrb[0].mxu0
  %v300 = vpop.f32.mrb[0].mxu0
  %v301 = vadd.f32 %v54, %v300
  %v302 = vpop.f32.mrb[0].mxu0
  %303 = vdwg.mxu0
  %v304 = vmax.f32 %v242, 0.0
  %v305 = vmax.f32 %v245, 0.0
  %v306 = vmax.f32 %v250, 0.0
  %v307 = vmax.f32 %v253, 0.0
  %v308 = vmax.f32 %v258, 0.0
  %v309 = vmax.f32 %v261, 0.0
  %v310 = vmax.f32 %v266, 0.0
  %v311 = vmax.f32 %v269, 0.0
  %v312 = vmax.f32 %v274, 0.0
  %v313 = vmax.f32 %v277, 0.0
  %v314 = vmax.f32 %v282, 0.0
  %v315 = vmax.f32 %v285, 0.0
  %v316 = vmax.f32 %v290, 0.0
  %v317 = vmax.f32 %v293, 0.0
  %v318 = vmax.f32 %v298, 0.0
  %v319 = vmax.f32 %v301, 0.0
  %v320 = vpack.c.bf16 %v305, %v304
  %v321 = vpack.c.bf16 %v307, %v306
  %v322 = vpack.c.bf16 %v309, %v308
  %v323 = vpack.c.bf16 %v311, %v310
  %v324 = vpack.c.bf16 %v313, %v312
  %v325 = vpack.c.bf16 %v315, %v314
  %v326 = vpack.c.bf16 %v317, %v316
  %v327 = vpack.c.bf16 %v319, %v318
  %v336 = vunpack.c.l.b16 %v320
  %v337 = vunpack.c.h.b16 %v320
  %v338 = vunpack.c.l.b16 %v321
  %v339 = vunpack.c.h.b16 %v321
  %v340 = vunpack.c.l.b16 %v322
  %v341 = vunpack.c.h.b16 %v322
  %v342 = vunpack.c.l.b16 %v323
  %v343 = vunpack.c.h.b16 %v323
  %v344 = vunpack.c.l.b16 %v324
  %v345 = vunpack.c.h.b16 %v324
  %v346 = vunpack.c.l.b16 %v325
  %v347 = vunpack.c.h.b16 %v325
  %v348 = vunpack.c.l.b16 %v326
  %v349 = vunpack.c.h.b16 %v326
  %v350 = vunpack.c.l.b16 %v327
  %v351 = vunpack.c.h.b16 %v327
  %v352 = vpack.c.b16 %v336, %v336
  %v353 = vpack.c.b16 %v337, %v337
  %v354 = vpack.c.b16 %v338, %v338
  %v355 = vpack.c.b16 %v339, %v339
  %v356 = vpack.c.b16 %v340, %v340
  %v357 = vpack.c.b16 %v341, %v341
  %v358 = vpack.c.b16 %v342, %v342
  %v359 = vpack.c.b16 %v343, %v343
  %v360 = vpack.c.b16 %v344, %v344
  %v361 = vpack.c.b16 %v345, %v345
  %v362 = vpack.c.b16 %v346, %v346
  %v363 = vpack.c.b16 %v347, %v347
  %v364 = vpack.c.b16 %v348, %v348
  %v365 = vpack.c.b16 %v349, %v349
  %v366 = vpack.c.b16 %v350, %v350
  %v367 = vpack.c.b16 %v351, %v351
  %384 = vst [vmem:[%s3] sm:$0xf] %v352
  %385 = vst [vmem:[%s3 + $0x4] sm:$0xf] %v353
  %386 = vst [vmem:[%s3 + $0x8] sm:$0xf] %v354
  %387 = vst [vmem:[%s3 + $0xc] sm:$0xf] %v355
  %388 = vst [vmem:[%s3 + $0x10] sm:$0xf] %v356
  %389 = vst [vmem:[%s3 + $0x14] sm:$0xf] %v357
  %390 = vst [vmem:[%s3 + $0x18] sm:$0xf] %v358
  %391 = vst [vmem:[%s3 + $0x1c] sm:$0xf] %v359
  %392 = vst [vmem:[%s3 + $0x20] sm:$0xf] %v360
  %393 = vst [vmem:[%s3 + $0x24] sm:$0xf] %v361
  %394 = vst [vmem:[%s3 + $0x28] sm:$0xf] %v362
  %395 = vst [vmem:[%s3 + $0x2c] sm:$0xf] %v363
  %396 = vst [vmem:[%s3 + $0x30] sm:$0xf] %v364
  %397 = vst [vmem:[%s3 + $0x34] sm:$0xf] %v365
  %398 = vst [vmem:[%s3 + $0x38] sm:$0xf] %v366
  %399 = vst [vmem:[%s3 + $0x3c] sm:$0xf] %v367
  // Predicated region
  $region14: #{encoder_forward.24} parent=0 // pred_check
    _
  $region15: #{encoder_forward.24} parent=0 // pred_check_branch
    %401 = sbr.rel (0) target = $region17
  $region16: #{encoder_forward.24} parent=0 // pred_region
    _
  $region17: #{encoder_forward.24} parent=0 // pred_fallthru
    _
  // Predicated region
  $region18: #{encoder_forward.24} parent=0 // pred_check
    _
  $region19: #{encoder_forward.24} parent=0 // pred_check_branch
    %403 = sbr.rel (0) target = $region21
  $region20: #{encoder_forward.24} parent=0 // pred_region
    _
  $region21: #{encoder_forward.24} parent=0 // pred_fallthru
    _

// kernel: encoder_forward.26
$region0: #{encoder_forward.26}
  #allocation0 [shape = 'u32[]', space=smem, size = 0x4, offset = 0x4, fixed_abs, tag = 'smem constant byte address 0x4 - core index']
  #allocation1 [shape = 'u32[144,128]{1,0:T(1,128)}', space=vmem, size = 0x12000, scoped, tag = 'internal scratch']
  %s0 = inlined_call_operand.vmem [shape: bf16[128,16], index: 0, kind: input, shape index: {}]
  %s1 = inlined_call_operand.vmem [shape: bf16[16,128], index: 1, kind: input, shape index: {}]
  %s2 = inlined_call_operand.vmem [shape: f32[1,128], index: 2, kind: input, shape index: {}]
  %s3 = inlined_call_operand.vmem [shape: bf16[128,128], index: 3, kind: input, shape index: {}]
  %s4 = inlined_call_operand.vmem [shape: bf16[128,128], index: 4, kind: output, shape index: {}]
  %s5 = sld [smem:[#allocation0]]
  $region26: #{encoder_forward.26} parent=0
    _
  %s7 = ssub.s32 1, %s5
  %s8 = scalar_select 0, %s7, %s5
  // Predicated region
  $region2: #{encoder_forward.26} parent=0 // pred_check
    _
  $region3: #{encoder_forward.26} parent=0 // pred_check_branch
    %10 = sbr.rel (0) target = $region5
  $region4: #{encoder_forward.26} parent=0 // pred_region
    _
  $region5: #{encoder_forward.26} parent=0 // pred_fallthru
    _
  // Predicated region
  $region6: #{encoder_forward.26} parent=0 // pred_check
    _
  $region7: #{encoder_forward.26} parent=0 // pred_check_branch
    %12 = sbr.rel (0) target = $region9
  $region8: #{encoder_forward.26} parent=0 // pred_region
    _
  $region9: #{encoder_forward.26} parent=0 // pred_fallthru
    _
  // Predicated region
  $region10: #{encoder_forward.26} parent=0 // pred_check
    _
  $region11: #{encoder_forward.26} parent=0 // pred_check_branch
    %14 = sbr.rel (0) target = $region13
  $region12: #{encoder_forward.26} parent=0 // pred_region
    _
  $region13: #{encoder_forward.26} parent=0 // pred_fallthru
    _
  // Predicated region
  $region14: #{encoder_forward.26} parent=0 // pred_check
    _
  $region15: #{encoder_forward.26} parent=0 // pred_check_branch
    %16 = sbr.rel (0) target = $region17
  $region16: #{encoder_forward.26} parent=0 // pred_region
    _
  $region17: #{encoder_forward.26} parent=0 // pred_fallthru
    _
  %v18 = vld [vmem:[%s0] sm:$0xf]
  %v19 = vld [vmem:[%s0 + $0x4] sm:$0xf]
  %v20 = vld [vmem:[%s0 + $0x8] sm:$0xf]
  %v21 = vld [vmem:[%s0 + $0xc] sm:$0xf]
  %v22 = vld [vmem:[%s0 + $0x10] sm:$0xf]
  %v23 = vld [vmem:[%s0 + $0x14] sm:$0xf]
  %v24 = vld [vmem:[%s0 + $0x18] sm:$0xf]
  %v25 = vld [vmem:[%s0 + $0x1c] sm:$0xf]
  %v26 = vld [vmem:[%s0 + $0x20] sm:$0xf]
  %v27 = vld [vmem:[%s0 + $0x24] sm:$0xf]
  %v28 = vld [vmem:[%s0 + $0x28] sm:$0xf]
  %v29 = vld [vmem:[%s0 + $0x2c] sm:$0xf]
  %v30 = vld [vmem:[%s0 + $0x30] sm:$0xf]
  %v31 = vld [vmem:[%s0 + $0x34] sm:$0xf]
  %v32 = vld [vmem:[%s0 + $0x38] sm:$0xf]
  %v33 = vld [vmem:[%s0 + $0x3c] sm:$0xf]
  %v34 = vld [vmem:[%s1] sm:$0xf]
  %v35 = vld [vmem:[%s1 + $0x4] sm:$0xf]
  %v36 = vld [vmem:[%s2] sm:$0x1]
  %v38 = vlaneseq
  %v39 = vshrl.u32 %v38, 7
  %v40 = vsub.s32 0, %v39
  %v41 = vrot.slane %v36, %v40
  %v59 = vunpack.c.l.b16 %v18
  %v60 = vunpack.c.l.b16 %v19
  %v61 = vunpack.c.l.b16 %v20
  %v62 = vunpack.c.l.b16 %v21
  %v63 = vunpack.c.l.b16 %v22
  %v64 = vunpack.c.l.b16 %v23
  %v65 = vunpack.c.l.b16 %v24
  %v66 = vunpack.c.l.b16 %v25
  %v67 = vunpack.c.l.b16 %v26
  %v68 = vunpack.c.l.b16 %v27
  %v69 = vunpack.c.l.b16 %v28
  %v70 = vunpack.c.l.b16 %v29
  %v71 = vunpack.c.l.b16 %v30
  %v72 = vunpack.c.l.b16 %v31
  %v73 = vunpack.c.l.b16 %v32
  %v74 = vunpack.c.l.b16 %v33
  %v75 = vpack.c.b16 %v60, %v59
  %v76 = vpack.c.b16 %v62, %v61
  %v77 = vpack.c.b16 %v64, %v63
  %v78 = vpack.c.b16 %v66, %v65
  %v79 = vpack.c.b16 %v68, %v67
  %v80 = vpack.c.b16 %v70, %v69
  %v81 = vpack.c.b16 %v72, %v71
  %v82 = vpack.c.b16 %v74, %v73
  %v85 = vunpack.c.l.b16 %v34
  %v86 = vunpack.c.l.b16 %v35
  %v87 = vpack.c.b16 %v86, %v85
  %vm89 = vcmask 130048
  %v91 = vsel %vm89, %v75, 0
  %v94 = vsel %vm89, %v76, 0
  %v97 = vsel %vm89, %v77, 0
  %v100 = vsel %vm89, %v78, 0
  %v103 = vsel %vm89, %v79, 0
  %v106 = vsel %vm89, %v80, 0
  %v109 = vsel %vm89, %v81, 0
  %v112 = vsel %vm89, %v82, 0
  %114 = vmatprep.subr.bf16.mxu0 0
  %115 = vmatpush1.bf16.msra.mxu0 %v87
  %116 = vmatprep.subr.bf16.mxu0 0
  %117 = vmatpush1.bf16.msra.mxu0 0
  %118 = vmatprep.subr.bf16.mxu0 0
  %119 = vmatpush1.bf16.msra.mxu0 0
  %120 = vmatprep.subr.bf16.mxu0 0
  %121 = vmatpush1.bf16.msra.mxu0 0
  %122 = vmatprep.subr.bf16.mxu0 0
  %123 = vmatpush1.bf16.msra.mxu0 0
  %124 = vmatprep.subr.bf16.mxu0 0
  %125 = vmatpush1.bf16.msra.mxu0 0
  %126 = vmatprep.subr.bf16.mxu0 0
  %127 = vmatpush1.bf16.msra.mxu0 0
  %128 = vmatprep.subr.bf16.mxu0 0
  %129 = vmatpush1.bf16.msra.mxu0 0
  %130 = vmatprep.subr.bf16.mxu0 0
  %131 = vmatpush1.bf16.msra.mxu0 0
  %132 = vmatprep.subr.bf16.mxu0 0
  %133 = vmatpush1.bf16.msra.mxu0 0
  %134 = vmatprep.subr.bf16.mxu0 0
  %135 = vmatpush1.bf16.msra.mxu0 0
  %136 = vmatprep.subr.bf16.mxu0 0
  %137 = vmatpush1.bf16.msra.mxu0 0
  %138 = vmatprep.subr.bf16.mxu0 0
  %139 = vmatpush1.bf16.msra.mxu0 0
  %140 = vmatprep.subr.bf16.mxu0 0
  %141 = vmatpush1.bf16.msra.mxu0 0
  %142 = vmatprep.subr.bf16.mxu0 0
  %143 = vmatpush1.bf16.msra.mxu0 0
  %144 = vmatprep.subr.bf16.mxu0 0
  %145 = vmatpush1.bf16.msra.mxu0 0
  %146 = vmatprep.mubr.bf16.mxu0 0
  %147 = vmatmul.mubr.bf16.gmra.mrb[0].mxu0 %v91
  %v148 = vpop.f32.mrb[0].mxu0
  %v149 = vadd.f32 %v41, %v148
  %v150 = vpop.f32.mrb[0].mxu0
  %v151 = vpop.f32.mrb[0].mxu0
  %v152 = vadd.f32 %v41, %v151
  %v153 = vpop.f32.mrb[0].mxu0
  %154 = vmatprep.mubr.bf16.mxu0 0
  %155 = vmatmul.mubr.bf16.gmra.mrb[0].mxu0 %v94
  %v156 = vpop.f32.mrb[0].mxu0
  %v157 = vadd.f32 %v41, %v156
  %v158 = vpop.f32.mrb[0].mxu0
  %v159 = vpop.f32.mrb[0].mxu0
  %v160 = vadd.f32 %v41, %v159
  %v161 = vpop.f32.mrb[0].mxu0
  %162 = vmatprep.mubr.bf16.mxu0 0
  %163 = vmatmul.mubr.bf16.gmra.mrb[0].mxu0 %v97
  %v164 = vpop.f32.mrb[0].mxu0
  %v165 = vadd.f32 %v41, %v164
  %v166 = vpop.f32.mrb[0].mxu0
  %v167 = vpop.f32.mrb[0].mxu0
  %v168 = vadd.f32 %v41, %v167
  %v169 = vpop.f32.mrb[0].mxu0
  %170 = vmatprep.mubr.bf16.mxu0 0
  %171 = vmatmul.mubr.bf16.gmra.mrb[0].mxu0 %v100
  %v172 = vpop.f32.mrb[0].mxu0
  %v173 = vadd.f32 %v41, %v172
  %v174 = vpop.f32.mrb[0].mxu0
  %v175 = vpop.f32.mrb[0].mxu0
  %v176 = vadd.f32 %v41, %v175
  %v177 = vpop.f32.mrb[0].mxu0
  %178 = vmatprep.mubr.bf16.mxu0 0
  %179 = vmatmul.mubr.bf16.gmra.mrb[0].mxu0 %v103
  %v180 = vpop.f32.mrb[0].mxu0
  %v181 = vadd.f32 %v41, %v180
  %v182 = vpop.f32.mrb[0].mxu0
  %v183 = vpop.f32.mrb[0].mxu0
  %v184 = vadd.f32 %v41, %v183
  %v185 = vpop.f32.mrb[0].mxu0
  %186 = vmatprep.mubr.bf16.mxu0 0
  %187 = vmatmul.mubr.bf16.gmra.mrb[0].mxu0 %v106
  %v188 = vpop.f32.mrb[0].mxu0
  %v189 = vadd.f32 %v41, %v188
  %v190 = vpop.f32.mrb[0].mxu0
  %v191 = vpop.f32.mrb[0].mxu0
  %v192 = vadd.f32 %v41, %v191
  %v193 = vpop.f32.mrb[0].mxu0
  %194 = vmatprep.mubr.bf16.mxu0 0
  %195 = vmatmul.mubr.bf16.gmra.mrb[0].mxu0 %v109
  %v196 = vpop.f32.mrb[0].mxu0
  %v197 = vadd.f32 %v41, %v196
  %v198 = vpop.f32.mrb[0].mxu0
  %v199 = vpop.f32.mrb[0].mxu0
  %v200 = vadd.f32 %v41, %v199
  %v201 = vpop.f32.mrb[0].mxu0
  %202 = vmatprep.mubr.bf16.mxu0 0
  %203 = vmatmul.mubr.bf16.gmra.mrb[0].mxu0 %v112
  %v204 = vpop.f32.mrb[0].mxu0
  %v205 = vadd.f32 %v41, %v204
  %v206 = vpop.f32.mrb[0].mxu0
  %v207 = vpop.f32.mrb[0].mxu0
  %v208 = vadd.f32 %v41, %v207
  %v209 = vpop.f32.mrb[0].mxu0
  %210 = vdwg.mxu0
  %v211 = vld [vmem:[%s3] sm:$0xf]
  %v212 = vld [vmem:[%s3 + $0x4] sm:$0xf]
  %v213 = vld [vmem:[%s3 + $0x8] sm:$0xf]
  %v214 = vld [vmem:[%s3 + $0xc] sm:$0xf]
  %v215 = vld [vmem:[%s3 + $0x10] sm:$0xf]
  %v216 = vld [vmem:[%s3 + $0x14] sm:$0xf]
  %v217 = vld [vmem:[%s3 + $0x18] sm:$0xf]
  %v218 = vld [vmem:[%s3 + $0x1c] sm:$0xf]
  %v219 = vld [vmem:[%s3 + $0x20] sm:$0xf]
  %v220 = vld [vmem:[%s3 + $0x24] sm:$0xf]
  %v221 = vld [vmem:[%s3 + $0x28] sm:$0xf]
  %v222 = vld [vmem:[%s3 + $0x2c] sm:$0xf]
  %v223 = vld [vmem:[%s3 + $0x30] sm:$0xf]
  %v224 = vld [vmem:[%s3 + $0x34] sm:$0xf]
  %v225 = vld [vmem:[%s3 + $0x38] sm:$0xf]
  %v226 = vld [vmem:[%s3 + $0x3c] sm:$0xf]
  %v227 = vunpack.c.l.bf16 %v211
  %v228 = vunpack.c.l.bf16 %v212
  %v229 = vunpack.c.l.bf16 %v213
  %v230 = vunpack.c.l.bf16 %v214
  %v231 = vunpack.c.l.bf16 %v215
  %v232 = vunpack.c.l.bf16 %v216
  %v233 = vunpack.c.l.bf16 %v217
  %v234 = vunpack.c.l.bf16 %v218
  %v235 = vunpack.c.l.bf16 %v219
  %v236 = vunpack.c.l.bf16 %v220
  %v237 = vunpack.c.l.bf16 %v221
  %v238 = vunpack.c.l.bf16 %v222
  %v239 = vunpack.c.l.bf16 %v223
  %v240 = vunpack.c.l.bf16 %v224
  %v241 = vunpack.c.l.bf16 %v225
  %v242 = vunpack.c.l.bf16 %v226
  %v243 = vadd.f32 %v149, %v227
  %v244 = vadd.f32 %v152, %v228
  %v245 = vadd.f32 %v157, %v229
  %v246 = vadd.f32 %v160, %v230
  %v247 = vadd.f32 %v165, %v231
  %v248 = vadd.f32 %v168, %v232
  %v249 = vadd.f32 %v173, %v233
  %v250 = vadd.f32 %v176, %v234
  %v251 = vadd.f32 %v181, %v235
  %v252 = vadd.f32 %v184, %v236
  %v253 = vadd.f32 %v189, %v237
  %v254 = vadd.f32 %v192, %v238
  %v255 = vadd.f32 %v197, %v239
  %v256 = vadd.f32 %v200, %v240
  %v257 = vadd.f32 %v205, %v241
  %v258 = vadd.f32 %v208, %v242
  %v259 = vmax.f32 %v243, 0.0
  %v260 = vmax.f32 %v244, 0.0
  %v261 = vmax.f32 %v245, 0.0
  %v262 = vmax.f32 %v246, 0.0
  %v263 = vmax.f32 %v247, 0.0
  %v264 = vmax.f32 %v248, 0.0
  %v265 = vmax.f32 %v249, 0.0
  %v266 = vmax.f32 %v250, 0.0
  %v267 = vmax.f32 %v251, 0.0
  %v268 = vmax.f32 %v252, 0.0
  %v269 = vmax.f32 %v253, 0.0
  %v270 = vmax.f32 %v254, 0.0
  %v271 = vmax.f32 %v255, 0.0
  %v272 = vmax.f32 %v256, 0.0
  %v273 = vmax.f32 %v257, 0.0
  %v274 = vmax.f32 %v258, 0.0
  %v275 = vpack.c.bf16 %v260, %v259
  %v276 = vpack.c.bf16 %v262, %v261
  %v277 = vpack.c.bf16 %v264, %v263
  %v278 = vpack.c.bf16 %v266, %v265
  %v279 = vpack.c.bf16 %v268, %v267
  %v280 = vpack.c.bf16 %v270, %v269
  %v281 = vpack.c.bf16 %v272, %v271
  %v282 = vpack.c.bf16 %v274, %v273
  %v291 = vunpack.c.l.b16 %v275
  %v292 = vunpack.c.h.b16 %v275
  %v293 = vunpack.c.l.b16 %v276
  %v294 = vunpack.c.h.b16 %v276
  %v295 = vunpack.c.l.b16 %v277
  %v296 = vunpack.c.h.b16 %v277
  %v297 = vunpack.c.l.b16 %v278
  %v298 = vunpack.c.h.b16 %v278
  %v299 = vunpack.c.l.b16 %v279
  %v300 = vunpack.c.h.b16 %v279
  %v301 = vunpack.c.l.b16 %v280
  %v302 = vunpack.c.h.b16 %v280
  %v303 = vunpack.c.l.b16 %v281
  %v304 = vunpack.c.h.b16 %v281
  %v305 = vunpack.c.l.b16 %v282
  %v306 = vunpack.c.h.b16 %v282
  %v307 = vpack.c.b16 %v291, %v291
  %v308 = vpack.c.b16 %v292, %v292
  %v309 = vpack.c.b16 %v293, %v293
  %v310 = vpack.c.b16 %v294, %v294
  %v311 = vpack.c.b16 %v295, %v295
  %v312 = vpack.c.b16 %v296, %v296
  %v313 = vpack.c.b16 %v297, %v297
  %v314 = vpack.c.b16 %v298, %v298
  %v315 = vpack.c.b16 %v299, %v299
  %v316 = vpack.c.b16 %v300, %v300
  %v317 = vpack.c.b16 %v301, %v301
  %v318 = vpack.c.b16 %v302, %v302
  %v319 = vpack.c.b16 %v303, %v303
  %v320 = vpack.c.b16 %v304, %v304
  %v321 = vpack.c.b16 %v305, %v305
  %v322 = vpack.c.b16 %v306, %v306
  %339 = vst [vmem:[%s4] sm:$0xf] %v307
  %340 = vst [vmem:[%s4 + $0x4] sm:$0xf] %v308
  %341 = vst [vmem:[%s4 + $0x8] sm:$0xf] %v309
  %342 = vst [vmem:[%s4 + $0xc] sm:$0xf] %v310
  %343 = vst [vmem:[%s4 + $0x10] sm:$0xf] %v311
  %344 = vst [vmem:[%s4 + $0x14] sm:$0xf] %v312
  %345 = vst [vmem:[%s4 + $0x18] sm:$0xf] %v313
  %346 = vst [vmem:[%s4 + $0x1c] sm:$0xf] %v314
  %347 = vst [vmem:[%s4 + $0x20] sm:$0xf] %v315
  %348 = vst [vmem:[%s4 + $0x24] sm:$0xf] %v316
  %349 = vst [vmem:[%s4 + $0x28] sm:$0xf] %v317
  %350 = vst [vmem:[%s4 + $0x2c] sm:$0xf] %v318
  %351 = vst [vmem:[%s4 + $0x30] sm:$0xf] %v319
  %352 = vst [vmem:[%s4 + $0x34] sm:$0xf] %v320
  %353 = vst [vmem:[%s4 + $0x38] sm:$0xf] %v321
  %354 = vst [vmem:[%s4 + $0x3c] sm:$0xf] %v322
  // Predicated region
  $region18: #{encoder_forward.26} parent=0 // pred_check
    _
  $region19: #{encoder_forward.26} parent=0 // pred_check_branch
    %356 = sbr.rel (0) target = $region21
  $region20: #{encoder_forward.26} parent=0 // pred_region
    _
  $region21: #{encoder_forward.26} parent=0 // pred_fallthru
    _
  // Predicated region
  $region22: #{encoder_forward.26} parent=0 // pred_check
    _
  $region23: #{encoder_forward.26} parent=0 // pred_check_branch
    %358 = sbr.rel (0) target = $region25
  $region24: #{encoder_forward.26} parent=0 // pred_region
    _
  $region25: #{encoder_forward.26} parent=0 // pred_fallthru
    _

// kernel: encoder_forward.27
$region0: #{encoder_forward.27}
  #allocation0 [shape = 'u32[]', space=smem, size = 0x4, offset = 0x4, fixed_abs, tag = 'smem constant byte address 0x4 - core index']
  #allocation1 [shape = 'u32[144,128]{1,0:T(1,128)}', space=vmem, size = 0x12000, scoped, tag = 'internal scratch']
  %s0 = inlined_call_operand.vmem [shape: bf16[128,64], index: 0, kind: input, shape index: {}]
  %s1 = inlined_call_operand.vmem [shape: bf16[64,128], index: 1, kind: input, shape index: {}]
  %s2 = inlined_call_operand.vmem [shape: f32[1,128], index: 2, kind: input, shape index: {}]
  %s3 = inlined_call_operand.vmem [shape: bf16[128,128], index: 3, kind: output, shape index: {}]
  %s4 = sld [smem:[#allocation0]]
  $region22: #{encoder_forward.27} parent=0
    _
  %s6 = ssub.s32 1, %s4
  %s7 = scalar_select 0, %s6, %s4
  // Predicated region
  $region2: #{encoder_forward.27} parent=0 // pred_check
    _
  $region3: #{encoder_forward.27} parent=0 // pred_check_branch
    %9 = sbr.rel (0) target = $region5
  $region4: #{encoder_forward.27} parent=0 // pred_region
    _
  $region5: #{encoder_forward.27} parent=0 // pred_fallthru
    _
  // Predicated region
  $region6: #{encoder_forward.27} parent=0 // pred_check
    _
  $region7: #{encoder_forward.27} parent=0 // pred_check_branch
    %11 = sbr.rel (0) target = $region9
  $region8: #{encoder_forward.27} parent=0 // pred_region
    _
  $region9: #{encoder_forward.27} parent=0 // pred_fallthru
    _
  // Predicated region
  $region10: #{encoder_forward.27} parent=0 // pred_check
    _
  $region11: #{encoder_forward.27} parent=0 // pred_check_branch
    %13 = sbr.rel (0) target = $region13
  $region12: #{encoder_forward.27} parent=0 // pred_region
    _
  $region13: #{encoder_forward.27} parent=0 // pred_fallthru
    _
  %v15 = vld [vmem:[%s0] sm:$0xf]
  %v16 = vld [vmem:[%s0 + $0x4] sm:$0xf]
  %v17 = vld [vmem:[%s0 + $0x8] sm:$0xf]
  %v18 = vld [vmem:[%s0 + $0xc] sm:$0xf]
  %v19 = vld [vmem:[%s0 + $0x10] sm:$0xf]
  %v20 = vld [vmem:[%s0 + $0x14] sm:$0xf]
  %v21 = vld [vmem:[%s0 + $0x18] sm:$0xf]
  %v22 = vld [vmem:[%s0 + $0x1c] sm:$0xf]
  %v23 = vld [vmem:[%s0 + $0x20] sm:$0xf]
  %v24 = vld [vmem:[%s0 + $0x24] sm:$0xf]
  %v25 = vld [vmem:[%s0 + $0x28] sm:$0xf]
  %v26 = vld [vmem:[%s0 + $0x2c] sm:$0xf]
  %v27 = vld [vmem:[%s0 + $0x30] sm:$0xf]
  %v28 = vld [vmem:[%s0 + $0x34] sm:$0xf]
  %v29 = vld [vmem:[%s0 + $0x38] sm:$0xf]
  %v30 = vld [vmem:[%s0 + $0x3c] sm:$0xf]
  %v31 = vld [vmem:[%s1] sm:$0xf]
  %v32 = vld [vmem:[%s1 + $0x4] sm:$0xf]
  %v33 = vld [vmem:[%s1 + $0x8] sm:$0xf]
  %v34 = vld [vmem:[%s1 + $0xc] sm:$0xf]
  %v35 = vld [vmem:[%s1 + $0x10] sm:$0xf]
  %v36 = vld [vmem:[%s1 + $0x14] sm:$0xf]
  %v37 = vld [vmem:[%s1 + $0x18] sm:$0xf]
  %v38 = vld [vmem:[%s1 + $0x1c] sm:$0xf]
  %v39 = vld [vmem:[%s2] sm:$0x1]
  %v41 = vlaneseq
  %v42 = vshrl.u32 %v41, 7
  %v43 = vsub.s32 0, %v42
  %v44 = vrot.slane %v39, %v43
  %v62 = vunpack.c.l.b16 %v15
  %v63 = vunpack.c.l.b16 %v16
  %v64 = vunpack.c.l.b16 %v17
  %v65 = vunpack.c.l.b16 %v18
  %v66 = vunpack.c.l.b16 %v19
  %v67 = vunpack.c.l.b16 %v20
  %v68 = vunpack.c.l.b16 %v21
  %v69 = vunpack.c.l.b16 %v22
  %v70 = vunpack.c.l.b16 %v23
  %v71 = vunpack.c.l.b16 %v24
  %v72 = vunpack.c.l.b16 %v25
  %v73 = vunpack.c.l.b16 %v26
  %v74 = vunpack.c.l.b16 %v27
  %v75 = vunpack.c.l.b16 %v28
  %v76 = vunpack.c.l.b16 %v29
  %v77 = vunpack.c.l.b16 %v30
  %v78 = vpack.c.b16 %v63, %v62
  %v79 = vpack.c.b16 %v65, %v64
  %v80 = vpack.c.b16 %v67, %v66
  %v81 = vpack.c.b16 %v69, %v68
  %v82 = vpack.c.b16 %v71, %v70
  %v83 = vpack.c.b16 %v73, %v72
  %v84 = vpack.c.b16 %v75, %v74
  %v85 = vpack.c.b16 %v77, %v76
  %v94 = vunpack.c.l.b16 %v31
  %v95 = vunpack.c.l.b16 %v32
  %v96 = vunpack.c.l.b16 %v33
  %v97 = vunpack.c.l.b16 %v34
  %v98 = vunpack.c.l.b16 %v35
  %v99 = vunpack.c.l.b16 %v36
  %v100 = vunpack.c.l.b16 %v37
  %v101 = vunpack.c.l.b16 %v38
  %v102 = vpack.c.b16 %v95, %v94
  %v103 = vpack.c.b16 %v97, %v96
  %v104 = vpack.c.b16 %v99, %v98
  %v105 = vpack.c.b16 %v101, %v100
  %vm110 = vcmask 523264
  %v112 = vsel %vm110, %v78, 0
  %v115 = vsel %vm110, %v79, 0
  %v118 = vsel %vm110, %v80, 0
  %v121 = vsel %vm110, %v81, 0
  %v124 = vsel %vm110, %v82, 0
  %v127 = vsel %vm110, %v83, 0
  %v130 = vsel %vm110, %v84, 0
  %v133 = vsel %vm110, %v85, 0
  %135 = vmatprep.subr.bf16.mxu0 0
  %136 = vmatpush1.bf16.msra.mxu0 %v102
  %137 = vmatprep.subr.bf16.mxu0 0
  %138 = vmatpush1.bf16.msra.mxu0 %v103
  %139 = vmatprep.subr.bf16.mxu0 0
  %140 = vmatpush1.bf16.msra.mxu0 %v104
  %141 = vmatprep.subr.bf16.mxu0 0
  %142 = vmatpush1.bf16.msra.mxu0 %v105
  %143 = vmatprep.subr.bf16.mxu0 0
  %144 = vmatpush1.bf16.msra.mxu0 0
  %145 = vmatprep.subr.bf16.mxu0 0
  %146 = vmatpush1.bf16.msra.mxu0 0
  %147 = vmatprep.subr.bf16.mxu0 0
  %148 = vmatpush1.bf16.msra.mxu0 0
  %149 = vmatprep.subr.bf16.mxu0 0
  %150 = vmatpush1.bf16.msra.mxu0 0
  %151 = vmatprep.subr.bf16.mxu0 0
  %152 = vmatpush1.bf16.msra.mxu0 0
  %153 = vmatprep.subr.bf16.mxu0 0
  %154 = vmatpush1.bf16.msra.mxu0 0
  %155 = vmatprep.subr.bf16.mxu0 0
  %156 = vmatpush1.bf16.msra.mxu0 0
  %157 = vmatprep.subr.bf16.mxu0 0
  %158 = vmatpush1.bf16.msra.mxu0 0
  %159 = vmatprep.subr.bf16.mxu0 0
  %160 = vmatpush1.bf16.msra.mxu0 0
  %161 = vmatprep.subr.bf16.mxu0 0
  %162 = vmatpush1.bf16.msra.mxu0 0
  %163 = vmatprep.subr.bf16.mxu0 0
  %164 = vmatpush1.bf16.msra.mxu0 0
  %165 = vmatprep.subr.bf16.mxu0 0
  %166 = vmatpush1.bf16.msra.mxu0 0
  %167 = vmatprep.mubr.bf16.mxu0 0
  %168 = vmatmul.mubr.bf16.gmra.mrb[0].mxu0 %v112
  %v169 = vpop.f32.mrb[0].mxu0
  %v170 = vadd.f32 %v44, %v169
  %v171 = vpop.f32.mrb[0].mxu0
  %v172 = vpop.f32.mrb[0].mxu0
  %v173 = vadd.f32 %v44, %v172
  %v174 = vpop.f32.mrb[0].mxu0
  %175 = vmatprep.mubr.bf16.mxu0 0
  %176 = vmatmul.mubr.bf16.gmra.mrb[0].mxu0 %v115
  %v177 = vpop.f32.mrb[0].mxu0
  %v178 = vadd.f32 %v44, %v177
  %v179 = vpop.f32.mrb[0].mxu0
  %v180 = vpop.f32.mrb[0].mxu0
  %v181 = vadd.f32 %v44, %v180
  %v182 = vpop.f32.mrb[0].mxu0
  %183 = vmatprep.mubr.bf16.mxu0 0
  %184 = vmatmul.mubr.bf16.gmra.mrb[0].mxu0 %v118
  %v185 = vpop.f32.mrb[0].mxu0
  %v186 = vadd.f32 %v44, %v185
  %v187 = vpop.f32.mrb[0].mxu0
  %v188 = vpop.f32.mrb[0].mxu0
  %v189 = vadd.f32 %v44, %v188
  %v190 = vpop.f32.mrb[0].mxu0
  %191 = vmatprep.mubr.bf16.mxu0 0
  %192 = vmatmul.mubr.bf16.gmra.mrb[0].mxu0 %v121
  %v193 = vpop.f32.mrb[0].mxu0
  %v194 = vadd.f32 %v44, %v193
  %v195 = vpop.f32.mrb[0].mxu0
  %v196 = vpop.f32.mrb[0].mxu0
  %v197 = vadd.f32 %v44, %v196
  %v198 = vpop.f32.mrb[0].mxu0
  %199 = vmatprep.mubr.bf16.mxu0 0
  %200 = vmatmul.mubr.bf16.gmra.mrb[0].mxu0 %v124
  %v201 = vpop.f32.mrb[0].mxu0
  %v202 = vadd.f32 %v44, %v201
  %v203 = vpop.f32.mrb[0].mxu0
  %v204 = vpop.f32.mrb[0].mxu0
  %v205 = vadd.f32 %v44, %v204
  %v206 = vpop.f32.mrb[0].mxu0
  %207 = vmatprep.mubr.bf16.mxu0 0
  %208 = vmatmul.mubr.bf16.gmra.mrb[0].mxu0 %v127
  %v209 = vpop.f32.mrb[0].mxu0
  %v210 = vadd.f32 %v44, %v209
  %v211 = vpop.f32.mrb[0].mxu0
  %v212 = vpop.f32.mrb[0].mxu0
  %v213 = vadd.f32 %v44, %v212
  %v214 = vpop.f32.mrb[0].mxu0
  %215 = vmatprep.mubr.bf16.mxu0 0
  %216 = vmatmul.mubr.bf16.gmra.mrb[0].mxu0 %v130
  %v217 = vpop.f32.mrb[0].mxu0
  %v218 = vadd.f32 %v44, %v217
  %v219 = vpop.f32.mrb[0].mxu0
  %v220 = vpop.f32.mrb[0].mxu0
  %v221 = vadd.f32 %v44, %v220
  %v222 = vpop.f32.mrb[0].mxu0
  %223 = vmatprep.mubr.bf16.mxu0 0
  %224 = vmatmul.mubr.bf16.gmra.mrb[0].mxu0 %v133
  %v225 = vpop.f32.mrb[0].mxu0
  %v226 = vadd.f32 %v44, %v225
  %v227 = vpop.f32.mrb[0].mxu0
  %v228 = vpop.f32.mrb[0].mxu0
  %v229 = vadd.f32 %v44, %v228
  %v230 = vpop.f32.mrb[0].mxu0
  %231 = vdwg.mxu0
  %v232 = vmax.f32 %v170, 0.0
  %v233 = vmax.f32 %v173, 0.0
  %v234 = vmax.f32 %v178, 0.0
  %v235 = vmax.f32 %v181, 0.0
  %v236 = vmax.f32 %v186, 0.0
  %v237 = vmax.f32 %v189, 0.0
  %v238 = vmax.f32 %v194, 0.0
  %v239 = vmax.f32 %v197, 0.0
  %v240 = vmax.f32 %v202, 0.0
  %v241 = vmax.f32 %v205, 0.0
  %v242 = vmax.f32 %v210, 0.0
  %v243 = vmax.f32 %v213, 0.0
  %v244 = vmax.f32 %v218, 0.0
  %v245 = vmax.f32 %v221, 0.0
  %v246 = vmax.f32 %v226, 0.0
  %v247 = vmax.f32 %v229, 0.0
  %v248 = vpack.c.bf16 %v233, %v232
  %v249 = vpack.c.bf16 %v235, %v234
  %v250 = vpack.c.bf16 %v237, %v236
  %v251 = vpack.c.bf16 %v239, %v238
  %v252 = vpack.c.bf16 %v241, %v240
  %v253 = vpack.c.bf16 %v243, %v242
  %v254 = vpack.c.bf16 %v245, %v244
  %v255 = vpack.c.bf16 %v247, %v246
  %v264 = vunpack.c.l.b16 %v248
  %v265 = vunpack.c.h.b16 %v248
  %v266 = vunpack.c.l.b16 %v249
  %v267 = vunpack.c.h.b16 %v249
  %v268 = vunpack.c.l.b16 %v250
  %v269 = vunpack.c.h.b16 %v250
  %v270 = vunpack.c.l.b16 %v251
  %v271 = vunpack.c.h.b16 %v251
  %v272 = vunpack.c.l.b16 %v252
  %v273 = vunpack.c.h.b16 %v252
  %v274 = vunpack.c.l.b16 %v253
  %v275 = vunpack.c.h.b16 %v253
  %v276 = vunpack.c.l.b16 %v254
  %v277 = vunpack.c.h.b16 %v254
  %v278 = vunpack.c.l.b16 %v255
  %v279 = vunpack.c.h.b16 %v255
  %v280 = vpack.c.b16 %v264, %v264
  %v281 = vpack.c.b16 %v265, %v265
  %v282 = vpack.c.b16 %v266, %v266
  %v283 = vpack.c.b16 %v267, %v267
  %v284 = vpack.c.b16 %v268, %v268
  %v285 = vpack.c.b16 %v269, %v269
  %v286 = vpack.c.b16 %v270, %v270
  %v287 = vpack.c.b16 %v271, %v271
  %v288 = vpack.c.b16 %v272, %v272
  %v289 = vpack.c.b16 %v273, %v273
  %v290 = vpack.c.b16 %v274, %v274
  %v291 = vpack.c.b16 %v275, %v275
  %v292 = vpack.c.b16 %v276, %v276
  %v293 = vpack.c.b16 %v277, %v277
  %v294 = vpack.c.b16 %v278, %v278
  %v295 = vpack.c.b16 %v279, %v279
  %312 = vst [vmem:[%s3] sm:$0xf] %v280
  %313 = vst [vmem:[%s3 + $0x4] sm:$0xf] %v281
  %314 = vst [vmem:[%s3 + $0x8] sm:$0xf] %v282
  %315 = vst [vmem:[%s3 + $0xc] sm:$0xf] %v283
  %316 = vst [vmem:[%s3 + $0x10] sm:$0xf] %v284
  %317 = vst [vmem:[%s3 + $0x14] sm:$0xf] %v285
  %318 = vst [vmem:[%s3 + $0x18] sm:$0xf] %v286
  %319 = vst [vmem:[%s3 + $0x1c] sm:$0xf] %v287
  %320 = vst [vmem:[%s3 + $0x20] sm:$0xf] %v288
  %321 = vst [vmem:[%s3 + $0x24] sm:$0xf] %v289
  %322 = vst [vmem:[%s3 + $0x28] sm:$0xf] %v290
  %323 = vst [vmem:[%s3 + $0x2c] sm:$0xf] %v291
  %324 = vst [vmem:[%s3 + $0x30] sm:$0xf] %v292
  %325 = vst [vmem:[%s3 + $0x34] sm:$0xf] %v293
  %326 = vst [vmem:[%s3 + $0x38] sm:$0xf] %v294
  %327 = vst [vmem:[%s3 + $0x3c] sm:$0xf] %v295
  // Predicated region
  $region14: #{encoder_forward.27} parent=0 // pred_check
    _
  $region15: #{encoder_forward.27} parent=0 // pred_check_branch
    %329 = sbr.rel (0) target = $region17
  $region16: #{encoder_forward.27} parent=0 // pred_region
    _
  $region17: #{encoder_forward.27} parent=0 // pred_fallthru
    _
  // Predicated region
  $region18: #{encoder_forward.27} parent=0 // pred_check
    _
  $region19: #{encoder_forward.27} parent=0 // pred_check_branch
    %331 = sbr.rel (0) target = $region21
  $region20: #{encoder_forward.27} parent=0 // pred_region
    _
  $region21: #{encoder_forward.27} parent=0 // pred_fallthru
    _

// kernel: encoder_forward.28
$region0: #{encoder_forward.28}
  #allocation0 [shape = 'u32[]', space=smem, size = 0x4, offset = 0x4, fixed_abs, tag = 'smem constant byte address 0x4 - core index']
  #allocation1 [shape = 'u32[144,128]{1,0:T(1,128)}', space=vmem, size = 0x12000, scoped, tag = 'internal scratch']
  %s0 = inlined_call_operand.vmem [shape: bf16[32,288], index: 0, kind: input, shape index: {}]
  %s1 = inlined_call_operand.vmem [shape: bf16[288,128], index: 1, kind: input, shape index: {}]
  %s2 = inlined_call_operand.vmem [shape: f32[1,128], index: 2, kind: input, shape index: {}]
  %s3 = inlined_call_operand.vmem [shape: bf16[32,128], index: 3, kind: output, shape index: {}]
  %s4 = sld [smem:[#allocation0]]
  $region22: #{encoder_forward.28} parent=0
    _
  %s6 = ssub.s32 1, %s4
  %s7 = scalar_select 0, %s6, %s4
  // Predicated region
  $region2: #{encoder_forward.28} parent=0 // pred_check
    _
  $region3: #{encoder_forward.28} parent=0 // pred_check_branch
    %9 = sbr.rel (0) target = $region5
  $region4: #{encoder_forward.28} parent=0 // pred_region
    _
  $region5: #{encoder_forward.28} parent=0 // pred_fallthru
    _
  // Predicated region
  $region6: #{encoder_forward.28} parent=0 // pred_check
    _
  $region7: #{encoder_forward.28} parent=0 // pred_check_branch
    %11 = sbr.rel (0) target = $region9
  $region8: #{encoder_forward.28} parent=0 // pred_region
    _
  $region9: #{encoder_forward.28} parent=0 // pred_fallthru
    _
  // Predicated region
  $region10: #{encoder_forward.28} parent=0 // pred_check
    _
  $region11: #{encoder_forward.28} parent=0 // pred_check_branch
    %13 = sbr.rel (0) target = $region13
  $region12: #{encoder_forward.28} parent=0 // pred_region
    _
  $region13: #{encoder_forward.28} parent=0 // pred_fallthru
    _
  %v15 = vld [vmem:[%s0] sm:$0xff]
  %v16 = vld [vmem:[%s0 + $0x8] sm:$0xf]
  %v17 = vld [vmem:[%s0 + $0xc] sm:$0xff]
  %v18 = vld [vmem:[%s0 + $0x14] sm:$0xf]
  %v19 = vld [vmem:[%s0 + $0x18] sm:$0xff]
  %v20 = vld [vmem:[%s0 + $0x20] sm:$0xf]
  %v21 = vld [vmem:[%s0 + $0x24] sm:$0xff]
  %v22 = vld [vmem:[%s0 + $0x2c] sm:$0xf]
  %v23 = vld [vmem:[%s1] sm:$0xf]
  %v24 = vld [vmem:[%s1 + $0x4] sm:$0xf]
  %v25 = vld [vmem:[%s1 + $0x8] sm:$0xf]
  %v26 = vld [vmem:[%s1 + $0xc] sm:$0xf]
  %v27 = vld [vmem:[%s1 + $0x10] sm:$0xf]
  %v28 = vld [vmem:[%s1 + $0x14] sm:$0xf]
  %v29 = vld [vmem:[%s1 + $0x18] sm:$0xf]
  %v30 = vld [vmem:[%s1 + $0x1c] sm:$0xf]
  %v31 = vld [vmem:[%s1 + $0x20] sm:$0xf]
  %v32 = vld [vmem:[%s1 + $0x24] sm:$0xf]
  %v33 = vld [vmem:[%s1 + $0x28] sm:$0xf]
  %v34 = vld [vmem:[%s1 + $0x2c] sm:$0xf]
  %v35 = vld [vmem:[%s1 + $0x30] sm:$0xf]
  %v36 = vld [vmem:[%s1 + $0x34] sm:$0xf]
  %v37 = vld [vmem:[%s1 + $0x38] sm:$0xf]
  %v38 = vld [vmem:[%s1 + $0x3c] sm:$0xf]
  %v39 = vld [vmem:[%s1 + $0x40] sm:$0xf]
  %v40 = vld [vmem:[%s1 + $0x44] sm:$0xf]
  %v41 = vld [vmem:[%s1 + $0x48] sm:$0xf]
  %v42 = vld [vmem:[%s1 + $0x4c] sm:$0xf]
  %v43 = vld [vmem:[%s1 + $0x50] sm:$0xf]
  %v44 = vld [vmem:[%s1 + $0x54] sm:$0xf]
  %v45 = vld [vmem:[%s1 + $0x58] sm:$0xf]
  %v46 = vld [vmem:[%s1 + $0x5c] sm:$0xf]
  %v47 = vld [vmem:[%s1 + $0x60] sm:$0xf]
  %v48 = vld [vmem:[%s1 + $0x64] sm:$0xf]
  %v49 = vld [vmem:[%s1 + $0x68] sm:$0xf]
  %v50 = vld [vmem:[%s1 + $0x6c] sm:$0xf]
  %v51 = vld [vmem:[%s1 + $0x70] sm:$0xf]
  %v52 = vld [vmem:[%s1 + $0x74] sm:$0xf]
  %v53 = vld [vmem:[%s1 + $0x78] sm:$0xf]
  %v54 = vld [vmem:[%s1 + $0x7c] sm:$0xf]
  %v55 = vld [vmem:[%s1 + $0x80] sm:$0xf]
  %v56 = vld [vmem:[%s1 + $0x84] sm:$0xf]
  %v57 = vld [vmem:[%s1 + $0x88] sm:$0xf]
  %v58 = vld [vmem:[%s1 + $0x8c] sm:$0xf]
  %v59 = vld [vmem:[%s2] sm:$0x1]
  %v61 = vlaneseq
  %v62 = vshrl.u32 %v61, 7
  %v63 = vsub.s32 0, %v62
  %v64 = vrot.slane %v59, %v63
  %v74 = vunpack.c.l.b16 %v15
  %v75 = vunpack.c.h.b16 %v15
  %v76 = vunpack.c.l.b16 %v16
  %v77 = vunpack.c.l.b16 %v17
  %v78 = vunpack.c.h.b16 %v17
  %v79 = vunpack.c.l.b16 %v18
  %v80 = vunpack.c.l.b16 %v19
  %v81 = vunpack.c.h.b16 %v19
  %v82 = vunpack.c.l.b16 %v20
  %v83 = vunpack.c.l.b16 %v21
  %v84 = vunpack.c.h.b16 %v21
  %v85 = vunpack.c.l.b16 %v22
  %v86 = vpack.c.b16 %v77, %v74
  %v87 = vpack.c.b16 %v78, %v75
  %v88 = vpack.c.b16 %v79, %v76
  %v89 = vpack.c.b16 %v83, %v80
  %v90 = vpack.c.b16 %v84, %v81
  %v91 = vpack.c.b16 %v85, %v82
  %v132 = vunpack.c.l.b16 %v23
  %v133 = vunpack.c.l.b16 %v24
  %v134 = vunpack.c.l.b16 %v25
  %v135 = vunpack.c.l.b16 %v26
  %v136 = vunpack.c.l.b16 %v27
  %v137 = vunpack.c.l.b16 %v28
  %v138 = vunpack.c.l.b16 %v29
  %v139 = vunpack.c.l.b16 %v30
  %v140 = vunpack.c.l.b16 %v31
  %v141 = vunpack.c.l.b16 %v32
  %v142 = vunpack.c.l.b16 %v33
  %v143 = vunpack.c.l.b16 %v34
  %v144 = vunpack.c.l.b16 %v35
  %v145 = vunpack.c.l.b16 %v36
  %v146 = vunpack.c.l.b16 %v37
  %v147 = vunpack.c.l.b16 %v38
  %v148 = vunpack.c.l.b16 %v39
  %v149 = vunpack.c.l.b16 %v40
  %v150 = vunpack.c.l.b16 %v41
  %v151 = vunpack.c.l.b16 %v42
  %v152 = vunpack.c.l.b16 %v43
  %v153 = vunpack.c.l.b16 %v44
  %v154 = vunpack.c.l.b16 %v45
  %v155 = vunpack.c.l.b16 %v46
  %v156 = vunpack.c.l.b16 %v47
  %v157 = vunpack.c.l.b16 %v48
  %v158 = vunpack.c.l.b16 %v49
  %v159 = vunpack.c.l.b16 %v50
  %v160 = vunpack.c.l.b16 %v51
  %v161 = vunpack.c.l.b16 %v52
  %v162 = vunpack.c.l.b16 %v53
  %v163 = vunpack.c.l.b16 %v54
  %v164 = vunpack.c.l.b16 %v55
  %v165 = vunpack.c.l.b16 %v56
  %v166 = vunpack.c.l.b16 %v57
  %v167 = vunpack.c.l.b16 %v58
  %v168 = vpack.c.b16 %v133, %v132
  %v169 = vpack.c.b16 %v135, %v134
  %v170 = vpack.c.b16 %v137, %v136
  %v171 = vpack.c.b16 %v139, %v138
  %v172 = vpack.c.b16 %v141, %v140
  %v173 = vpack.c.b16 %v143, %v142
  %v174 = vpack.c.b16 %v145, %v144
  %v175 = vpack.c.b16 %v147, %v146
  %v176 = vpack.c.b16 %v149, %v148
  %v177 = vpack.c.b16 %v151, %v150
  %v178 = vpack.c.b16 %v153, %v152
  %v179 = vpack.c.b16 %v155, %v154
  %v180 = vpack.c.b16 %v157, %v156
  %v181 = vpack.c.b16 %v159, %v158
  %v182 = vpack.c.b16 %v161, %v160
  %v183 = vpack.c.b16 %v163, %v162
  %v184 = vpack.c.b16 %v165, %v164
  %v185 = vpack.c.b16 %v167, %v166
  %vm204 = vcmask 261120
  %v206 = vsel %vm204, %v88, 0
  %v209 = vsel %vm204, %v91, 0
  %211 = vmatprep.subr.bf16.mxu0 0
  %212 = vmatpush1.bf16.msra.mxu0 %v168
  %213 = vmatprep.subr.bf16.mxu0 0
  %214 = vmatpush1.bf16.msra.mxu0 %v169
  %215 = vmatprep.subr.bf16.mxu0 0
  %216 = vmatpush1.bf16.msra.mxu0 %v170
  %217 = vmatprep.subr.bf16.mxu0 0
  %218 = vmatpush1.bf16.msra.mxu0 %v171
  %219 = vmatprep.subr.bf16.mxu0 0
  %220 = vmatpush1.bf16.msra.mxu0 %v172
  %221 = vmatprep.subr.bf16.mxu0 0
  %222 = vmatpush1.bf16.msra.mxu0 %v173
  %223 = vmatprep.subr.bf16.mxu0 0
  %224 = vmatpush1.bf16.msra.mxu0 %v174
  %225 = vmatprep.subr.bf16.mxu0 0
  %226 = vmatpush1.bf16.msra.mxu0 %v175
  %227 = vmatprep.subr.bf16.mxu0 0
  %228 = vmatpush1.bf16.msra.mxu0 %v176
  %229 = vmatprep.subr.bf16.mxu0 0
  %230 = vmatpush1.bf16.msra.mxu0 %v177
  %231 = vmatprep.subr.bf16.mxu0 0
  %232 = vmatpush1.bf16.msra.mxu0 %v178
  %233 = vmatprep.subr.bf16.mxu0 0
  %234 = vmatpush1.bf16.msra.mxu0 %v179
  %235 = vmatprep.subr.bf16.mxu0 0
  %236 = vmatpush1.bf16.msra.mxu0 %v180
  %237 = vmatprep.subr.bf16.mxu0 0
  %238 = vmatpush1.bf16.msra.mxu0 %v181
  %239 = vmatprep.subr.bf16.mxu0 0
  %240 = vmatpush1.bf16.msra.mxu0 %v182
  %241 = vmatprep.subr.bf16.mxu0 0
  %242 = vmatpush1.bf16.msra.mxu0 %v183
  %243 = vmatprep.mubr.bf16.mxu0 %v87
  %244 = vmatmul.mubr.bf16.gmra.mrb[0].mxu0 %v86
  %v245 = vpop.f32.mrb[0].mxu0
  %v246 = vadd.f32 %v64, %v245
  %v247 = vpop.f32.mrb[0].mxu0
  %v248 = vpop.f32.mrb[0].mxu0
  %v249 = vadd.f32 %v64, %v248
  %v250 = vpop.f32.mrb[0].mxu0
  %251 = vmatprep.mubr.bf16.mxu0 %v90
  %252 = vmatmul.mubr.bf16.gmra.mrb[0].mxu0 %v89
  %v253 = vpop.f32.mrb[0].mxu0
  %v254 = vadd.f32 %v64, %v253
  %v255 = vpop.f32.mrb[0].mxu0
  %v256 = vpop.f32.mrb[0].mxu0
  %v257 = vadd.f32 %v64, %v256
  %v258 = vpop.f32.mrb[0].mxu0
  %259 = vdwg.mxu0
  %260 = vmatprep.subr.bf16.mxu0 0
  %261 = vmatpush1.bf16.msra.mxu0 %v184
  %262 = vmatprep.subr.bf16.mxu0 0
  %263 = vmatpush1.bf16.msra.mxu0 %v185
  %264 = vmatprep.subr.bf16.mxu0 0
  %265 = vmatpush1.bf16.msra.mxu0 0
  %266 = vmatprep.subr.bf16.mxu0 0
  %267 = vmatpush1.bf16.msra.mxu0 0
  %268 = vmatprep.subr.bf16.mxu0 0
  %269 = vmatpush1.bf16.msra.mxu0 0
  %270 = vmatprep.subr.bf16.mxu0 0
  %271 = vmatpush1.bf16.msra.mxu0 0
  %272 = vmatprep.subr.bf16.mxu0 0
  %273 = vmatpush1.bf16.msra.mxu0 0
  %274 = vmatprep.subr.bf16.mxu0 0
  %275 = vmatpush1.bf16.msra.mxu0 0
  %276 = vmatprep.subr.bf16.mxu0 0
  %277 = vmatpush1.bf16.msra.mxu0 0
  %278 = vmatprep.subr.bf16.mxu0 0
  %279 = vmatpush1.bf16.msra.mxu0 0
  %280 = vmatprep.subr.bf16.mxu0 0
  %281 = vmatpush1.bf16.msra.mxu0 0
  %282 = vmatprep.subr.bf16.mxu0 0
  %283 = vmatpush1.bf16.msra.mxu0 0
  %284 = vmatprep.subr.bf16.mxu0 0
  %285 = vmatpush1.bf16.msra.mxu0 0
  %286 = vmatprep.subr.bf16.mxu0 0
  %287 = vmatpush1.bf16.msra.mxu0 0
  %288 = vmatprep.subr.bf16.mxu0 0
  %289 = vmatpush1.bf16.msra.mxu0 0
  %290 = vmatprep.subr.bf16.mxu0 0
  %291 = vmatpush1.bf16.msra.mxu0 0
  %292 = vmatprep.mubr.bf16.mxu0 0
  %293 = vmatmul.mubr.bf16.gmra.mrb[0].mxu0 %v206
  %v294 = vpop.f32.mrb[0].mxu0
  %v295 = vadd.f32 %v246, %v294
  %v296 = vpop.f32.mrb[0].mxu0
  %v297 = vpop.f32.mrb[0].mxu0
  %v298 = vadd.f32 %v249, %v297
  %v299 = vpop.f32.mrb[0].mxu0
  %300 = vmatprep.mubr.bf16.mxu0 0
  %301 = vmatmul.mubr.bf16.gmra.mrb[0].mxu0 %v209
  %v302 = vpop.f32.mrb[0].mxu0
  %v303 = vadd.f32 %v254, %v302
  %v304 = vpop.f32.mrb[0].mxu0
  %v305 = vpop.f32.mrb[0].mxu0
  %v306 = vadd.f32 %v257, %v305
  %v307 = vpop.f32.mrb[0].mxu0
  %308 = vdwg.mxu0
  %v309 = vmax.f32 %v295, 0.0
  %v310 = vmax.f32 %v298, 0.0
  %v311 = vmax.f32 %v303, 0.0
  %v312 = vmax.f32 %v306, 0.0
  %v313 = vpack.c.bf16 %v310, %v309
  %v314 = vpack.c.bf16 %v312, %v311
  %v317 = vunpack.c.l.b16 %v313
  %v318 = vunpack.c.h.b16 %v313
  %v319 = vunpack.c.l.b16 %v314
  %v320 = vunpack.c.h.b16 %v314
  %v321 = vpack.c.b16 %v317, %v317
  %v322 = vpack.c.b16 %v318, %v318
  %v323 = vpack.c.b16 %v319, %v319
  %v324 = vpack.c.b16 %v320, %v320
  %329 = vst [vmem:[%s3] sm:$0xf] %v321
  %330 = vst [vmem:[%s3 + $0x4] sm:$0xf] %v322
  %331 = vst [vmem:[%s3 + $0x8] sm:$0xf] %v323
  %332 = vst [vmem:[%s3 + $0xc] sm:$0xf] %v324
  // Predicated region
  $region14: #{encoder_forward.28} parent=0 // pred_check
    _
  $region15: #{encoder_forward.28} parent=0 // pred_check_branch
    %334 = sbr.rel (0) target = $region17
  $region16: #{encoder_forward.28} parent=0 // pred_region
    _
  $region17: #{encoder_forward.28} parent=0 // pred_fallthru
    _
  // Predicated region
  $region18: #{encoder_forward.28} parent=0 // pred_check
    _
  $region19: #{encoder_forward.28} parent=0 // pred_check_branch
    %336 = sbr.rel (0) target = $region21
  $region20: #{encoder_forward.28} parent=0 // pred_region
    _
  $region21: #{encoder_forward.28} parent=0 // pred_fallthru
    _

// kernel: encoder_forward.30
$region0: #{encoder_forward.30}
  #allocation0 [shape = 'u32[]', space=smem, size = 0x4, offset = 0x4, fixed_abs, tag = 'smem constant byte address 0x4 - core index']
  #allocation1 [shape = 'u32[144,128]{1,0:T(1,128)}', space=vmem, size = 0x12000, scoped, tag = 'internal scratch']
  %s0 = inlined_call_operand.vmem [shape: bf16[32,32], index: 0, kind: input, shape index: {}]
  %s1 = inlined_call_operand.vmem [shape: bf16[32,128], index: 1, kind: input, shape index: {}]
  %s2 = inlined_call_operand.vmem [shape: f32[1,128], index: 2, kind: input, shape index: {}]
  %s3 = inlined_call_operand.vmem [shape: bf16[32,128], index: 3, kind: input, shape index: {}]
  %s4 = inlined_call_operand.vmem [shape: bf16[32,128], index: 4, kind: output, shape index: {}]
  %s5 = sld [smem:[#allocation0]]
  $region26: #{encoder_forward.30} parent=0
    _
  %s7 = ssub.s32 1, %s5
  %s8 = scalar_select 0, %s7, %s5
  // Predicated region
  $region2: #{encoder_forward.30} parent=0 // pred_check
    _
  $region3: #{encoder_forward.30} parent=0 // pred_check_branch
    %10 = sbr.rel (0) target = $region5
  $region4: #{encoder_forward.30} parent=0 // pred_region
    _
  $region5: #{encoder_forward.30} parent=0 // pred_fallthru
    _
  // Predicated region
  $region6: #{encoder_forward.30} parent=0 // pred_check
    _
  $region7: #{encoder_forward.30} parent=0 // pred_check_branch
    %12 = sbr.rel (0) target = $region9
  $region8: #{encoder_forward.30} parent=0 // pred_region
    _
  $region9: #{encoder_forward.30} parent=0 // pred_fallthru
    _
  // Predicated region
  $region10: #{encoder_forward.30} parent=0 // pred_check
    _
  $region11: #{encoder_forward.30} parent=0 // pred_check_branch
    %14 = sbr.rel (0) target = $region13
  $region12: #{encoder_forward.30} parent=0 // pred_region
    _
  $region13: #{encoder_forward.30} parent=0 // pred_fallthru
    _
  // Predicated region
  $region14: #{encoder_forward.30} parent=0 // pred_check
    _
  $region15: #{encoder_forward.30} parent=0 // pred_check_branch
    %16 = sbr.rel (0) target = $region17
  $region16: #{encoder_forward.30} parent=0 // pred_region
    _
  $region17: #{encoder_forward.30} parent=0 // pred_fallthru
    _
  %v18 = vld [vmem:[%s0] sm:$0xf]
  %v19 = vld [vmem:[%s0 + $0x4] sm:$0xf]
  %v20 = vld [vmem:[%s0 + $0x8] sm:$0xf]
  %v21 = vld [vmem:[%s0 + $0xc] sm:$0xf]
  %v22 = vld [vmem:[%s1] sm:$0xf]
  %v23 = vld [vmem:[%s1 + $0x4] sm:$0xf]
  %v24 = vld [vmem:[%s1 + $0x8] sm:$0xf]
  %v25 = vld [vmem:[%s1 + $0xc] sm:$0xf]
  %v26 = vld [vmem:[%s2] sm:$0x1]
  %v28 = vlaneseq
  %v29 = vshrl.u32 %v28, 7
  %v30 = vsub.s32 0, %v29
  %v31 = vrot.slane %v26, %v30
  %v37 = vunpack.c.l.b16 %v18
  %v38 = vunpack.c.l.b16 %v19
  %v39 = vunpack.c.l.b16 %v20
  %v40 = vunpack.c.l.b16 %v21
  %v41 = vpack.c.b16 %v38, %v37
  %v42 = vpack.c.b16 %v40, %v39
  %v47 = vunpack.c.l.b16 %v22
  %v48 = vunpack.c.l.b16 %v23
  %v49 = vunpack.c.l.b16 %v24
  %v50 = vunpack.c.l.b16 %v25
  %v51 = vpack.c.b16 %v48, %v47
  %v52 = vpack.c.b16 %v50, %v49
  %vm55 = vcmask 261120
  %v57 = vsel %vm55, %v41, 0
  %v60 = vsel %vm55, %v42, 0
  %62 = vmatprep.subr.bf16.mxu0 0
  %63 = vmatpush1.bf16.msra.mxu0 %v51
  %64 = vmatprep.subr.bf16.mxu0 0
  %65 = vmatpush1.bf16.msra.mxu0 %v52
  %66 = vmatprep.subr.bf16.mxu0 0
  %67 = vmatpush1.bf16.msra.mxu0 0
  %68 = vmatprep.subr.bf16.mxu0 0
  %69 = vmatpush1.bf16.msra.mxu0 0
  %70 = vmatprep.subr.bf16.mxu0 0
  %71 = vmatpush1.bf16.msra.mxu0 0
  %72 = vmatprep.subr.bf16.mxu0 0
  %73 = vmatpush1.bf16.msra.mxu0 0
  %74 = vmatprep.subr.bf16.mxu0 0
  %75 = vmatpush1.bf16.msra.mxu0 0
  %76 = vmatprep.subr.bf16.mxu0 0
  %77 = vmatpush1.bf16.msra.mxu0 0
  %78 = vmatprep.subr.bf16.mxu0 0
  %79 = vmatpush1.bf16.msra.mxu0 0
  %80 = vmatprep.subr.bf16.mxu0 0
  %81 = vmatpush1.bf16.msra.mxu0 0
  %82 = vmatprep.subr.bf16.mxu0 0
  %83 = vmatpush1.bf16.msra.mxu0 0
  %84 = vmatprep.subr.bf16.mxu0 0
  %85 = vmatpush1.bf16.msra.mxu0 0
  %86 = vmatprep.subr.bf16.mxu0 0
  %87 = vmatpush1.bf16.msra.mxu0 0
  %88 = vmatprep.subr.bf16.mxu0 0
  %89 = vmatpush1.bf16.msra.mxu0 0
  %90 = vmatprep.subr.bf16.mxu0 0
  %91 = vmatpush1.bf16.msra.mxu0 0
  %92 = vmatprep.subr.bf16.mxu0 0
  %93 = vmatpush1.bf16.msra.mxu0 0
  %94 = vmatprep.mubr.bf16.mxu0 0
  %95 = vmatmul.mubr.bf16.gmra.mrb[0].mxu0 %v57
  %v96 = vpop.f32.mrb[0].mxu0
  %v97 = vadd.f32 %v31, %v96
  %v98 = vpop.f32.mrb[0].mxu0
  %v99 = vpop.f32.mrb[0].mxu0
  %v100 = vadd.f32 %v31, %v99
  %v101 = vpop.f32.mrb[0].mxu0
  %102 = vmatprep.mubr.bf16.mxu0 0
  %103 = vmatmul.mubr.bf16.gmra.mrb[0].mxu0 %v60
  %v104 = vpop.f32.mrb[0].mxu0
  %v105 = vadd.f32 %v31, %v104
  %v106 = vpop.f32.mrb[0].mxu0
  %v107 = vpop.f32.mrb[0].mxu0
  %v108 = vadd.f32 %v31, %v107
  %v109 = vpop.f32.mrb[0].mxu0
  %110 = vdwg.mxu0
  %v111 = vld [vmem:[%s3] sm:$0xf]
  %v112 = vld [vmem:[%s3 + $0x4] sm:$0xf]
  %v113 = vld [vmem:[%s3 + $0x8] sm:$0xf]
  %v114 = vld [vmem:[%s3 + $0xc] sm:$0xf]
  %v115 = vunpack.c.l.bf16 %v111
  %v116 = vunpack.c.l.bf16 %v112
  %v117 = vunpack.c.l.bf16 %v113
  %v118 = vunpack.c.l.bf16 %v114
  %v119 = vadd.f32 %v97, %v115
  %v120 = vadd.f32 %v100, %v116
  %v121 = vadd.f32 %v105, %v117
  %v122 = vadd.f32 %v108, %v118
  %v123 = vmax.f32 %v119, 0.0
  %v124 = vmax.f32 %v120, 0.0
  %v125 = vmax.f32 %v121, 0.0
  %v126 = vmax.f32 %v122, 0.0
  %v127 = vpack.c.bf16 %v124, %v123
  %v128 = vpack.c.bf16 %v126, %v125
  %v131 = vunpack.c.l.b16 %v127
  %v132 = vunpack.c.h.b16 %v127
  %v133 = vunpack.c.l.b16 %v128
  %v134 = vunpack.c.h.b16 %v128
  %v135 = vpack.c.b16 %v131, %v131
  %v136 = vpack.c.b16 %v132, %v132
  %v137 = vpack.c.b16 %v133, %v133
  %v138 = vpack.c.b16 %v134, %v134
  %143 = vst [vmem:[%s4] sm:$0xf] %v135
  %144 = vst [vmem:[%s4 + $0x4] sm:$0xf] %v136
  %145 = vst [vmem:[%s4 + $0x8] sm:$0xf] %v137
  %146 = vst [vmem:[%s4 + $0xc] sm:$0xf] %v138
  // Predicated region
  $region18: #{encoder_forward.30} parent=0 // pred_check
    _
  $region19: #{encoder_forward.30} parent=0 // pred_check_branch
    %148 = sbr.rel (0) target = $region21
  $region20: #{encoder_forward.30} parent=0 // pred_region
    _
  $region21: #{encoder_forward.30} parent=0 // pred_fallthru
    _
  // Predicated region
  $region22: #{encoder_forward.30} parent=0 // pred_check
    _
  $region23: #{encoder_forward.30} parent=0 // pred_check_branch
    %150 = sbr.rel (0) target = $region25
  $region24: #{encoder_forward.30} parent=0 // pred_region
    _
  $region25: #{encoder_forward.30} parent=0 // pred_fallthru
    _

// kernel: encoder_forward.29
$region0: #{encoder_forward.29}
  #allocation0 [shape = 'u32[]', space=smem, size = 0x4, offset = 0x4, fixed_abs, tag = 'smem constant byte address 0x4 - core index']
  #allocation1 [shape = 'u32[144,128]{1,0:T(1,128)}', space=vmem, size = 0x12000, scoped, tag = 'internal scratch']
  %s0 = inlined_call_operand.vmem [shape: bf16[32,64], index: 0, kind: input, shape index: {}]
  %s1 = inlined_call_operand.vmem [shape: bf16[64,128], index: 1, kind: input, shape index: {}]
  %s2 = inlined_call_operand.vmem [shape: f32[1,128], index: 2, kind: input, shape index: {}]
  %s3 = inlined_call_operand.vmem [shape: bf16[32,128], index: 3, kind: output, shape index: {}]
  %s4 = sld [smem:[#allocation0]]
  $region22: #{encoder_forward.29} parent=0
    _
  %s6 = ssub.s32 1, %s4
  %s7 = scalar_select 0, %s6, %s4
  // Predicated region
  $region2: #{encoder_forward.29} parent=0 // pred_check
    _
  $region3: #{encoder_forward.29} parent=0 // pred_check_branch
    %9 = sbr.rel (0) target = $region5
  $region4: #{encoder_forward.29} parent=0 // pred_region
    _
  $region5: #{encoder_forward.29} parent=0 // pred_fallthru
    _
  // Predicated region
  $region6: #{encoder_forward.29} parent=0 // pred_check
    _
  $region7: #{encoder_forward.29} parent=0 // pred_check_branch
    %11 = sbr.rel (0) target = $region9
  $region8: #{encoder_forward.29} parent=0 // pred_region
    _
  $region9: #{encoder_forward.29} parent=0 // pred_fallthru
    _
  // Predicated region
  $region10: #{encoder_forward.29} parent=0 // pred_check
    _
  $region11: #{encoder_forward.29} parent=0 // pred_check_branch
    %13 = sbr.rel (0) target = $region13
  $region12: #{encoder_forward.29} parent=0 // pred_region
    _
  $region13: #{encoder_forward.29} parent=0 // pred_fallthru
    _
  %v15 = vld [vmem:[%s0] sm:$0xf]
  %v16 = vld [vmem:[%s0 + $0x4] sm:$0xf]
  %v17 = vld [vmem:[%s0 + $0x8] sm:$0xf]
  %v18 = vld [vmem:[%s0 + $0xc] sm:$0xf]
  %v19 = vld [vmem:[%s1] sm:$0xf]
  %v20 = vld [vmem:[%s1 + $0x4] sm:$0xf]
  %v21 = vld [vmem:[%s1 + $0x8] sm:$0xf]
  %v22 = vld [vmem:[%s1 + $0xc] sm:$0xf]
  %v23 = vld [vmem:[%s1 + $0x10] sm:$0xf]
  %v24 = vld [vmem:[%s1 + $0x14] sm:$0xf]
  %v25 = vld [vmem:[%s1 + $0x18] sm:$0xf]
  %v26 = vld [vmem:[%s1 + $0x1c] sm:$0xf]
  %v27 = vld [vmem:[%s2] sm:$0x1]
  %v29 = vlaneseq
  %v30 = vshrl.u32 %v29, 7
  %v31 = vsub.s32 0, %v30
  %v32 = vrot.slane %v27, %v31
  %v38 = vunpack.c.l.b16 %v15
  %v39 = vunpack.c.l.b16 %v16
  %v40 = vunpack.c.l.b16 %v17
  %v41 = vunpack.c.l.b16 %v18
  %v42 = vpack.c.b16 %v39, %v38
  %v43 = vpack.c.b16 %v41, %v40
  %v52 = vunpack.c.l.b16 %v19
  %v53 = vunpack.c.l.b16 %v20
  %v54 = vunpack.c.l.b16 %v21
  %v55 = vunpack.c.l.b16 %v22
  %v56 = vunpack.c.l.b16 %v23
  %v57 = vunpack.c.l.b16 %v24
  %v58 = vunpack.c.l.b16 %v25
  %v59 = vunpack.c.l.b16 %v26
  %v60 = vpack.c.b16 %v53, %v52
  %v61 = vpack.c.b16 %v55, %v54
  %v62 = vpack.c.b16 %v57, %v56
  %v63 = vpack.c.b16 %v59, %v58
  %vm68 = vcmask 523264
  %v70 = vsel %vm68, %v42, 0
  %v73 = vsel %vm68, %v43, 0
  %75 = vmatprep.subr.bf16.mxu0 0
  %76 = vmatpush1.bf16.msra.mxu0 %v60
  %77 = vmatprep.subr.bf16.mxu0 0
  %78 = vmatpush1.bf16.msra.mxu0 %v61
  %79 = vmatprep.subr.bf16.mxu0 0
  %80 = vmatpush1.bf16.msra.mxu0 %v62
  %81 = vmatprep.subr.bf16.mxu0 0
  %82 = vmatpush1.bf16.msra.mxu0 %v63
  %83 = vmatprep.subr.bf16.mxu0 0
  %84 = vmatpush1.bf16.msra.mxu0 0
  %85 = vmatprep.subr.bf16.mxu0 0
  %86 = vmatpush1.bf16.msra.mxu0 0
  %87 = vmatprep.subr.bf16.mxu0 0
  %88 = vmatpush1.bf16.msra.mxu0 0
  %89 = vmatprep.subr.bf16.mxu0 0
  %90 = vmatpush1.bf16.msra.mxu0 0
  %91 = vmatprep.subr.bf16.mxu0 0
  %92 = vmatpush1.bf16.msra.mxu0 0
  %93 = vmatprep.subr.bf16.mxu0 0
  %94 = vmatpush1.bf16.msra.mxu0 0
  %95 = vmatprep.subr.bf16.mxu0 0
  %96 = vmatpush1.bf16.msra.mxu0 0
  %97 = vmatprep.subr.bf16.mxu0 0
  %98 = vmatpush1.bf16.msra.mxu0 0
  %99 = vmatprep.subr.bf16.mxu0 0
  %100 = vmatpush1.bf16.msra.mxu0 0
  %101 = vmatprep.subr.bf16.mxu0 0
  %102 = vmatpush1.bf16.msra.mxu0 0
  %103 = vmatprep.subr.bf16.mxu0 0
  %104 = vmatpush1.bf16.msra.mxu0 0
  %105 = vmatprep.subr.bf16.mxu0 0
  %106 = vmatpush1.bf16.msra.mxu0 0
  %107 = vmatprep.mubr.bf16.mxu0 0
  %108 = vmatmul.mubr.bf16.gmra.mrb[0].mxu0 %v70
  %v109 = vpop.f32.mrb[0].mxu0
  %v110 = vadd.f32 %v32, %v109
  %v111 = vpop.f32.mrb[0].mxu0
  %v112 = vpop.f32.mrb[0].mxu0
  %v113 = vadd.f32 %v32, %v112
  %v114 = vpop.f32.mrb[0].mxu0
  %115 = vmatprep.mubr.bf16.mxu0 0
  %116 = vmatmul.mubr.bf16.gmra.mrb[0].mxu0 %v73
  %v117 = vpop.f32.mrb[0].mxu0
  %v118 = vadd.f32 %v32, %v117
  %v119 = vpop.f32.mrb[0].mxu0
  %v120 = vpop.f32.mrb[0].mxu0
  %v121 = vadd.f32 %v32, %v120
  %v122 = vpop.f32.mrb[0].mxu0
  %123 = vdwg.mxu0
  %v124 = vpack.c.bf16 %v113, %v110
  %v125 = vpack.c.bf16 %v121, %v118
  %v128 = vunpack.c.l.b16 %v124
  %v129 = vunpack.c.h.b16 %v124
  %v130 = vunpack.c.l.b16 %v125
  %v131 = vunpack.c.h.b16 %v125
  %v132 = vpack.c.b16 %v128, %v128
  %v133 = vpack.c.b16 %v129, %v129
  %v134 = vpack.c.b16 %v130, %v130
  %v135 = vpack.c.b16 %v131, %v131
  %140 = vst [vmem:[%s3] sm:$0xf] %v132
  %141 = vst [vmem:[%s3 + $0x4] sm:$0xf] %v133
  %142 = vst [vmem:[%s3 + $0x8] sm:$0xf] %v134
  %143 = vst [vmem:[%s3 + $0xc] sm:$0xf] %v135
  // Predicated region
  $region14: #{encoder_forward.29} parent=0 // pred_check
    _
  $region15: #{encoder_forward.29} parent=0 // pred_check_branch
    %145 = sbr.rel (0) target = $region17
  $region16: #{encoder_forward.29} parent=0 // pred_region
    _
  $region17: #{encoder_forward.29} parent=0 // pred_fallthru
    _
  // Predicated region
  $region18: #{encoder_forward.29} parent=0 // pred_check
    _
  $region19: #{encoder_forward.29} parent=0 // pred_check_branch
    %147 = sbr.rel (0) target = $region21
  $region20: #{encoder_forward.29} parent=0 // pred_region
    _
  $region21: #{encoder_forward.29} parent=0 // pred_fallthru
    _

// kernel: encoder_forward.31
$region0: #{encoder_forward.31}
  #allocation0 [shape = 'u32[]', space=smem, size = 0x4, offset = 0x4, fixed_abs, tag = 'smem constant byte address 0x4 - core index']
  #allocation1 [shape = 'u32[144,128]{1,0:T(1,128)}', space=vmem, size = 0x12000, scoped, tag = 'internal scratch']
  %s0 = inlined_call_operand.vmem [shape: bf16[32,128], index: 0, kind: input, shape index: {}]
  %s1 = inlined_call_operand.vmem [shape: bf16[128,128], index: 1, kind: input, shape index: {}]
  %s2 = inlined_call_operand.vmem [shape: f32[1,128], index: 2, kind: input, shape index: {}]
  %s3 = inlined_call_operand.vmem [shape: bf16[32,128], index: 3, kind: output, shape index: {}]
  %s4 = sld [smem:[#allocation0]]
  $region22: #{encoder_forward.31} parent=0
    _
  %s6 = ssub.s32 1, %s4
  %s7 = scalar_select 0, %s6, %s4
  // Predicated region
  $region2: #{encoder_forward.31} parent=0 // pred_check
    _
  $region3: #{encoder_forward.31} parent=0 // pred_check_branch
    %9 = sbr.rel (0) target = $region5
  $region4: #{encoder_forward.31} parent=0 // pred_region
    _
  $region5: #{encoder_forward.31} parent=0 // pred_fallthru
    _
  // Predicated region
  $region6: #{encoder_forward.31} parent=0 // pred_check
    _
  $region7: #{encoder_forward.31} parent=0 // pred_check_branch
    %11 = sbr.rel (0) target = $region9
  $region8: #{encoder_forward.31} parent=0 // pred_region
    _
  $region9: #{encoder_forward.31} parent=0 // pred_fallthru
    _
  // Predicated region
  $region10: #{encoder_forward.31} parent=0 // pred_check
    _
  $region11: #{encoder_forward.31} parent=0 // pred_check_branch
    %13 = sbr.rel (0) target = $region13
  $region12: #{encoder_forward.31} parent=0 // pred_region
    _
  $region13: #{encoder_forward.31} parent=0 // pred_fallthru
    _
  %v15 = vld [vmem:[%s0] sm:$0xf]
  %v16 = vld [vmem:[%s0 + $0x4] sm:$0xf]
  %v17 = vld [vmem:[%s0 + $0x8] sm:$0xf]
  %v18 = vld [vmem:[%s0 + $0xc] sm:$0xf]
  %v19 = vld [vmem:[%s1] sm:$0xf]
  %v20 = vld [vmem:[%s1 + $0x4] sm:$0xf]
  %v21 = vld [vmem:[%s1 + $0x8] sm:$0xf]
  %v22 = vld [vmem:[%s1 + $0xc] sm:$0xf]
  %v23 = vld [vmem:[%s1 + $0x10] sm:$0xf]
  %v24 = vld [vmem:[%s1 + $0x14] sm:$0xf]
  %v25 = vld [vmem:[%s1 + $0x18] sm:$0xf]
  %v26 = vld [vmem:[%s1 + $0x1c] sm:$0xf]
  %v27 = vld [vmem:[%s1 + $0x20] sm:$0xf]
  %v28 = vld [vmem:[%s1 + $0x24] sm:$0xf]
  %v29 = vld [vmem:[%s1 + $0x28] sm:$0xf]
  %v30 = vld [vmem:[%s1 + $0x2c] sm:$0xf]
  %v31 = vld [vmem:[%s1 + $0x30] sm:$0xf]
  %v32 = vld [vmem:[%s1 + $0x34] sm:$0xf]
  %v33 = vld [vmem:[%s1 + $0x38] sm:$0xf]
  %v34 = vld [vmem:[%s1 + $0x3c] sm:$0xf]
  %v35 = vld [vmem:[%s2] sm:$0x1]
  %v37 = vlaneseq
  %v38 = vshrl.u32 %v37, 7
  %v39 = vsub.s32 0, %v38
  %v40 = vrot.slane %v35, %v39
  %v46 = vunpack.c.l.b16 %v15
  %v47 = vunpack.c.l.b16 %v16
  %v48 = vunpack.c.l.b16 %v17
  %v49 = vunpack.c.l.b16 %v18
  %v50 = vpack.c.b16 %v47, %v46
  %v51 = vpack.c.b16 %v49, %v48
  %v70 = vunpack.c.l.b16 %v19
  %v71 = vunpack.c.l.b16 %v20
  %v72 = vunpack.c.l.b16 %v21
  %v73 = vunpack.c.l.b16 %v22
  %v74 = vunpack.c.l.b16 %v23
  %v75 = vunpack.c.l.b16 %v24
  %v76 = vunpack.c.l.b16 %v25
  %v77 = vunpack.c.l.b16 %v26
  %v78 = vunpack.c.l.b16 %v27
  %v79 = vunpack.c.l.b16 %v28
  %v80 = vunpack.c.l.b16 %v29
  %v81 = vunpack.c.l.b16 %v30
  %v82 = vunpack.c.l.b16 %v31
  %v83 = vunpack.c.l.b16 %v32
  %v84 = vunpack.c.l.b16 %v33
  %v85 = vunpack.c.l.b16 %v34
  %v86 = vpack.c.b16 %v71, %v70
  %v87 = vpack.c.b16 %v73, %v72
  %v88 = vpack.c.b16 %v75, %v74
  %v89 = vpack.c.b16 %v77, %v76
  %v90 = vpack.c.b16 %v79, %v78
  %v91 = vpack.c.b16 %v81, %v80
  %v92 = vpack.c.b16 %v83, %v82
  %v93 = vpack.c.b16 %v85, %v84
  %102 = vmatprep.subr.bf16.mxu0 0
  %103 = vmatpush1.bf16.msra.mxu0 %v86
  %104 = vmatprep.subr.bf16.mxu0 0
  %105 = vmatpush1.bf16.msra.mxu0 %v87
  %106 = vmatprep.subr.bf16.mxu0 0
  %107 = vmatpush1.bf16.msra.mxu0 %v88
  %108 = vmatprep.subr.bf16.mxu0 0
  %109 = vmatpush1.bf16.msra.mxu0 %v89
  %110 = vmatprep.subr.bf16.mxu0 0
  %111 = vmatpush1.bf16.msra.mxu0 %v90
  %112 = vmatprep.subr.bf16.mxu0 0
  %113 = vmatpush1.bf16.msra.mxu0 %v91
  %114 = vmatprep.subr.bf16.mxu0 0
  %115 = vmatpush1.bf16.msra.mxu0 %v92
  %116 = vmatprep.subr.bf16.mxu0 0
  %117 = vmatpush1.bf16.msra.mxu0 %v93
  %118 = vmatprep.subr.bf16.mxu0 0
  %119 = vmatpush1.bf16.msra.mxu0 0
  %120 = vmatprep.subr.bf16.mxu0 0
  %121 = vmatpush1.bf16.msra.mxu0 0
  %122 = vmatprep.subr.bf16.mxu0 0
  %123 = vmatpush1.bf16.msra.mxu0 0
  %124 = vmatprep.subr.bf16.mxu0 0
  %125 = vmatpush1.bf16.msra.mxu0 0
  %126 = vmatprep.subr.bf16.mxu0 0
  %127 = vmatpush1.bf16.msra.mxu0 0
  %128 = vmatprep.subr.bf16.mxu0 0
  %129 = vmatpush1.bf16.msra.mxu0 0
  %130 = vmatprep.subr.bf16.mxu0 0
  %131 = vmatpush1.bf16.msra.mxu0 0
  %132 = vmatprep.subr.bf16.mxu0 0
  %133 = vmatpush1.bf16.msra.mxu0 0
  %134 = vmatprep.mubr.bf16.mxu0 0
  %135 = vmatmul.mubr.bf16.gmra.mrb[0].mxu0 %v50
  %v136 = vpop.f32.mrb[0].mxu0
  %v137 = vadd.f32 %v40, %v136
  %v138 = vpop.f32.mrb[0].mxu0
  %v139 = vpop.f32.mrb[0].mxu0
  %v140 = vadd.f32 %v40, %v139
  %v141 = vpop.f32.mrb[0].mxu0
  %142 = vmatprep.mubr.bf16.mxu0 0
  %143 = vmatmul.mubr.bf16.gmra.mrb[0].mxu0 %v51
  %v144 = vpop.f32.mrb[0].mxu0
  %v145 = vadd.f32 %v40, %v144
  %v146 = vpop.f32.mrb[0].mxu0
  %v147 = vpop.f32.mrb[0].mxu0
  %v148 = vadd.f32 %v40, %v147
  %v149 = vpop.f32.mrb[0].mxu0
  %150 = vdwg.mxu0
  %v151 = vmax.f32 %v137, 0.0
  %v152 = vmax.f32 %v140, 0.0
  %v153 = vmax.f32 %v145, 0.0
  %v154 = vmax.f32 %v148, 0.0
  %v155 = vpack.c.bf16 %v152, %v151
  %v156 = vpack.c.bf16 %v154, %v153
  %v159 = vunpack.c.l.b16 %v155
  %v160 = vunpack.c.h.b16 %v155
  %v161 = vunpack.c.l.b16 %v156
  %v162 = vunpack.c.h.b16 %v156
  %v163 = vpack.c.b16 %v159, %v159
  %v164 = vpack.c.b16 %v160, %v160
  %v165 = vpack.c.b16 %v161, %v161
  %v166 = vpack.c.b16 %v162, %v162
  %171 = vst [vmem:[%s3] sm:$0xf] %v163
  %172 = vst [vmem:[%s3 + $0x4] sm:$0xf] %v164
  %173 = vst [vmem:[%s3 + $0x8] sm:$0xf] %v165
  %174 = vst [vmem:[%s3 + $0xc] sm:$0xf] %v166
  // Predicated region
  $region14: #{encoder_forward.31} parent=0 // pred_check
    _
  $region15: #{encoder_forward.31} parent=0 // pred_check_branch
    %176 = sbr.rel (0) target = $region17
  $region16: #{encoder_forward.31} parent=0 // pred_region
    _
  $region17: #{encoder_forward.31} parent=0 // pred_fallthru
    _
  // Predicated region
  $region18: #{encoder_forward.31} parent=0 // pred_check
    _
  $region19: #{encoder_forward.31} parent=0 // pred_check_branch
    %178 = sbr.rel (0) target = $region21
  $region20: #{encoder_forward.31} parent=0 // pred_region
    _
  $region21: #{encoder_forward.31} parent=0 // pred_fallthru
    _

// kernel: encoder_forward.33
$region0: #{encoder_forward.33}
  #allocation0 [shape = 'u32[]', space=smem, size = 0x4, offset = 0x4, fixed_abs, tag = 'smem constant byte address 0x4 - core index']
  #allocation1 [shape = 'u32[144,128]{1,0:T(1,128)}', space=vmem, size = 0x12000, scoped, tag = 'internal scratch']
  %s0 = inlined_call_operand.vmem [shape: bf16[16,128], index: 0, kind: input, shape index: {}]
  %s1 = inlined_call_operand.vmem [shape: bf16[128,256], index: 1, kind: input, shape index: {}]
  %s2 = inlined_call_operand.vmem [shape: f32[1,256], index: 2, kind: input, shape index: {}]
  %s3 = inlined_call_operand.vmem [shape: bf16[16,256], index: 3, kind: output, shape index: {}]
  %s4 = sld [smem:[#allocation0]]
  $region22: #{encoder_forward.33} parent=0
    _
  %s6 = ssub.s32 1, %s4
  %s7 = scalar_select 0, %s6, %s4
  // Predicated region
  $region2: #{encoder_forward.33} parent=0 // pred_check
    _
  $region3: #{encoder_forward.33} parent=0 // pred_check_branch
    %9 = sbr.rel (0) target = $region5
  $region4: #{encoder_forward.33} parent=0 // pred_region
    _
  $region5: #{encoder_forward.33} parent=0 // pred_fallthru
    _
  // Predicated region
  $region6: #{encoder_forward.33} parent=0 // pred_check
    _
  $region7: #{encoder_forward.33} parent=0 // pred_check_branch
    %11 = sbr.rel (0) target = $region9
  $region8: #{encoder_forward.33} parent=0 // pred_region
    _
  $region9: #{encoder_forward.33} parent=0 // pred_fallthru
    _
  // Predicated region
  $region10: #{encoder_forward.33} parent=0 // pred_check
    _
  $region11: #{encoder_forward.33} parent=0 // pred_check_branch
    %13 = sbr.rel (0) target = $region13
  $region12: #{encoder_forward.33} parent=0 // pred_region
    _
  $region13: #{encoder_forward.33} parent=0 // pred_fallthru
    _
  %v15 = vld [vmem:[%s0] sm:$0xf]
  %v16 = vld [vmem:[%s0 + $0x4] sm:$0xf]
  %v17 = vld [vmem:[%s1] sm:$0xff]
  %v18 = vld [vmem:[%s1 + $0x8] sm:$0xff]
  %v19 = vld [vmem:[%s1 + $0x10] sm:$0xff]
  %v20 = vld [vmem:[%s1 + $0x18] sm:$0xff]
  %v21 = vld [vmem:[%s1 + $0x20] sm:$0xff]
  %v22 = vld [vmem:[%s1 + $0x28] sm:$0xff]
  %v23 = vld [vmem:[%s1 + $0x30] sm:$0xff]
  %v24 = vld [vmem:[%s1 + $0x38] sm:$0xff]
  %v25 = vld [vmem:[%s1 + $0x40] sm:$0xff]
  %v26 = vld [vmem:[%s1 + $0x48] sm:$0xff]
  %v27 = vld [vmem:[%s1 + $0x50] sm:$0xff]
  %v28 = vld [vmem:[%s1 + $0x58] sm:$0xff]
  %v29 = vld [vmem:[%s1 + $0x60] sm:$0xff]
  %v30 = vld [vmem:[%s1 + $0x68] sm:$0xff]
  %v31 = vld [vmem:[%s1 + $0x70] sm:$0xff]
  %v32 = vld [vmem:[%s1 + $0x78] sm:$0xff]
  %v33 = vld [vmem:[%s2] sm:$0x3]
  %v35 = vlaneseq
  %v36 = vshrl.u32 %v35, 7
  %v37 = vsub.s32 0, %v36
  %v38 = vrot.slane %v33, %v37
  %v39 = vlaneseq
  %v40 = vshrl.u32 %v39, 7
  %v41 = vsub.s32 1, %v40
  %v42 = vrot.slane %v33, %v41
  %v47 = vunpack.c.l.b16 %v15
  %v48 = vunpack.c.l.b16 %v16
  %v49 = vpack.c.b16 %v48, %v47
  %v67 = vunpack.c.l.b16 %v17
  %v68 = vunpack.c.h.b16 %v17
  %v69 = vunpack.c.l.b16 %v18
  %v70 = vunpack.c.h.b16 %v18
  %v71 = vunpack.c.l.b16 %v19
  %v72 = vunpack.c.h.b16 %v19
  %v73 = vunpack.c.l.b16 %v20
  %v74 = vunpack.c.h.b16 %v20
  %v75 = vunpack.c.l.b16 %v21
  %v76 = vunpack.c.h.b16 %v21
  %v77 = vunpack.c.l.b16 %v22
  %v78 = vunpack.c.h.b16 %v22
  %v79 = vunpack.c.l.b16 %v23
  %v80 = vunpack.c.h.b16 %v23
  %v81 = vunpack.c.l.b16 %v24
  %v82 = vunpack.c.h.b16 %v24
  %v83 = vunpack.c.l.b16 %v25
  %v84 = vunpack.c.h.b16 %v25
  %v85 = vunpack.c.l.b16 %v26
  %v86 = vunpack.c.h.b16 %v26
  %v87 = vunpack.c.l.b16 %v27
  %v88 = vunpack.c.h.b16 %v27
  %v89 = vunpack.c.l.b16 %v28
  %v90 = vunpack.c.h.b16 %v28
  %v91 = vunpack.c.l.b16 %v29
  %v92 = vunpack.c.h.b16 %v29
  %v93 = vunpack.c.l.b16 %v30
  %v94 = vunpack.c.h.b16 %v30
  %v95 = vunpack.c.l.b16 %v31
  %v96 = vunpack.c.h.b16 %v31
  %v97 = vunpack.c.l.b16 %v32
  %v98 = vunpack.c.h.b16 %v32
  %v99 = vpack.c.b16 %v69, %v67
  %v100 = vpack.c.b16 %v70, %v68
  %v101 = vpack.c.b16 %v73, %v71
  %v102 = vpack.c.b16 %v74, %v72
  %v103 = vpack.c.b16 %v77, %v75
  %v104 = vpack.c.b16 %v78, %v76
  %v105 = vpack.c.b16 %v81, %v79
  %v106 = vpack.c.b16 %v82, %v80
  %v107 = vpack.c.b16 %v85, %v83
  %v108 = vpack.c.b16 %v86, %v84
  %v109 = vpack.c.b16 %v89, %v87
  %v110 = vpack.c.b16 %v90, %v88
  %v111 = vpack.c.b16 %v93, %v91
  %v112 = vpack.c.b16 %v94, %v92
  %v113 = vpack.c.b16 %v97, %v95
  %v114 = vpack.c.b16 %v98, %v96
  %131 = vmatprep.subr.bf16.mxu0 %v100
  %132 = vmatpush1.bf16.msra.mxu0 %v99
  %133 = vmatprep.subr.bf16.mxu0 %v102
  %134 = vmatpush1.bf16.msra.mxu0 %v101
  %135 = vmatprep.subr.bf16.mxu0 %v104
  %136 = vmatpush1.bf16.msra.mxu0 %v103
  %137 = vmatprep.subr.bf16.mxu0 %v106
  %138 = vmatpush1.bf16.msra.mxu0 %v105
  %139 = vmatprep.subr.bf16.mxu0 %v108
  %140 = vmatpush1.bf16.msra.mxu0 %v107
  %141 = vmatprep.subr.bf16.mxu0 %v110
  %142 = vmatpush1.bf16.msra.mxu0 %v109
  %143 = vmatprep.subr.bf16.mxu0 %v112
  %144 = vmatpush1.bf16.msra.mxu0 %v111
  %145 = vmatprep.subr.bf16.mxu0 %v114
  %146 = vmatpush1.bf16.msra.mxu0 %v113
  %147 = vmatprep.subr.bf16.mxu0 0
  %148 = vmatpush1.bf16.msra.mxu0 0
  %149 = vmatprep.subr.bf16.mxu0 0
  %150 = vmatpush1.bf16.msra.mxu0 0
  %151 = vmatprep.subr.bf16.mxu0 0
  %152 = vmatpush1.bf16.msra.mxu0 0
  %153 = vmatprep.subr.bf16.mxu0 0
  %154 = vmatpush1.bf16.msra.mxu0 0
  %155 = vmatprep.subr.bf16.mxu0 0
  %156 = vmatpush1.bf16.msra.mxu0 0
  %157 = vmatprep.subr.bf16.mxu0 0
  %158 = vmatpush1.bf16.msra.mxu0 0
  %159 = vmatprep.subr.bf16.mxu0 0
  %160 = vmatpush1.bf16.msra.mxu0 0
  %161 = vmatprep.subr.bf16.mxu0 0
  %162 = vmatpush1.bf16.msra.mxu0 0
  %163 = vmatprep.mubr.bf16.mxu0 0
  %164 = vmatmul.mubr.bf16.gmra.mrb[0].mxu0 %v49
  %v165 = vpop.f32.mrb[0].mxu0
  %v166 = vadd.f32 %v38, %v165
  %v167 = vpop.f32.mrb[0].mxu0
  %v168 = vadd.f32 %v42, %v167
  %v169 = vpop.f32.mrb[0].mxu0
  %v170 = vadd.f32 %v38, %v169
  %v171 = vpop.f32.mrb[0].mxu0
  %v172 = vadd.f32 %v42, %v171
  %173 = vdwg.mxu0
  %v174 = vpack.c.bf16 %v170, %v166
  %v175 = vpack.c.bf16 %v172, %v168
  %v178 = vunpack.c.l.b16 %v174
  %v179 = vunpack.c.l.b16 %v175
  %v180 = vunpack.c.h.b16 %v174
  %v181 = vunpack.c.h.b16 %v175
  %v182 = vpack.c.b16 %v179, %v178
  %v183 = vpack.c.b16 %v181, %v180
  %186 = vst [vmem:[%s3] sm:$0xff] %v182
  %187 = vst [vmem:[%s3 + $0x8] sm:$0xff] %v183
  // Predicated region
  $region14: #{encoder_forward.33} parent=0 // pred_check
    _
  $region15: #{encoder_forward.33} parent=0 // pred_check_branch
    %189 = sbr.rel (0) target = $region17
  $region16: #{encoder_forward.33} parent=0 // pred_region
    _
  $region17: #{encoder_forward.33} parent=0 // pred_fallthru
    _
  // Predicated region
  $region18: #{encoder_forward.33} parent=0 // pred_check
    _
  $region19: #{encoder_forward.33} parent=0 // pred_check_branch
    %191 = sbr.rel (0) target = $region21
  $region20: #{encoder_forward.33} parent=0 // pred_region
    _
  $region21: #{encoder_forward.33} parent=0 // pred_fallthru
    _

// kernel: encoder_forward.32
$region0: #{encoder_forward.32}
  #allocation0 [shape = 'u32[]', space=smem, size = 0x4, offset = 0x4, fixed_abs, tag = 'smem constant byte address 0x4 - core index']
  #allocation1 [shape = 'u32[144,128]{1,0:T(1,128)}', space=vmem, size = 0x12000, scoped, tag = 'internal scratch']
  %s0 = inlined_call_operand.vmem [shape: bf16[16,576], index: 0, kind: input, shape index: {}]
  %s1 = inlined_call_operand.vmem [shape: bf16[576,128], index: 1, kind: input, shape index: {}]
  %s2 = inlined_call_operand.vmem [shape: f32[1,128], index: 2, kind: input, shape index: {}]
  %s3 = inlined_call_operand.vmem [shape: bf16[16,128], index: 3, kind: output, shape index: {}]
  %s4 = sld [smem:[#allocation0]]
  $region22: #{encoder_forward.32} parent=0
    _
  %s6 = ssub.s32 1, %s4
  %s7 = scalar_select 0, %s6, %s4
  // Predicated region
  $region2: #{encoder_forward.32} parent=0 // pred_check
    _
  $region3: #{encoder_forward.32} parent=0 // pred_check_branch
    %9 = sbr.rel (0) target = $region5
  $region4: #{encoder_forward.32} parent=0 // pred_region
    _
  $region5: #{encoder_forward.32} parent=0 // pred_fallthru
    _
  // Predicated region
  $region6: #{encoder_forward.32} parent=0 // pred_check
    _
  $region7: #{encoder_forward.32} parent=0 // pred_check_branch
    %11 = sbr.rel (0) target = $region9
  $region8: #{encoder_forward.32} parent=0 // pred_region
    _
  $region9: #{encoder_forward.32} parent=0 // pred_fallthru
    _
  // Predicated region
  $region10: #{encoder_forward.32} parent=0 // pred_check
    _
  $region11: #{encoder_forward.32} parent=0 // pred_check_branch
    %13 = sbr.rel (0) target = $region13
  $region12: #{encoder_forward.32} parent=0 // pred_region
    _
  $region13: #{encoder_forward.32} parent=0 // pred_fallthru
    _
  %v15 = vld [vmem:[%s0] sm:$0xff]
  %v16 = vld [vmem:[%s0 + $0x8] sm:$0xff]
  %v17 = vld [vmem:[%s0 + $0x10] sm:$0xf]
  %v18 = vld [vmem:[%s0 + $0x14] sm:$0xff]
  %v19 = vld [vmem:[%s0 + $0x1c] sm:$0xff]
  %v20 = vld [vmem:[%s0 + $0x24] sm:$0xf]
  %v21 = vld [vmem:[%s1] sm:$0xf]
  %v22 = vld [vmem:[%s1 + $0x4] sm:$0xf]
  %v23 = vld [vmem:[%s1 + $0x8] sm:$0xf]
  %v24 = vld [vmem:[%s1 + $0xc] sm:$0xf]
  %v25 = vld [vmem:[%s1 + $0x10] sm:$0xf]
  %v26 = vld [vmem:[%s1 + $0x14] sm:$0xf]
  %v27 = vld [vmem:[%s1 + $0x18] sm:$0xf]
  %v28 = vld [vmem:[%s1 + $0x1c] sm:$0xf]
  %v29 = vld [vmem:[%s1 + $0x20] sm:$0xf]
  %v30 = vld [vmem:[%s1 + $0x24] sm:$0xf]
  %v31 = vld [vmem:[%s1 + $0x28] sm:$0xf]
  %v32 = vld [vmem:[%s1 + $0x2c] sm:$0xf]
  %v33 = vld [vmem:[%s1 + $0x30] sm:$0xf]
  %v34 = vld [vmem:[%s1 + $0x34] sm:$0xf]
  %v35 = vld [vmem:[%s1 + $0x38] sm:$0xf]
  %v36 = vld [vmem:[%s1 + $0x3c] sm:$0xf]
  %v37 = vld [vmem:[%s1 + $0x40] sm:$0xf]
  %v38 = vld [vmem:[%s1 + $0x44] sm:$0xf]
  %v39 = vld [vmem:[%s1 + $0x48] sm:$0xf]
  %v40 = vld [vmem:[%s1 + $0x4c] sm:$0xf]
  %v41 = vld [vmem:[%s1 + $0x50] sm:$0xf]
  %v42 = vld [vmem:[%s1 + $0x54] sm:$0xf]
  %v43 = vld [vmem:[%s1 + $0x58] sm:$0xf]
  %v44 = vld [vmem:[%s1 + $0x5c] sm:$0xf]
  %v45 = vld [vmem:[%s1 + $0x60] sm:$0xf]
  %v46 = vld [vmem:[%s1 + $0x64] sm:$0xf]
  %v47 = vld [vmem:[%s1 + $0x68] sm:$0xf]
  %v48 = vld [vmem:[%s1 + $0x6c] sm:$0xf]
  %v49 = vld [vmem:[%s1 + $0x70] sm:$0xf]
  %v50 = vld [vmem:[%s1 + $0x74] sm:$0xf]
  %v51 = vld [vmem:[%s1 + $0x78] sm:$0xf]
  %v52 = vld [vmem:[%s1 + $0x7c] sm:$0xf]
  %v53 = vld [vmem:[%s1 + $0x80] sm:$0xf]
  %v54 = vld [vmem:[%s1 + $0x84] sm:$0xf]
  %v55 = vld [vmem:[%s1 + $0x88] sm:$0xf]
  %v56 = vld [vmem:[%s1 + $0x8c] sm:$0xf]
  %v57 = vld [vmem:[%s1 + $0x90] sm:$0xf]
  %v58 = vld [vmem:[%s1 + $0x94] sm:$0xf]
  %v59 = vld [vmem:[%s1 + $0x98] sm:$0xf]
  %v60 = vld [vmem:[%s1 + $0x9c] sm:$0xf]
  %v61 = vld [vmem:[%s1 + $0xa0] sm:$0xf]
  %v62 = vld [vmem:[%s1 + $0xa4] sm:$0xf]
  %v63 = vld [vmem:[%s1 + $0xa8] sm:$0xf]
  %v64 = vld [vmem:[%s1 + $0xac] sm:$0xf]
  %v65 = vld [vmem:[%s1 + $0xb0] sm:$0xf]
  %v66 = vld [vmem:[%s1 + $0xb4] sm:$0xf]
  %v67 = vld [vmem:[%s1 + $0xb8] sm:$0xf]
  %v68 = vld [vmem:[%s1 + $0xbc] sm:$0xf]
  %v69 = vld [vmem:[%s1 + $0xc0] sm:$0xf]
  %v70 = vld [vmem:[%s1 + $0xc4] sm:$0xf]
  %v71 = vld [vmem:[%s1 + $0xc8] sm:$0xf]
  %v72 = vld [vmem:[%s1 + $0xcc] sm:$0xf]
  %v73 = vld [vmem:[%s1 + $0xd0] sm:$0xf]
  %v74 = vld [vmem:[%s1 + $0xd4] sm:$0xf]
  %v75 = vld [vmem:[%s1 + $0xd8] sm:$0xf]
  %v76 = vld [vmem:[%s1 + $0xdc] sm:$0xf]
  %v77 = vld [vmem:[%s1 + $0xe0] sm:$0xf]
  %v78 = vld [vmem:[%s1 + $0xe4] sm:$0xf]
  %v79 = vld [vmem:[%s1 + $0xe8] sm:$0xf]
  %v80 = vld [vmem:[%s1 + $0xec] sm:$0xf]
  %v81 = vld [vmem:[%s1 + $0xf0] sm:$0xf]
  %v82 = vld [vmem:[%s1 + $0xf4] sm:$0xf]
  %v83 = vld [vmem:[%s1 + $0xf8] sm:$0xf]
  %v84 = vld [vmem:[%s1 + $0xfc] sm:$0xf]
  %v85 = vld [vmem:[%s1 + $0x100] sm:$0xf]
  %v86 = vld [vmem:[%s1 + $0x104] sm:$0xf]
  %v87 = vld [vmem:[%s1 + $0x108] sm:$0xf]
  %v88 = vld [vmem:[%s1 + $0x10c] sm:$0xf]
  %v89 = vld [vmem:[%s1 + $0x110] sm:$0xf]
  %v90 = vld [vmem:[%s1 + $0x114] sm:$0xf]
  %v91 = vld [vmem:[%s1 + $0x118] sm:$0xf]
  %v92 = vld [vmem:[%s1 + $0x11c] sm:$0xf]
  %v93 = vld [vmem:[%s2] sm:$0x1]
  %v95 = vlaneseq
  %v96 = vshrl.u32 %v95, 7
  %v97 = vsub.s32 0, %v96
  %v98 = vrot.slane %v93, %v97
  %v106 = vunpack.c.l.b16 %v15
  %v107 = vunpack.c.h.b16 %v15
  %v108 = vunpack.c.l.b16 %v16
  %v109 = vunpack.c.h.b16 %v16
  %v110 = vunpack.c.l.b16 %v17
  %v111 = vunpack.c.l.b16 %v18
  %v112 = vunpack.c.h.b16 %v18
  %v113 = vunpack.c.l.b16 %v19
  %v114 = vunpack.c.h.b16 %v19
  %v115 = vunpack.c.l.b16 %v20
  %v116 = vpack.c.b16 %v111, %v106
  %v117 = vpack.c.b16 %v112, %v107
  %v118 = vpack.c.b16 %v113, %v108
  %v119 = vpack.c.b16 %v114, %v109
  %v120 = vpack.c.b16 %v115, %v110
  %v197 = vunpack.c.l.b16 %v21
  %v198 = vunpack.c.l.b16 %v22
  %v199 = vunpack.c.l.b16 %v23
  %v200 = vunpack.c.l.b16 %v24
  %v201 = vunpack.c.l.b16 %v25
  %v202 = vunpack.c.l.b16 %v26
  %v203 = vunpack.c.l.b16 %v27
  %v204 = vunpack.c.l.b16 %v28
  %v205 = vunpack.c.l.b16 %v29
  %v206 = vunpack.c.l.b16 %v30
  %v207 = vunpack.c.l.b16 %v31
  %v208 = vunpack.c.l.b16 %v32
  %v209 = vunpack.c.l.b16 %v33
  %v210 = vunpack.c.l.b16 %v34
  %v211 = vunpack.c.l.b16 %v35
  %v212 = vunpack.c.l.b16 %v36
  %v213 = vunpack.c.l.b16 %v37
  %v214 = vunpack.c.l.b16 %v38
  %v215 = vunpack.c.l.b16 %v39
  %v216 = vunpack.c.l.b16 %v40
  %v217 = vunpack.c.l.b16 %v41
  %v218 = vunpack.c.l.b16 %v42
  %v219 = vunpack.c.l.b16 %v43
  %v220 = vunpack.c.l.b16 %v44
  %v221 = vunpack.c.l.b16 %v45
  %v222 = vunpack.c.l.b16 %v46
  %v223 = vunpack.c.l.b16 %v47
  %v224 = vunpack.c.l.b16 %v48
  %v225 = vunpack.c.l.b16 %v49
  %v226 = vunpack.c.l.b16 %v50
  %v227 = vunpack.c.l.b16 %v51
  %v228 = vunpack.c.l.b16 %v52
  %v229 = vunpack.c.l.b16 %v53
  %v230 = vunpack.c.l.b16 %v54
  %v231 = vunpack.c.l.b16 %v55
  %v232 = vunpack.c.l.b16 %v56
  %v233 = vunpack.c.l.b16 %v57
  %v234 = vunpack.c.l.b16 %v58
  %v235 = vunpack.c.l.b16 %v59
  %v236 = vunpack.c.l.b16 %v60
  %v237 = vunpack.c.l.b16 %v61
  %v238 = vunpack.c.l.b16 %v62
  %v239 = vunpack.c.l.b16 %v63
  %v240 = vunpack.c.l.b16 %v64
  %v241 = vunpack.c.l.b16 %v65
  %v242 = vunpack.c.l.b16 %v66
  %v243 = vunpack.c.l.b16 %v67
  %v244 = vunpack.c.l.b16 %v68
  %v245 = vunpack.c.l.b16 %v69
  %v246 = vunpack.c.l.b16 %v70
  %v247 = vunpack.c.l.b16 %v71
  %v248 = vunpack.c.l.b16 %v72
  %v249 = vunpack.c.l.b16 %v73
  %v250 = vunpack.c.l.b16 %v74
  %v251 = vunpack.c.l.b16 %v75
  %v252 = vunpack.c.l.b16 %v76
  %v253 = vunpack.c.l.b16 %v77
  %v254 = vunpack.c.l.b16 %v78
  %v255 = vunpack.c.l.b16 %v79
  %v256 = vunpack.c.l.b16 %v80
  %v257 = vunpack.c.l.b16 %v81
  %v258 = vunpack.c.l.b16 %v82
  %v259 = vunpack.c.l.b16 %v83
  %v260 = vunpack.c.l.b16 %v84
  %v261 = vunpack.c.l.b16 %v85
  %v262 = vunpack.c.l.b16 %v86
  %v263 = vunpack.c.l.b16 %v87
  %v264 = vunpack.c.l.b16 %v88
  %v265 = vunpack.c.l.b16 %v89
  %v266 = vunpack.c.l.b16 %v90
  %v267 = vunpack.c.l.b16 %v91
  %v268 = vunpack.c.l.b16 %v92
  %v269 = vpack.c.b16 %v198, %v197
  %v270 = vpack.c.b16 %v200, %v199
  %v271 = vpack.c.b16 %v202, %v201
  %v272 = vpack.c.b16 %v204, %v203
  %v273 = vpack.c.b16 %v206, %v205
  %v274 = vpack.c.b16 %v208, %v207
  %v275 = vpack.c.b16 %v210, %v209
  %v276 = vpack.c.b16 %v212, %v211
  %v277 = vpack.c.b16 %v214, %v213
  %v278 = vpack.c.b16 %v216, %v215
  %v279 = vpack.c.b16 %v218, %v217
  %v280 = vpack.c.b16 %v220, %v219
  %v281 = vpack.c.b16 %v222, %v221
  %v282 = vpack.c.b16 %v224, %v223
  %v283 = vpack.c.b16 %v226, %v225
  %v284 = vpack.c.b16 %v228, %v227
  %v285 = vpack.c.b16 %v230, %v229
  %v286 = vpack.c.b16 %v232, %v231
  %v287 = vpack.c.b16 %v234, %v233
  %v288 = vpack.c.b16 %v236, %v235
  %v289 = vpack.c.b16 %v238, %v237
  %v290 = vpack.c.b16 %v240, %v239
  %v291 = vpack.c.b16 %v242, %v241
  %v292 = vpack.c.b16 %v244, %v243
  %v293 = vpack.c.b16 %v246, %v245
  %v294 = vpack.c.b16 %v248, %v247
  %v295 = vpack.c.b16 %v250, %v249
  %v296 = vpack.c.b16 %v252, %v251
  %v297 = vpack.c.b16 %v254, %v253
  %v298 = vpack.c.b16 %v256, %v255
  %v299 = vpack.c.b16 %v258, %v257
  %v300 = vpack.c.b16 %v260, %v259
  %v301 = vpack.c.b16 %v262, %v261
  %v302 = vpack.c.b16 %v264, %v263
  %v303 = vpack.c.b16 %v266, %v265
  %v304 = vpack.c.b16 %v268, %v267
  %vm341 = vcmask 523264
  %v343 = vsel %vm341, %v120, 0
  %345 = vmatprep.subr.bf16.mxu0 0
  %346 = vmatpush1.bf16.msra.mxu0 %v269
  %347 = vmatprep.subr.bf16.mxu0 0
  %348 = vmatpush1.bf16.msra.mxu0 %v270
  %349 = vmatprep.subr.bf16.mxu0 0
  %350 = vmatpush1.bf16.msra.mxu0 %v271
  %351 = vmatprep.subr.bf16.mxu0 0
  %352 = vmatpush1.bf16.msra.mxu0 %v272
  %353 = vmatprep.subr.bf16.mxu0 0
  %354 = vmatpush1.bf16.msra.mxu0 %v273
  %355 = vmatprep.subr.bf16.mxu0 0
  %356 = vmatpush1.bf16.msra.mxu0 %v274
  %357 = vmatprep.subr.bf16.mxu0 0
  %358 = vmatpush1.bf16.msra.mxu0 %v275
  %359 = vmatprep.subr.bf16.mxu0 0
  %360 = vmatpush1.bf16.msra.mxu0 %v276
  %361 = vmatprep.subr.bf16.mxu0 0
  %362 = vmatpush1.bf16.msra.mxu0 %v277
  %363 = vmatprep.subr.bf16.mxu0 0
  %364 = vmatpush1.bf16.msra.mxu0 %v278
  %365 = vmatprep.subr.bf16.mxu0 0
  %366 = vmatpush1.bf16.msra.mxu0 %v279
  %367 = vmatprep.subr.bf16.mxu0 0
  %368 = vmatpush1.bf16.msra.mxu0 %v280
  %369 = vmatprep.subr.bf16.mxu0 0
  %370 = vmatpush1.bf16.msra.mxu0 %v281
  %371 = vmatprep.subr.bf16.mxu0 0
  %372 = vmatpush1.bf16.msra.mxu0 %v282
  %373 = vmatprep.subr.bf16.mxu0 0
  %374 = vmatpush1.bf16.msra.mxu0 %v283
  %375 = vmatprep.subr.bf16.mxu0 0
  %376 = vmatpush1.bf16.msra.mxu0 %v284
  %377 = vmatprep.mubr.bf16.mxu0 %v117
  %378 = vmatmul.mubr.bf16.gmra.mrb[0].mxu0 %v116
  %v379 = vpop.f32.mrb[0].mxu0
  %v380 = vadd.f32 %v98, %v379
  %v381 = vpop.f32.mrb[0].mxu0
  %v382 = vpop.f32.mrb[0].mxu0
  %v383 = vadd.f32 %v98, %v382
  %v384 = vpop.f32.mrb[0].mxu0
  %385 = vdwg.mxu0
  %386 = vmatprep.subr.bf16.mxu0 0
  %387 = vmatpush1.bf16.msra.mxu0 %v285
  %388 = vmatprep.subr.bf16.mxu0 0
  %389 = vmatpush1.bf16.msra.mxu0 %v286
  %390 = vmatprep.subr.bf16.mxu0 0
  %391 = vmatpush1.bf16.msra.mxu0 %v287
  %392 = vmatprep.subr.bf16.mxu0 0
  %393 = vmatpush1.bf16.msra.mxu0 %v288
  %394 = vmatprep.subr.bf16.mxu0 0
  %395 = vmatpush1.bf16.msra.mxu0 %v289
  %396 = vmatprep.subr.bf16.mxu0 0
  %397 = vmatpush1.bf16.msra.mxu0 %v290
  %398 = vmatprep.subr.bf16.mxu0 0
  %399 = vmatpush1.bf16.msra.mxu0 %v291
  %400 = vmatprep.subr.bf16.mxu0 0
  %401 = vmatpush1.bf16.msra.mxu0 %v292
  %402 = vmatprep.subr.bf16.mxu0 0
  %403 = vmatpush1.bf16.msra.mxu0 %v293
  %404 = vmatprep.subr.bf16.mxu0 0
  %405 = vmatpush1.bf16.msra.mxu0 %v294
  %406 = vmatprep.subr.bf16.mxu0 0
  %407 = vmatpush1.bf16.msra.mxu0 %v295
  %408 = vmatprep.subr.bf16.mxu0 0
  %409 = vmatpush1.bf16.msra.mxu0 %v296
  %410 = vmatprep.subr.bf16.mxu0 0
  %411 = vmatpush1.bf16.msra.mxu0 %v297
  %412 = vmatprep.subr.bf16.mxu0 0
  %413 = vmatpush1.bf16.msra.mxu0 %v298
  %414 = vmatprep.subr.bf16.mxu0 0
  %415 = vmatpush1.bf16.msra.mxu0 %v299
  %416 = vmatprep.subr.bf16.mxu0 0
  %417 = vmatpush1.bf16.msra.mxu0 %v300
  %418 = vmatprep.mubr.bf16.mxu0 %v119
  %419 = vmatmul.mubr.bf16.gmra.mrb[0].mxu0 %v118
  %v420 = vpop.f32.mrb[0].mxu0
  %v421 = vadd.f32 %v380, %v420
  %v422 = vpop.f32.mrb[0].mxu0
  %v423 = vpop.f32.mrb[0].mxu0
  %v424 = vadd.f32 %v383, %v423
  %v425 = vpop.f32.mrb[0].mxu0
  %426 = vdwg.mxu0
  %427 = vmatprep.subr.bf16.mxu0 0
  %428 = vmatpush1.bf16.msra.mxu0 %v301
  %429 = vmatprep.subr.bf16.mxu0 0
  %430 = vmatpush1.bf16.msra.mxu0 %v302
  %431 = vmatprep.subr.bf16.mxu0 0
  %432 = vmatpush1.bf16.msra.mxu0 %v303
  %433 = vmatprep.subr.bf16.mxu0 0
  %434 = vmatpush1.bf16.msra.mxu0 %v304
  %435 = vmatprep.subr.bf16.mxu0 0
  %436 = vmatpush1.bf16.msra.mxu0 0
  %437 = vmatprep.subr.bf16.mxu0 0
  %438 = vmatpush1.bf16.msra.mxu0 0
  %439 = vmatprep.subr.bf16.mxu0 0
  %440 = vmatpush1.bf16.msra.mxu0 0
  %441 = vmatprep.subr.bf16.mxu0 0
  %442 = vmatpush1.bf16.msra.mxu0 0
  %443 = vmatprep.subr.bf16.mxu0 0
  %444 = vmatpush1.bf16.msra.mxu0 0
  %445 = vmatprep.subr.bf16.mxu0 0
  %446 = vmatpush1.bf16.msra.mxu0 0
  %447 = vmatprep.subr.bf16.mxu0 0
  %448 = vmatpush1.bf16.msra.mxu0 0
  %449 = vmatprep.subr.bf16.mxu0 0
  %450 = vmatpush1.bf16.msra.mxu0 0
  %451 = vmatprep.subr.bf16.mxu0 0
  %452 = vmatpush1.bf16.msra.mxu0 0
  %453 = vmatprep.subr.bf16.mxu0 0
  %454 = vmatpush1.bf16.msra.mxu0 0
  %455 = vmatprep.subr.bf16.mxu0 0
  %456 = vmatpush1.bf16.msra.mxu0 0
  %457 = vmatprep.subr.bf16.mxu0 0
  %458 = vmatpush1.bf16.msra.mxu0 0
  %459 = vmatprep.mubr.bf16.mxu0 0
  %460 = vmatmul.mubr.bf16.gmra.mrb[0].mxu0 %v343
  %v461 = vpop.f32.mrb[0].mxu0
  %v462 = vadd.f32 %v421, %v461
  %v463 = vpop.f32.mrb[0].mxu0
  %v464 = vpop.f32.mrb[0].mxu0
  %v465 = vadd.f32 %v424, %v464
  %v466 = vpop.f32.mrb[0].mxu0
  %467 = vdwg.mxu0
  %v468 = vmax.f32 %v462, 0.0
  %v469 = vmax.f32 %v465, 0.0
  %v470 = vpack.c.bf16 %v469, %v468
  %v472 = vunpack.c.l.b16 %v470
  %v473 = vunpack.c.h.b16 %v470
  %v474 = vpack.c.b16 %v472, %v472
  %v475 = vpack.c.b16 %v473, %v473
  %478 = vst [vmem:[%s3] sm:$0xf] %v474
  %479 = vst [vmem:[%s3 + $0x4] sm:$0xf] %v475
  // Predicated region
  $region14: #{encoder_forward.32} parent=0 // pred_check
    _
  $region15: #{encoder_forward.32} parent=0 // pred_check_branch
    %481 = sbr.rel (0) target = $region17
  $region16: #{encoder_forward.32} parent=0 // pred_region
    _
  $region17: #{encoder_forward.32} parent=0 // pred_fallthru
    _
  // Predicated region
  $region18: #{encoder_forward.32} parent=0 // pred_check
    _
  $region19: #{encoder_forward.32} parent=0 // pred_check_branch
    %483 = sbr.rel (0) target = $region21
  $region20: #{encoder_forward.32} parent=0 // pred_region
    _
  $region21: #{encoder_forward.32} parent=0 // pred_fallthru
    _

// kernel: encoder_forward.34
$region0: #{encoder_forward.34}
  #allocation0 [shape = 'u32[]', space=smem, size = 0x4, offset = 0x4, fixed_abs, tag = 'smem constant byte address 0x4 - core index']
  #allocation1 [shape = 'u32[144,128]{1,0:T(1,128)}', space=vmem, size = 0x12000, scoped, tag = 'internal scratch']
  %s0 = inlined_call_operand.vmem [shape: bf16[16,64], index: 0, kind: input, shape index: {}]
  %s1 = inlined_call_operand.vmem [shape: bf16[64,256], index: 1, kind: input, shape index: {}]
  %s2 = inlined_call_operand.vmem [shape: f32[1,256], index: 2, kind: input, shape index: {}]
  %s3 = inlined_call_operand.vmem [shape: bf16[16,256], index: 3, kind: input, shape index: {}]
  %s4 = inlined_call_operand.vmem [shape: bf16[16,256], index: 4, kind: output, shape index: {}]
  %s5 = sld [smem:[#allocation0]]
  $region26: #{encoder_forward.34} parent=0
    _
  %s7 = ssub.s32 1, %s5
  %s8 = scalar_select 0, %s7, %s5
  // Predicated region
  $region2: #{encoder_forward.34} parent=0 // pred_check
    _
  $region3: #{encoder_forward.34} parent=0 // pred_check_branch
    %10 = sbr.rel (0) target = $region5
  $region4: #{encoder_forward.34} parent=0 // pred_region
    _
  $region5: #{encoder_forward.34} parent=0 // pred_fallthru
    _
  // Predicated region
  $region6: #{encoder_forward.34} parent=0 // pred_check
    _
  $region7: #{encoder_forward.34} parent=0 // pred_check_branch
    %12 = sbr.rel (0) target = $region9
  $region8: #{encoder_forward.34} parent=0 // pred_region
    _
  $region9: #{encoder_forward.34} parent=0 // pred_fallthru
    _
  // Predicated region
  $region10: #{encoder_forward.34} parent=0 // pred_check
    _
  $region11: #{encoder_forward.34} parent=0 // pred_check_branch
    %14 = sbr.rel (0) target = $region13
  $region12: #{encoder_forward.34} parent=0 // pred_region
    _
  $region13: #{encoder_forward.34} parent=0 // pred_fallthru
    _
  // Predicated region
  $region14: #{encoder_forward.34} parent=0 // pred_check
    _
  $region15: #{encoder_forward.34} parent=0 // pred_check_branch
    %16 = sbr.rel (0) target = $region17
  $region16: #{encoder_forward.34} parent=0 // pred_region
    _
  $region17: #{encoder_forward.34} parent=0 // pred_fallthru
    _
  %v18 = vld [vmem:[%s0] sm:$0xf]
  %v19 = vld [vmem:[%s0 + $0x4] sm:$0xf]
  %v20 = vld [vmem:[%s1] sm:$0xff]
  %v21 = vld [vmem:[%s1 + $0x8] sm:$0xff]
  %v22 = vld [vmem:[%s1 + $0x10] sm:$0xff]
  %v23 = vld [vmem:[%s1 + $0x18] sm:$0xff]
  %v24 = vld [vmem:[%s1 + $0x20] sm:$0xff]
  %v25 = vld [vmem:[%s1 + $0x28] sm:$0xff]
  %v26 = vld [vmem:[%s1 + $0x30] sm:$0xff]
  %v27 = vld [vmem:[%s1 + $0x38] sm:$0xff]
  %v28 = vld [vmem:[%s2] sm:$0x3]
  %v30 = vlaneseq
  %v31 = vshrl.u32 %v30, 7
  %v32 = vsub.s32 0, %v31
  %v33 = vrot.slane %v28, %v32
  %v34 = vlaneseq
  %v35 = vshrl.u32 %v34, 7
  %v36 = vsub.s32 1, %v35
  %v37 = vrot.slane %v28, %v36
  %v42 = vunpack.c.l.b16 %v18
  %v43 = vunpack.c.l.b16 %v19
  %v44 = vpack.c.b16 %v43, %v42
  %v53 = vunpack.c.l.b16 %v20
  %v54 = vunpack.c.h.b16 %v20
  %v55 = vunpack.c.l.b16 %v21
  %v56 = vunpack.c.h.b16 %v21
  %v57 = vunpack.c.l.b16 %v22
  %v58 = vunpack.c.h.b16 %v22
  %v59 = vunpack.c.l.b16 %v23
  %v60 = vunpack.c.h.b16 %v23
  %v61 = vunpack.c.l.b16 %v24
  %v62 = vunpack.c.h.b16 %v24
  %v63 = vunpack.c.l.b16 %v25
  %v64 = vunpack.c.h.b16 %v25
  %v65 = vunpack.c.l.b16 %v26
  %v66 = vunpack.c.h.b16 %v26
  %v67 = vunpack.c.l.b16 %v27
  %v68 = vunpack.c.h.b16 %v27
  %v69 = vpack.c.b16 %v55, %v53
  %v70 = vpack.c.b16 %v56, %v54
  %v71 = vpack.c.b16 %v59, %v57
  %v72 = vpack.c.b16 %v60, %v58
  %v73 = vpack.c.b16 %v63, %v61
  %v74 = vpack.c.b16 %v64, %v62
  %v75 = vpack.c.b16 %v67, %v65
  %v76 = vpack.c.b16 %v68, %v66
  %vm85 = vcmask 523264
  %v87 = vsel %vm85, %v44, 0
  %89 = vmatprep.subr.bf16.mxu0 %v70
  %90 = vmatpush1.bf16.msra.mxu0 %v69
  %91 = vmatprep.subr.bf16.mxu0 %v72
  %92 = vmatpush1.bf16.msra.mxu0 %v71
  %93 = vmatprep.subr.bf16.mxu0 %v74
  %94 = vmatpush1.bf16.msra.mxu0 %v73
  %95 = vmatprep.subr.bf16.mxu0 %v76
  %96 = vmatpush1.bf16.msra.mxu0 %v75
  %97 = vmatprep.subr.bf16.mxu0 0
  %98 = vmatpush1.bf16.msra.mxu0 0
  %99 = vmatprep.subr.bf16.mxu0 0
  %100 = vmatpush1.bf16.msra.mxu0 0
  %101 = vmatprep.subr.bf16.mxu0 0
  %102 = vmatpush1.bf16.msra.mxu0 0
  %103 = vmatprep.subr.bf16.mxu0 0
  %104 = vmatpush1.bf16.msra.mxu0 0
  %105 = vmatprep.subr.bf16.mxu0 0
  %106 = vmatpush1.bf16.msra.mxu0 0
  %107 = vmatprep.subr.bf16.mxu0 0
  %108 = vmatpush1.bf16.msra.mxu0 0
  %109 = vmatprep.subr.bf16.mxu0 0
  %110 = vmatpush1.bf16.msra.mxu0 0
  %111 = vmatprep.subr.bf16.mxu0 0
  %112 = vmatpush1.bf16.msra.mxu0 0
  %113 = vmatprep.subr.bf16.mxu0 0
  %114 = vmatpush1.bf16.msra.mxu0 0
  %115 = vmatprep.subr.bf16.mxu0 0
  %116 = vmatpush1.bf16.msra.mxu0 0
  %117 = vmatprep.subr.bf16.mxu0 0
  %118 = vmatpush1.bf16.msra.mxu0 0
  %119 = vmatprep.subr.bf16.mxu0 0
  %120 = vmatpush1.bf16.msra.mxu0 0
  %121 = vmatprep.mubr.bf16.mxu0 0
  %122 = vmatmul.mubr.bf16.gmra.mrb[0].mxu0 %v87
  %v123 = vpop.f32.mrb[0].mxu0
  %v124 = vadd.f32 %v33, %v123
  %v125 = vpop.f32.mrb[0].mxu0
  %v126 = vadd.f32 %v37, %v125
  %v127 = vpop.f32.mrb[0].mxu0
  %v128 = vadd.f32 %v33, %v127
  %v129 = vpop.f32.mrb[0].mxu0
  %v130 = vadd.f32 %v37, %v129
  %131 = vdwg.mxu0
  %v132 = vld [vmem:[%s3] sm:$0xff]
  %v133 = vld [vmem:[%s3 + $0x8] sm:$0xff]
  %v134 = vunpack.c.l.bf16 %v132
  %v135 = vunpack.c.h.bf16 %v132
  %v136 = vunpack.c.l.bf16 %v133
  %v137 = vunpack.c.h.bf16 %v133
  %v138 = vadd.f32 %v124, %v134
  %v139 = vadd.f32 %v126, %v135
  %v140 = vadd.f32 %v128, %v136
  %v141 = vadd.f32 %v130, %v137
  %v142 = vmax.f32 %v138, 0.0
  %v143 = vmax.f32 %v139, 0.0
  %v144 = vmax.f32 %v140, 0.0
  %v145 = vmax.f32 %v141, 0.0
  %v146 = vpack.c.bf16 %v144, %v142
  %v147 = vpack.c.bf16 %v145, %v143
  %v150 = vunpack.c.l.b16 %v146
  %v151 = vunpack.c.l.b16 %v147
  %v152 = vunpack.c.h.b16 %v146
  %v153 = vunpack.c.h.b16 %v147
  %v154 = vpack.c.b16 %v151, %v150
  %v155 = vpack.c.b16 %v153, %v152
  %158 = vst [vmem:[%s4] sm:$0xff] %v154
  %159 = vst [vmem:[%s4 + $0x8] sm:$0xff] %v155
  // Predicated region
  $region18: #{encoder_forward.34} parent=0 // pred_check
    _
  $region19: #{encoder_forward.34} parent=0 // pred_check_branch
    %161 = sbr.rel (0) target = $region21
  $region20: #{encoder_forward.34} parent=0 // pred_region
    _
  $region21: #{encoder_forward.34} parent=0 // pred_fallthru
    _
  // Predicated region
  $region22: #{encoder_forward.34} parent=0 // pred_check
    _
  $region23: #{encoder_forward.34} parent=0 // pred_check_branch
    %163 = sbr.rel (0) target = $region25
  $region24: #{encoder_forward.34} parent=0 // pred_region
    _
  $region25: #{encoder_forward.34} parent=0 // pred_fallthru
    _

// kernel: encoder_forward.35
$region0: #{encoder_forward.35}
  #allocation0 [shape = 'u32[]', space=smem, size = 0x4, offset = 0x4, fixed_abs, tag = 'smem constant byte address 0x4 - core index']
  #allocation1 [shape = 'u32[144,128]{1,0:T(1,128)}', space=vmem, size = 0x12000, scoped, tag = 'internal scratch']
  %s0 = inlined_call_operand.vmem [shape: f32[16,4], index: 0, kind: input, shape index: {}]
  %s1 = inlined_call_operand.vmem [shape: f32[4,512], index: 1, kind: input, shape index: {}]
  %s2 = inlined_call_operand.vmem [shape: f32[16,512], index: 2, kind: output, shape index: {}]
  %s3 = sld [smem:[#allocation0]]
  $region18: #{encoder_forward.35} parent=0
    _
  %s5 = ssub.s32 1, %s3
  %s6 = scalar_select 0, %s5, %s3
  // Predicated region
  $region2: #{encoder_forward.35} parent=0 // pred_check
    _
  $region3: #{encoder_forward.35} parent=0 // pred_check_branch
    %8 = sbr.rel (0) target = $region5
  $region4: #{encoder_forward.35} parent=0 // pred_region
    _
  $region5: #{encoder_forward.35} parent=0 // pred_fallthru
    _
  // Predicated region
  $region6: #{encoder_forward.35} parent=0 // pred_check
    _
  $region7: #{encoder_forward.35} parent=0 // pred_check_branch
    %10 = sbr.rel (0) target = $region9
  $region8: #{encoder_forward.35} parent=0 // pred_region
    _
  $region9: #{encoder_forward.35} parent=0 // pred_fallthru
    _
  %v11 = vld [vmem:[%s0] sm:$0xff]
  %v12 = vld [vmem:[%s0 + $0x8] sm:$0xff]
  %v13 = vld [vmem:[%s1] sm:$0xff]
  %v14 = vld [vmem:[%s1 + $0x8] sm:$0xff]
  %v17 = vcombine.high %v13, %v13
  %v18 = vcombine.high %v14, %v14
  %vm19 = vcmask 31744
  %v21 = vsel %vm19, %v11, 0
  %v24 = vsel %vm19, %v12, 0
  %vm26 = vcmask 1043456
  %v27 = vsel %vm26, %v13, 0
  %v29 = vsel %vm26, %v17, 0
  %v31 = vsel %vm26, %v14, 0
  %v33 = vsel %vm26, %v18, 0
  %35 = vmatprep.subr.mxu0 %v29
  %36 = vmatpush1.msra.mxu0 %v27
  %37 = vmatprep.subr.mxu0 0.0
  %38 = vmatpush1.msra.mxu0 0.0
  %39 = vmatprep.subr.mxu0 0.0
  %40 = vmatpush1.msra.mxu0 0.0
  %41 = vmatprep.subr.mxu0 0.0
  %42 = vmatpush1.msra.mxu0 0.0
  %43 = vmatprep.subr.mxu0 0.0
  %44 = vmatpush1.msra.mxu0 0.0
  %45 = vmatprep.subr.mxu0 0.0
  %46 = vmatpush1.msra.mxu0 0.0
  %47 = vmatprep.subr.mxu0 0.0
  %48 = vmatpush1.msra.mxu0 0.0
  %49 = vmatprep.subr.mxu0 0.0
  %50 = vmatpush1.msra.mxu0 0.0
  %51 = vmatprep.subr.mxu0 0.0
  %52 = vmatpush1.msra.mxu0 0.0
  %53 = vmatprep.subr.mxu0 0.0
  %54 = vmatpush1.msra.mxu0 0.0
  %55 = vmatprep.subr.mxu0 0.0
  %56 = vmatpush1.msra.mxu0 0.0
  %57 = vmatprep.subr.mxu0 0.0
  %58 = vmatpush1.msra.mxu0 0.0
  %59 = vmatprep.subr.mxu0 0.0
  %60 = vmatpush1.msra.mxu0 0.0
  %61 = vmatprep.subr.mxu0 0.0
  %62 = vmatpush1.msra.mxu0 0.0
  %63 = vmatprep.subr.mxu0 0.0
  %64 = vmatpush1.msra.mxu0 0.0
  %65 = vmatprep.subr.mxu0 0.0
  %66 = vmatpush1.msra.mxu0 0.0
  %67 = vmatprep.subr.mxu0 0.0
  %68 = vmatpush1.msra.mxu0 0.0
  %69 = vmatprep.subr.mxu0 0.0
  %70 = vmatpush1.msra.mxu0 0.0
  %71 = vmatprep.subr.mxu0 0.0
  %72 = vmatpush1.msra.mxu0 0.0
  %73 = vmatprep.subr.mxu0 0.0
  %74 = vmatpush1.msra.mxu0 0.0
  %75 = vmatprep.subr.mxu0 0.0
  %76 = vmatpush1.msra.mxu0 0.0
  %77 = vmatprep.subr.mxu0 0.0
  %78 = vmatpush1.msra.mxu0 0.0
  %79 = vmatprep.subr.mxu0 0.0
  %80 = vmatpush1.msra.mxu0 0.0
  %81 = vmatprep.subr.mxu0 0.0
  %82 = vmatpush1.msra.mxu0 0.0
  %83 = vmatprep.subr.mxu0 0.0
  %84 = vmatpush1.msra.mxu0 0.0
  %85 = vmatprep.subr.mxu0 0.0
  %86 = vmatpush1.msra.mxu0 0.0
  %87 = vmatprep.subr.mxu0 0.0
  %88 = vmatpush1.msra.mxu0 0.0
  %89 = vmatprep.subr.mxu0 0.0
  %90 = vmatpush1.msra.mxu0 0.0
  %91 = vmatprep.subr.mxu0 0.0
  %92 = vmatpush1.msra.mxu0 0.0
  %93 = vmatprep.subr.mxu0 0.0
  %94 = vmatpush1.msra.mxu0 0.0
  %95 = vmatprep.subr.mxu0 0.0
  %96 = vmatpush1.msra.mxu0 0.0
  %97 = vmatprep.subr.mxu0 0.0
  %98 = vmatpush1.msra.mxu0 0.0
  %99 = vmatprep.mubr.f32.mxu0 0.0
  %100 = vmatmul.mubr.f32.gmra.mrb[0].mxu0 %v21
  %v101 = vpop.f32.mrb[0].mxu0
  %v102 = vadd.f32 0.0, %v101
  %v103 = vpop.f32.mrb[0].mxu0
  %v104 = vadd.f32 0.0, %v103
  %105 = vmatprep.mubr.f32.mxu0 0.0
  %106 = vmatmul.mubr.f32.gmra.mrb[0].mxu0 %v24
  %v107 = vpop.f32.mrb[0].mxu0
  %v108 = vadd.f32 0.0, %v107
  %v109 = vpop.f32.mrb[0].mxu0
  %v110 = vadd.f32 0.0, %v109
  %111 = vdwg.mxu0
  %112 = vmatprep.subr.mxu0 %v33
  %113 = vmatpush1.msra.mxu0 %v31
  %114 = vmatprep.subr.mxu0 0.0
  %115 = vmatpush1.msra.mxu0 0.0
  %116 = vmatprep.subr.mxu0 0.0
  %117 = vmatpush1.msra.mxu0 0.0
  %118 = vmatprep.subr.mxu0 0.0
  %119 = vmatpush1.msra.mxu0 0.0
  %120 = vmatprep.subr.mxu0 0.0
  %121 = vmatpush1.msra.mxu0 0.0
  %122 = vmatprep.subr.mxu0 0.0
  %123 = vmatpush1.msra.mxu0 0.0
  %124 = vmatprep.subr.mxu0 0.0
  %125 = vmatpush1.msra.mxu0 0.0
  %126 = vmatprep.subr.mxu0 0.0
  %127 = vmatpush1.msra.mxu0 0.0
  %128 = vmatprep.subr.mxu0 0.0
  %129 = vmatpush1.msra.mxu0 0.0
  %130 = vmatprep.subr.mxu0 0.0
  %131 = vmatpush1.msra.mxu0 0.0
  %132 = vmatprep.subr.mxu0 0.0
  %133 = vmatpush1.msra.mxu0 0.0
  %134 = vmatprep.subr.mxu0 0.0
  %135 = vmatpush1.msra.mxu0 0.0
  %136 = vmatprep.subr.mxu0 0.0
  %137 = vmatpush1.msra.mxu0 0.0
  %138 = vmatprep.subr.mxu0 0.0
  %139 = vmatpush1.msra.mxu0 0.0
  %140 = vmatprep.subr.mxu0 0.0
  %141 = vmatpush1.msra.mxu0 0.0
  %142 = vmatprep.subr.mxu0 0.0
  %143 = vmatpush1.msra.mxu0 0.0
  %144 = vmatprep.subr.mxu0 0.0
  %145 = vmatpush1.msra.mxu0 0.0
  %146 = vmatprep.subr.mxu0 0.0
  %147 = vmatpush1.msra.mxu0 0.0
  %148 = vmatprep.subr.mxu0 0.0
  %149 = vmatpush1.msra.mxu0 0.0
  %150 = vmatprep.subr.mxu0 0.0
  %151 = vmatpush1.msra.mxu0 0.0
  %152 = vmatprep.subr.mxu0 0.0
  %153 = vmatpush1.msra.mxu0 0.0
  %154 = vmatprep.subr.mxu0 0.0
  %155 = vmatpush1.msra.mxu0 0.0
  %156 = vmatprep.subr.mxu0 0.0
  %157 = vmatpush1.msra.mxu0 0.0
  %158 = vmatprep.subr.mxu0 0.0
  %159 = vmatpush1.msra.mxu0 0.0
  %160 = vmatprep.subr.mxu0 0.0
  %161 = vmatpush1.msra.mxu0 0.0
  %162 = vmatprep.subr.mxu0 0.0
  %163 = vmatpush1.msra.mxu0 0.0
  %164 = vmatprep.subr.mxu0 0.0
  %165 = vmatpush1.msra.mxu0 0.0
  %166 = vmatprep.subr.mxu0 0.0
  %167 = vmatpush1.msra.mxu0 0.0
  %168 = vmatprep.subr.mxu0 0.0
  %169 = vmatpush1.msra.mxu0 0.0
  %170 = vmatprep.subr.mxu0 0.0
  %171 = vmatpush1.msra.mxu0 0.0
  %172 = vmatprep.subr.mxu0 0.0
  %173 = vmatpush1.msra.mxu0 0.0
  %174 = vmatprep.subr.mxu0 0.0
  %175 = vmatpush1.msra.mxu0 0.0
  %176 = vmatprep.mubr.f32.mxu0 0.0
  %177 = vmatmul.mubr.f32.gmra.mrb[0].mxu0 %v21
  %v178 = vpop.f32.mrb[0].mxu0
  %v179 = vadd.f32 0.0, %v178
  %v180 = vpop.f32.mrb[0].mxu0
  %v181 = vadd.f32 0.0, %v180
  %182 = vmatprep.mubr.f32.mxu0 0.0
  %183 = vmatmul.mubr.f32.gmra.mrb[0].mxu0 %v24
  %v184 = vpop.f32.mrb[0].mxu0
  %v185 = vadd.f32 0.0, %v184
  %v186 = vpop.f32.mrb[0].mxu0
  %v187 = vadd.f32 0.0, %v186
  %188 = vdwg.mxu0
  %189 = vst [vmem:[%s2] sm:$0xff] %v102
  %190 = vst [vmem:[%s2 + $0x8] sm:$0xff] %v104
  %191 = vst [vmem:[%s2 + $0x10] sm:$0xff] %v179
  %192 = vst [vmem:[%s2 + $0x18] sm:$0xff] %v181
  %193 = vst [vmem:[%s2 + $0x20] sm:$0xff] %v108
  %194 = vst [vmem:[%s2 + $0x28] sm:$0xff] %v110
  %195 = vst [vmem:[%s2 + $0x30] sm:$0xff] %v185
  %196 = vst [vmem:[%s2 + $0x38] sm:$0xff] %v187
  // Predicated region
  $region10: #{encoder_forward.35} parent=0 // pred_check
    _
  $region11: #{encoder_forward.35} parent=0 // pred_check_branch
    %198 = sbr.rel (0) target = $region13
  $region12: #{encoder_forward.35} parent=0 // pred_region
    _
  $region13: #{encoder_forward.35} parent=0 // pred_fallthru
    _
  // Predicated region
  $region14: #{encoder_forward.35} parent=0 // pred_check
    _
  $region15: #{encoder_forward.35} parent=0 // pred_check_branch
    %200 = sbr.rel (0) target = $region17
  $region16: #{encoder_forward.35} parent=0 // pred_region
    _
  $region17: #{encoder_forward.35} parent=0 // pred_fallthru
    _

</llo_original>
